<compile_context>
chip_gen: v6e
topology: v6e:2x2x1
jax: 0.10.0
libtpu: 0.0.40
codegen_flags: <defaults>
</compile_context>

<pallas_src>
import jax
import jax.numpy as jnp
from jax.experimental import pallas as pl
from jax.experimental.pallas import tpu as pltpu

IN_FEATURES = 784
HIDDEN = 1200
NUM_CLASSES = 10

HIDDEN_PAD = 1280   # 10 * 128 — lane-aligned hidden width
OUT_PAD = 128       # lane-dense logits block; real 10 logits sliced out in wrapper


# --------------------------------------------------------------------------- #
# Kernel
# --------------------------------------------------------------------------- #
def teacher_mlp_kernel(x_ref, w1_ref, b1_ref, w2_ref, b2_ref, w3_ref, b3_ref, o_ref):
    # fc1 + (dropout: identity in eval) + relu   (bf16 operands, f32 accumulation)
    h1 = jnp.dot(x_ref[...], w1_ref[...], preferred_element_type=jnp.float32)
    h1 = jnp.maximum(h1 + b1_ref[...], 0.0).astype(jnp.bfloat16)
    # fc2 + (dropout: identity in eval) + relu
    h2 = jnp.dot(h1, w2_ref[...], preferred_element_type=jnp.float32)
    h2 = jnp.maximum(h2 + b2_ref[...], 0.0).astype(jnp.bfloat16)
    # fc3 (logits, no activation)
    out = jnp.dot(h2, w3_ref[...], preferred_element_type=jnp.float32)
    o_ref[...] = (out + b3_ref[...]).astype(o_ref.dtype)


# --------------------------------------------------------------------------- #
# Helpers
# --------------------------------------------------------------------------- #
def _round_up(n, m):
    return ((n + m - 1) // m) * m


def _pad2d(a, rows, cols):
    return jnp.pad(a, ((0, rows - a.shape[0]), (0, cols - a.shape[1])))


def _mxu_is_256_wide():
    """v6e / v7x have a 2x256 MXU; v5e (and older) are 128-wide."""
    try:
        kind = jax.devices()[0].device_kind.lower()
    except Exception:
        return False
    return ("v6" in kind) or ("v7" in kind)


def _choose_tile_b(B):
    """Batch tile: 256 for large batches on 256-wide-MXU chips, 128 otherwise,
    small 8/16-aligned tiles for tiny batches (>=2 tiles when possible so v7x's
    two TensorCores are both used)."""
    if B >= 512 and _mxu_is_256_wide():
        return 256
    if B >= 128:
        return 128
    if B <= 16:
        return max(8, _round_up(B, 8))            # single exact tile
    return min(128, _round_up(-(-B // 2), 16))    # >= 2 tiles, 16-row aligned


def _const_spec(shape):
    # Constant across grid steps -> single-buffered (no wasted second VMEM buffer).
    return pl.BlockSpec(shape, lambda i: (0, 0), pipeline_mode=pl.Buffered(1))


# --------------------------------------------------------------------------- #
# Parameter preparation (done ONCE, outside the per-call path)
# --------------------------------------------------------------------------- #
def prepare_params(params):
    """Pad matmul output dims to 128-multiples and cast weights to bf16, once.

    Zero padding is numerically exact: padded weight rows/cols and biases are
    zero, so padded lanes stay zero through ReLU and contribute nothing.
    Weights are (in_features, out_features): y = x @ W + b.
    """
    w1, b1, w2, b2, w3, b3 = params
    w1p = _pad2d(w1.astype(jnp.bfloat16), IN_FEATURES, HIDDEN_PAD)  # K kept at 784
    w2p = _pad2d(w2.astype(jnp.bfloat16), HIDDEN_PAD, HIDDEN_PAD)
    w3p = _pad2d(w3.astype(jnp.bfloat16), HIDDEN_PAD, OUT_PAD)
    b1p = _pad2d(b1.astype(jnp.float32), 1, HIDDEN_PAD)
    b2p = _pad2d(b2.astype(jnp.float32), 1, HIDDEN_PAD)
    b3p = _pad2d(b3.astype(jnp.float32), 1, OUT_PAD)
    return tuple(jax.block_until_ready(p) for p in (w1p, b1p, w2p, b2p, w3p, b3p))


# --------------------------------------------------------------------------- #
# Forward
# --------------------------------------------------------------------------- #
def teacher_forward(x, padded_params, tile_b=None):
    """x: any shape flattening to (B, 784) (e.g. NCHW (B, 1, 28, 28)).
    padded_params: output of prepare_params()."""
    w1p, b1p, w2p, b2p, w3p, b3p = padded_params

    x2d = x.reshape(-1, IN_FEATURES).astype(jnp.bfloat16)
    B = x2d.shape[0]
    if tile_b is None:
        tile_b = _choose_tile_b(B)
    n_tiles = pl.cdiv(B, tile_b)   # ragged last tile handled by Pallas (rows independent)

    out = pl.pallas_call(
        teacher_mlp_kernel,
        out_shape=jax.ShapeDtypeStruct((B, OUT_PAD), jnp.float32),
        grid_spec=pltpu.PrefetchScalarGridSpec(
            num_scalar_prefetch=0,
            grid=(n_tiles,),
            in_specs=[
                pl.BlockSpec((tile_b, IN_FEATURES), lambda i: (i, 0)),  # x tile (K=784 full dim)
                _const_spec((IN_FEATURES, HIDDEN_PAD)),                 # W1
                _const_spec((1, HIDDEN_PAD)),                           # b1
                _const_spec((HIDDEN_PAD, HIDDEN_PAD)),                  # W2
                _const_spec((1, HIDDEN_PAD)),                           # b2
                _const_spec((HIDDEN_PAD, OUT_PAD)),                     # W3 (lane-padded)
                _const_spec((1, OUT_PAD)),                              # b3 (lane-padded)
            ],
            out_specs=pl.BlockSpec((tile_b, OUT_PAD), lambda i: (i, 0)),
        ),
        compiler_params=pltpu.CompilerParams(
            dimension_semantics=("parallel",),
            vmem_limit_bytes=32 << 20,  # headroom on v7x's 64 MiB physical VMEM
        ),
    )(x2d, w1p, b1p, w2p, b2p, w3p, b3p)

    # Strip lane padding of the logits.
    return out[:, :NUM_CLASSES]


# --------------------------------------------------------------------------- #
# Init + reference
# --------------------------------------------------------------------------- #
def init_params(key):
    """Deterministic init matching nn.Linear's default U(-1/sqrt(fan_in), 1/sqrt(fan_in)).
    Weights stored as (in_features, out_features): y = x @ W + b."""
    def linear(k, fan_in, fan_out):
        kw, kb = jax.random.split(k)
        bound = 1.0 / jnp.sqrt(fan_in)
        w = jax.random.uniform(kw, (fan_in, fan_out), jnp.float32, -bound, bound)
        b = jax.random.uniform(kb, (1, fan_out), jnp.float32, -bound, bound)
        return w, b

    k1, k2, k3 = jax.random.split(key, 3)
    w1, b1 = linear(k1, IN_FEATURES, HIDDEN)
    w2, b2 = linear(k2, HIDDEN, HIDDEN)
    w3, b3 = linear(k3, HIDDEN, NUM_CLASSES)
    return (w1, b1, w2, b2, w3, b3)


def reference_forward(x, params):
    """Pure-JAX reference with the same bf16 operand / f32 accumulation scheme."""
    w1, b1, w2, b2, w3, b3 = params
    x2d = x.reshape(-1, IN_FEATURES).astype(jnp.bfloat16)
    w1b, w2b, w3b = (w.astype(jnp.bfloat16) for w in (w1, w2, w3))
    h1 = jnp.maximum(
        jnp.dot(x2d, w1b, preferred_element_type=jnp.float32) + b1, 0.0
    ).astype(jnp.bfloat16)
    h2 = jnp.maximum(
        jnp.dot(h1, w2b, preferred_element_type=jnp.float32) + b2, 0.0
    ).astype(jnp.bfloat16)
    return jnp.dot(h2, w3b, preferred_element_type=jnp.float32) + b3


# --------------------------------------------------------------------------- #
# Self-check
# --------------------------------------------------------------------------- #
if __name__ == "__main__":
    key = jax.random.PRNGKey(0)
    kp, kx1, kx2 = jax.random.split(key, 3)
    params = init_params(kp)
    padded_params = prepare_params(params)   # pad + cast ONCE (not per call)

    # Test 1: MNIST-like NCHW input, tiny batch (single exact tile).
    x1 = jax.random.normal(kx1, (8, 1, 28, 28), dtype=jnp.float32)
    out1 = jax.block_until_ready(teacher_forward(x1, padded_params))
    ref1 = reference_forward(x1, params)
    assert out1.shape == (8, NUM_CLASSES)
    assert jnp.allclose(out1, ref1, atol=1e-2, rtol=1e-2), "mismatch vs reference (B=8)"

    # Test 2: multi-tile grid with a ragged last tile (B=40, tile=32 -> grid=(2,)).
    x2 = jax.random.normal(kx2, (40, 1, 28, 28), dtype=jnp.float32)
    out2 = jax.block_until_ready(teacher_forward(x2, padded_params))
    ref2 = reference_forward(x2, params)
    assert out2.shape == (40, NUM_CLASSES)
    assert jnp.allclose(out2, ref2, atol=1e-2, rtol=1e-2), "mismatch vs reference (B=40)"

    print("KERNEL_OK")
</pallas_src>

<mosaic_0001>
module attributes {stable_mosaic.version = 11 : i64} {
  func.func @teacher_mlp_kernel(%arg0: i32, %arg1: memref<8x784xbf16, #tpu.memory_space<vmem>>, %arg2: memref<784x1280xbf16, #tpu.memory_space<vmem>>, %arg3: memref<1x1280xf32, #tpu.memory_space<vmem>>, %arg4: memref<1280x1280xbf16, #tpu.memory_space<vmem>>, %arg5: memref<1x1280xf32, #tpu.memory_space<vmem>>, %arg6: memref<1280x128xbf16, #tpu.memory_space<vmem>>, %arg7: memref<1x128xf32, #tpu.memory_space<vmem>>, %arg8: memref<8x128xf32, #tpu.memory_space<vmem>>) attributes {dimension_semantics = [#tpu.dimension_semantics<parallel>], iteration_bounds = array<i64: 1>, scalar_prefetch = 0 : i64, scratch_operands = 0 : i64, tpu.core_type = #tpu.core_type<tc>, window_params = [{transform_indices = @transform_0, window_bounds = array<i64: 8, 784>}, {pipeline_mode = #tpu.pipeline_mode<synchronous>, transform_indices = @transform_1, window_bounds = array<i64: 784, 1280>}, {pipeline_mode = #tpu.pipeline_mode<synchronous>, transform_indices = @transform_2, window_bounds = array<i64: 1, 1280>}, {pipeline_mode = #tpu.pipeline_mode<synchronous>, transform_indices = @transform_3, window_bounds = array<i64: 1280, 1280>}, {pipeline_mode = #tpu.pipeline_mode<synchronous>, transform_indices = @transform_4, window_bounds = array<i64: 1, 1280>}, {pipeline_mode = #tpu.pipeline_mode<synchronous>, transform_indices = @transform_5, window_bounds = array<i64: 1280, 128>}, {pipeline_mode = #tpu.pipeline_mode<synchronous>, transform_indices = @transform_6, window_bounds = array<i64: 1, 128>}, {transform_indices = @transform_7, window_bounds = array<i64: 8, 128>}]} {
    %c0 = arith.constant 0 : index
    %c0_0 = arith.constant 0 : index
    %0 = vector.load %arg1[%c0, %c0_0] : memref<8x784xbf16, #tpu.memory_space<vmem>>, vector<8x784xbf16>
    %c0_1 = arith.constant 0 : index
    %c0_2 = arith.constant 0 : index
    %1 = vector.load %arg2[%c0_1, %c0_2] : memref<784x1280xbf16, #tpu.memory_space<vmem>>, vector<784x1280xbf16>
    %cst = arith.constant dense<0.000000e+00> : vector<8x1280xf32>
    %2 = tpu.matmul %0, %1, %cst {dimension_numbers = #tpu.dot_dimension_numbers<[1], [0], [0], [1], [0, 0, 1, 1], [], []>} : vector<8x784xbf16>, vector<784x1280xbf16>, vector<8x1280xf32> -> vector<8x1280xf32>
    %c0_3 = arith.constant 0 : index
    %c0_4 = arith.constant 0 : index
    %3 = vector.load %arg3[%c0_3, %c0_4] : memref<1x1280xf32, #tpu.memory_space<vmem>>, vector<1x1280xf32>
    %4 = vector.broadcast %3 : vector<1x1280xf32> to vector<8x1280xf32>
    %5 = arith.addf %2, %4 : vector<8x1280xf32>
    %cst_5 = arith.constant 0.000000e+00 : f32
    %6 = vector.broadcast %cst_5 : f32 to vector<8x1280xf32>
    %7 = arith.maximumf %5, %6 : vector<8x1280xf32>
    %8 = arith.truncf %7 : vector<8x1280xf32> to vector<8x1280xbf16>
    %c0_6 = arith.constant 0 : index
    %c0_7 = arith.constant 0 : index
    %9 = vector.load %arg4[%c0_6, %c0_7] : memref<1280x1280xbf16, #tpu.memory_space<vmem>>, vector<1280x1280xbf16>
    %cst_8 = arith.constant dense<0.000000e+00> : vector<8x1280xf32>
    %10 = tpu.matmul %8, %9, %cst_8 {dimension_numbers = #tpu.dot_dimension_numbers<[1], [0], [0], [1], [0, 0, 1, 1], [], []>} : vector<8x1280xbf16>, vector<1280x1280xbf16>, vector<8x1280xf32> -> vector<8x1280xf32>
    %c0_9 = arith.constant 0 : index
    %c0_10 = arith.constant 0 : index
    %11 = vector.load %arg5[%c0_9, %c0_10] : memref<1x1280xf32, #tpu.memory_space<vmem>>, vector<1x1280xf32>
    %12 = vector.broadcast %11 : vector<1x1280xf32> to vector<8x1280xf32>
    %13 = arith.addf %10, %12 : vector<8x1280xf32>
    %cst_11 = arith.constant 0.000000e+00 : f32
    %14 = vector.broadcast %cst_11 : f32 to vector<8x1280xf32>
    %15 = arith.maximumf %13, %14 : vector<8x1280xf32>
    %16 = arith.truncf %15 : vector<8x1280xf32> to vector<8x1280xbf16>
    %c0_12 = arith.constant 0 : index
    %c0_13 = arith.constant 0 : index
    %17 = vector.load %arg6[%c0_12, %c0_13] : memref<1280x128xbf16, #tpu.memory_space<vmem>>, vector<1280x128xbf16>
    %cst_14 = arith.constant dense<0.000000e+00> : vector<8x128xf32>
    %18 = tpu.matmul %16, %17, %cst_14 {dimension_numbers = #tpu.dot_dimension_numbers<[1], [0], [0], [1], [0, 0, 1, 1], [], []>} : vector<8x1280xbf16>, vector<1280x128xbf16>, vector<8x128xf32> -> vector<8x128xf32>
    %c0_15 = arith.constant 0 : index
    %c0_16 = arith.constant 0 : index
    %19 = vector.load %arg7[%c0_15, %c0_16] : memref<1x128xf32, #tpu.memory_space<vmem>>, vector<1x128xf32>
    %20 = vector.broadcast %19 : vector<1x128xf32> to vector<8x128xf32>
    %21 = arith.addf %18, %20 : vector<8x128xf32>
    %c0_17 = arith.constant 0 : index
    %c0_18 = arith.constant 0 : index
    %22 = vector.load %arg8[%c0_17, %c0_18] : memref<8x128xf32, #tpu.memory_space<vmem>>, vector<8x128xf32>
    tpu.vector_store %arg8[%c0_17, %c0_18], %21 {strides = array<i32>} : memref<8x128xf32, #tpu.memory_space<vmem>>, vector<8x128xf32>,
    return
  }
  func.func @transform_0(%arg0: i32) -> (i32, i32) {
    %c0_i32 = arith.constant 0 : i32
    %c0_i32_0 = arith.constant 0 : i32
    return %arg0, %c0_i32 : i32, i32
  }
  func.func @transform_1(%arg0: i32) -> (i32, i32) {
    %c0_i32 = arith.constant 0 : i32
    %c0_i32_0 = arith.constant 0 : i32
    %c0_i32_1 = arith.constant 0 : i32
    return %c0_i32, %c0_i32_0 : i32, i32
  }
  func.func @transform_2(%arg0: i32) -> (i32, i32) {
    %c0_i32 = arith.constant 0 : i32
    %c0_i32_0 = arith.constant 0 : i32
    %c0_i32_1 = arith.constant 0 : i32
    return %c0_i32, %c0_i32_0 : i32, i32
  }
  func.func @transform_3(%arg0: i32) -> (i32, i32) {
    %c0_i32 = arith.constant 0 : i32
    %c0_i32_0 = arith.constant 0 : i32
    %c0_i32_1 = arith.constant 0 : i32
    return %c0_i32, %c0_i32_0 : i32, i32
  }
  func.func @transform_4(%arg0: i32) -> (i32, i32) {
    %c0_i32 = arith.constant 0 : i32
    %c0_i32_0 = arith.constant 0 : i32
    %c0_i32_1 = arith.constant 0 : i32
    return %c0_i32, %c0_i32_0 : i32, i32
  }
  func.func @transform_5(%arg0: i32) -> (i32, i32) {
    %c0_i32 = arith.constant 0 : i32
    %c0_i32_0 = arith.constant 0 : i32
    %c0_i32_1 = arith.constant 0 : i32
    return %c0_i32, %c0_i32_0 : i32, i32
  }
  func.func @transform_6(%arg0: i32) -> (i32, i32) {
    %c0_i32 = arith.constant 0 : i32
    %c0_i32_0 = arith.constant 0 : i32
    %c0_i32_1 = arith.constant 0 : i32
    return %c0_i32, %c0_i32_0 : i32, i32
  }
  func.func @transform_7(%arg0: i32) -> (i32, i32) {
    %c0_i32 = arith.constant 0 : i32
    %c0_i32_0 = arith.constant 0 : i32
    return %arg0, %c0_i32 : i32, i32
  }
}

</mosaic_0001>

<llo_original>
// kernel: tpu_custom_call.1
$region0: #{tpu_custom_call.1}
  #allocation0 [shape = 'u32[]', space=smem, size = 0x4, offset = 0x4, fixed_abs, tag = 'smem constant byte address 0x4 - core index']
  #allocation1 [shape = 'u32[144,128]{1,0:T(1,128)}', space=vmem, size = 0x12000, scoped, tag = 'internal scratch']
  %s0 = inlined_call_operand.hbm [shape: bf16[8,784], index: 0, kind: input, shape index: {}]
  %s1 = inlined_call_operand.hbm [shape: bf16[784,1280], index: 1, kind: input, shape index: {}]
  %s2 = inlined_call_operand.hbm [shape: f32[1,1280], index: 2, kind: input, shape index: {}]
  %s3 = inlined_call_operand.hbm [shape: bf16[1280,1280], index: 3, kind: input, shape index: {}]
  %s4 = inlined_call_operand.hbm [shape: f32[1,1280], index: 4, kind: input, shape index: {}]
  %s5 = inlined_call_operand.hbm [shape: bf16[1280,128], index: 5, kind: input, shape index: {}]
  %s6 = inlined_call_operand.hbm [shape: f32[1,128], index: 6, kind: input, shape index: {}]
  %s7 = inlined_call_operand.hbm [shape: f32[8,128], index: 7, kind: output, shape index: {}]
  %s8 = sld [smem:[#allocation0]]
  $region66: #{tpu_custom_call.1} parent=0
    _
  %s10 = ssub.s32 1, %s8
  %s11 = scalar_select 0, %s10, %s8
  $region1: #{tpu_custom_call.1} parent=0
    #allocation2 [shape = 'u8[14336]{0}', space=vmem, size = 0x3800, scoped, tag = 'input window, operand 0, single buffered']
    #allocation3 [shape = 's32[1]{0}', space=sflag, size = 0x4, scoped, tag = 'scoped memory for tpu_custom_call.1']
    #allocation4 [shape = 's32[1]{0}', space=sflag, size = 0x4, scoped, tag = 'scoped memory for tpu_custom_call.1']
    #allocation5 [shape = 'u8[2007040]{0}', space=vmem, size = 0x1ea000, scoped, tag = 'input window, operand 1, single buffered']
    #allocation6 [shape = 's32[1]{0}', space=sflag, size = 0x4, scoped, tag = 'scoped memory for tpu_custom_call.1']
    #allocation7 [shape = 'u8[5120]{0}', space=vmem, size = 0x1400, scoped, tag = 'input window, operand 2, single buffered']
    #allocation8 [shape = 'u8[3276800]{0}', space=vmem, size = 0x320000, scoped, tag = 'input window, operand 3, single buffered']
    #allocation9 [shape = 's32[1]{0}', space=sflag, size = 0x4, scoped, tag = 'scoped memory for tpu_custom_call.1']
    #allocation10 [shape = 'u8[5120]{0}', space=vmem, size = 0x1400, scoped, tag = 'input window, operand 4, single buffered']
    #allocation11 [shape = 'u8[327680]{0}', space=vmem, size = 0x50000, scoped, tag = 'input window, operand 5, single buffered']
    #allocation12 [shape = 's32[1]{0}', space=sflag, size = 0x4, scoped, tag = 'scoped memory for tpu_custom_call.1']
    #allocation13 [shape = 'u8[512]{0}', space=vmem, size = 0x400, scoped, tag = 'input window, operand 6, single buffered']
    #allocation14 [shape = 'u8[4096]{0}', space=vmem, size = 0x1000, scoped, tag = 'output window, operand 0, single buffered']
    %12 = vsyncpa [#allocation3], 0
    %13 = vsyncpa [#allocation6], 0
    %14 = vsyncpa [#allocation9], 0
    %15 = vsyncpa [#allocation12], 0
    %16 = vsyncpa [#allocation4], 0
    // Predicated region
    $region2: #{tpu_custom_call.1} parent=1 // pred_check
      _
    $region3: #{tpu_custom_call.1} parent=1 // pred_check_branch
      %18 = sbr.rel (0) target = $region5
    $region4: #{tpu_custom_call.1} parent=1 // pred_region
      %s20 = ssub.s32 448, 448
      %21 = vsyncadd [#allocation3], %s20
      %s23 = sshll.u32 [#allocation2], 4
      %s24 = int_to_ptr.vmem [resolvable:$true] %s23
      %26 = dma.hbm_to_vmem [thread:$0]  %s0, 448, %s24, [#allocation3]
    $region5: #{tpu_custom_call.1} parent=1 // pred_fallthru
      _
    // Predicated region
    $region6: #{tpu_custom_call.1} parent=1 // pred_check
      _
    $region7: #{tpu_custom_call.1} parent=1 // pred_check_branch
      %28 = sbr.rel (0) target = $region9
    $region8: #{tpu_custom_call.1} parent=1 // pred_region
      %s30 = ssub.s32 62720, 62720
      %31 = vsyncadd [#allocation6], %s30
      %s32 = sshll.u32 [#allocation5], 4
      %s33 = int_to_ptr.vmem [resolvable:$true] %s32
      %38 = dma.hbm_to_vmem [thread:$0]  %s1, 62720, %s33, [#allocation6], 640, 640, 40
    $region9: #{tpu_custom_call.1} parent=1 // pred_fallthru
      _
    // Predicated region
    $region10: #{tpu_custom_call.1} parent=1 // pred_check
      _
    $region11: #{tpu_custom_call.1} parent=1 // pred_check_branch
      %40 = sbr.rel (0) target = $region13
    $region12: #{tpu_custom_call.1} parent=1 // pred_region
      %s42 = ssub.s32 160, 160
      %43 = vsyncadd [#allocation6], %s42
      %s45 = sshll.u32 [#allocation7], 4
      %s46 = int_to_ptr.vmem [resolvable:$true] %s45
      %48 = dma.hbm_to_vmem [thread:$0]  %s2, 160, %s46, [#allocation6]
    $region13: #{tpu_custom_call.1} parent=1 // pred_fallthru
      _
    // Predicated region
    $region14: #{tpu_custom_call.1} parent=1 // pred_check
      _
    $region15: #{tpu_custom_call.1} parent=1 // pred_check_branch
      %50 = sbr.rel (0) target = $region17
    $region16: #{tpu_custom_call.1} parent=1 // pred_region
      %s52 = ssub.s32 102400, 102400
      %53 = vsyncadd [#allocation9], %s52
      %s54 = sshll.u32 [#allocation8], 4
      %s55 = int_to_ptr.vmem [resolvable:$true] %s54
      %60 = dma.hbm_to_vmem [thread:$0]  %s3, 102400, %s55, [#allocation9], 640, 640, 40
    $region17: #{tpu_custom_call.1} parent=1 // pred_fallthru
      _
    // Predicated region
    $region18: #{tpu_custom_call.1} parent=1 // pred_check
      _
    $region19: #{tpu_custom_call.1} parent=1 // pred_check_branch
      %62 = sbr.rel (0) target = $region21
    $region20: #{tpu_custom_call.1} parent=1 // pred_region
      %s64 = ssub.s32 160, 160
      %65 = vsyncadd [#allocation9], %s64
      %s67 = sshll.u32 [#allocation10], 4
      %s68 = int_to_ptr.vmem [resolvable:$true] %s67
      %70 = dma.hbm_to_vmem [thread:$0]  %s4, 160, %s68, [#allocation9]
    $region21: #{tpu_custom_call.1} parent=1 // pred_fallthru
      _
    // Predicated region
    $region22: #{tpu_custom_call.1} parent=1 // pred_check
      _
    $region23: #{tpu_custom_call.1} parent=1 // pred_check_branch
      %72 = sbr.rel (0) target = $region25
    $region24: #{tpu_custom_call.1} parent=1 // pred_region
      %s74 = ssub.s32 10240, 10240
      %75 = vsyncadd [#allocation12], %s74
      %s76 = sshll.u32 [#allocation11], 4
      %s77 = int_to_ptr.vmem [resolvable:$true] %s76
      %82 = dma.hbm_to_vmem [thread:$0]  %s5, 10240, %s77, [#allocation12], 64, 64, 4
    $region25: #{tpu_custom_call.1} parent=1 // pred_fallthru
      _
    // Predicated region
    $region26: #{tpu_custom_call.1} parent=1 // pred_check
      _
    $region27: #{tpu_custom_call.1} parent=1 // pred_check_branch
      %84 = sbr.rel (0) target = $region29
    $region28: #{tpu_custom_call.1} parent=1 // pred_region
      %s86 = ssub.s32 16, 16
      %87 = vsyncadd [#allocation12], %s86
      %s89 = sshll.u32 [#allocation13], 4
      %s90 = int_to_ptr.vmem [resolvable:$true] %s89
      %92 = dma.hbm_to_vmem [thread:$0]  %s6, 16, %s90, [#allocation12]
    $region29: #{tpu_custom_call.1} parent=1 // pred_fallthru
      _
    // Predicated region
    $region30: #{tpu_custom_call.1} parent=1 // pred_check
      _
    $region31: #{tpu_custom_call.1} parent=1 // pred_check_branch
      %94 = sbr.rel (0) target = $region33
    $region32: #{tpu_custom_call.1} parent=1 // pred_region
      %95 = dma.done [#allocation3], 448
    $region33: #{tpu_custom_call.1} parent=1 // pred_fallthru
      _
    // Predicated region
    $region34: #{tpu_custom_call.1} parent=1 // pred_check
      _
    $region35: #{tpu_custom_call.1} parent=1 // pred_check_branch
      %97 = sbr.rel (0) target = $region37
    $region36: #{tpu_custom_call.1} parent=1 // pred_region
      %98 = dma.done [#allocation6], 62720
    $region37: #{tpu_custom_call.1} parent=1 // pred_fallthru
      _
    // Predicated region
    $region38: #{tpu_custom_call.1} parent=1 // pred_check
      _
    $region39: #{tpu_custom_call.1} parent=1 // pred_check_branch
      %100 = sbr.rel (0) target = $region41
    $region40: #{tpu_custom_call.1} parent=1 // pred_region
      %101 = dma.done [#allocation6], 160
    $region41: #{tpu_custom_call.1} parent=1 // pred_fallthru
      _
    // Predicated region
    $region42: #{tpu_custom_call.1} parent=1 // pred_check
      _
    $region43: #{tpu_custom_call.1} parent=1 // pred_check_branch
      %103 = sbr.rel (0) target = $region45
    $region44: #{tpu_custom_call.1} parent=1 // pred_region
      %104 = dma.done [#allocation9], 102400
    $region45: #{tpu_custom_call.1} parent=1 // pred_fallthru
      _
    // Predicated region
    $region46: #{tpu_custom_call.1} parent=1 // pred_check
      _
    $region47: #{tpu_custom_call.1} parent=1 // pred_check_branch
      %106 = sbr.rel (0) target = $region49
    $region48: #{tpu_custom_call.1} parent=1 // pred_region
      %107 = dma.done [#allocation9], 160
    $region49: #{tpu_custom_call.1} parent=1 // pred_fallthru
      _
    // Predicated region
    $region50: #{tpu_custom_call.1} parent=1 // pred_check
      _
    $region51: #{tpu_custom_call.1} parent=1 // pred_check_branch
      %109 = sbr.rel (0) target = $region53
    $region52: #{tpu_custom_call.1} parent=1 // pred_region
      %110 = dma.done [#allocation12], 10240
    $region53: #{tpu_custom_call.1} parent=1 // pred_fallthru
      _
    // Predicated region
    $region54: #{tpu_custom_call.1} parent=1 // pred_check
      _
    $region55: #{tpu_custom_call.1} parent=1 // pred_check_branch
      %112 = sbr.rel (0) target = $region57
    $region56: #{tpu_custom_call.1} parent=1 // pred_region
      %113 = dma.done [#allocation12], 16
    $region57: #{tpu_custom_call.1} parent=1 // pred_fallthru
      _
    %v115 = vld [vmem:[#allocation2] sm:$0xff]
    %v116 = vld [vmem:[#allocation2 + $0x8] sm:$0xff]
    %v117 = vld [vmem:[#allocation2 + $0x10] sm:$0xff]
    %v118 = vld [vmem:[#allocation2 + $0x18] sm:$0xf]
    %v119 = vld [vmem:[#allocation5] sm:$0xff]
    %v120 = vld [vmem:[#allocation5 + $0x8] sm:$0xff]
    %v121 = vld [vmem:[#allocation5 + $0x10] sm:$0xff]
    %v122 = vld [vmem:[#allocation5 + $0x18] sm:$0xff]
    %v123 = vld [vmem:[#allocation5 + $0x20] sm:$0xff]
    %v124 = vld [vmem:[#allocation5 + $0x28] sm:$0xff]
    %v125 = vld [vmem:[#allocation5 + $0x30] sm:$0xff]
    %v126 = vld [vmem:[#allocation5 + $0x38] sm:$0xff]
    %v127 = vld [vmem:[#allocation5 + $0x40] sm:$0xff]
    %v128 = vld [vmem:[#allocation5 + $0x48] sm:$0xff]
    %v129 = vld [vmem:[#allocation5 + $0x50] sm:$0xff]
    %v130 = vld [vmem:[#allocation5 + $0x58] sm:$0xff]
    %v131 = vld [vmem:[#allocation5 + $0x60] sm:$0xff]
    %v132 = vld [vmem:[#allocation5 + $0x68] sm:$0xff]
    %v133 = vld [vmem:[#allocation5 + $0x70] sm:$0xff]
    %v134 = vld [vmem:[#allocation5 + $0x78] sm:$0xff]
    %v135 = vld [vmem:[#allocation5 + $0x80] sm:$0xff]
    %v136 = vld [vmem:[#allocation5 + $0x88] sm:$0xff]
    %v137 = vld [vmem:[#allocation5 + $0x90] sm:$0xff]
    %v138 = vld [vmem:[#allocation5 + $0x98] sm:$0xff]
    %v139 = vld [vmem:[#allocation5 + $0xa0] sm:$0xff]
    %v140 = vld [vmem:[#allocation5 + $0xa8] sm:$0xff]
    %v141 = vld [vmem:[#allocation5 + $0xb0] sm:$0xff]
    %v142 = vld [vmem:[#allocation5 + $0xb8] sm:$0xff]
    %v143 = vld [vmem:[#allocation5 + $0xc0] sm:$0xff]
    %v144 = vld [vmem:[#allocation5 + $0xc8] sm:$0xff]
    %v145 = vld [vmem:[#allocation5 + $0xd0] sm:$0xff]
    %v146 = vld [vmem:[#allocation5 + $0xd8] sm:$0xff]
    %v147 = vld [vmem:[#allocation5 + $0xe0] sm:$0xff]
    %v148 = vld [vmem:[#allocation5 + $0xe8] sm:$0xff]
    %v149 = vld [vmem:[#allocation5 + $0xf0] sm:$0xff]
    %v150 = vld [vmem:[#allocation5 + $0xf8] sm:$0xff]
    %v151 = vld [vmem:[#allocation5 + $0x100] sm:$0xff]
    %v152 = vld [vmem:[#allocation5 + $0x108] sm:$0xff]
    %v153 = vld [vmem:[#allocation5 + $0x110] sm:$0xff]
    %v154 = vld [vmem:[#allocation5 + $0x118] sm:$0xff]
    %v155 = vld [vmem:[#allocation5 + $0x120] sm:$0xff]
    %v156 = vld [vmem:[#allocation5 + $0x128] sm:$0xff]
    %v157 = vld [vmem:[#allocation5 + $0x130] sm:$0xff]
    %v158 = vld [vmem:[#allocation5 + $0x138] sm:$0xff]
    %v159 = vld [vmem:[#allocation5 + $0x140] sm:$0xff]
    %v160 = vld [vmem:[#allocation5 + $0x148] sm:$0xff]
    %v161 = vld [vmem:[#allocation5 + $0x150] sm:$0xff]
    %v162 = vld [vmem:[#allocation5 + $0x158] sm:$0xff]
    %v163 = vld [vmem:[#allocation5 + $0x160] sm:$0xff]
    %v164 = vld [vmem:[#allocation5 + $0x168] sm:$0xff]
    %v165 = vld [vmem:[#allocation5 + $0x170] sm:$0xff]
    %v166 = vld [vmem:[#allocation5 + $0x178] sm:$0xff]
    %v167 = vld [vmem:[#allocation5 + $0x180] sm:$0xff]
    %v168 = vld [vmem:[#allocation5 + $0x188] sm:$0xff]
    %v169 = vld [vmem:[#allocation5 + $0x190] sm:$0xff]
    %v170 = vld [vmem:[#allocation5 + $0x198] sm:$0xff]
    %v171 = vld [vmem:[#allocation5 + $0x1a0] sm:$0xff]
    %v172 = vld [vmem:[#allocation5 + $0x1a8] sm:$0xff]
    %v173 = vld [vmem:[#allocation5 + $0x1b0] sm:$0xff]
    %v174 = vld [vmem:[#allocation5 + $0x1b8] sm:$0xff]
    %v175 = vld [vmem:[#allocation5 + $0x1c0] sm:$0xff]
    %v176 = vld [vmem:[#allocation5 + $0x1c8] sm:$0xff]
    %v177 = vld [vmem:[#allocation5 + $0x1d0] sm:$0xff]
    %v178 = vld [vmem:[#allocation5 + $0x1d8] sm:$0xff]
    %v179 = vld [vmem:[#allocation5 + $0x1e0] sm:$0xff]
    %v180 = vld [vmem:[#allocation5 + $0x1e8] sm:$0xff]
    %v181 = vld [vmem:[#allocation5 + $0x1f0] sm:$0xff]
    %v182 = vld [vmem:[#allocation5 + $0x1f8] sm:$0xff]
    %v183 = vld [vmem:[#allocation5 + $0x200] sm:$0xff]
    %v184 = vld [vmem:[#allocation5 + $0x208] sm:$0xff]
    %v185 = vld [vmem:[#allocation5 + $0x210] sm:$0xff]
    %v186 = vld [vmem:[#allocation5 + $0x218] sm:$0xff]
    %v187 = vld [vmem:[#allocation5 + $0x220] sm:$0xff]
    %v188 = vld [vmem:[#allocation5 + $0x228] sm:$0xff]
    %v189 = vld [vmem:[#allocation5 + $0x230] sm:$0xff]
    %v190 = vld [vmem:[#allocation5 + $0x238] sm:$0xff]
    %v191 = vld [vmem:[#allocation5 + $0x240] sm:$0xff]
    %v192 = vld [vmem:[#allocation5 + $0x248] sm:$0xff]
    %v193 = vld [vmem:[#allocation5 + $0x250] sm:$0xff]
    %v194 = vld [vmem:[#allocation5 + $0x258] sm:$0xff]
    %v195 = vld [vmem:[#allocation5 + $0x260] sm:$0xff]
    %v196 = vld [vmem:[#allocation5 + $0x268] sm:$0xff]
    %v197 = vld [vmem:[#allocation5 + $0x270] sm:$0xff]
    %v198 = vld [vmem:[#allocation5 + $0x278] sm:$0xff]
    %v199 = vld [vmem:[#allocation5 + $0x280] sm:$0xff]
    %v200 = vld [vmem:[#allocation5 + $0x288] sm:$0xff]
    %v201 = vld [vmem:[#allocation5 + $0x290] sm:$0xff]
    %v202 = vld [vmem:[#allocation5 + $0x298] sm:$0xff]
    %v203 = vld [vmem:[#allocation5 + $0x2a0] sm:$0xff]
    %v204 = vld [vmem:[#allocation5 + $0x2a8] sm:$0xff]
    %v205 = vld [vmem:[#allocation5 + $0x2b0] sm:$0xff]
    %v206 = vld [vmem:[#allocation5 + $0x2b8] sm:$0xff]
    %v207 = vld [vmem:[#allocation5 + $0x2c0] sm:$0xff]
    %v208 = vld [vmem:[#allocation5 + $0x2c8] sm:$0xff]
    %v209 = vld [vmem:[#allocation5 + $0x2d0] sm:$0xff]
    %v210 = vld [vmem:[#allocation5 + $0x2d8] sm:$0xff]
    %v211 = vld [vmem:[#allocation5 + $0x2e0] sm:$0xff]
    %v212 = vld [vmem:[#allocation5 + $0x2e8] sm:$0xff]
    %v213 = vld [vmem:[#allocation5 + $0x2f0] sm:$0xff]
    %v214 = vld [vmem:[#allocation5 + $0x2f8] sm:$0xff]
    %v215 = vld [vmem:[#allocation5 + $0x300] sm:$0xff]
    %v216 = vld [vmem:[#allocation5 + $0x308] sm:$0xff]
    %v217 = vld [vmem:[#allocation5 + $0x310] sm:$0xff]
    %v218 = vld [vmem:[#allocation5 + $0x318] sm:$0xff]
    %v219 = vld [vmem:[#allocation5 + $0x320] sm:$0xff]
    %v220 = vld [vmem:[#allocation5 + $0x328] sm:$0xff]
    %v221 = vld [vmem:[#allocation5 + $0x330] sm:$0xff]
    %v222 = vld [vmem:[#allocation5 + $0x338] sm:$0xff]
    %v223 = vld [vmem:[#allocation5 + $0x340] sm:$0xff]
    %v224 = vld [vmem:[#allocation5 + $0x348] sm:$0xff]
    %v225 = vld [vmem:[#allocation5 + $0x350] sm:$0xff]
    %v226 = vld [vmem:[#allocation5 + $0x358] sm:$0xff]
    %v227 = vld [vmem:[#allocation5 + $0x360] sm:$0xff]
    %v228 = vld [vmem:[#allocation5 + $0x368] sm:$0xff]
    %v229 = vld [vmem:[#allocation5 + $0x370] sm:$0xff]
    %v230 = vld [vmem:[#allocation5 + $0x378] sm:$0xff]
    %v231 = vld [vmem:[#allocation5 + $0x380] sm:$0xff]
    %v232 = vld [vmem:[#allocation5 + $0x388] sm:$0xff]
    %v233 = vld [vmem:[#allocation5 + $0x390] sm:$0xff]
    %v234 = vld [vmem:[#allocation5 + $0x398] sm:$0xff]
    %v235 = vld [vmem:[#allocation5 + $0x3a0] sm:$0xff]
    %v236 = vld [vmem:[#allocation5 + $0x3a8] sm:$0xff]
    %v237 = vld [vmem:[#allocation5 + $0x3b0] sm:$0xff]
    %v238 = vld [vmem:[#allocation5 + $0x3b8] sm:$0xff]
    %v239 = vld [vmem:[#allocation5 + $0x3c0] sm:$0xff]
    %v240 = vld [vmem:[#allocation5 + $0x3c8] sm:$0xff]
    %v241 = vld [vmem:[#allocation5 + $0x3d0] sm:$0xff]
    %v242 = vld [vmem:[#allocation5 + $0x3d8] sm:$0xff]
    %v243 = vld [vmem:[#allocation5 + $0x3e0] sm:$0xff]
    %v244 = vld [vmem:[#allocation5 + $0x3e8] sm:$0xff]
    %v245 = vld [vmem:[#allocation5 + $0x3f0] sm:$0xff]
    %v246 = vld [vmem:[#allocation5 + $0x3f8] sm:$0xff]
    %v247 = vld [vmem:[#allocation5 + $0x400] sm:$0xff]
    %v248 = vld [vmem:[#allocation5 + $0x408] sm:$0xff]
    %v249 = vld [vmem:[#allocation5 + $0x410] sm:$0xff]
    %v250 = vld [vmem:[#allocation5 + $0x418] sm:$0xff]
    %v251 = vld [vmem:[#allocation5 + $0x420] sm:$0xff]
    %v252 = vld [vmem:[#allocation5 + $0x428] sm:$0xff]
    %v253 = vld [vmem:[#allocation5 + $0x430] sm:$0xff]
    %v254 = vld [vmem:[#allocation5 + $0x438] sm:$0xff]
    %v255 = vld [vmem:[#allocation5 + $0x440] sm:$0xff]
    %v256 = vld [vmem:[#allocation5 + $0x448] sm:$0xff]
    %v257 = vld [vmem:[#allocation5 + $0x450] sm:$0xff]
    %v258 = vld [vmem:[#allocation5 + $0x458] sm:$0xff]
    %v259 = vld [vmem:[#allocation5 + $0x460] sm:$0xff]
    %v260 = vld [vmem:[#allocation5 + $0x468] sm:$0xff]
    %v261 = vld [vmem:[#allocation5 + $0x470] sm:$0xff]
    %v262 = vld [vmem:[#allocation5 + $0x478] sm:$0xff]
    %v263 = vld [vmem:[#allocation5 + $0x480] sm:$0xff]
    %v264 = vld [vmem:[#allocation5 + $0x488] sm:$0xff]
    %v265 = vld [vmem:[#allocation5 + $0x490] sm:$0xff]
    %v266 = vld [vmem:[#allocation5 + $0x498] sm:$0xff]
    %v267 = vld [vmem:[#allocation5 + $0x4a0] sm:$0xff]
    %v268 = vld [vmem:[#allocation5 + $0x4a8] sm:$0xff]
    %v269 = vld [vmem:[#allocation5 + $0x4b0] sm:$0xff]
    %v270 = vld [vmem:[#allocation5 + $0x4b8] sm:$0xff]
    %v271 = vld [vmem:[#allocation5 + $0x4c0] sm:$0xff]
    %v272 = vld [vmem:[#allocation5 + $0x4c8] sm:$0xff]
    %v273 = vld [vmem:[#allocation5 + $0x4d0] sm:$0xff]
    %v274 = vld [vmem:[#allocation5 + $0x4d8] sm:$0xff]
    %v275 = vld [vmem:[#allocation5 + $0x4e0] sm:$0xff]
    %v276 = vld [vmem:[#allocation5 + $0x4e8] sm:$0xff]
    %v277 = vld [vmem:[#allocation5 + $0x4f0] sm:$0xff]
    %v278 = vld [vmem:[#allocation5 + $0x4f8] sm:$0xff]
    %v279 = vld [vmem:[#allocation5 + $0x500] sm:$0xff]
    %v280 = vld [vmem:[#allocation5 + $0x508] sm:$0xff]
    %v281 = vld [vmem:[#allocation5 + $0x510] sm:$0xff]
    %v282 = vld [vmem:[#allocation5 + $0x518] sm:$0xff]
    %v283 = vld [vmem:[#allocation5 + $0x520] sm:$0xff]
    %v284 = vld [vmem:[#allocation5 + $0x528] sm:$0xff]
    %v285 = vld [vmem:[#allocation5 + $0x530] sm:$0xff]
    %v286 = vld [vmem:[#allocation5 + $0x538] sm:$0xff]
    %v287 = vld [vmem:[#allocation5 + $0x540] sm:$0xff]
    %v288 = vld [vmem:[#allocation5 + $0x548] sm:$0xff]
    %v289 = vld [vmem:[#allocation5 + $0x550] sm:$0xff]
    %v290 = vld [vmem:[#allocation5 + $0x558] sm:$0xff]
    %v291 = vld [vmem:[#allocation5 + $0x560] sm:$0xff]
    %v292 = vld [vmem:[#allocation5 + $0x568] sm:$0xff]
    %v293 = vld [vmem:[#allocation5 + $0x570] sm:$0xff]
    %v294 = vld [vmem:[#allocation5 + $0x578] sm:$0xff]
    %v295 = vld [vmem:[#allocation5 + $0x580] sm:$0xff]
    %v296 = vld [vmem:[#allocation5 + $0x588] sm:$0xff]
    %v297 = vld [vmem:[#allocation5 + $0x590] sm:$0xff]
    %v298 = vld [vmem:[#allocation5 + $0x598] sm:$0xff]
    %v299 = vld [vmem:[#allocation5 + $0x5a0] sm:$0xff]
    %v300 = vld [vmem:[#allocation5 + $0x5a8] sm:$0xff]
    %v301 = vld [vmem:[#allocation5 + $0x5b0] sm:$0xff]
    %v302 = vld [vmem:[#allocation5 + $0x5b8] sm:$0xff]
    %v303 = vld [vmem:[#allocation5 + $0x5c0] sm:$0xff]
    %v304 = vld [vmem:[#allocation5 + $0x5c8] sm:$0xff]
    %v305 = vld [vmem:[#allocation5 + $0x5d0] sm:$0xff]
    %v306 = vld [vmem:[#allocation5 + $0x5d8] sm:$0xff]
    %v307 = vld [vmem:[#allocation5 + $0x5e0] sm:$0xff]
    %v308 = vld [vmem:[#allocation5 + $0x5e8] sm:$0xff]
    %v309 = vld [vmem:[#allocation5 + $0x5f0] sm:$0xff]
    %v310 = vld [vmem:[#allocation5 + $0x5f8] sm:$0xff]
    %v311 = vld [vmem:[#allocation5 + $0x600] sm:$0xff]
    %v312 = vld [vmem:[#allocation5 + $0x608] sm:$0xff]
    %v313 = vld [vmem:[#allocation5 + $0x610] sm:$0xff]
    %v314 = vld [vmem:[#allocation5 + $0x618] sm:$0xff]
    %v315 = vld [vmem:[#allocation5 + $0x620] sm:$0xff]
    %v316 = vld [vmem:[#allocation5 + $0x628] sm:$0xff]
    %v317 = vld [vmem:[#allocation5 + $0x630] sm:$0xff]
    %v318 = vld [vmem:[#allocation5 + $0x638] sm:$0xff]
    %v319 = vld [vmem:[#allocation5 + $0x640] sm:$0xff]
    %v320 = vld [vmem:[#allocation5 + $0x648] sm:$0xff]
    %v321 = vld [vmem:[#allocation5 + $0x650] sm:$0xff]
    %v322 = vld [vmem:[#allocation5 + $0x658] sm:$0xff]
    %v323 = vld [vmem:[#allocation5 + $0x660] sm:$0xff]
    %v324 = vld [vmem:[#allocation5 + $0x668] sm:$0xff]
    %v325 = vld [vmem:[#allocation5 + $0x670] sm:$0xff]
    %v326 = vld [vmem:[#allocation5 + $0x678] sm:$0xff]
    %v327 = vld [vmem:[#allocation5 + $0x680] sm:$0xff]
    %v328 = vld [vmem:[#allocation5 + $0x688] sm:$0xff]
    %v329 = vld [vmem:[#allocation5 + $0x690] sm:$0xff]
    %v330 = vld [vmem:[#allocation5 + $0x698] sm:$0xff]
    %v331 = vld [vmem:[#allocation5 + $0x6a0] sm:$0xff]
    %v332 = vld [vmem:[#allocation5 + $0x6a8] sm:$0xff]
    %v333 = vld [vmem:[#allocation5 + $0x6b0] sm:$0xff]
    %v334 = vld [vmem:[#allocation5 + $0x6b8] sm:$0xff]
    %v335 = vld [vmem:[#allocation5 + $0x6c0] sm:$0xff]
    %v336 = vld [vmem:[#allocation5 + $0x6c8] sm:$0xff]
    %v337 = vld [vmem:[#allocation5 + $0x6d0] sm:$0xff]
    %v338 = vld [vmem:[#allocation5 + $0x6d8] sm:$0xff]
    %v339 = vld [vmem:[#allocation5 + $0x6e0] sm:$0xff]
    %v340 = vld [vmem:[#allocation5 + $0x6e8] sm:$0xff]
    %v341 = vld [vmem:[#allocation5 + $0x6f0] sm:$0xff]
    %v342 = vld [vmem:[#allocation5 + $0x6f8] sm:$0xff]
    %v343 = vld [vmem:[#allocation5 + $0x700] sm:$0xff]
    %v344 = vld [vmem:[#allocation5 + $0x708] sm:$0xff]
    %v345 = vld [vmem:[#allocation5 + $0x710] sm:$0xff]
    %v346 = vld [vmem:[#allocation5 + $0x718] sm:$0xff]
    %v347 = vld [vmem:[#allocation5 + $0x720] sm:$0xff]
    %v348 = vld [vmem:[#allocation5 + $0x728] sm:$0xff]
    %v349 = vld [vmem:[#allocation5 + $0x730] sm:$0xff]
    %v350 = vld [vmem:[#allocation5 + $0x738] sm:$0xff]
    %v351 = vld [vmem:[#allocation5 + $0x740] sm:$0xff]
    %v352 = vld [vmem:[#allocation5 + $0x748] sm:$0xff]
    %v353 = vld [vmem:[#allocation5 + $0x750] sm:$0xff]
    %v354 = vld [vmem:[#allocation5 + $0x758] sm:$0xff]
    %v355 = vld [vmem:[#allocation5 + $0x760] sm:$0xff]
    %v356 = vld [vmem:[#allocation5 + $0x768] sm:$0xff]
    %v357 = vld [vmem:[#allocation5 + $0x770] sm:$0xff]
    %v358 = vld [vmem:[#allocation5 + $0x778] sm:$0xff]
    %v359 = vld [vmem:[#allocation5 + $0x780] sm:$0xff]
    %v360 = vld [vmem:[#allocation5 + $0x788] sm:$0xff]
    %v361 = vld [vmem:[#allocation5 + $0x790] sm:$0xff]
    %v362 = vld [vmem:[#allocation5 + $0x798] sm:$0xff]
    %v363 = vld [vmem:[#allocation5 + $0x7a0] sm:$0xff]
    %v364 = vld [vmem:[#allocation5 + $0x7a8] sm:$0xff]
    %v365 = vld [vmem:[#allocation5 + $0x7b0] sm:$0xff]
    %v366 = vld [vmem:[#allocation5 + $0x7b8] sm:$0xff]
    %v367 = vld [vmem:[#allocation5 + $0x7c0] sm:$0xff]
    %v368 = vld [vmem:[#allocation5 + $0x7c8] sm:$0xff]
    %v369 = vld [vmem:[#allocation5 + $0x7d0] sm:$0xff]
    %v370 = vld [vmem:[#allocation5 + $0x7d8] sm:$0xff]
    %v371 = vld [vmem:[#allocation5 + $0x7e0] sm:$0xff]
    %v372 = vld [vmem:[#allocation5 + $0x7e8] sm:$0xff]
    %v373 = vld [vmem:[#allocation5 + $0x7f0] sm:$0xff]
    %v374 = vld [vmem:[#allocation5 + $0x7f8] sm:$0xff]
    %v375 = vld [vmem:[#allocation5 + $0x800] sm:$0xff]
    %v376 = vld [vmem:[#allocation5 + $0x808] sm:$0xff]
    %v377 = vld [vmem:[#allocation5 + $0x810] sm:$0xff]
    %v378 = vld [vmem:[#allocation5 + $0x818] sm:$0xff]
    %v379 = vld [vmem:[#allocation5 + $0x820] sm:$0xff]
    %v380 = vld [vmem:[#allocation5 + $0x828] sm:$0xff]
    %v381 = vld [vmem:[#allocation5 + $0x830] sm:$0xff]
    %v382 = vld [vmem:[#allocation5 + $0x838] sm:$0xff]
    %v383 = vld [vmem:[#allocation5 + $0x840] sm:$0xff]
    %v384 = vld [vmem:[#allocation5 + $0x848] sm:$0xff]
    %v385 = vld [vmem:[#allocation5 + $0x850] sm:$0xff]
    %v386 = vld [vmem:[#allocation5 + $0x858] sm:$0xff]
    %v387 = vld [vmem:[#allocation5 + $0x860] sm:$0xff]
    %v388 = vld [vmem:[#allocation5 + $0x868] sm:$0xff]
    %v389 = vld [vmem:[#allocation5 + $0x870] sm:$0xff]
    %v390 = vld [vmem:[#allocation5 + $0x878] sm:$0xff]
    %v391 = vld [vmem:[#allocation5 + $0x880] sm:$0xff]
    %v392 = vld [vmem:[#allocation5 + $0x888] sm:$0xff]
    %v393 = vld [vmem:[#allocation5 + $0x890] sm:$0xff]
    %v394 = vld [vmem:[#allocation5 + $0x898] sm:$0xff]
    %v395 = vld [vmem:[#allocation5 + $0x8a0] sm:$0xff]
    %v396 = vld [vmem:[#allocation5 + $0x8a8] sm:$0xff]
    %v397 = vld [vmem:[#allocation5 + $0x8b0] sm:$0xff]
    %v398 = vld [vmem:[#allocation5 + $0x8b8] sm:$0xff]
    %v399 = vld [vmem:[#allocation5 + $0x8c0] sm:$0xff]
    %v400 = vld [vmem:[#allocation5 + $0x8c8] sm:$0xff]
    %v401 = vld [vmem:[#allocation5 + $0x8d0] sm:$0xff]
    %v402 = vld [vmem:[#allocation5 + $0x8d8] sm:$0xff]
    %v403 = vld [vmem:[#allocation5 + $0x8e0] sm:$0xff]
    %v404 = vld [vmem:[#allocation5 + $0x8e8] sm:$0xff]
    %v405 = vld [vmem:[#allocation5 + $0x8f0] sm:$0xff]
    %v406 = vld [vmem:[#allocation5 + $0x8f8] sm:$0xff]
    %v407 = vld [vmem:[#allocation5 + $0x900] sm:$0xff]
    %v408 = vld [vmem:[#allocation5 + $0x908] sm:$0xff]
    %v409 = vld [vmem:[#allocation5 + $0x910] sm:$0xff]
    %v410 = vld [vmem:[#allocation5 + $0x918] sm:$0xff]
    %v411 = vld [vmem:[#allocation5 + $0x920] sm:$0xff]
    %v412 = vld [vmem:[#allocation5 + $0x928] sm:$0xff]
    %v413 = vld [vmem:[#allocation5 + $0x930] sm:$0xff]
    %v414 = vld [vmem:[#allocation5 + $0x938] sm:$0xff]
    %v415 = vld [vmem:[#allocation5 + $0x940] sm:$0xff]
    %v416 = vld [vmem:[#allocation5 + $0x948] sm:$0xff]
    %v417 = vld [vmem:[#allocation5 + $0x950] sm:$0xff]
    %v418 = vld [vmem:[#allocation5 + $0x958] sm:$0xff]
    %v419 = vld [vmem:[#allocation5 + $0x960] sm:$0xff]
    %v420 = vld [vmem:[#allocation5 + $0x968] sm:$0xff]
    %v421 = vld [vmem:[#allocation5 + $0x970] sm:$0xff]
    %v422 = vld [vmem:[#allocation5 + $0x978] sm:$0xff]
    %v423 = vld [vmem:[#allocation5 + $0x980] sm:$0xff]
    %v424 = vld [vmem:[#allocation5 + $0x988] sm:$0xff]
    %v425 = vld [vmem:[#allocation5 + $0x990] sm:$0xff]
    %v426 = vld [vmem:[#allocation5 + $0x998] sm:$0xff]
    %v427 = vld [vmem:[#allocation5 + $0x9a0] sm:$0xff]
    %v428 = vld [vmem:[#allocation5 + $0x9a8] sm:$0xff]
    %v429 = vld [vmem:[#allocation5 + $0x9b0] sm:$0xff]
    %v430 = vld [vmem:[#allocation5 + $0x9b8] sm:$0xff]
    %v431 = vld [vmem:[#allocation5 + $0x9c0] sm:$0xff]
    %v432 = vld [vmem:[#allocation5 + $0x9c8] sm:$0xff]
    %v433 = vld [vmem:[#allocation5 + $0x9d0] sm:$0xff]
    %v434 = vld [vmem:[#allocation5 + $0x9d8] sm:$0xff]
    %v435 = vld [vmem:[#allocation5 + $0x9e0] sm:$0xff]
    %v436 = vld [vmem:[#allocation5 + $0x9e8] sm:$0xff]
    %v437 = vld [vmem:[#allocation5 + $0x9f0] sm:$0xff]
    %v438 = vld [vmem:[#allocation5 + $0x9f8] sm:$0xff]
    %v439 = vld [vmem:[#allocation5 + $0xa00] sm:$0xff]
    %v440 = vld [vmem:[#allocation5 + $0xa08] sm:$0xff]
    %v441 = vld [vmem:[#allocation5 + $0xa10] sm:$0xff]
    %v442 = vld [vmem:[#allocation5 + $0xa18] sm:$0xff]
    %v443 = vld [vmem:[#allocation5 + $0xa20] sm:$0xff]
    %v444 = vld [vmem:[#allocation5 + $0xa28] sm:$0xff]
    %v445 = vld [vmem:[#allocation5 + $0xa30] sm:$0xff]
    %v446 = vld [vmem:[#allocation5 + $0xa38] sm:$0xff]
    %v447 = vld [vmem:[#allocation5 + $0xa40] sm:$0xff]
    %v448 = vld [vmem:[#allocation5 + $0xa48] sm:$0xff]
    %v449 = vld [vmem:[#allocation5 + $0xa50] sm:$0xff]
    %v450 = vld [vmem:[#allocation5 + $0xa58] sm:$0xff]
    %v451 = vld [vmem:[#allocation5 + $0xa60] sm:$0xff]
    %v452 = vld [vmem:[#allocation5 + $0xa68] sm:$0xff]
    %v453 = vld [vmem:[#allocation5 + $0xa70] sm:$0xff]
    %v454 = vld [vmem:[#allocation5 + $0xa78] sm:$0xff]
    %v455 = vld [vmem:[#allocation5 + $0xa80] sm:$0xff]
    %v456 = vld [vmem:[#allocation5 + $0xa88] sm:$0xff]
    %v457 = vld [vmem:[#allocation5 + $0xa90] sm:$0xff]
    %v458 = vld [vmem:[#allocation5 + $0xa98] sm:$0xff]
    %v459 = vld [vmem:[#allocation5 + $0xaa0] sm:$0xff]
    %v460 = vld [vmem:[#allocation5 + $0xaa8] sm:$0xff]
    %v461 = vld [vmem:[#allocation5 + $0xab0] sm:$0xff]
    %v462 = vld [vmem:[#allocation5 + $0xab8] sm:$0xff]
    %v463 = vld [vmem:[#allocation5 + $0xac0] sm:$0xff]
    %v464 = vld [vmem:[#allocation5 + $0xac8] sm:$0xff]
    %v465 = vld [vmem:[#allocation5 + $0xad0] sm:$0xff]
    %v466 = vld [vmem:[#allocation5 + $0xad8] sm:$0xff]
    %v467 = vld [vmem:[#allocation5 + $0xae0] sm:$0xff]
    %v468 = vld [vmem:[#allocation5 + $0xae8] sm:$0xff]
    %v469 = vld [vmem:[#allocation5 + $0xaf0] sm:$0xff]
    %v470 = vld [vmem:[#allocation5 + $0xaf8] sm:$0xff]
    %v471 = vld [vmem:[#allocation5 + $0xb00] sm:$0xff]
    %v472 = vld [vmem:[#allocation5 + $0xb08] sm:$0xff]
    %v473 = vld [vmem:[#allocation5 + $0xb10] sm:$0xff]
    %v474 = vld [vmem:[#allocation5 + $0xb18] sm:$0xff]
    %v475 = vld [vmem:[#allocation5 + $0xb20] sm:$0xff]
    %v476 = vld [vmem:[#allocation5 + $0xb28] sm:$0xff]
    %v477 = vld [vmem:[#allocation5 + $0xb30] sm:$0xff]
    %v478 = vld [vmem:[#allocation5 + $0xb38] sm:$0xff]
    %v479 = vld [vmem:[#allocation5 + $0xb40] sm:$0xff]
    %v480 = vld [vmem:[#allocation5 + $0xb48] sm:$0xff]
    %v481 = vld [vmem:[#allocation5 + $0xb50] sm:$0xff]
    %v482 = vld [vmem:[#allocation5 + $0xb58] sm:$0xff]
    %v483 = vld [vmem:[#allocation5 + $0xb60] sm:$0xff]
    %v484 = vld [vmem:[#allocation5 + $0xb68] sm:$0xff]
    %v485 = vld [vmem:[#allocation5 + $0xb70] sm:$0xff]
    %v486 = vld [vmem:[#allocation5 + $0xb78] sm:$0xff]
    %v487 = vld [vmem:[#allocation5 + $0xb80] sm:$0xff]
    %v488 = vld [vmem:[#allocation5 + $0xb88] sm:$0xff]
    %v489 = vld [vmem:[#allocation5 + $0xb90] sm:$0xff]
    %v490 = vld [vmem:[#allocation5 + $0xb98] sm:$0xff]
    %v491 = vld [vmem:[#allocation5 + $0xba0] sm:$0xff]
    %v492 = vld [vmem:[#allocation5 + $0xba8] sm:$0xff]
    %v493 = vld [vmem:[#allocation5 + $0xbb0] sm:$0xff]
    %v494 = vld [vmem:[#allocation5 + $0xbb8] sm:$0xff]
    %v495 = vld [vmem:[#allocation5 + $0xbc0] sm:$0xff]
    %v496 = vld [vmem:[#allocation5 + $0xbc8] sm:$0xff]
    %v497 = vld [vmem:[#allocation5 + $0xbd0] sm:$0xff]
    %v498 = vld [vmem:[#allocation5 + $0xbd8] sm:$0xff]
    %v499 = vld [vmem:[#allocation5 + $0xbe0] sm:$0xff]
    %v500 = vld [vmem:[#allocation5 + $0xbe8] sm:$0xff]
    %v501 = vld [vmem:[#allocation5 + $0xbf0] sm:$0xff]
    %v502 = vld [vmem:[#allocation5 + $0xbf8] sm:$0xff]
    %v503 = vld [vmem:[#allocation5 + $0xc00] sm:$0xff]
    %v504 = vld [vmem:[#allocation5 + $0xc08] sm:$0xff]
    %v505 = vld [vmem:[#allocation5 + $0xc10] sm:$0xff]
    %v506 = vld [vmem:[#allocation5 + $0xc18] sm:$0xff]
    %v507 = vld [vmem:[#allocation5 + $0xc20] sm:$0xff]
    %v508 = vld [vmem:[#allocation5 + $0xc28] sm:$0xff]
    %v509 = vld [vmem:[#allocation5 + $0xc30] sm:$0xff]
    %v510 = vld [vmem:[#allocation5 + $0xc38] sm:$0xff]
    %v511 = vld [vmem:[#allocation5 + $0xc40] sm:$0xff]
    %v512 = vld [vmem:[#allocation5 + $0xc48] sm:$0xff]
    %v513 = vld [vmem:[#allocation5 + $0xc50] sm:$0xff]
    %v514 = vld [vmem:[#allocation5 + $0xc58] sm:$0xff]
    %v515 = vld [vmem:[#allocation5 + $0xc60] sm:$0xff]
    %v516 = vld [vmem:[#allocation5 + $0xc68] sm:$0xff]
    %v517 = vld [vmem:[#allocation5 + $0xc70] sm:$0xff]
    %v518 = vld [vmem:[#allocation5 + $0xc78] sm:$0xff]
    %v519 = vld [vmem:[#allocation5 + $0xc80] sm:$0xff]
    %v520 = vld [vmem:[#allocation5 + $0xc88] sm:$0xff]
    %v521 = vld [vmem:[#allocation5 + $0xc90] sm:$0xff]
    %v522 = vld [vmem:[#allocation5 + $0xc98] sm:$0xff]
    %v523 = vld [vmem:[#allocation5 + $0xca0] sm:$0xff]
    %v524 = vld [vmem:[#allocation5 + $0xca8] sm:$0xff]
    %v525 = vld [vmem:[#allocation5 + $0xcb0] sm:$0xff]
    %v526 = vld [vmem:[#allocation5 + $0xcb8] sm:$0xff]
    %v527 = vld [vmem:[#allocation5 + $0xcc0] sm:$0xff]
    %v528 = vld [vmem:[#allocation5 + $0xcc8] sm:$0xff]
    %v529 = vld [vmem:[#allocation5 + $0xcd0] sm:$0xff]
    %v530 = vld [vmem:[#allocation5 + $0xcd8] sm:$0xff]
    %v531 = vld [vmem:[#allocation5 + $0xce0] sm:$0xff]
    %v532 = vld [vmem:[#allocation5 + $0xce8] sm:$0xff]
    %v533 = vld [vmem:[#allocation5 + $0xcf0] sm:$0xff]
    %v534 = vld [vmem:[#allocation5 + $0xcf8] sm:$0xff]
    %v535 = vld [vmem:[#allocation5 + $0xd00] sm:$0xff]
    %v536 = vld [vmem:[#allocation5 + $0xd08] sm:$0xff]
    %v537 = vld [vmem:[#allocation5 + $0xd10] sm:$0xff]
    %v538 = vld [vmem:[#allocation5 + $0xd18] sm:$0xff]
    %v539 = vld [vmem:[#allocation5 + $0xd20] sm:$0xff]
    %v540 = vld [vmem:[#allocation5 + $0xd28] sm:$0xff]
    %v541 = vld [vmem:[#allocation5 + $0xd30] sm:$0xff]
    %v542 = vld [vmem:[#allocation5 + $0xd38] sm:$0xff]
    %v543 = vld [vmem:[#allocation5 + $0xd40] sm:$0xff]
    %v544 = vld [vmem:[#allocation5 + $0xd48] sm:$0xff]
    %v545 = vld [vmem:[#allocation5 + $0xd50] sm:$0xff]
    %v546 = vld [vmem:[#allocation5 + $0xd58] sm:$0xff]
    %v547 = vld [vmem:[#allocation5 + $0xd60] sm:$0xff]
    %v548 = vld [vmem:[#allocation5 + $0xd68] sm:$0xff]
    %v549 = vld [vmem:[#allocation5 + $0xd70] sm:$0xff]
    %v550 = vld [vmem:[#allocation5 + $0xd78] sm:$0xff]
    %v551 = vld [vmem:[#allocation5 + $0xd80] sm:$0xff]
    %v552 = vld [vmem:[#allocation5 + $0xd88] sm:$0xff]
    %v553 = vld [vmem:[#allocation5 + $0xd90] sm:$0xff]
    %v554 = vld [vmem:[#allocation5 + $0xd98] sm:$0xff]
    %v555 = vld [vmem:[#allocation5 + $0xda0] sm:$0xff]
    %v556 = vld [vmem:[#allocation5 + $0xda8] sm:$0xff]
    %v557 = vld [vmem:[#allocation5 + $0xdb0] sm:$0xff]
    %v558 = vld [vmem:[#allocation5 + $0xdb8] sm:$0xff]
    %v559 = vld [vmem:[#allocation5 + $0xdc0] sm:$0xff]
    %v560 = vld [vmem:[#allocation5 + $0xdc8] sm:$0xff]
    %v561 = vld [vmem:[#allocation5 + $0xdd0] sm:$0xff]
    %v562 = vld [vmem:[#allocation5 + $0xdd8] sm:$0xff]
    %v563 = vld [vmem:[#allocation5 + $0xde0] sm:$0xff]
    %v564 = vld [vmem:[#allocation5 + $0xde8] sm:$0xff]
    %v565 = vld [vmem:[#allocation5 + $0xdf0] sm:$0xff]
    %v566 = vld [vmem:[#allocation5 + $0xdf8] sm:$0xff]
    %v567 = vld [vmem:[#allocation5 + $0xe00] sm:$0xff]
    %v568 = vld [vmem:[#allocation5 + $0xe08] sm:$0xff]
    %v569 = vld [vmem:[#allocation5 + $0xe10] sm:$0xff]
    %v570 = vld [vmem:[#allocation5 + $0xe18] sm:$0xff]
    %v571 = vld [vmem:[#allocation5 + $0xe20] sm:$0xff]
    %v572 = vld [vmem:[#allocation5 + $0xe28] sm:$0xff]
    %v573 = vld [vmem:[#allocation5 + $0xe30] sm:$0xff]
    %v574 = vld [vmem:[#allocation5 + $0xe38] sm:$0xff]
    %v575 = vld [vmem:[#allocation5 + $0xe40] sm:$0xff]
    %v576 = vld [vmem:[#allocation5 + $0xe48] sm:$0xff]
    %v577 = vld [vmem:[#allocation5 + $0xe50] sm:$0xff]
    %v578 = vld [vmem:[#allocation5 + $0xe58] sm:$0xff]
    %v579 = vld [vmem:[#allocation5 + $0xe60] sm:$0xff]
    %v580 = vld [vmem:[#allocation5 + $0xe68] sm:$0xff]
    %v581 = vld [vmem:[#allocation5 + $0xe70] sm:$0xff]
    %v582 = vld [vmem:[#allocation5 + $0xe78] sm:$0xff]
    %v583 = vld [vmem:[#allocation5 + $0xe80] sm:$0xff]
    %v584 = vld [vmem:[#allocation5 + $0xe88] sm:$0xff]
    %v585 = vld [vmem:[#allocation5 + $0xe90] sm:$0xff]
    %v586 = vld [vmem:[#allocation5 + $0xe98] sm:$0xff]
    %v587 = vld [vmem:[#allocation5 + $0xea0] sm:$0xff]
    %v588 = vld [vmem:[#allocation5 + $0xea8] sm:$0xff]
    %v589 = vld [vmem:[#allocation5 + $0xeb0] sm:$0xff]
    %v590 = vld [vmem:[#allocation5 + $0xeb8] sm:$0xff]
    %v591 = vld [vmem:[#allocation5 + $0xec0] sm:$0xff]
    %v592 = vld [vmem:[#allocation5 + $0xec8] sm:$0xff]
    %v593 = vld [vmem:[#allocation5 + $0xed0] sm:$0xff]
    %v594 = vld [vmem:[#allocation5 + $0xed8] sm:$0xff]
    %v595 = vld [vmem:[#allocation5 + $0xee0] sm:$0xff]
    %v596 = vld [vmem:[#allocation5 + $0xee8] sm:$0xff]
    %v597 = vld [vmem:[#allocation5 + $0xef0] sm:$0xff]
    %v598 = vld [vmem:[#allocation5 + $0xef8] sm:$0xff]
    %v599 = vld [vmem:[#allocation5 + $0xf00] sm:$0xff]
    %v600 = vld [vmem:[#allocation5 + $0xf08] sm:$0xff]
    %v601 = vld [vmem:[#allocation5 + $0xf10] sm:$0xff]
    %v602 = vld [vmem:[#allocation5 + $0xf18] sm:$0xff]
    %v603 = vld [vmem:[#allocation5 + $0xf20] sm:$0xff]
    %v604 = vld [vmem:[#allocation5 + $0xf28] sm:$0xff]
    %v605 = vld [vmem:[#allocation5 + $0xf30] sm:$0xff]
    %v606 = vld [vmem:[#allocation5 + $0xf38] sm:$0xff]
    %v607 = vld [vmem:[#allocation5 + $0xf40] sm:$0xff]
    %v608 = vld [vmem:[#allocation5 + $0xf48] sm:$0xff]
    %v609 = vld [vmem:[#allocation7] sm:$0xff]
    %v610 = vld [vmem:[#allocation7 + $0x8] sm:$0x3]
    %v613 = vlaneseq
    %v614 = vshrl.u32 %v613, 7
    %v615 = vsub.s32 0, %v614
    %v616 = vrot.slane %v609, %v615
    %v617 = vlaneseq
    %v618 = vshrl.u32 %v617, 7
    %v619 = vsub.s32 1, %v618
    %v620 = vrot.slane %v609, %v619
    %v621 = vlaneseq
    %v622 = vshrl.u32 %v621, 7
    %v623 = vsub.s32 2, %v622
    %v624 = vrot.slane %v609, %v623
    %v625 = vlaneseq
    %v626 = vshrl.u32 %v625, 7
    %v627 = vsub.s32 3, %v626
    %v628 = vrot.slane %v609, %v627
    %v629 = vlaneseq
    %v630 = vshrl.u32 %v629, 7
    %v631 = vsub.s32 4, %v630
    %v632 = vrot.slane %v609, %v631
    %v633 = vlaneseq
    %v634 = vshrl.u32 %v633, 7
    %v635 = vsub.s32 5, %v634
    %v636 = vrot.slane %v609, %v635
    %v637 = vlaneseq
    %v638 = vshrl.u32 %v637, 7
    %v639 = vsub.s32 6, %v638
    %v640 = vrot.slane %v609, %v639
    %v641 = vlaneseq
    %v642 = vshrl.u32 %v641, 7
    %v643 = vsub.s32 7, %v642
    %v644 = vrot.slane %v609, %v643
    %v645 = vlaneseq
    %v646 = vshrl.u32 %v645, 7
    %v647 = vsub.s32 0, %v646
    %v648 = vrot.slane %v610, %v647
    %v649 = vlaneseq
    %v650 = vshrl.u32 %v649, 7
    %v651 = vsub.s32 1, %v650
    %v652 = vrot.slane %v610, %v651
    %v667 = vunpack.c.l.b16 %v115
    %v668 = vunpack.c.h.b16 %v115
    %v669 = vunpack.c.l.b16 %v116
    %v670 = vunpack.c.h.b16 %v116
    %v671 = vunpack.c.l.b16 %v117
    %v672 = vunpack.c.h.b16 %v117
    %v673 = vunpack.c.l.b16 %v118
    %v674 = vpack.c.b16 %v667, %v667
    %v675 = vpack.c.b16 %v668, %v668
    %v676 = vpack.c.b16 %v669, %v669
    %v677 = vpack.c.b16 %v670, %v670
    %v678 = vpack.c.b16 %v671, %v671
    %v679 = vpack.c.b16 %v672, %v672
    %v680 = vpack.c.b16 %v673, %v673
    %v1177 = vunpack.c.l.b16 %v119
    %v1178 = vunpack.c.h.b16 %v119
    %v1179 = vunpack.c.l.b16 %v120
    %v1180 = vunpack.c.h.b16 %v120
    %v1181 = vunpack.c.l.b16 %v121
    %v1182 = vunpack.c.h.b16 %v121
    %v1183 = vunpack.c.l.b16 %v122
    %v1184 = vunpack.c.h.b16 %v122
    %v1185 = vunpack.c.l.b16 %v123
    %v1186 = vunpack.c.h.b16 %v123
    %v1187 = vunpack.c.l.b16 %v124
    %v1188 = vunpack.c.h.b16 %v124
    %v1189 = vunpack.c.l.b16 %v125
    %v1190 = vunpack.c.h.b16 %v125
    %v1191 = vunpack.c.l.b16 %v126
    %v1192 = vunpack.c.h.b16 %v126
    %v1193 = vunpack.c.l.b16 %v127
    %v1194 = vunpack.c.h.b16 %v127
    %v1195 = vunpack.c.l.b16 %v128
    %v1196 = vunpack.c.h.b16 %v128
    %v1197 = vunpack.c.l.b16 %v129
    %v1198 = vunpack.c.h.b16 %v129
    %v1199 = vunpack.c.l.b16 %v130
    %v1200 = vunpack.c.h.b16 %v130
    %v1201 = vunpack.c.l.b16 %v131
    %v1202 = vunpack.c.h.b16 %v131
    %v1203 = vunpack.c.l.b16 %v132
    %v1204 = vunpack.c.h.b16 %v132
    %v1205 = vunpack.c.l.b16 %v133
    %v1206 = vunpack.c.h.b16 %v133
    %v1207 = vunpack.c.l.b16 %v134
    %v1208 = vunpack.c.h.b16 %v134
    %v1209 = vunpack.c.l.b16 %v135
    %v1210 = vunpack.c.h.b16 %v135
    %v1211 = vunpack.c.l.b16 %v136
    %v1212 = vunpack.c.h.b16 %v136
    %v1213 = vunpack.c.l.b16 %v137
    %v1214 = vunpack.c.h.b16 %v137
    %v1215 = vunpack.c.l.b16 %v138
    %v1216 = vunpack.c.h.b16 %v138
    %v1217 = vunpack.c.l.b16 %v139
    %v1218 = vunpack.c.h.b16 %v139
    %v1219 = vunpack.c.l.b16 %v140
    %v1220 = vunpack.c.h.b16 %v140
    %v1221 = vunpack.c.l.b16 %v141
    %v1222 = vunpack.c.h.b16 %v141
    %v1223 = vunpack.c.l.b16 %v142
    %v1224 = vunpack.c.h.b16 %v142
    %v1225 = vunpack.c.l.b16 %v143
    %v1226 = vunpack.c.h.b16 %v143
    %v1227 = vunpack.c.l.b16 %v144
    %v1228 = vunpack.c.h.b16 %v144
    %v1229 = vunpack.c.l.b16 %v145
    %v1230 = vunpack.c.h.b16 %v145
    %v1231 = vunpack.c.l.b16 %v146
    %v1232 = vunpack.c.h.b16 %v146
    %v1233 = vunpack.c.l.b16 %v147
    %v1234 = vunpack.c.h.b16 %v147
    %v1235 = vunpack.c.l.b16 %v148
    %v1236 = vunpack.c.h.b16 %v148
    %v1237 = vunpack.c.l.b16 %v149
    %v1238 = vunpack.c.h.b16 %v149
    %v1239 = vunpack.c.l.b16 %v150
    %v1240 = vunpack.c.h.b16 %v150
    %v1241 = vunpack.c.l.b16 %v151
    %v1242 = vunpack.c.h.b16 %v151
    %v1243 = vunpack.c.l.b16 %v152
    %v1244 = vunpack.c.h.b16 %v152
    %v1245 = vunpack.c.l.b16 %v153
    %v1246 = vunpack.c.h.b16 %v153
    %v1247 = vunpack.c.l.b16 %v154
    %v1248 = vunpack.c.h.b16 %v154
    %v1249 = vunpack.c.l.b16 %v155
    %v1250 = vunpack.c.h.b16 %v155
    %v1251 = vunpack.c.l.b16 %v156
    %v1252 = vunpack.c.h.b16 %v156
    %v1253 = vunpack.c.l.b16 %v157
    %v1254 = vunpack.c.h.b16 %v157
    %v1255 = vunpack.c.l.b16 %v158
    %v1256 = vunpack.c.h.b16 %v158
    %v1257 = vunpack.c.l.b16 %v159
    %v1258 = vunpack.c.h.b16 %v159
    %v1259 = vunpack.c.l.b16 %v160
    %v1260 = vunpack.c.h.b16 %v160
    %v1261 = vunpack.c.l.b16 %v161
    %v1262 = vunpack.c.h.b16 %v161
    %v1263 = vunpack.c.l.b16 %v162
    %v1264 = vunpack.c.h.b16 %v162
    %v1265 = vunpack.c.l.b16 %v163
    %v1266 = vunpack.c.h.b16 %v163
    %v1267 = vunpack.c.l.b16 %v164
    %v1268 = vunpack.c.h.b16 %v164
    %v1269 = vunpack.c.l.b16 %v165
    %v1270 = vunpack.c.h.b16 %v165
    %v1271 = vunpack.c.l.b16 %v166
    %v1272 = vunpack.c.h.b16 %v166
    %v1273 = vunpack.c.l.b16 %v167
    %v1274 = vunpack.c.h.b16 %v167
    %v1275 = vunpack.c.l.b16 %v168
    %v1276 = vunpack.c.h.b16 %v168
    %v1277 = vunpack.c.l.b16 %v169
    %v1278 = vunpack.c.h.b16 %v169
    %v1279 = vunpack.c.l.b16 %v170
    %v1280 = vunpack.c.h.b16 %v170
    %v1281 = vunpack.c.l.b16 %v171
    %v1282 = vunpack.c.h.b16 %v171
    %v1283 = vunpack.c.l.b16 %v172
    %v1284 = vunpack.c.h.b16 %v172
    %v1285 = vunpack.c.l.b16 %v173
    %v1286 = vunpack.c.h.b16 %v173
    %v1287 = vunpack.c.l.b16 %v174
    %v1288 = vunpack.c.h.b16 %v174
    %v1289 = vunpack.c.l.b16 %v175
    %v1290 = vunpack.c.h.b16 %v175
    %v1291 = vunpack.c.l.b16 %v176
    %v1292 = vunpack.c.h.b16 %v176
    %v1293 = vunpack.c.l.b16 %v177
    %v1294 = vunpack.c.h.b16 %v177
    %v1295 = vunpack.c.l.b16 %v178
    %v1296 = vunpack.c.h.b16 %v178
    %v1297 = vunpack.c.l.b16 %v179
    %v1298 = vunpack.c.h.b16 %v179
    %v1299 = vunpack.c.l.b16 %v180
    %v1300 = vunpack.c.h.b16 %v180
    %v1301 = vunpack.c.l.b16 %v181
    %v1302 = vunpack.c.h.b16 %v181
    %v1303 = vunpack.c.l.b16 %v182
    %v1304 = vunpack.c.h.b16 %v182
    %v1305 = vunpack.c.l.b16 %v183
    %v1306 = vunpack.c.h.b16 %v183
    %v1307 = vunpack.c.l.b16 %v184
    %v1308 = vunpack.c.h.b16 %v184
    %v1309 = vunpack.c.l.b16 %v185
    %v1310 = vunpack.c.h.b16 %v185
    %v1311 = vunpack.c.l.b16 %v186
    %v1312 = vunpack.c.h.b16 %v186
    %v1313 = vunpack.c.l.b16 %v187
    %v1314 = vunpack.c.h.b16 %v187
    %v1315 = vunpack.c.l.b16 %v188
    %v1316 = vunpack.c.h.b16 %v188
    %v1317 = vunpack.c.l.b16 %v189
    %v1318 = vunpack.c.h.b16 %v189
    %v1319 = vunpack.c.l.b16 %v190
    %v1320 = vunpack.c.h.b16 %v190
    %v1321 = vunpack.c.l.b16 %v191
    %v1322 = vunpack.c.h.b16 %v191
    %v1323 = vunpack.c.l.b16 %v192
    %v1324 = vunpack.c.h.b16 %v192
    %v1325 = vunpack.c.l.b16 %v193
    %v1326 = vunpack.c.h.b16 %v193
    %v1327 = vunpack.c.l.b16 %v194
    %v1328 = vunpack.c.h.b16 %v194
    %v1329 = vunpack.c.l.b16 %v195
    %v1330 = vunpack.c.h.b16 %v195
    %v1331 = vunpack.c.l.b16 %v196
    %v1332 = vunpack.c.h.b16 %v196
    %v1333 = vunpack.c.l.b16 %v197
    %v1334 = vunpack.c.h.b16 %v197
    %v1335 = vunpack.c.l.b16 %v198
    %v1336 = vunpack.c.h.b16 %v198
    %v1337 = vunpack.c.l.b16 %v199
    %v1338 = vunpack.c.h.b16 %v199
    %v1339 = vunpack.c.l.b16 %v200
    %v1340 = vunpack.c.h.b16 %v200
    %v1341 = vunpack.c.l.b16 %v201
    %v1342 = vunpack.c.h.b16 %v201
    %v1343 = vunpack.c.l.b16 %v202
    %v1344 = vunpack.c.h.b16 %v202
    %v1345 = vunpack.c.l.b16 %v203
    %v1346 = vunpack.c.h.b16 %v203
    %v1347 = vunpack.c.l.b16 %v204
    %v1348 = vunpack.c.h.b16 %v204
    %v1349 = vunpack.c.l.b16 %v205
    %v1350 = vunpack.c.h.b16 %v205
    %v1351 = vunpack.c.l.b16 %v206
    %v1352 = vunpack.c.h.b16 %v206
    %v1353 = vunpack.c.l.b16 %v207
    %v1354 = vunpack.c.h.b16 %v207
    %v1355 = vunpack.c.l.b16 %v208
    %v1356 = vunpack.c.h.b16 %v208
    %v1357 = vunpack.c.l.b16 %v209
    %v1358 = vunpack.c.h.b16 %v209
    %v1359 = vunpack.c.l.b16 %v210
    %v1360 = vunpack.c.h.b16 %v210
    %v1361 = vunpack.c.l.b16 %v211
    %v1362 = vunpack.c.h.b16 %v211
    %v1363 = vunpack.c.l.b16 %v212
    %v1364 = vunpack.c.h.b16 %v212
    %v1365 = vunpack.c.l.b16 %v213
    %v1366 = vunpack.c.h.b16 %v213
    %v1367 = vunpack.c.l.b16 %v214
    %v1368 = vunpack.c.h.b16 %v214
    %v1369 = vunpack.c.l.b16 %v215
    %v1370 = vunpack.c.h.b16 %v215
    %v1371 = vunpack.c.l.b16 %v216
    %v1372 = vunpack.c.h.b16 %v216
    %v1373 = vunpack.c.l.b16 %v217
    %v1374 = vunpack.c.h.b16 %v217
    %v1375 = vunpack.c.l.b16 %v218
    %v1376 = vunpack.c.h.b16 %v218
    %v1377 = vunpack.c.l.b16 %v219
    %v1378 = vunpack.c.h.b16 %v219
    %v1379 = vunpack.c.l.b16 %v220
    %v1380 = vunpack.c.h.b16 %v220
    %v1381 = vunpack.c.l.b16 %v221
    %v1382 = vunpack.c.h.b16 %v221
    %v1383 = vunpack.c.l.b16 %v222
    %v1384 = vunpack.c.h.b16 %v222
    %v1385 = vunpack.c.l.b16 %v223
    %v1386 = vunpack.c.h.b16 %v223
    %v1387 = vunpack.c.l.b16 %v224
    %v1388 = vunpack.c.h.b16 %v224
    %v1389 = vunpack.c.l.b16 %v225
    %v1390 = vunpack.c.h.b16 %v225
    %v1391 = vunpack.c.l.b16 %v226
    %v1392 = vunpack.c.h.b16 %v226
    %v1393 = vunpack.c.l.b16 %v227
    %v1394 = vunpack.c.h.b16 %v227
    %v1395 = vunpack.c.l.b16 %v228
    %v1396 = vunpack.c.h.b16 %v228
    %v1397 = vunpack.c.l.b16 %v229
    %v1398 = vunpack.c.h.b16 %v229
    %v1399 = vunpack.c.l.b16 %v230
    %v1400 = vunpack.c.h.b16 %v230
    %v1401 = vunpack.c.l.b16 %v231
    %v1402 = vunpack.c.h.b16 %v231
    %v1403 = vunpack.c.l.b16 %v232
    %v1404 = vunpack.c.h.b16 %v232
    %v1405 = vunpack.c.l.b16 %v233
    %v1406 = vunpack.c.h.b16 %v233
    %v1407 = vunpack.c.l.b16 %v234
    %v1408 = vunpack.c.h.b16 %v234
    %v1409 = vunpack.c.l.b16 %v235
    %v1410 = vunpack.c.h.b16 %v235
    %v1411 = vunpack.c.l.b16 %v236
    %v1412 = vunpack.c.h.b16 %v236
    %v1413 = vunpack.c.l.b16 %v237
    %v1414 = vunpack.c.h.b16 %v237
    %v1415 = vunpack.c.l.b16 %v238
    %v1416 = vunpack.c.h.b16 %v238
    %v1417 = vunpack.c.l.b16 %v239
    %v1418 = vunpack.c.h.b16 %v239
    %v1419 = vunpack.c.l.b16 %v240
    %v1420 = vunpack.c.h.b16 %v240
    %v1421 = vunpack.c.l.b16 %v241
    %v1422 = vunpack.c.h.b16 %v241
    %v1423 = vunpack.c.l.b16 %v242
    %v1424 = vunpack.c.h.b16 %v242
    %v1425 = vunpack.c.l.b16 %v243
    %v1426 = vunpack.c.h.b16 %v243
    %v1427 = vunpack.c.l.b16 %v244
    %v1428 = vunpack.c.h.b16 %v244
    %v1429 = vunpack.c.l.b16 %v245
    %v1430 = vunpack.c.h.b16 %v245
    %v1431 = vunpack.c.l.b16 %v246
    %v1432 = vunpack.c.h.b16 %v246
    %v1433 = vunpack.c.l.b16 %v247
    %v1434 = vunpack.c.h.b16 %v247
    %v1435 = vunpack.c.l.b16 %v248
    %v1436 = vunpack.c.h.b16 %v248
    %v1437 = vunpack.c.l.b16 %v249
    %v1438 = vunpack.c.h.b16 %v249
    %v1439 = vunpack.c.l.b16 %v250
    %v1440 = vunpack.c.h.b16 %v250
    %v1441 = vunpack.c.l.b16 %v251
    %v1442 = vunpack.c.h.b16 %v251
    %v1443 = vunpack.c.l.b16 %v252
    %v1444 = vunpack.c.h.b16 %v252
    %v1445 = vunpack.c.l.b16 %v253
    %v1446 = vunpack.c.h.b16 %v253
    %v1447 = vunpack.c.l.b16 %v254
    %v1448 = vunpack.c.h.b16 %v254
    %v1449 = vunpack.c.l.b16 %v255
    %v1450 = vunpack.c.h.b16 %v255
    %v1451 = vunpack.c.l.b16 %v256
    %v1452 = vunpack.c.h.b16 %v256
    %v1453 = vunpack.c.l.b16 %v257
    %v1454 = vunpack.c.h.b16 %v257
    %v1455 = vunpack.c.l.b16 %v258
    %v1456 = vunpack.c.h.b16 %v258
    %v1457 = vunpack.c.l.b16 %v259
    %v1458 = vunpack.c.h.b16 %v259
    %v1459 = vunpack.c.l.b16 %v260
    %v1460 = vunpack.c.h.b16 %v260
    %v1461 = vunpack.c.l.b16 %v261
    %v1462 = vunpack.c.h.b16 %v261
    %v1463 = vunpack.c.l.b16 %v262
    %v1464 = vunpack.c.h.b16 %v262
    %v1465 = vunpack.c.l.b16 %v263
    %v1466 = vunpack.c.h.b16 %v263
    %v1467 = vunpack.c.l.b16 %v264
    %v1468 = vunpack.c.h.b16 %v264
    %v1469 = vunpack.c.l.b16 %v265
    %v1470 = vunpack.c.h.b16 %v265
    %v1471 = vunpack.c.l.b16 %v266
    %v1472 = vunpack.c.h.b16 %v266
    %v1473 = vunpack.c.l.b16 %v267
    %v1474 = vunpack.c.h.b16 %v267
    %v1475 = vunpack.c.l.b16 %v268
    %v1476 = vunpack.c.h.b16 %v268
    %v1477 = vunpack.c.l.b16 %v269
    %v1478 = vunpack.c.h.b16 %v269
    %v1479 = vunpack.c.l.b16 %v270
    %v1480 = vunpack.c.h.b16 %v270
    %v1481 = vunpack.c.l.b16 %v271
    %v1482 = vunpack.c.h.b16 %v271
    %v1483 = vunpack.c.l.b16 %v272
    %v1484 = vunpack.c.h.b16 %v272
    %v1485 = vunpack.c.l.b16 %v273
    %v1486 = vunpack.c.h.b16 %v273
    %v1487 = vunpack.c.l.b16 %v274
    %v1488 = vunpack.c.h.b16 %v274
    %v1489 = vunpack.c.l.b16 %v275
    %v1490 = vunpack.c.h.b16 %v275
    %v1491 = vunpack.c.l.b16 %v276
    %v1492 = vunpack.c.h.b16 %v276
    %v1493 = vunpack.c.l.b16 %v277
    %v1494 = vunpack.c.h.b16 %v277
    %v1495 = vunpack.c.l.b16 %v278
    %v1496 = vunpack.c.h.b16 %v278
    %v1497 = vunpack.c.l.b16 %v279
    %v1498 = vunpack.c.h.b16 %v279
    %v1499 = vunpack.c.l.b16 %v280
    %v1500 = vunpack.c.h.b16 %v280
    %v1501 = vunpack.c.l.b16 %v281
    %v1502 = vunpack.c.h.b16 %v281
    %v1503 = vunpack.c.l.b16 %v282
    %v1504 = vunpack.c.h.b16 %v282
    %v1505 = vunpack.c.l.b16 %v283
    %v1506 = vunpack.c.h.b16 %v283
    %v1507 = vunpack.c.l.b16 %v284
    %v1508 = vunpack.c.h.b16 %v284
    %v1509 = vunpack.c.l.b16 %v285
    %v1510 = vunpack.c.h.b16 %v285
    %v1511 = vunpack.c.l.b16 %v286
    %v1512 = vunpack.c.h.b16 %v286
    %v1513 = vunpack.c.l.b16 %v287
    %v1514 = vunpack.c.h.b16 %v287
    %v1515 = vunpack.c.l.b16 %v288
    %v1516 = vunpack.c.h.b16 %v288
    %v1517 = vunpack.c.l.b16 %v289
    %v1518 = vunpack.c.h.b16 %v289
    %v1519 = vunpack.c.l.b16 %v290
    %v1520 = vunpack.c.h.b16 %v290
    %v1521 = vunpack.c.l.b16 %v291
    %v1522 = vunpack.c.h.b16 %v291
    %v1523 = vunpack.c.l.b16 %v292
    %v1524 = vunpack.c.h.b16 %v292
    %v1525 = vunpack.c.l.b16 %v293
    %v1526 = vunpack.c.h.b16 %v293
    %v1527 = vunpack.c.l.b16 %v294
    %v1528 = vunpack.c.h.b16 %v294
    %v1529 = vunpack.c.l.b16 %v295
    %v1530 = vunpack.c.h.b16 %v295
    %v1531 = vunpack.c.l.b16 %v296
    %v1532 = vunpack.c.h.b16 %v296
    %v1533 = vunpack.c.l.b16 %v297
    %v1534 = vunpack.c.h.b16 %v297
    %v1535 = vunpack.c.l.b16 %v298
    %v1536 = vunpack.c.h.b16 %v298
    %v1537 = vunpack.c.l.b16 %v299
    %v1538 = vunpack.c.h.b16 %v299
    %v1539 = vunpack.c.l.b16 %v300
    %v1540 = vunpack.c.h.b16 %v300
    %v1541 = vunpack.c.l.b16 %v301
    %v1542 = vunpack.c.h.b16 %v301
    %v1543 = vunpack.c.l.b16 %v302
    %v1544 = vunpack.c.h.b16 %v302
    %v1545 = vunpack.c.l.b16 %v303
    %v1546 = vunpack.c.h.b16 %v303
    %v1547 = vunpack.c.l.b16 %v304
    %v1548 = vunpack.c.h.b16 %v304
    %v1549 = vunpack.c.l.b16 %v305
    %v1550 = vunpack.c.h.b16 %v305
    %v1551 = vunpack.c.l.b16 %v306
    %v1552 = vunpack.c.h.b16 %v306
    %v1553 = vunpack.c.l.b16 %v307
    %v1554 = vunpack.c.h.b16 %v307
    %v1555 = vunpack.c.l.b16 %v308
    %v1556 = vunpack.c.h.b16 %v308
    %v1557 = vunpack.c.l.b16 %v309
    %v1558 = vunpack.c.h.b16 %v309
    %v1559 = vunpack.c.l.b16 %v310
    %v1560 = vunpack.c.h.b16 %v310
    %v1561 = vunpack.c.l.b16 %v311
    %v1562 = vunpack.c.h.b16 %v311
    %v1563 = vunpack.c.l.b16 %v312
    %v1564 = vunpack.c.h.b16 %v312
    %v1565 = vunpack.c.l.b16 %v313
    %v1566 = vunpack.c.h.b16 %v313
    %v1567 = vunpack.c.l.b16 %v314
    %v1568 = vunpack.c.h.b16 %v314
    %v1569 = vunpack.c.l.b16 %v315
    %v1570 = vunpack.c.h.b16 %v315
    %v1571 = vunpack.c.l.b16 %v316
    %v1572 = vunpack.c.h.b16 %v316
    %v1573 = vunpack.c.l.b16 %v317
    %v1574 = vunpack.c.h.b16 %v317
    %v1575 = vunpack.c.l.b16 %v318
    %v1576 = vunpack.c.h.b16 %v318
    %v1577 = vunpack.c.l.b16 %v319
    %v1578 = vunpack.c.h.b16 %v319
    %v1579 = vunpack.c.l.b16 %v320
    %v1580 = vunpack.c.h.b16 %v320
    %v1581 = vunpack.c.l.b16 %v321
    %v1582 = vunpack.c.h.b16 %v321
    %v1583 = vunpack.c.l.b16 %v322
    %v1584 = vunpack.c.h.b16 %v322
    %v1585 = vunpack.c.l.b16 %v323
    %v1586 = vunpack.c.h.b16 %v323
    %v1587 = vunpack.c.l.b16 %v324
    %v1588 = vunpack.c.h.b16 %v324
    %v1589 = vunpack.c.l.b16 %v325
    %v1590 = vunpack.c.h.b16 %v325
    %v1591 = vunpack.c.l.b16 %v326
    %v1592 = vunpack.c.h.b16 %v326
    %v1593 = vunpack.c.l.b16 %v327
    %v1594 = vunpack.c.h.b16 %v327
    %v1595 = vunpack.c.l.b16 %v328
    %v1596 = vunpack.c.h.b16 %v328
    %v1597 = vunpack.c.l.b16 %v329
    %v1598 = vunpack.c.h.b16 %v329
    %v1599 = vunpack.c.l.b16 %v330
    %v1600 = vunpack.c.h.b16 %v330
    %v1601 = vunpack.c.l.b16 %v331
    %v1602 = vunpack.c.h.b16 %v331
    %v1603 = vunpack.c.l.b16 %v332
    %v1604 = vunpack.c.h.b16 %v332
    %v1605 = vunpack.c.l.b16 %v333
    %v1606 = vunpack.c.h.b16 %v333
    %v1607 = vunpack.c.l.b16 %v334
    %v1608 = vunpack.c.h.b16 %v334
    %v1609 = vunpack.c.l.b16 %v335
    %v1610 = vunpack.c.h.b16 %v335
    %v1611 = vunpack.c.l.b16 %v336
    %v1612 = vunpack.c.h.b16 %v336
    %v1613 = vunpack.c.l.b16 %v337
    %v1614 = vunpack.c.h.b16 %v337
    %v1615 = vunpack.c.l.b16 %v338
    %v1616 = vunpack.c.h.b16 %v338
    %v1617 = vunpack.c.l.b16 %v339
    %v1618 = vunpack.c.h.b16 %v339
    %v1619 = vunpack.c.l.b16 %v340
    %v1620 = vunpack.c.h.b16 %v340
    %v1621 = vunpack.c.l.b16 %v341
    %v1622 = vunpack.c.h.b16 %v341
    %v1623 = vunpack.c.l.b16 %v342
    %v1624 = vunpack.c.h.b16 %v342
    %v1625 = vunpack.c.l.b16 %v343
    %v1626 = vunpack.c.h.b16 %v343
    %v1627 = vunpack.c.l.b16 %v344
    %v1628 = vunpack.c.h.b16 %v344
    %v1629 = vunpack.c.l.b16 %v345
    %v1630 = vunpack.c.h.b16 %v345
    %v1631 = vunpack.c.l.b16 %v346
    %v1632 = vunpack.c.h.b16 %v346
    %v1633 = vunpack.c.l.b16 %v347
    %v1634 = vunpack.c.h.b16 %v347
    %v1635 = vunpack.c.l.b16 %v348
    %v1636 = vunpack.c.h.b16 %v348
    %v1637 = vunpack.c.l.b16 %v349
    %v1638 = vunpack.c.h.b16 %v349
    %v1639 = vunpack.c.l.b16 %v350
    %v1640 = vunpack.c.h.b16 %v350
    %v1641 = vunpack.c.l.b16 %v351
    %v1642 = vunpack.c.h.b16 %v351
    %v1643 = vunpack.c.l.b16 %v352
    %v1644 = vunpack.c.h.b16 %v352
    %v1645 = vunpack.c.l.b16 %v353
    %v1646 = vunpack.c.h.b16 %v353
    %v1647 = vunpack.c.l.b16 %v354
    %v1648 = vunpack.c.h.b16 %v354
    %v1649 = vunpack.c.l.b16 %v355
    %v1650 = vunpack.c.h.b16 %v355
    %v1651 = vunpack.c.l.b16 %v356
    %v1652 = vunpack.c.h.b16 %v356
    %v1653 = vunpack.c.l.b16 %v357
    %v1654 = vunpack.c.h.b16 %v357
    %v1655 = vunpack.c.l.b16 %v358
    %v1656 = vunpack.c.h.b16 %v358
    %v1657 = vunpack.c.l.b16 %v359
    %v1658 = vunpack.c.h.b16 %v359
    %v1659 = vunpack.c.l.b16 %v360
    %v1660 = vunpack.c.h.b16 %v360
    %v1661 = vunpack.c.l.b16 %v361
    %v1662 = vunpack.c.h.b16 %v361
    %v1663 = vunpack.c.l.b16 %v362
    %v1664 = vunpack.c.h.b16 %v362
    %v1665 = vunpack.c.l.b16 %v363
    %v1666 = vunpack.c.h.b16 %v363
    %v1667 = vunpack.c.l.b16 %v364
    %v1668 = vunpack.c.h.b16 %v364
    %v1669 = vunpack.c.l.b16 %v365
    %v1670 = vunpack.c.h.b16 %v365
    %v1671 = vunpack.c.l.b16 %v366
    %v1672 = vunpack.c.h.b16 %v366
    %v1673 = vunpack.c.l.b16 %v367
    %v1674 = vunpack.c.h.b16 %v367
    %v1675 = vunpack.c.l.b16 %v368
    %v1676 = vunpack.c.h.b16 %v368
    %v1677 = vunpack.c.l.b16 %v369
    %v1678 = vunpack.c.h.b16 %v369
    %v1679 = vunpack.c.l.b16 %v370
    %v1680 = vunpack.c.h.b16 %v370
    %v1681 = vunpack.c.l.b16 %v371
    %v1682 = vunpack.c.h.b16 %v371
    %v1683 = vunpack.c.l.b16 %v372
    %v1684 = vunpack.c.h.b16 %v372
    %v1685 = vunpack.c.l.b16 %v373
    %v1686 = vunpack.c.h.b16 %v373
    %v1687 = vunpack.c.l.b16 %v374
    %v1688 = vunpack.c.h.b16 %v374
    %v1689 = vunpack.c.l.b16 %v375
    %v1690 = vunpack.c.h.b16 %v375
    %v1691 = vunpack.c.l.b16 %v376
    %v1692 = vunpack.c.h.b16 %v376
    %v1693 = vunpack.c.l.b16 %v377
    %v1694 = vunpack.c.h.b16 %v377
    %v1695 = vunpack.c.l.b16 %v378
    %v1696 = vunpack.c.h.b16 %v378
    %v1697 = vunpack.c.l.b16 %v379
    %v1698 = vunpack.c.h.b16 %v379
    %v1699 = vunpack.c.l.b16 %v380
    %v1700 = vunpack.c.h.b16 %v380
    %v1701 = vunpack.c.l.b16 %v381
    %v1702 = vunpack.c.h.b16 %v381
    %v1703 = vunpack.c.l.b16 %v382
    %v1704 = vunpack.c.h.b16 %v382
    %v1705 = vunpack.c.l.b16 %v383
    %v1706 = vunpack.c.h.b16 %v383
    %v1707 = vunpack.c.l.b16 %v384
    %v1708 = vunpack.c.h.b16 %v384
    %v1709 = vunpack.c.l.b16 %v385
    %v1710 = vunpack.c.h.b16 %v385
    %v1711 = vunpack.c.l.b16 %v386
    %v1712 = vunpack.c.h.b16 %v386
    %v1713 = vunpack.c.l.b16 %v387
    %v1714 = vunpack.c.h.b16 %v387
    %v1715 = vunpack.c.l.b16 %v388
    %v1716 = vunpack.c.h.b16 %v388
    %v1717 = vunpack.c.l.b16 %v389
    %v1718 = vunpack.c.h.b16 %v389
    %v1719 = vunpack.c.l.b16 %v390
    %v1720 = vunpack.c.h.b16 %v390
    %v1721 = vunpack.c.l.b16 %v391
    %v1722 = vunpack.c.h.b16 %v391
    %v1723 = vunpack.c.l.b16 %v392
    %v1724 = vunpack.c.h.b16 %v392
    %v1725 = vunpack.c.l.b16 %v393
    %v1726 = vunpack.c.h.b16 %v393
    %v1727 = vunpack.c.l.b16 %v394
    %v1728 = vunpack.c.h.b16 %v394
    %v1729 = vunpack.c.l.b16 %v395
    %v1730 = vunpack.c.h.b16 %v395
    %v1731 = vunpack.c.l.b16 %v396
    %v1732 = vunpack.c.h.b16 %v396
    %v1733 = vunpack.c.l.b16 %v397
    %v1734 = vunpack.c.h.b16 %v397
    %v1735 = vunpack.c.l.b16 %v398
    %v1736 = vunpack.c.h.b16 %v398
    %v1737 = vunpack.c.l.b16 %v399
    %v1738 = vunpack.c.h.b16 %v399
    %v1739 = vunpack.c.l.b16 %v400
    %v1740 = vunpack.c.h.b16 %v400
    %v1741 = vunpack.c.l.b16 %v401
    %v1742 = vunpack.c.h.b16 %v401
    %v1743 = vunpack.c.l.b16 %v402
    %v1744 = vunpack.c.h.b16 %v402
    %v1745 = vunpack.c.l.b16 %v403
    %v1746 = vunpack.c.h.b16 %v403
    %v1747 = vunpack.c.l.b16 %v404
    %v1748 = vunpack.c.h.b16 %v404
    %v1749 = vunpack.c.l.b16 %v405
    %v1750 = vunpack.c.h.b16 %v405
    %v1751 = vunpack.c.l.b16 %v406
    %v1752 = vunpack.c.h.b16 %v406
    %v1753 = vunpack.c.l.b16 %v407
    %v1754 = vunpack.c.h.b16 %v407
    %v1755 = vunpack.c.l.b16 %v408
    %v1756 = vunpack.c.h.b16 %v408
    %v1757 = vunpack.c.l.b16 %v409
    %v1758 = vunpack.c.h.b16 %v409
    %v1759 = vunpack.c.l.b16 %v410
    %v1760 = vunpack.c.h.b16 %v410
    %v1761 = vunpack.c.l.b16 %v411
    %v1762 = vunpack.c.h.b16 %v411
    %v1763 = vunpack.c.l.b16 %v412
    %v1764 = vunpack.c.h.b16 %v412
    %v1765 = vunpack.c.l.b16 %v413
    %v1766 = vunpack.c.h.b16 %v413
    %v1767 = vunpack.c.l.b16 %v414
    %v1768 = vunpack.c.h.b16 %v414
    %v1769 = vunpack.c.l.b16 %v415
    %v1770 = vunpack.c.h.b16 %v415
    %v1771 = vunpack.c.l.b16 %v416
    %v1772 = vunpack.c.h.b16 %v416
    %v1773 = vunpack.c.l.b16 %v417
    %v1774 = vunpack.c.h.b16 %v417
    %v1775 = vunpack.c.l.b16 %v418
    %v1776 = vunpack.c.h.b16 %v418
    %v1777 = vunpack.c.l.b16 %v419
    %v1778 = vunpack.c.h.b16 %v419
    %v1779 = vunpack.c.l.b16 %v420
    %v1780 = vunpack.c.h.b16 %v420
    %v1781 = vunpack.c.l.b16 %v421
    %v1782 = vunpack.c.h.b16 %v421
    %v1783 = vunpack.c.l.b16 %v422
    %v1784 = vunpack.c.h.b16 %v422
    %v1785 = vunpack.c.l.b16 %v423
    %v1786 = vunpack.c.h.b16 %v423
    %v1787 = vunpack.c.l.b16 %v424
    %v1788 = vunpack.c.h.b16 %v424
    %v1789 = vunpack.c.l.b16 %v425
    %v1790 = vunpack.c.h.b16 %v425
    %v1791 = vunpack.c.l.b16 %v426
    %v1792 = vunpack.c.h.b16 %v426
    %v1793 = vunpack.c.l.b16 %v427
    %v1794 = vunpack.c.h.b16 %v427
    %v1795 = vunpack.c.l.b16 %v428
    %v1796 = vunpack.c.h.b16 %v428
    %v1797 = vunpack.c.l.b16 %v429
    %v1798 = vunpack.c.h.b16 %v429
    %v1799 = vunpack.c.l.b16 %v430
    %v1800 = vunpack.c.h.b16 %v430
    %v1801 = vunpack.c.l.b16 %v431
    %v1802 = vunpack.c.h.b16 %v431
    %v1803 = vunpack.c.l.b16 %v432
    %v1804 = vunpack.c.h.b16 %v432
    %v1805 = vunpack.c.l.b16 %v433
    %v1806 = vunpack.c.h.b16 %v433
    %v1807 = vunpack.c.l.b16 %v434
    %v1808 = vunpack.c.h.b16 %v434
    %v1809 = vunpack.c.l.b16 %v435
    %v1810 = vunpack.c.h.b16 %v435
    %v1811 = vunpack.c.l.b16 %v436
    %v1812 = vunpack.c.h.b16 %v436
    %v1813 = vunpack.c.l.b16 %v437
    %v1814 = vunpack.c.h.b16 %v437
    %v1815 = vunpack.c.l.b16 %v438
    %v1816 = vunpack.c.h.b16 %v438
    %v1817 = vunpack.c.l.b16 %v439
    %v1818 = vunpack.c.h.b16 %v439
    %v1819 = vunpack.c.l.b16 %v440
    %v1820 = vunpack.c.h.b16 %v440
    %v1821 = vunpack.c.l.b16 %v441
    %v1822 = vunpack.c.h.b16 %v441
    %v1823 = vunpack.c.l.b16 %v442
    %v1824 = vunpack.c.h.b16 %v442
    %v1825 = vunpack.c.l.b16 %v443
    %v1826 = vunpack.c.h.b16 %v443
    %v1827 = vunpack.c.l.b16 %v444
    %v1828 = vunpack.c.h.b16 %v444
    %v1829 = vunpack.c.l.b16 %v445
    %v1830 = vunpack.c.h.b16 %v445
    %v1831 = vunpack.c.l.b16 %v446
    %v1832 = vunpack.c.h.b16 %v446
    %v1833 = vunpack.c.l.b16 %v447
    %v1834 = vunpack.c.h.b16 %v447
    %v1835 = vunpack.c.l.b16 %v448
    %v1836 = vunpack.c.h.b16 %v448
    %v1837 = vunpack.c.l.b16 %v449
    %v1838 = vunpack.c.h.b16 %v449
    %v1839 = vunpack.c.l.b16 %v450
    %v1840 = vunpack.c.h.b16 %v450
    %v1841 = vunpack.c.l.b16 %v451
    %v1842 = vunpack.c.h.b16 %v451
    %v1843 = vunpack.c.l.b16 %v452
    %v1844 = vunpack.c.h.b16 %v452
    %v1845 = vunpack.c.l.b16 %v453
    %v1846 = vunpack.c.h.b16 %v453
    %v1847 = vunpack.c.l.b16 %v454
    %v1848 = vunpack.c.h.b16 %v454
    %v1849 = vunpack.c.l.b16 %v455
    %v1850 = vunpack.c.h.b16 %v455
    %v1851 = vunpack.c.l.b16 %v456
    %v1852 = vunpack.c.h.b16 %v456
    %v1853 = vunpack.c.l.b16 %v457
    %v1854 = vunpack.c.h.b16 %v457
    %v1855 = vunpack.c.l.b16 %v458
    %v1856 = vunpack.c.h.b16 %v458
    %v1857 = vunpack.c.l.b16 %v459
    %v1858 = vunpack.c.h.b16 %v459
    %v1859 = vunpack.c.l.b16 %v460
    %v1860 = vunpack.c.h.b16 %v460
    %v1861 = vunpack.c.l.b16 %v461
    %v1862 = vunpack.c.h.b16 %v461
    %v1863 = vunpack.c.l.b16 %v462
    %v1864 = vunpack.c.h.b16 %v462
    %v1865 = vunpack.c.l.b16 %v463
    %v1866 = vunpack.c.h.b16 %v463
    %v1867 = vunpack.c.l.b16 %v464
    %v1868 = vunpack.c.h.b16 %v464
    %v1869 = vunpack.c.l.b16 %v465
    %v1870 = vunpack.c.h.b16 %v465
    %v1871 = vunpack.c.l.b16 %v466
    %v1872 = vunpack.c.h.b16 %v466
    %v1873 = vunpack.c.l.b16 %v467
    %v1874 = vunpack.c.h.b16 %v467
    %v1875 = vunpack.c.l.b16 %v468
    %v1876 = vunpack.c.h.b16 %v468
    %v1877 = vunpack.c.l.b16 %v469
    %v1878 = vunpack.c.h.b16 %v469
    %v1879 = vunpack.c.l.b16 %v470
    %v1880 = vunpack.c.h.b16 %v470
    %v1881 = vunpack.c.l.b16 %v471
    %v1882 = vunpack.c.h.b16 %v471
    %v1883 = vunpack.c.l.b16 %v472
    %v1884 = vunpack.c.h.b16 %v472
    %v1885 = vunpack.c.l.b16 %v473
    %v1886 = vunpack.c.h.b16 %v473
    %v1887 = vunpack.c.l.b16 %v474
    %v1888 = vunpack.c.h.b16 %v474
    %v1889 = vunpack.c.l.b16 %v475
    %v1890 = vunpack.c.h.b16 %v475
    %v1891 = vunpack.c.l.b16 %v476
    %v1892 = vunpack.c.h.b16 %v476
    %v1893 = vunpack.c.l.b16 %v477
    %v1894 = vunpack.c.h.b16 %v477
    %v1895 = vunpack.c.l.b16 %v478
    %v1896 = vunpack.c.h.b16 %v478
    %v1897 = vunpack.c.l.b16 %v479
    %v1898 = vunpack.c.h.b16 %v479
    %v1899 = vunpack.c.l.b16 %v480
    %v1900 = vunpack.c.h.b16 %v480
    %v1901 = vunpack.c.l.b16 %v481
    %v1902 = vunpack.c.h.b16 %v481
    %v1903 = vunpack.c.l.b16 %v482
    %v1904 = vunpack.c.h.b16 %v482
    %v1905 = vunpack.c.l.b16 %v483
    %v1906 = vunpack.c.h.b16 %v483
    %v1907 = vunpack.c.l.b16 %v484
    %v1908 = vunpack.c.h.b16 %v484
    %v1909 = vunpack.c.l.b16 %v485
    %v1910 = vunpack.c.h.b16 %v485
    %v1911 = vunpack.c.l.b16 %v486
    %v1912 = vunpack.c.h.b16 %v486
    %v1913 = vunpack.c.l.b16 %v487
    %v1914 = vunpack.c.h.b16 %v487
    %v1915 = vunpack.c.l.b16 %v488
    %v1916 = vunpack.c.h.b16 %v488
    %v1917 = vunpack.c.l.b16 %v489
    %v1918 = vunpack.c.h.b16 %v489
    %v1919 = vunpack.c.l.b16 %v490
    %v1920 = vunpack.c.h.b16 %v490
    %v1921 = vunpack.c.l.b16 %v491
    %v1922 = vunpack.c.h.b16 %v491
    %v1923 = vunpack.c.l.b16 %v492
    %v1924 = vunpack.c.h.b16 %v492
    %v1925 = vunpack.c.l.b16 %v493
    %v1926 = vunpack.c.h.b16 %v493
    %v1927 = vunpack.c.l.b16 %v494
    %v1928 = vunpack.c.h.b16 %v494
    %v1929 = vunpack.c.l.b16 %v495
    %v1930 = vunpack.c.h.b16 %v495
    %v1931 = vunpack.c.l.b16 %v496
    %v1932 = vunpack.c.h.b16 %v496
    %v1933 = vunpack.c.l.b16 %v497
    %v1934 = vunpack.c.h.b16 %v497
    %v1935 = vunpack.c.l.b16 %v498
    %v1936 = vunpack.c.h.b16 %v498
    %v1937 = vunpack.c.l.b16 %v499
    %v1938 = vunpack.c.h.b16 %v499
    %v1939 = vunpack.c.l.b16 %v500
    %v1940 = vunpack.c.h.b16 %v500
    %v1941 = vunpack.c.l.b16 %v501
    %v1942 = vunpack.c.h.b16 %v501
    %v1943 = vunpack.c.l.b16 %v502
    %v1944 = vunpack.c.h.b16 %v502
    %v1945 = vunpack.c.l.b16 %v503
    %v1946 = vunpack.c.h.b16 %v503
    %v1947 = vunpack.c.l.b16 %v504
    %v1948 = vunpack.c.h.b16 %v504
    %v1949 = vunpack.c.l.b16 %v505
    %v1950 = vunpack.c.h.b16 %v505
    %v1951 = vunpack.c.l.b16 %v506
    %v1952 = vunpack.c.h.b16 %v506
    %v1953 = vunpack.c.l.b16 %v507
    %v1954 = vunpack.c.h.b16 %v507
    %v1955 = vunpack.c.l.b16 %v508
    %v1956 = vunpack.c.h.b16 %v508
    %v1957 = vunpack.c.l.b16 %v509
    %v1958 = vunpack.c.h.b16 %v509
    %v1959 = vunpack.c.l.b16 %v510
    %v1960 = vunpack.c.h.b16 %v510
    %v1961 = vunpack.c.l.b16 %v511
    %v1962 = vunpack.c.h.b16 %v511
    %v1963 = vunpack.c.l.b16 %v512
    %v1964 = vunpack.c.h.b16 %v512
    %v1965 = vunpack.c.l.b16 %v513
    %v1966 = vunpack.c.h.b16 %v513
    %v1967 = vunpack.c.l.b16 %v514
    %v1968 = vunpack.c.h.b16 %v514
    %v1969 = vunpack.c.l.b16 %v515
    %v1970 = vunpack.c.h.b16 %v515
    %v1971 = vunpack.c.l.b16 %v516
    %v1972 = vunpack.c.h.b16 %v516
    %v1973 = vunpack.c.l.b16 %v517
    %v1974 = vunpack.c.h.b16 %v517
    %v1975 = vunpack.c.l.b16 %v518
    %v1976 = vunpack.c.h.b16 %v518
    %v1977 = vunpack.c.l.b16 %v519
    %v1978 = vunpack.c.h.b16 %v519
    %v1979 = vunpack.c.l.b16 %v520
    %v1980 = vunpack.c.h.b16 %v520
    %v1981 = vunpack.c.l.b16 %v521
    %v1982 = vunpack.c.h.b16 %v521
    %v1983 = vunpack.c.l.b16 %v522
    %v1984 = vunpack.c.h.b16 %v522
    %v1985 = vunpack.c.l.b16 %v523
    %v1986 = vunpack.c.h.b16 %v523
    %v1987 = vunpack.c.l.b16 %v524
    %v1988 = vunpack.c.h.b16 %v524
    %v1989 = vunpack.c.l.b16 %v525
    %v1990 = vunpack.c.h.b16 %v525
    %v1991 = vunpack.c.l.b16 %v526
    %v1992 = vunpack.c.h.b16 %v526
    %v1993 = vunpack.c.l.b16 %v527
    %v1994 = vunpack.c.h.b16 %v527
    %v1995 = vunpack.c.l.b16 %v528
    %v1996 = vunpack.c.h.b16 %v528
    %v1997 = vunpack.c.l.b16 %v529
    %v1998 = vunpack.c.h.b16 %v529
    %v1999 = vunpack.c.l.b16 %v530
    %v2000 = vunpack.c.h.b16 %v530
    %v2001 = vunpack.c.l.b16 %v531
    %v2002 = vunpack.c.h.b16 %v531
    %v2003 = vunpack.c.l.b16 %v532
    %v2004 = vunpack.c.h.b16 %v532
    %v2005 = vunpack.c.l.b16 %v533
    %v2006 = vunpack.c.h.b16 %v533
    %v2007 = vunpack.c.l.b16 %v534
    %v2008 = vunpack.c.h.b16 %v534
    %v2009 = vunpack.c.l.b16 %v535
    %v2010 = vunpack.c.h.b16 %v535
    %v2011 = vunpack.c.l.b16 %v536
    %v2012 = vunpack.c.h.b16 %v536
    %v2013 = vunpack.c.l.b16 %v537
    %v2014 = vunpack.c.h.b16 %v537
    %v2015 = vunpack.c.l.b16 %v538
    %v2016 = vunpack.c.h.b16 %v538
    %v2017 = vunpack.c.l.b16 %v539
    %v2018 = vunpack.c.h.b16 %v539
    %v2019 = vunpack.c.l.b16 %v540
    %v2020 = vunpack.c.h.b16 %v540
    %v2021 = vunpack.c.l.b16 %v541
    %v2022 = vunpack.c.h.b16 %v541
    %v2023 = vunpack.c.l.b16 %v542
    %v2024 = vunpack.c.h.b16 %v542
    %v2025 = vunpack.c.l.b16 %v543
    %v2026 = vunpack.c.h.b16 %v543
    %v2027 = vunpack.c.l.b16 %v544
    %v2028 = vunpack.c.h.b16 %v544
    %v2029 = vunpack.c.l.b16 %v545
    %v2030 = vunpack.c.h.b16 %v545
    %v2031 = vunpack.c.l.b16 %v546
    %v2032 = vunpack.c.h.b16 %v546
    %v2033 = vunpack.c.l.b16 %v547
    %v2034 = vunpack.c.h.b16 %v547
    %v2035 = vunpack.c.l.b16 %v548
    %v2036 = vunpack.c.h.b16 %v548
    %v2037 = vunpack.c.l.b16 %v549
    %v2038 = vunpack.c.h.b16 %v549
    %v2039 = vunpack.c.l.b16 %v550
    %v2040 = vunpack.c.h.b16 %v550
    %v2041 = vunpack.c.l.b16 %v551
    %v2042 = vunpack.c.h.b16 %v551
    %v2043 = vunpack.c.l.b16 %v552
    %v2044 = vunpack.c.h.b16 %v552
    %v2045 = vunpack.c.l.b16 %v553
    %v2046 = vunpack.c.h.b16 %v553
    %v2047 = vunpack.c.l.b16 %v554
    %v2048 = vunpack.c.h.b16 %v554
    %v2049 = vunpack.c.l.b16 %v555
    %v2050 = vunpack.c.h.b16 %v555
    %v2051 = vunpack.c.l.b16 %v556
    %v2052 = vunpack.c.h.b16 %v556
    %v2053 = vunpack.c.l.b16 %v557
    %v2054 = vunpack.c.h.b16 %v557
    %v2055 = vunpack.c.l.b16 %v558
    %v2056 = vunpack.c.h.b16 %v558
    %v2057 = vunpack.c.l.b16 %v559
    %v2058 = vunpack.c.h.b16 %v559
    %v2059 = vunpack.c.l.b16 %v560
    %v2060 = vunpack.c.h.b16 %v560
    %v2061 = vunpack.c.l.b16 %v561
    %v2062 = vunpack.c.h.b16 %v561
    %v2063 = vunpack.c.l.b16 %v562
    %v2064 = vunpack.c.h.b16 %v562
    %v2065 = vunpack.c.l.b16 %v563
    %v2066 = vunpack.c.h.b16 %v563
    %v2067 = vunpack.c.l.b16 %v564
    %v2068 = vunpack.c.h.b16 %v564
    %v2069 = vunpack.c.l.b16 %v565
    %v2070 = vunpack.c.h.b16 %v565
    %v2071 = vunpack.c.l.b16 %v566
    %v2072 = vunpack.c.h.b16 %v566
    %v2073 = vunpack.c.l.b16 %v567
    %v2074 = vunpack.c.h.b16 %v567
    %v2075 = vunpack.c.l.b16 %v568
    %v2076 = vunpack.c.h.b16 %v568
    %v2077 = vunpack.c.l.b16 %v569
    %v2078 = vunpack.c.h.b16 %v569
    %v2079 = vunpack.c.l.b16 %v570
    %v2080 = vunpack.c.h.b16 %v570
    %v2081 = vunpack.c.l.b16 %v571
    %v2082 = vunpack.c.h.b16 %v571
    %v2083 = vunpack.c.l.b16 %v572
    %v2084 = vunpack.c.h.b16 %v572
    %v2085 = vunpack.c.l.b16 %v573
    %v2086 = vunpack.c.h.b16 %v573
    %v2087 = vunpack.c.l.b16 %v574
    %v2088 = vunpack.c.h.b16 %v574
    %v2089 = vunpack.c.l.b16 %v575
    %v2090 = vunpack.c.h.b16 %v575
    %v2091 = vunpack.c.l.b16 %v576
    %v2092 = vunpack.c.h.b16 %v576
    %v2093 = vunpack.c.l.b16 %v577
    %v2094 = vunpack.c.h.b16 %v577
    %v2095 = vunpack.c.l.b16 %v578
    %v2096 = vunpack.c.h.b16 %v578
    %v2097 = vunpack.c.l.b16 %v579
    %v2098 = vunpack.c.h.b16 %v579
    %v2099 = vunpack.c.l.b16 %v580
    %v2100 = vunpack.c.h.b16 %v580
    %v2101 = vunpack.c.l.b16 %v581
    %v2102 = vunpack.c.h.b16 %v581
    %v2103 = vunpack.c.l.b16 %v582
    %v2104 = vunpack.c.h.b16 %v582
    %v2105 = vunpack.c.l.b16 %v583
    %v2106 = vunpack.c.h.b16 %v583
    %v2107 = vunpack.c.l.b16 %v584
    %v2108 = vunpack.c.h.b16 %v584
    %v2109 = vunpack.c.l.b16 %v585
    %v2110 = vunpack.c.h.b16 %v585
    %v2111 = vunpack.c.l.b16 %v586
    %v2112 = vunpack.c.h.b16 %v586
    %v2113 = vunpack.c.l.b16 %v587
    %v2114 = vunpack.c.h.b16 %v587
    %v2115 = vunpack.c.l.b16 %v588
    %v2116 = vunpack.c.h.b16 %v588
    %v2117 = vunpack.c.l.b16 %v589
    %v2118 = vunpack.c.h.b16 %v589
    %v2119 = vunpack.c.l.b16 %v590
    %v2120 = vunpack.c.h.b16 %v590
    %v2121 = vunpack.c.l.b16 %v591
    %v2122 = vunpack.c.h.b16 %v591
    %v2123 = vunpack.c.l.b16 %v592
    %v2124 = vunpack.c.h.b16 %v592
    %v2125 = vunpack.c.l.b16 %v593
    %v2126 = vunpack.c.h.b16 %v593
    %v2127 = vunpack.c.l.b16 %v594
    %v2128 = vunpack.c.h.b16 %v594
    %v2129 = vunpack.c.l.b16 %v595
    %v2130 = vunpack.c.h.b16 %v595
    %v2131 = vunpack.c.l.b16 %v596
    %v2132 = vunpack.c.h.b16 %v596
    %v2133 = vunpack.c.l.b16 %v597
    %v2134 = vunpack.c.h.b16 %v597
    %v2135 = vunpack.c.l.b16 %v598
    %v2136 = vunpack.c.h.b16 %v598
    %v2137 = vunpack.c.l.b16 %v599
    %v2138 = vunpack.c.h.b16 %v599
    %v2139 = vunpack.c.l.b16 %v600
    %v2140 = vunpack.c.h.b16 %v600
    %v2141 = vunpack.c.l.b16 %v601
    %v2142 = vunpack.c.h.b16 %v601
    %v2143 = vunpack.c.l.b16 %v602
    %v2144 = vunpack.c.h.b16 %v602
    %v2145 = vunpack.c.l.b16 %v603
    %v2146 = vunpack.c.h.b16 %v603
    %v2147 = vunpack.c.l.b16 %v604
    %v2148 = vunpack.c.h.b16 %v604
    %v2149 = vunpack.c.l.b16 %v605
    %v2150 = vunpack.c.h.b16 %v605
    %v2151 = vunpack.c.l.b16 %v606
    %v2152 = vunpack.c.h.b16 %v606
    %v2153 = vunpack.c.l.b16 %v607
    %v2154 = vunpack.c.h.b16 %v607
    %v2155 = vunpack.c.l.b16 %v608
    %v2156 = vunpack.c.h.b16 %v608
    %v2157 = vpack.c.b16 %v1187, %v1177
    %v2158 = vpack.c.b16 %v1188, %v1178
    %v2159 = vpack.c.b16 %v1189, %v1179
    %v2160 = vpack.c.b16 %v1190, %v1180
    %v2161 = vpack.c.b16 %v1191, %v1181
    %v2162 = vpack.c.b16 %v1192, %v1182
    %v2163 = vpack.c.b16 %v1193, %v1183
    %v2164 = vpack.c.b16 %v1194, %v1184
    %v2165 = vpack.c.b16 %v1195, %v1185
    %v2166 = vpack.c.b16 %v1196, %v1186
    %v2167 = vpack.c.b16 %v1207, %v1197
    %v2168 = vpack.c.b16 %v1208, %v1198
    %v2169 = vpack.c.b16 %v1209, %v1199
    %v2170 = vpack.c.b16 %v1210, %v1200
    %v2171 = vpack.c.b16 %v1211, %v1201
    %v2172 = vpack.c.b16 %v1212, %v1202
    %v2173 = vpack.c.b16 %v1213, %v1203
    %v2174 = vpack.c.b16 %v1214, %v1204
    %v2175 = vpack.c.b16 %v1215, %v1205
    %v2176 = vpack.c.b16 %v1216, %v1206
    %v2177 = vpack.c.b16 %v1227, %v1217
    %v2178 = vpack.c.b16 %v1228, %v1218
    %v2179 = vpack.c.b16 %v1229, %v1219
    %v2180 = vpack.c.b16 %v1230, %v1220
    %v2181 = vpack.c.b16 %v1231, %v1221
    %v2182 = vpack.c.b16 %v1232, %v1222
    %v2183 = vpack.c.b16 %v1233, %v1223
    %v2184 = vpack.c.b16 %v1234, %v1224
    %v2185 = vpack.c.b16 %v1235, %v1225
    %v2186 = vpack.c.b16 %v1236, %v1226
    %v2187 = vpack.c.b16 %v1247, %v1237
    %v2188 = vpack.c.b16 %v1248, %v1238
    %v2189 = vpack.c.b16 %v1249, %v1239
    %v2190 = vpack.c.b16 %v1250, %v1240
    %v2191 = vpack.c.b16 %v1251, %v1241
    %v2192 = vpack.c.b16 %v1252, %v1242
    %v2193 = vpack.c.b16 %v1253, %v1243
    %v2194 = vpack.c.b16 %v1254, %v1244
    %v2195 = vpack.c.b16 %v1255, %v1245
    %v2196 = vpack.c.b16 %v1256, %v1246
    %v2197 = vpack.c.b16 %v1267, %v1257
    %v2198 = vpack.c.b16 %v1268, %v1258
    %v2199 = vpack.c.b16 %v1269, %v1259
    %v2200 = vpack.c.b16 %v1270, %v1260
    %v2201 = vpack.c.b16 %v1271, %v1261
    %v2202 = vpack.c.b16 %v1272, %v1262
    %v2203 = vpack.c.b16 %v1273, %v1263
    %v2204 = vpack.c.b16 %v1274, %v1264
    %v2205 = vpack.c.b16 %v1275, %v1265
    %v2206 = vpack.c.b16 %v1276, %v1266
    %v2207 = vpack.c.b16 %v1287, %v1277
    %v2208 = vpack.c.b16 %v1288, %v1278
    %v2209 = vpack.c.b16 %v1289, %v1279
    %v2210 = vpack.c.b16 %v1290, %v1280
    %v2211 = vpack.c.b16 %v1291, %v1281
    %v2212 = vpack.c.b16 %v1292, %v1282
    %v2213 = vpack.c.b16 %v1293, %v1283
    %v2214 = vpack.c.b16 %v1294, %v1284
    %v2215 = vpack.c.b16 %v1295, %v1285
    %v2216 = vpack.c.b16 %v1296, %v1286
    %v2217 = vpack.c.b16 %v1307, %v1297
    %v2218 = vpack.c.b16 %v1308, %v1298
    %v2219 = vpack.c.b16 %v1309, %v1299
    %v2220 = vpack.c.b16 %v1310, %v1300
    %v2221 = vpack.c.b16 %v1311, %v1301
    %v2222 = vpack.c.b16 %v1312, %v1302
    %v2223 = vpack.c.b16 %v1313, %v1303
    %v2224 = vpack.c.b16 %v1314, %v1304
    %v2225 = vpack.c.b16 %v1315, %v1305
    %v2226 = vpack.c.b16 %v1316, %v1306
    %v2227 = vpack.c.b16 %v1327, %v1317
    %v2228 = vpack.c.b16 %v1328, %v1318
    %v2229 = vpack.c.b16 %v1329, %v1319
    %v2230 = vpack.c.b16 %v1330, %v1320
    %v2231 = vpack.c.b16 %v1331, %v1321
    %v2232 = vpack.c.b16 %v1332, %v1322
    %v2233 = vpack.c.b16 %v1333, %v1323
    %v2234 = vpack.c.b16 %v1334, %v1324
    %v2235 = vpack.c.b16 %v1335, %v1325
    %v2236 = vpack.c.b16 %v1336, %v1326
    %v2237 = vpack.c.b16 %v1347, %v1337
    %v2238 = vpack.c.b16 %v1348, %v1338
    %v2239 = vpack.c.b16 %v1349, %v1339
    %v2240 = vpack.c.b16 %v1350, %v1340
    %v2241 = vpack.c.b16 %v1351, %v1341
    %v2242 = vpack.c.b16 %v1352, %v1342
    %v2243 = vpack.c.b16 %v1353, %v1343
    %v2244 = vpack.c.b16 %v1354, %v1344
    %v2245 = vpack.c.b16 %v1355, %v1345
    %v2246 = vpack.c.b16 %v1356, %v1346
    %v2247 = vpack.c.b16 %v1367, %v1357
    %v2248 = vpack.c.b16 %v1368, %v1358
    %v2249 = vpack.c.b16 %v1369, %v1359
    %v2250 = vpack.c.b16 %v1370, %v1360
    %v2251 = vpack.c.b16 %v1371, %v1361
    %v2252 = vpack.c.b16 %v1372, %v1362
    %v2253 = vpack.c.b16 %v1373, %v1363
    %v2254 = vpack.c.b16 %v1374, %v1364
    %v2255 = vpack.c.b16 %v1375, %v1365
    %v2256 = vpack.c.b16 %v1376, %v1366
    %v2257 = vpack.c.b16 %v1387, %v1377
    %v2258 = vpack.c.b16 %v1388, %v1378
    %v2259 = vpack.c.b16 %v1389, %v1379
    %v2260 = vpack.c.b16 %v1390, %v1380
    %v2261 = vpack.c.b16 %v1391, %v1381
    %v2262 = vpack.c.b16 %v1392, %v1382
    %v2263 = vpack.c.b16 %v1393, %v1383
    %v2264 = vpack.c.b16 %v1394, %v1384
    %v2265 = vpack.c.b16 %v1395, %v1385
    %v2266 = vpack.c.b16 %v1396, %v1386
    %v2267 = vpack.c.b16 %v1407, %v1397
    %v2268 = vpack.c.b16 %v1408, %v1398
    %v2269 = vpack.c.b16 %v1409, %v1399
    %v2270 = vpack.c.b16 %v1410, %v1400
    %v2271 = vpack.c.b16 %v1411, %v1401
    %v2272 = vpack.c.b16 %v1412, %v1402
    %v2273 = vpack.c.b16 %v1413, %v1403
    %v2274 = vpack.c.b16 %v1414, %v1404
    %v2275 = vpack.c.b16 %v1415, %v1405
    %v2276 = vpack.c.b16 %v1416, %v1406
    %v2277 = vpack.c.b16 %v1427, %v1417
    %v2278 = vpack.c.b16 %v1428, %v1418
    %v2279 = vpack.c.b16 %v1429, %v1419
    %v2280 = vpack.c.b16 %v1430, %v1420
    %v2281 = vpack.c.b16 %v1431, %v1421
    %v2282 = vpack.c.b16 %v1432, %v1422
    %v2283 = vpack.c.b16 %v1433, %v1423
    %v2284 = vpack.c.b16 %v1434, %v1424
    %v2285 = vpack.c.b16 %v1435, %v1425
    %v2286 = vpack.c.b16 %v1436, %v1426
    %v2287 = vpack.c.b16 %v1447, %v1437
    %v2288 = vpack.c.b16 %v1448, %v1438
    %v2289 = vpack.c.b16 %v1449, %v1439
    %v2290 = vpack.c.b16 %v1450, %v1440
    %v2291 = vpack.c.b16 %v1451, %v1441
    %v2292 = vpack.c.b16 %v1452, %v1442
    %v2293 = vpack.c.b16 %v1453, %v1443
    %v2294 = vpack.c.b16 %v1454, %v1444
    %v2295 = vpack.c.b16 %v1455, %v1445
    %v2296 = vpack.c.b16 %v1456, %v1446
    %v2297 = vpack.c.b16 %v1467, %v1457
    %v2298 = vpack.c.b16 %v1468, %v1458
    %v2299 = vpack.c.b16 %v1469, %v1459
    %v2300 = vpack.c.b16 %v1470, %v1460
    %v2301 = vpack.c.b16 %v1471, %v1461
    %v2302 = vpack.c.b16 %v1472, %v1462
    %v2303 = vpack.c.b16 %v1473, %v1463
    %v2304 = vpack.c.b16 %v1474, %v1464
    %v2305 = vpack.c.b16 %v1475, %v1465
    %v2306 = vpack.c.b16 %v1476, %v1466
    %v2307 = vpack.c.b16 %v1487, %v1477
    %v2308 = vpack.c.b16 %v1488, %v1478
    %v2309 = vpack.c.b16 %v1489, %v1479
    %v2310 = vpack.c.b16 %v1490, %v1480
    %v2311 = vpack.c.b16 %v1491, %v1481
    %v2312 = vpack.c.b16 %v1492, %v1482
    %v2313 = vpack.c.b16 %v1493, %v1483
    %v2314 = vpack.c.b16 %v1494, %v1484
    %v2315 = vpack.c.b16 %v1495, %v1485
    %v2316 = vpack.c.b16 %v1496, %v1486
    %v2317 = vpack.c.b16 %v1507, %v1497
    %v2318 = vpack.c.b16 %v1508, %v1498
    %v2319 = vpack.c.b16 %v1509, %v1499
    %v2320 = vpack.c.b16 %v1510, %v1500
    %v2321 = vpack.c.b16 %v1511, %v1501
    %v2322 = vpack.c.b16 %v1512, %v1502
    %v2323 = vpack.c.b16 %v1513, %v1503
    %v2324 = vpack.c.b16 %v1514, %v1504
    %v2325 = vpack.c.b16 %v1515, %v1505
    %v2326 = vpack.c.b16 %v1516, %v1506
    %v2327 = vpack.c.b16 %v1527, %v1517
    %v2328 = vpack.c.b16 %v1528, %v1518
    %v2329 = vpack.c.b16 %v1529, %v1519
    %v2330 = vpack.c.b16 %v1530, %v1520
    %v2331 = vpack.c.b16 %v1531, %v1521
    %v2332 = vpack.c.b16 %v1532, %v1522
    %v2333 = vpack.c.b16 %v1533, %v1523
    %v2334 = vpack.c.b16 %v1534, %v1524
    %v2335 = vpack.c.b16 %v1535, %v1525
    %v2336 = vpack.c.b16 %v1536, %v1526
    %v2337 = vpack.c.b16 %v1547, %v1537
    %v2338 = vpack.c.b16 %v1548, %v1538
    %v2339 = vpack.c.b16 %v1549, %v1539
    %v2340 = vpack.c.b16 %v1550, %v1540
    %v2341 = vpack.c.b16 %v1551, %v1541
    %v2342 = vpack.c.b16 %v1552, %v1542
    %v2343 = vpack.c.b16 %v1553, %v1543
    %v2344 = vpack.c.b16 %v1554, %v1544
    %v2345 = vpack.c.b16 %v1555, %v1545
    %v2346 = vpack.c.b16 %v1556, %v1546
    %v2347 = vpack.c.b16 %v1567, %v1557
    %v2348 = vpack.c.b16 %v1568, %v1558
    %v2349 = vpack.c.b16 %v1569, %v1559
    %v2350 = vpack.c.b16 %v1570, %v1560
    %v2351 = vpack.c.b16 %v1571, %v1561
    %v2352 = vpack.c.b16 %v1572, %v1562
    %v2353 = vpack.c.b16 %v1573, %v1563
    %v2354 = vpack.c.b16 %v1574, %v1564
    %v2355 = vpack.c.b16 %v1575, %v1565
    %v2356 = vpack.c.b16 %v1576, %v1566
    %v2357 = vpack.c.b16 %v1587, %v1577
    %v2358 = vpack.c.b16 %v1588, %v1578
    %v2359 = vpack.c.b16 %v1589, %v1579
    %v2360 = vpack.c.b16 %v1590, %v1580
    %v2361 = vpack.c.b16 %v1591, %v1581
    %v2362 = vpack.c.b16 %v1592, %v1582
    %v2363 = vpack.c.b16 %v1593, %v1583
    %v2364 = vpack.c.b16 %v1594, %v1584
    %v2365 = vpack.c.b16 %v1595, %v1585
    %v2366 = vpack.c.b16 %v1596, %v1586
    %v2367 = vpack.c.b16 %v1607, %v1597
    %v2368 = vpack.c.b16 %v1608, %v1598
    %v2369 = vpack.c.b16 %v1609, %v1599
    %v2370 = vpack.c.b16 %v1610, %v1600
    %v2371 = vpack.c.b16 %v1611, %v1601
    %v2372 = vpack.c.b16 %v1612, %v1602
    %v2373 = vpack.c.b16 %v1613, %v1603
    %v2374 = vpack.c.b16 %v1614, %v1604
    %v2375 = vpack.c.b16 %v1615, %v1605
    %v2376 = vpack.c.b16 %v1616, %v1606
    %v2377 = vpack.c.b16 %v1627, %v1617
    %v2378 = vpack.c.b16 %v1628, %v1618
    %v2379 = vpack.c.b16 %v1629, %v1619
    %v2380 = vpack.c.b16 %v1630, %v1620
    %v2381 = vpack.c.b16 %v1631, %v1621
    %v2382 = vpack.c.b16 %v1632, %v1622
    %v2383 = vpack.c.b16 %v1633, %v1623
    %v2384 = vpack.c.b16 %v1634, %v1624
    %v2385 = vpack.c.b16 %v1635, %v1625
    %v2386 = vpack.c.b16 %v1636, %v1626
    %v2387 = vpack.c.b16 %v1647, %v1637
    %v2388 = vpack.c.b16 %v1648, %v1638
    %v2389 = vpack.c.b16 %v1649, %v1639
    %v2390 = vpack.c.b16 %v1650, %v1640
    %v2391 = vpack.c.b16 %v1651, %v1641
    %v2392 = vpack.c.b16 %v1652, %v1642
    %v2393 = vpack.c.b16 %v1653, %v1643
    %v2394 = vpack.c.b16 %v1654, %v1644
    %v2395 = vpack.c.b16 %v1655, %v1645
    %v2396 = vpack.c.b16 %v1656, %v1646
    %v2397 = vpack.c.b16 %v1667, %v1657
    %v2398 = vpack.c.b16 %v1668, %v1658
    %v2399 = vpack.c.b16 %v1669, %v1659
    %v2400 = vpack.c.b16 %v1670, %v1660
    %v2401 = vpack.c.b16 %v1671, %v1661
    %v2402 = vpack.c.b16 %v1672, %v1662
    %v2403 = vpack.c.b16 %v1673, %v1663
    %v2404 = vpack.c.b16 %v1674, %v1664
    %v2405 = vpack.c.b16 %v1675, %v1665
    %v2406 = vpack.c.b16 %v1676, %v1666
    %v2407 = vpack.c.b16 %v1687, %v1677
    %v2408 = vpack.c.b16 %v1688, %v1678
    %v2409 = vpack.c.b16 %v1689, %v1679
    %v2410 = vpack.c.b16 %v1690, %v1680
    %v2411 = vpack.c.b16 %v1691, %v1681
    %v2412 = vpack.c.b16 %v1692, %v1682
    %v2413 = vpack.c.b16 %v1693, %v1683
    %v2414 = vpack.c.b16 %v1694, %v1684
    %v2415 = vpack.c.b16 %v1695, %v1685
    %v2416 = vpack.c.b16 %v1696, %v1686
    %v2417 = vpack.c.b16 %v1707, %v1697
    %v2418 = vpack.c.b16 %v1708, %v1698
    %v2419 = vpack.c.b16 %v1709, %v1699
    %v2420 = vpack.c.b16 %v1710, %v1700
    %v2421 = vpack.c.b16 %v1711, %v1701
    %v2422 = vpack.c.b16 %v1712, %v1702
    %v2423 = vpack.c.b16 %v1713, %v1703
    %v2424 = vpack.c.b16 %v1714, %v1704
    %v2425 = vpack.c.b16 %v1715, %v1705
    %v2426 = vpack.c.b16 %v1716, %v1706
    %v2427 = vpack.c.b16 %v1727, %v1717
    %v2428 = vpack.c.b16 %v1728, %v1718
    %v2429 = vpack.c.b16 %v1729, %v1719
    %v2430 = vpack.c.b16 %v1730, %v1720
    %v2431 = vpack.c.b16 %v1731, %v1721
    %v2432 = vpack.c.b16 %v1732, %v1722
    %v2433 = vpack.c.b16 %v1733, %v1723
    %v2434 = vpack.c.b16 %v1734, %v1724
    %v2435 = vpack.c.b16 %v1735, %v1725
    %v2436 = vpack.c.b16 %v1736, %v1726
    %v2437 = vpack.c.b16 %v1747, %v1737
    %v2438 = vpack.c.b16 %v1748, %v1738
    %v2439 = vpack.c.b16 %v1749, %v1739
    %v2440 = vpack.c.b16 %v1750, %v1740
    %v2441 = vpack.c.b16 %v1751, %v1741
    %v2442 = vpack.c.b16 %v1752, %v1742
    %v2443 = vpack.c.b16 %v1753, %v1743
    %v2444 = vpack.c.b16 %v1754, %v1744
    %v2445 = vpack.c.b16 %v1755, %v1745
    %v2446 = vpack.c.b16 %v1756, %v1746
    %v2447 = vpack.c.b16 %v1767, %v1757
    %v2448 = vpack.c.b16 %v1768, %v1758
    %v2449 = vpack.c.b16 %v1769, %v1759
    %v2450 = vpack.c.b16 %v1770, %v1760
    %v2451 = vpack.c.b16 %v1771, %v1761
    %v2452 = vpack.c.b16 %v1772, %v1762
    %v2453 = vpack.c.b16 %v1773, %v1763
    %v2454 = vpack.c.b16 %v1774, %v1764
    %v2455 = vpack.c.b16 %v1775, %v1765
    %v2456 = vpack.c.b16 %v1776, %v1766
    %v2457 = vpack.c.b16 %v1787, %v1777
    %v2458 = vpack.c.b16 %v1788, %v1778
    %v2459 = vpack.c.b16 %v1789, %v1779
    %v2460 = vpack.c.b16 %v1790, %v1780
    %v2461 = vpack.c.b16 %v1791, %v1781
    %v2462 = vpack.c.b16 %v1792, %v1782
    %v2463 = vpack.c.b16 %v1793, %v1783
    %v2464 = vpack.c.b16 %v1794, %v1784
    %v2465 = vpack.c.b16 %v1795, %v1785
    %v2466 = vpack.c.b16 %v1796, %v1786
    %v2467 = vpack.c.b16 %v1807, %v1797
    %v2468 = vpack.c.b16 %v1808, %v1798
    %v2469 = vpack.c.b16 %v1809, %v1799
    %v2470 = vpack.c.b16 %v1810, %v1800
    %v2471 = vpack.c.b16 %v1811, %v1801
    %v2472 = vpack.c.b16 %v1812, %v1802
    %v2473 = vpack.c.b16 %v1813, %v1803
    %v2474 = vpack.c.b16 %v1814, %v1804
    %v2475 = vpack.c.b16 %v1815, %v1805
    %v2476 = vpack.c.b16 %v1816, %v1806
    %v2477 = vpack.c.b16 %v1827, %v1817
    %v2478 = vpack.c.b16 %v1828, %v1818
    %v2479 = vpack.c.b16 %v1829, %v1819
    %v2480 = vpack.c.b16 %v1830, %v1820
    %v2481 = vpack.c.b16 %v1831, %v1821
    %v2482 = vpack.c.b16 %v1832, %v1822
    %v2483 = vpack.c.b16 %v1833, %v1823
    %v2484 = vpack.c.b16 %v1834, %v1824
    %v2485 = vpack.c.b16 %v1835, %v1825
    %v2486 = vpack.c.b16 %v1836, %v1826
    %v2487 = vpack.c.b16 %v1847, %v1837
    %v2488 = vpack.c.b16 %v1848, %v1838
    %v2489 = vpack.c.b16 %v1849, %v1839
    %v2490 = vpack.c.b16 %v1850, %v1840
    %v2491 = vpack.c.b16 %v1851, %v1841
    %v2492 = vpack.c.b16 %v1852, %v1842
    %v2493 = vpack.c.b16 %v1853, %v1843
    %v2494 = vpack.c.b16 %v1854, %v1844
    %v2495 = vpack.c.b16 %v1855, %v1845
    %v2496 = vpack.c.b16 %v1856, %v1846
    %v2497 = vpack.c.b16 %v1867, %v1857
    %v2498 = vpack.c.b16 %v1868, %v1858
    %v2499 = vpack.c.b16 %v1869, %v1859
    %v2500 = vpack.c.b16 %v1870, %v1860
    %v2501 = vpack.c.b16 %v1871, %v1861
    %v2502 = vpack.c.b16 %v1872, %v1862
    %v2503 = vpack.c.b16 %v1873, %v1863
    %v2504 = vpack.c.b16 %v1874, %v1864
    %v2505 = vpack.c.b16 %v1875, %v1865
    %v2506 = vpack.c.b16 %v1876, %v1866
    %v2507 = vpack.c.b16 %v1887, %v1877
    %v2508 = vpack.c.b16 %v1888, %v1878
    %v2509 = vpack.c.b16 %v1889, %v1879
    %v2510 = vpack.c.b16 %v1890, %v1880
    %v2511 = vpack.c.b16 %v1891, %v1881
    %v2512 = vpack.c.b16 %v1892, %v1882
    %v2513 = vpack.c.b16 %v1893, %v1883
    %v2514 = vpack.c.b16 %v1894, %v1884
    %v2515 = vpack.c.b16 %v1895, %v1885
    %v2516 = vpack.c.b16 %v1896, %v1886
    %v2517 = vpack.c.b16 %v1907, %v1897
    %v2518 = vpack.c.b16 %v1908, %v1898
    %v2519 = vpack.c.b16 %v1909, %v1899
    %v2520 = vpack.c.b16 %v1910, %v1900
    %v2521 = vpack.c.b16 %v1911, %v1901
    %v2522 = vpack.c.b16 %v1912, %v1902
    %v2523 = vpack.c.b16 %v1913, %v1903
    %v2524 = vpack.c.b16 %v1914, %v1904
    %v2525 = vpack.c.b16 %v1915, %v1905
    %v2526 = vpack.c.b16 %v1916, %v1906
    %v2527 = vpack.c.b16 %v1927, %v1917
    %v2528 = vpack.c.b16 %v1928, %v1918
    %v2529 = vpack.c.b16 %v1929, %v1919
    %v2530 = vpack.c.b16 %v1930, %v1920
    %v2531 = vpack.c.b16 %v1931, %v1921
    %v2532 = vpack.c.b16 %v1932, %v1922
    %v2533 = vpack.c.b16 %v1933, %v1923
    %v2534 = vpack.c.b16 %v1934, %v1924
    %v2535 = vpack.c.b16 %v1935, %v1925
    %v2536 = vpack.c.b16 %v1936, %v1926
    %v2537 = vpack.c.b16 %v1947, %v1937
    %v2538 = vpack.c.b16 %v1948, %v1938
    %v2539 = vpack.c.b16 %v1949, %v1939
    %v2540 = vpack.c.b16 %v1950, %v1940
    %v2541 = vpack.c.b16 %v1951, %v1941
    %v2542 = vpack.c.b16 %v1952, %v1942
    %v2543 = vpack.c.b16 %v1953, %v1943
    %v2544 = vpack.c.b16 %v1954, %v1944
    %v2545 = vpack.c.b16 %v1955, %v1945
    %v2546 = vpack.c.b16 %v1956, %v1946
    %v2547 = vpack.c.b16 %v1967, %v1957
    %v2548 = vpack.c.b16 %v1968, %v1958
    %v2549 = vpack.c.b16 %v1969, %v1959
    %v2550 = vpack.c.b16 %v1970, %v1960
    %v2551 = vpack.c.b16 %v1971, %v1961
    %v2552 = vpack.c.b16 %v1972, %v1962
    %v2553 = vpack.c.b16 %v1973, %v1963
    %v2554 = vpack.c.b16 %v1974, %v1964
    %v2555 = vpack.c.b16 %v1975, %v1965
    %v2556 = vpack.c.b16 %v1976, %v1966
    %v2557 = vpack.c.b16 %v1987, %v1977
    %v2558 = vpack.c.b16 %v1988, %v1978
    %v2559 = vpack.c.b16 %v1989, %v1979
    %v2560 = vpack.c.b16 %v1990, %v1980
    %v2561 = vpack.c.b16 %v1991, %v1981
    %v2562 = vpack.c.b16 %v1992, %v1982
    %v2563 = vpack.c.b16 %v1993, %v1983
    %v2564 = vpack.c.b16 %v1994, %v1984
    %v2565 = vpack.c.b16 %v1995, %v1985
    %v2566 = vpack.c.b16 %v1996, %v1986
    %v2567 = vpack.c.b16 %v2007, %v1997
    %v2568 = vpack.c.b16 %v2008, %v1998
    %v2569 = vpack.c.b16 %v2009, %v1999
    %v2570 = vpack.c.b16 %v2010, %v2000
    %v2571 = vpack.c.b16 %v2011, %v2001
    %v2572 = vpack.c.b16 %v2012, %v2002
    %v2573 = vpack.c.b16 %v2013, %v2003
    %v2574 = vpack.c.b16 %v2014, %v2004
    %v2575 = vpack.c.b16 %v2015, %v2005
    %v2576 = vpack.c.b16 %v2016, %v2006
    %v2577 = vpack.c.b16 %v2027, %v2017
    %v2578 = vpack.c.b16 %v2028, %v2018
    %v2579 = vpack.c.b16 %v2029, %v2019
    %v2580 = vpack.c.b16 %v2030, %v2020
    %v2581 = vpack.c.b16 %v2031, %v2021
    %v2582 = vpack.c.b16 %v2032, %v2022
    %v2583 = vpack.c.b16 %v2033, %v2023
    %v2584 = vpack.c.b16 %v2034, %v2024
    %v2585 = vpack.c.b16 %v2035, %v2025
    %v2586 = vpack.c.b16 %v2036, %v2026
    %v2587 = vpack.c.b16 %v2047, %v2037
    %v2588 = vpack.c.b16 %v2048, %v2038
    %v2589 = vpack.c.b16 %v2049, %v2039
    %v2590 = vpack.c.b16 %v2050, %v2040
    %v2591 = vpack.c.b16 %v2051, %v2041
    %v2592 = vpack.c.b16 %v2052, %v2042
    %v2593 = vpack.c.b16 %v2053, %v2043
    %v2594 = vpack.c.b16 %v2054, %v2044
    %v2595 = vpack.c.b16 %v2055, %v2045
    %v2596 = vpack.c.b16 %v2056, %v2046
    %v2597 = vpack.c.b16 %v2067, %v2057
    %v2598 = vpack.c.b16 %v2068, %v2058
    %v2599 = vpack.c.b16 %v2069, %v2059
    %v2600 = vpack.c.b16 %v2070, %v2060
    %v2601 = vpack.c.b16 %v2071, %v2061
    %v2602 = vpack.c.b16 %v2072, %v2062
    %v2603 = vpack.c.b16 %v2073, %v2063
    %v2604 = vpack.c.b16 %v2074, %v2064
    %v2605 = vpack.c.b16 %v2075, %v2065
    %v2606 = vpack.c.b16 %v2076, %v2066
    %v2607 = vpack.c.b16 %v2087, %v2077
    %v2608 = vpack.c.b16 %v2088, %v2078
    %v2609 = vpack.c.b16 %v2089, %v2079
    %v2610 = vpack.c.b16 %v2090, %v2080
    %v2611 = vpack.c.b16 %v2091, %v2081
    %v2612 = vpack.c.b16 %v2092, %v2082
    %v2613 = vpack.c.b16 %v2093, %v2083
    %v2614 = vpack.c.b16 %v2094, %v2084
    %v2615 = vpack.c.b16 %v2095, %v2085
    %v2616 = vpack.c.b16 %v2096, %v2086
    %v2617 = vpack.c.b16 %v2107, %v2097
    %v2618 = vpack.c.b16 %v2108, %v2098
    %v2619 = vpack.c.b16 %v2109, %v2099
    %v2620 = vpack.c.b16 %v2110, %v2100
    %v2621 = vpack.c.b16 %v2111, %v2101
    %v2622 = vpack.c.b16 %v2112, %v2102
    %v2623 = vpack.c.b16 %v2113, %v2103
    %v2624 = vpack.c.b16 %v2114, %v2104
    %v2625 = vpack.c.b16 %v2115, %v2105
    %v2626 = vpack.c.b16 %v2116, %v2106
    %v2627 = vpack.c.b16 %v2127, %v2117
    %v2628 = vpack.c.b16 %v2128, %v2118
    %v2629 = vpack.c.b16 %v2129, %v2119
    %v2630 = vpack.c.b16 %v2130, %v2120
    %v2631 = vpack.c.b16 %v2131, %v2121
    %v2632 = vpack.c.b16 %v2132, %v2122
    %v2633 = vpack.c.b16 %v2133, %v2123
    %v2634 = vpack.c.b16 %v2134, %v2124
    %v2635 = vpack.c.b16 %v2135, %v2125
    %v2636 = vpack.c.b16 %v2136, %v2126
    %v2637 = vpack.c.b16 %v2147, %v2137
    %v2638 = vpack.c.b16 %v2148, %v2138
    %v2639 = vpack.c.b16 %v2149, %v2139
    %v2640 = vpack.c.b16 %v2150, %v2140
    %v2641 = vpack.c.b16 %v2151, %v2141
    %v2642 = vpack.c.b16 %v2152, %v2142
    %v2643 = vpack.c.b16 %v2153, %v2143
    %v2644 = vpack.c.b16 %v2154, %v2144
    %v2645 = vpack.c.b16 %v2155, %v2145
    %v2646 = vpack.c.b16 %v2156, %v2146
    %vm3137 = vcmask 130048
    %v3139 = vsel %vm3137, %v680, 0
    %3141 = vmatprep.subr.bf16.mxu0 %v2228
    %3142 = vmatpush1.bf16.msra.mxu0 %v2227
    %3143 = vmatprep.subr.bf16.mxu0 %v2218
    %3144 = vmatpush1.bf16.msra.mxu0 %v2217
    %3145 = vmatprep.subr.bf16.mxu0 %v2208
    %3146 = vmatpush1.bf16.msra.mxu0 %v2207
    %3147 = vmatprep.subr.bf16.mxu0 %v2198
    %3148 = vmatpush1.bf16.msra.mxu0 %v2197
    %3149 = vmatprep.subr.bf16.mxu0 %v2188
    %3150 = vmatpush1.bf16.msra.mxu0 %v2187
    %3151 = vmatprep.subr.bf16.mxu0 %v2178
    %3152 = vmatpush1.bf16.msra.mxu0 %v2177
    %3153 = vmatprep.subr.bf16.mxu0 %v2168
    %3154 = vmatpush1.bf16.msra.mxu0 %v2167
    %3155 = vmatprep.subr.bf16.mxu0 %v2158
    %3156 = vmatpush1.bf16.msra.mxu0 %v2157
    %3157 = vmatprep.subr.bf16.mxu0 %v2308
    %3158 = vmatpush2.bf16.msra.mxu0 %v2307
    %3159 = vmatprep.subr.bf16.mxu0 %v2298
    %3160 = vmatpush2.bf16.msra.mxu0 %v2297
    %3161 = vmatprep.subr.bf16.mxu0 %v2288
    %3162 = vmatpush2.bf16.msra.mxu0 %v2287
    %3163 = vmatprep.subr.bf16.mxu0 %v2278
    %3164 = vmatpush2.bf16.msra.mxu0 %v2277
    %3165 = vmatprep.subr.bf16.mxu0 %v2268
    %3166 = vmatpush2.bf16.msra.mxu0 %v2267
    %3167 = vmatprep.subr.bf16.mxu0 %v2258
    %3168 = vmatpush2.bf16.msra.mxu0 %v2257
    %3169 = vmatprep.subr.bf16.mxu0 %v2248
    %3170 = vmatpush2.bf16.msra.mxu0 %v2247
    %3171 = vmatprep.subr.bf16.mxu0 %v2238
    %3172 = vmatpush2.bf16.msra.mxu0 %v2237
    %3173 = vmatprep.mubr.bf16.mxu0 %v675
    %3174 = vmatmul.mubr.bf16.gmra.mxu0 %v674
    %v3175 = vpop.f32.mrf.mxu0
    %v3176 = vadd.f32 %v616, %v3175
    %v3177 = vpop.f32.mrf.mxu0
    %v3178 = vadd.f32 %v620, %v3177
    %v3179 = vpop.f32.mrf.mxu0
    %v3180 = vpop.f32.mrf.mxu0
    %3181 = vdwg.mxu0
    %3182 = vmatprep.subr.bf16.mxu0 %v2388
    %3183 = vmatpush1.bf16.msra.mxu0 %v2387
    %3184 = vmatprep.subr.bf16.mxu0 %v2378
    %3185 = vmatpush1.bf16.msra.mxu0 %v2377
    %3186 = vmatprep.subr.bf16.mxu0 %v2368
    %3187 = vmatpush1.bf16.msra.mxu0 %v2367
    %3188 = vmatprep.subr.bf16.mxu0 %v2358
    %3189 = vmatpush1.bf16.msra.mxu0 %v2357
    %3190 = vmatprep.subr.bf16.mxu0 %v2348
    %3191 = vmatpush1.bf16.msra.mxu0 %v2347
    %3192 = vmatprep.subr.bf16.mxu0 %v2338
    %3193 = vmatpush1.bf16.msra.mxu0 %v2337
    %3194 = vmatprep.subr.bf16.mxu0 %v2328
    %3195 = vmatpush1.bf16.msra.mxu0 %v2327
    %3196 = vmatprep.subr.bf16.mxu0 %v2318
    %3197 = vmatpush1.bf16.msra.mxu0 %v2317
    %3198 = vmatprep.subr.bf16.mxu0 %v2468
    %3199 = vmatpush2.bf16.msra.mxu0 %v2467
    %3200 = vmatprep.subr.bf16.mxu0 %v2458
    %3201 = vmatpush2.bf16.msra.mxu0 %v2457
    %3202 = vmatprep.subr.bf16.mxu0 %v2448
    %3203 = vmatpush2.bf16.msra.mxu0 %v2447
    %3204 = vmatprep.subr.bf16.mxu0 %v2438
    %3205 = vmatpush2.bf16.msra.mxu0 %v2437
    %3206 = vmatprep.subr.bf16.mxu0 %v2428
    %3207 = vmatpush2.bf16.msra.mxu0 %v2427
    %3208 = vmatprep.subr.bf16.mxu0 %v2418
    %3209 = vmatpush2.bf16.msra.mxu0 %v2417
    %3210 = vmatprep.subr.bf16.mxu0 %v2408
    %3211 = vmatpush2.bf16.msra.mxu0 %v2407
    %3212 = vmatprep.subr.bf16.mxu0 %v2398
    %3213 = vmatpush2.bf16.msra.mxu0 %v2397
    %3214 = vmatprep.mubr.bf16.mxu0 %v677
    %3215 = vmatmul.mubr.bf16.gmra.mxu0 %v676
    %v3216 = vpop.f32.mrf.mxu0
    %v3217 = vadd.f32 %v3176, %v3216
    %v3218 = vpop.f32.mrf.mxu0
    %v3219 = vadd.f32 %v3178, %v3218
    %v3220 = vpop.f32.mrf.mxu0
    %v3221 = vpop.f32.mrf.mxu0
    %3222 = vdwg.mxu0
    %3223 = vmatprep.subr.bf16.mxu0 %v2548
    %3224 = vmatpush1.bf16.msra.mxu0 %v2547
    %3225 = vmatprep.subr.bf16.mxu0 %v2538
    %3226 = vmatpush1.bf16.msra.mxu0 %v2537
    %3227 = vmatprep.subr.bf16.mxu0 %v2528
    %3228 = vmatpush1.bf16.msra.mxu0 %v2527
    %3229 = vmatprep.subr.bf16.mxu0 %v2518
    %3230 = vmatpush1.bf16.msra.mxu0 %v2517
    %3231 = vmatprep.subr.bf16.mxu0 %v2508
    %3232 = vmatpush1.bf16.msra.mxu0 %v2507
    %3233 = vmatprep.subr.bf16.mxu0 %v2498
    %3234 = vmatpush1.bf16.msra.mxu0 %v2497
    %3235 = vmatprep.subr.bf16.mxu0 %v2488
    %3236 = vmatpush1.bf16.msra.mxu0 %v2487
    %3237 = vmatprep.subr.bf16.mxu0 %v2478
    %3238 = vmatpush1.bf16.msra.mxu0 %v2477
    %3239 = vmatprep.subr.bf16.mxu0 %v2628
    %3240 = vmatpush2.bf16.msra.mxu0 %v2627
    %3241 = vmatprep.subr.bf16.mxu0 %v2618
    %3242 = vmatpush2.bf16.msra.mxu0 %v2617
    %3243 = vmatprep.subr.bf16.mxu0 %v2608
    %3244 = vmatpush2.bf16.msra.mxu0 %v2607
    %3245 = vmatprep.subr.bf16.mxu0 %v2598
    %3246 = vmatpush2.bf16.msra.mxu0 %v2597
    %3247 = vmatprep.subr.bf16.mxu0 %v2588
    %3248 = vmatpush2.bf16.msra.mxu0 %v2587
    %3249 = vmatprep.subr.bf16.mxu0 %v2578
    %3250 = vmatpush2.bf16.msra.mxu0 %v2577
    %3251 = vmatprep.subr.bf16.mxu0 %v2568
    %3252 = vmatpush2.bf16.msra.mxu0 %v2567
    %3253 = vmatprep.subr.bf16.mxu0 %v2558
    %3254 = vmatpush2.bf16.msra.mxu0 %v2557
    %3255 = vmatprep.mubr.bf16.mxu0 %v679
    %3256 = vmatmul.mubr.bf16.gmra.mxu0 %v678
    %v3257 = vpop.f32.mrf.mxu0
    %v3258 = vadd.f32 %v3217, %v3257
    %v3259 = vpop.f32.mrf.mxu0
    %v3260 = vadd.f32 %v3219, %v3259
    %v3261 = vpop.f32.mrf.mxu0
    %v3262 = vpop.f32.mrf.mxu0
    %3263 = vdwg.mxu0
    %3264 = vmatprep.subr.bf16.mxu0 0
    %3265 = vmatpush1.bf16.msra.mxu0 0
    %3266 = vmatprep.subr.bf16.mxu0 0
    %3267 = vmatpush1.bf16.msra.mxu0 0
    %3268 = vmatprep.subr.bf16.mxu0 0
    %3269 = vmatpush1.bf16.msra.mxu0 0
    %3270 = vmatprep.subr.bf16.mxu0 0
    %3271 = vmatpush1.bf16.msra.mxu0 0
    %3272 = vmatprep.subr.bf16.mxu0 0
    %3273 = vmatpush1.bf16.msra.mxu0 0
    %3274 = vmatprep.subr.bf16.mxu0 0
    %3275 = vmatpush1.bf16.msra.mxu0 0
    %3276 = vmatprep.subr.bf16.mxu0 0
    %3277 = vmatpush1.bf16.msra.mxu0 0
    %3278 = vmatprep.subr.bf16.mxu0 %v2638
    %3279 = vmatpush1.bf16.msra.mxu0 %v2637
    %3280 = vmatprep.subr.bf16.mxu0 0
    %3281 = vmatpush2.bf16.msra.mxu0 0
    %3282 = vmatprep.subr.bf16.mxu0 0
    %3283 = vmatpush2.bf16.msra.mxu0 0
    %3284 = vmatprep.subr.bf16.mxu0 0
    %3285 = vmatpush2.bf16.msra.mxu0 0
    %3286 = vmatprep.subr.bf16.mxu0 0
    %3287 = vmatpush2.bf16.msra.mxu0 0
    %3288 = vmatprep.subr.bf16.mxu0 0
    %3289 = vmatpush2.bf16.msra.mxu0 0
    %3290 = vmatprep.subr.bf16.mxu0 0
    %3291 = vmatpush2.bf16.msra.mxu0 0
    %3292 = vmatprep.subr.bf16.mxu0 0
    %3293 = vmatpush2.bf16.msra.mxu0 0
    %3294 = vmatprep.subr.bf16.mxu0 0
    %3295 = vmatpush2.bf16.msra.mxu0 0
    %3296 = vmatprep.mubr.bf16.mxu0 0
    %3297 = vmatmul.mubr.bf16.gmra.mxu0 %v3139
    %v3298 = vpop.f32.mrf.mxu0
    %v3299 = vadd.f32 %v3258, %v3298
    %v3300 = vpop.f32.mrf.mxu0
    %v3301 = vadd.f32 %v3260, %v3300
    %v3302 = vpop.f32.mrf.mxu0
    %v3303 = vpop.f32.mrf.mxu0
    %3304 = vdwg.mxu0
    %3305 = vmatprep.subr.bf16.mxu0 %v2230
    %3306 = vmatpush1.bf16.msra.mxu0 %v2229
    %3307 = vmatprep.subr.bf16.mxu0 %v2220
    %3308 = vmatpush1.bf16.msra.mxu0 %v2219
    %3309 = vmatprep.subr.bf16.mxu0 %v2210
    %3310 = vmatpush1.bf16.msra.mxu0 %v2209
    %3311 = vmatprep.subr.bf16.mxu0 %v2200
    %3312 = vmatpush1.bf16.msra.mxu0 %v2199
    %3313 = vmatprep.subr.bf16.mxu0 %v2190
    %3314 = vmatpush1.bf16.msra.mxu0 %v2189
    %3315 = vmatprep.subr.bf16.mxu0 %v2180
    %3316 = vmatpush1.bf16.msra.mxu0 %v2179
    %3317 = vmatprep.subr.bf16.mxu0 %v2170
    %3318 = vmatpush1.bf16.msra.mxu0 %v2169
    %3319 = vmatprep.subr.bf16.mxu0 %v2160
    %3320 = vmatpush1.bf16.msra.mxu0 %v2159
    %3321 = vmatprep.subr.bf16.mxu0 %v2310
    %3322 = vmatpush2.bf16.msra.mxu0 %v2309
    %3323 = vmatprep.subr.bf16.mxu0 %v2300
    %3324 = vmatpush2.bf16.msra.mxu0 %v2299
    %3325 = vmatprep.subr.bf16.mxu0 %v2290
    %3326 = vmatpush2.bf16.msra.mxu0 %v2289
    %3327 = vmatprep.subr.bf16.mxu0 %v2280
    %3328 = vmatpush2.bf16.msra.mxu0 %v2279
    %3329 = vmatprep.subr.bf16.mxu0 %v2270
    %3330 = vmatpush2.bf16.msra.mxu0 %v2269
    %3331 = vmatprep.subr.bf16.mxu0 %v2260
    %3332 = vmatpush2.bf16.msra.mxu0 %v2259
    %3333 = vmatprep.subr.bf16.mxu0 %v2250
    %3334 = vmatpush2.bf16.msra.mxu0 %v2249
    %3335 = vmatprep.subr.bf16.mxu0 %v2240
    %3336 = vmatpush2.bf16.msra.mxu0 %v2239
    %3337 = vmatprep.mubr.bf16.mxu0 %v675
    %3338 = vmatmul.mubr.bf16.gmra.mxu0 %v674
    %v3339 = vpop.f32.mrf.mxu0
    %v3340 = vadd.f32 %v624, %v3339
    %v3341 = vpop.f32.mrf.mxu0
    %v3342 = vadd.f32 %v628, %v3341
    %v3343 = vpop.f32.mrf.mxu0
    %v3344 = vpop.f32.mrf.mxu0
    %3345 = vdwg.mxu0
    %3346 = vmatprep.subr.bf16.mxu0 %v2390
    %3347 = vmatpush1.bf16.msra.mxu0 %v2389
    %3348 = vmatprep.subr.bf16.mxu0 %v2380
    %3349 = vmatpush1.bf16.msra.mxu0 %v2379
    %3350 = vmatprep.subr.bf16.mxu0 %v2370
    %3351 = vmatpush1.bf16.msra.mxu0 %v2369
    %3352 = vmatprep.subr.bf16.mxu0 %v2360
    %3353 = vmatpush1.bf16.msra.mxu0 %v2359
    %3354 = vmatprep.subr.bf16.mxu0 %v2350
    %3355 = vmatpush1.bf16.msra.mxu0 %v2349
    %3356 = vmatprep.subr.bf16.mxu0 %v2340
    %3357 = vmatpush1.bf16.msra.mxu0 %v2339
    %3358 = vmatprep.subr.bf16.mxu0 %v2330
    %3359 = vmatpush1.bf16.msra.mxu0 %v2329
    %3360 = vmatprep.subr.bf16.mxu0 %v2320
    %3361 = vmatpush1.bf16.msra.mxu0 %v2319
    %3362 = vmatprep.subr.bf16.mxu0 %v2470
    %3363 = vmatpush2.bf16.msra.mxu0 %v2469
    %3364 = vmatprep.subr.bf16.mxu0 %v2460
    %3365 = vmatpush2.bf16.msra.mxu0 %v2459
    %3366 = vmatprep.subr.bf16.mxu0 %v2450
    %3367 = vmatpush2.bf16.msra.mxu0 %v2449
    %3368 = vmatprep.subr.bf16.mxu0 %v2440
    %3369 = vmatpush2.bf16.msra.mxu0 %v2439
    %3370 = vmatprep.subr.bf16.mxu0 %v2430
    %3371 = vmatpush2.bf16.msra.mxu0 %v2429
    %3372 = vmatprep.subr.bf16.mxu0 %v2420
    %3373 = vmatpush2.bf16.msra.mxu0 %v2419
    %3374 = vmatprep.subr.bf16.mxu0 %v2410
    %3375 = vmatpush2.bf16.msra.mxu0 %v2409
    %3376 = vmatprep.subr.bf16.mxu0 %v2400
    %3377 = vmatpush2.bf16.msra.mxu0 %v2399
    %3378 = vmatprep.mubr.bf16.mxu0 %v677
    %3379 = vmatmul.mubr.bf16.gmra.mxu0 %v676
    %v3380 = vpop.f32.mrf.mxu0
    %v3381 = vadd.f32 %v3340, %v3380
    %v3382 = vpop.f32.mrf.mxu0
    %v3383 = vadd.f32 %v3342, %v3382
    %v3384 = vpop.f32.mrf.mxu0
    %v3385 = vpop.f32.mrf.mxu0
    %3386 = vdwg.mxu0
    %3387 = vmatprep.subr.bf16.mxu0 %v2550
    %3388 = vmatpush1.bf16.msra.mxu0 %v2549
    %3389 = vmatprep.subr.bf16.mxu0 %v2540
    %3390 = vmatpush1.bf16.msra.mxu0 %v2539
    %3391 = vmatprep.subr.bf16.mxu0 %v2530
    %3392 = vmatpush1.bf16.msra.mxu0 %v2529
    %3393 = vmatprep.subr.bf16.mxu0 %v2520
    %3394 = vmatpush1.bf16.msra.mxu0 %v2519
    %3395 = vmatprep.subr.bf16.mxu0 %v2510
    %3396 = vmatpush1.bf16.msra.mxu0 %v2509
    %3397 = vmatprep.subr.bf16.mxu0 %v2500
    %3398 = vmatpush1.bf16.msra.mxu0 %v2499
    %3399 = vmatprep.subr.bf16.mxu0 %v2490
    %3400 = vmatpush1.bf16.msra.mxu0 %v2489
    %3401 = vmatprep.subr.bf16.mxu0 %v2480
    %3402 = vmatpush1.bf16.msra.mxu0 %v2479
    %3403 = vmatprep.subr.bf16.mxu0 %v2630
    %3404 = vmatpush2.bf16.msra.mxu0 %v2629
    %3405 = vmatprep.subr.bf16.mxu0 %v2620
    %3406 = vmatpush2.bf16.msra.mxu0 %v2619
    %3407 = vmatprep.subr.bf16.mxu0 %v2610
    %3408 = vmatpush2.bf16.msra.mxu0 %v2609
    %3409 = vmatprep.subr.bf16.mxu0 %v2600
    %3410 = vmatpush2.bf16.msra.mxu0 %v2599
    %3411 = vmatprep.subr.bf16.mxu0 %v2590
    %3412 = vmatpush2.bf16.msra.mxu0 %v2589
    %3413 = vmatprep.subr.bf16.mxu0 %v2580
    %3414 = vmatpush2.bf16.msra.mxu0 %v2579
    %3415 = vmatprep.subr.bf16.mxu0 %v2570
    %3416 = vmatpush2.bf16.msra.mxu0 %v2569
    %3417 = vmatprep.subr.bf16.mxu0 %v2560
    %3418 = vmatpush2.bf16.msra.mxu0 %v2559
    %3419 = vmatprep.mubr.bf16.mxu0 %v679
    %3420 = vmatmul.mubr.bf16.gmra.mxu0 %v678
    %v3421 = vpop.f32.mrf.mxu0
    %v3422 = vadd.f32 %v3381, %v3421
    %v3423 = vpop.f32.mrf.mxu0
    %v3424 = vadd.f32 %v3383, %v3423
    %v3425 = vpop.f32.mrf.mxu0
    %v3426 = vpop.f32.mrf.mxu0
    %3427 = vdwg.mxu0
    %3428 = vmatprep.subr.bf16.mxu0 0
    %3429 = vmatpush1.bf16.msra.mxu0 0
    %3430 = vmatprep.subr.bf16.mxu0 0
    %3431 = vmatpush1.bf16.msra.mxu0 0
    %3432 = vmatprep.subr.bf16.mxu0 0
    %3433 = vmatpush1.bf16.msra.mxu0 0
    %3434 = vmatprep.subr.bf16.mxu0 0
    %3435 = vmatpush1.bf16.msra.mxu0 0
    %3436 = vmatprep.subr.bf16.mxu0 0
    %3437 = vmatpush1.bf16.msra.mxu0 0
    %3438 = vmatprep.subr.bf16.mxu0 0
    %3439 = vmatpush1.bf16.msra.mxu0 0
    %3440 = vmatprep.subr.bf16.mxu0 0
    %3441 = vmatpush1.bf16.msra.mxu0 0
    %3442 = vmatprep.subr.bf16.mxu0 %v2640
    %3443 = vmatpush1.bf16.msra.mxu0 %v2639
    %3444 = vmatprep.subr.bf16.mxu0 0
    %3445 = vmatpush2.bf16.msra.mxu0 0
    %3446 = vmatprep.subr.bf16.mxu0 0
    %3447 = vmatpush2.bf16.msra.mxu0 0
    %3448 = vmatprep.subr.bf16.mxu0 0
    %3449 = vmatpush2.bf16.msra.mxu0 0
    %3450 = vmatprep.subr.bf16.mxu0 0
    %3451 = vmatpush2.bf16.msra.mxu0 0
    %3452 = vmatprep.subr.bf16.mxu0 0
    %3453 = vmatpush2.bf16.msra.mxu0 0
    %3454 = vmatprep.subr.bf16.mxu0 0
    %3455 = vmatpush2.bf16.msra.mxu0 0
    %3456 = vmatprep.subr.bf16.mxu0 0
    %3457 = vmatpush2.bf16.msra.mxu0 0
    %3458 = vmatprep.subr.bf16.mxu0 0
    %3459 = vmatpush2.bf16.msra.mxu0 0
    %3460 = vmatprep.mubr.bf16.mxu0 0
    %3461 = vmatmul.mubr.bf16.gmra.mxu0 %v3139
    %v3462 = vpop.f32.mrf.mxu0
    %v3463 = vadd.f32 %v3422, %v3462
    %v3464 = vpop.f32.mrf.mxu0
    %v3465 = vadd.f32 %v3424, %v3464
    %v3466 = vpop.f32.mrf.mxu0
    %v3467 = vpop.f32.mrf.mxu0
    %3468 = vdwg.mxu0
    %3469 = vmatprep.subr.bf16.mxu0 %v2232
    %3470 = vmatpush1.bf16.msra.mxu0 %v2231
    %3471 = vmatprep.subr.bf16.mxu0 %v2222
    %3472 = vmatpush1.bf16.msra.mxu0 %v2221
    %3473 = vmatprep.subr.bf16.mxu0 %v2212
    %3474 = vmatpush1.bf16.msra.mxu0 %v2211
    %3475 = vmatprep.subr.bf16.mxu0 %v2202
    %3476 = vmatpush1.bf16.msra.mxu0 %v2201
    %3477 = vmatprep.subr.bf16.mxu0 %v2192
    %3478 = vmatpush1.bf16.msra.mxu0 %v2191
    %3479 = vmatprep.subr.bf16.mxu0 %v2182
    %3480 = vmatpush1.bf16.msra.mxu0 %v2181
    %3481 = vmatprep.subr.bf16.mxu0 %v2172
    %3482 = vmatpush1.bf16.msra.mxu0 %v2171
    %3483 = vmatprep.subr.bf16.mxu0 %v2162
    %3484 = vmatpush1.bf16.msra.mxu0 %v2161
    %3485 = vmatprep.subr.bf16.mxu0 %v2312
    %3486 = vmatpush2.bf16.msra.mxu0 %v2311
    %3487 = vmatprep.subr.bf16.mxu0 %v2302
    %3488 = vmatpush2.bf16.msra.mxu0 %v2301
    %3489 = vmatprep.subr.bf16.mxu0 %v2292
    %3490 = vmatpush2.bf16.msra.mxu0 %v2291
    %3491 = vmatprep.subr.bf16.mxu0 %v2282
    %3492 = vmatpush2.bf16.msra.mxu0 %v2281
    %3493 = vmatprep.subr.bf16.mxu0 %v2272
    %3494 = vmatpush2.bf16.msra.mxu0 %v2271
    %3495 = vmatprep.subr.bf16.mxu0 %v2262
    %3496 = vmatpush2.bf16.msra.mxu0 %v2261
    %3497 = vmatprep.subr.bf16.mxu0 %v2252
    %3498 = vmatpush2.bf16.msra.mxu0 %v2251
    %3499 = vmatprep.subr.bf16.mxu0 %v2242
    %3500 = vmatpush2.bf16.msra.mxu0 %v2241
    %3501 = vmatprep.mubr.bf16.mxu0 %v675
    %3502 = vmatmul.mubr.bf16.gmra.mxu0 %v674
    %v3503 = vpop.f32.mrf.mxu0
    %v3504 = vadd.f32 %v632, %v3503
    %v3505 = vpop.f32.mrf.mxu0
    %v3506 = vadd.f32 %v636, %v3505
    %v3507 = vpop.f32.mrf.mxu0
    %v3508 = vpop.f32.mrf.mxu0
    %3509 = vdwg.mxu0
    %3510 = vmatprep.subr.bf16.mxu0 %v2392
    %3511 = vmatpush1.bf16.msra.mxu0 %v2391
    %3512 = vmatprep.subr.bf16.mxu0 %v2382
    %3513 = vmatpush1.bf16.msra.mxu0 %v2381
    %3514 = vmatprep.subr.bf16.mxu0 %v2372
    %3515 = vmatpush1.bf16.msra.mxu0 %v2371
    %3516 = vmatprep.subr.bf16.mxu0 %v2362
    %3517 = vmatpush1.bf16.msra.mxu0 %v2361
    %3518 = vmatprep.subr.bf16.mxu0 %v2352
    %3519 = vmatpush1.bf16.msra.mxu0 %v2351
    %3520 = vmatprep.subr.bf16.mxu0 %v2342
    %3521 = vmatpush1.bf16.msra.mxu0 %v2341
    %3522 = vmatprep.subr.bf16.mxu0 %v2332
    %3523 = vmatpush1.bf16.msra.mxu0 %v2331
    %3524 = vmatprep.subr.bf16.mxu0 %v2322
    %3525 = vmatpush1.bf16.msra.mxu0 %v2321
    %3526 = vmatprep.subr.bf16.mxu0 %v2472
    %3527 = vmatpush2.bf16.msra.mxu0 %v2471
    %3528 = vmatprep.subr.bf16.mxu0 %v2462
    %3529 = vmatpush2.bf16.msra.mxu0 %v2461
    %3530 = vmatprep.subr.bf16.mxu0 %v2452
    %3531 = vmatpush2.bf16.msra.mxu0 %v2451
    %3532 = vmatprep.subr.bf16.mxu0 %v2442
    %3533 = vmatpush2.bf16.msra.mxu0 %v2441
    %3534 = vmatprep.subr.bf16.mxu0 %v2432
    %3535 = vmatpush2.bf16.msra.mxu0 %v2431
    %3536 = vmatprep.subr.bf16.mxu0 %v2422
    %3537 = vmatpush2.bf16.msra.mxu0 %v2421
    %3538 = vmatprep.subr.bf16.mxu0 %v2412
    %3539 = vmatpush2.bf16.msra.mxu0 %v2411
    %3540 = vmatprep.subr.bf16.mxu0 %v2402
    %3541 = vmatpush2.bf16.msra.mxu0 %v2401
    %3542 = vmatprep.mubr.bf16.mxu0 %v677
    %3543 = vmatmul.mubr.bf16.gmra.mxu0 %v676
    %v3544 = vpop.f32.mrf.mxu0
    %v3545 = vadd.f32 %v3504, %v3544
    %v3546 = vpop.f32.mrf.mxu0
    %v3547 = vadd.f32 %v3506, %v3546
    %v3548 = vpop.f32.mrf.mxu0
    %v3549 = vpop.f32.mrf.mxu0
    %3550 = vdwg.mxu0
    %3551 = vmatprep.subr.bf16.mxu0 %v2552
    %3552 = vmatpush1.bf16.msra.mxu0 %v2551
    %3553 = vmatprep.subr.bf16.mxu0 %v2542
    %3554 = vmatpush1.bf16.msra.mxu0 %v2541
    %3555 = vmatprep.subr.bf16.mxu0 %v2532
    %3556 = vmatpush1.bf16.msra.mxu0 %v2531
    %3557 = vmatprep.subr.bf16.mxu0 %v2522
    %3558 = vmatpush1.bf16.msra.mxu0 %v2521
    %3559 = vmatprep.subr.bf16.mxu0 %v2512
    %3560 = vmatpush1.bf16.msra.mxu0 %v2511
    %3561 = vmatprep.subr.bf16.mxu0 %v2502
    %3562 = vmatpush1.bf16.msra.mxu0 %v2501
    %3563 = vmatprep.subr.bf16.mxu0 %v2492
    %3564 = vmatpush1.bf16.msra.mxu0 %v2491
    %3565 = vmatprep.subr.bf16.mxu0 %v2482
    %3566 = vmatpush1.bf16.msra.mxu0 %v2481
    %3567 = vmatprep.subr.bf16.mxu0 %v2632
    %3568 = vmatpush2.bf16.msra.mxu0 %v2631
    %3569 = vmatprep.subr.bf16.mxu0 %v2622
    %3570 = vmatpush2.bf16.msra.mxu0 %v2621
    %3571 = vmatprep.subr.bf16.mxu0 %v2612
    %3572 = vmatpush2.bf16.msra.mxu0 %v2611
    %3573 = vmatprep.subr.bf16.mxu0 %v2602
    %3574 = vmatpush2.bf16.msra.mxu0 %v2601
    %3575 = vmatprep.subr.bf16.mxu0 %v2592
    %3576 = vmatpush2.bf16.msra.mxu0 %v2591
    %3577 = vmatprep.subr.bf16.mxu0 %v2582
    %3578 = vmatpush2.bf16.msra.mxu0 %v2581
    %3579 = vmatprep.subr.bf16.mxu0 %v2572
    %3580 = vmatpush2.bf16.msra.mxu0 %v2571
    %3581 = vmatprep.subr.bf16.mxu0 %v2562
    %3582 = vmatpush2.bf16.msra.mxu0 %v2561
    %3583 = vmatprep.mubr.bf16.mxu0 %v679
    %3584 = vmatmul.mubr.bf16.gmra.mxu0 %v678
    %v3585 = vpop.f32.mrf.mxu0
    %v3586 = vadd.f32 %v3545, %v3585
    %v3587 = vpop.f32.mrf.mxu0
    %v3588 = vadd.f32 %v3547, %v3587
    %v3589 = vpop.f32.mrf.mxu0
    %v3590 = vpop.f32.mrf.mxu0
    %3591 = vdwg.mxu0
    %3592 = vmatprep.subr.bf16.mxu0 0
    %3593 = vmatpush1.bf16.msra.mxu0 0
    %3594 = vmatprep.subr.bf16.mxu0 0
    %3595 = vmatpush1.bf16.msra.mxu0 0
    %3596 = vmatprep.subr.bf16.mxu0 0
    %3597 = vmatpush1.bf16.msra.mxu0 0
    %3598 = vmatprep.subr.bf16.mxu0 0
    %3599 = vmatpush1.bf16.msra.mxu0 0
    %3600 = vmatprep.subr.bf16.mxu0 0
    %3601 = vmatpush1.bf16.msra.mxu0 0
    %3602 = vmatprep.subr.bf16.mxu0 0
    %3603 = vmatpush1.bf16.msra.mxu0 0
    %3604 = vmatprep.subr.bf16.mxu0 0
    %3605 = vmatpush1.bf16.msra.mxu0 0
    %3606 = vmatprep.subr.bf16.mxu0 %v2642
    %3607 = vmatpush1.bf16.msra.mxu0 %v2641
    %3608 = vmatprep.subr.bf16.mxu0 0
    %3609 = vmatpush2.bf16.msra.mxu0 0
    %3610 = vmatprep.subr.bf16.mxu0 0
    %3611 = vmatpush2.bf16.msra.mxu0 0
    %3612 = vmatprep.subr.bf16.mxu0 0
    %3613 = vmatpush2.bf16.msra.mxu0 0
    %3614 = vmatprep.subr.bf16.mxu0 0
    %3615 = vmatpush2.bf16.msra.mxu0 0
    %3616 = vmatprep.subr.bf16.mxu0 0
    %3617 = vmatpush2.bf16.msra.mxu0 0
    %3618 = vmatprep.subr.bf16.mxu0 0
    %3619 = vmatpush2.bf16.msra.mxu0 0
    %3620 = vmatprep.subr.bf16.mxu0 0
    %3621 = vmatpush2.bf16.msra.mxu0 0
    %3622 = vmatprep.subr.bf16.mxu0 0
    %3623 = vmatpush2.bf16.msra.mxu0 0
    %3624 = vmatprep.mubr.bf16.mxu0 0
    %3625 = vmatmul.mubr.bf16.gmra.mxu0 %v3139
    %v3626 = vpop.f32.mrf.mxu0
    %v3627 = vadd.f32 %v3586, %v3626
    %v3628 = vpop.f32.mrf.mxu0
    %v3629 = vadd.f32 %v3588, %v3628
    %v3630 = vpop.f32.mrf.mxu0
    %v3631 = vpop.f32.mrf.mxu0
    %3632 = vdwg.mxu0
    %3633 = vmatprep.subr.bf16.mxu0 %v2234
    %3634 = vmatpush1.bf16.msra.mxu0 %v2233
    %3635 = vmatprep.subr.bf16.mxu0 %v2224
    %3636 = vmatpush1.bf16.msra.mxu0 %v2223
    %3637 = vmatprep.subr.bf16.mxu0 %v2214
    %3638 = vmatpush1.bf16.msra.mxu0 %v2213
    %3639 = vmatprep.subr.bf16.mxu0 %v2204
    %3640 = vmatpush1.bf16.msra.mxu0 %v2203
    %3641 = vmatprep.subr.bf16.mxu0 %v2194
    %3642 = vmatpush1.bf16.msra.mxu0 %v2193
    %3643 = vmatprep.subr.bf16.mxu0 %v2184
    %3644 = vmatpush1.bf16.msra.mxu0 %v2183
    %3645 = vmatprep.subr.bf16.mxu0 %v2174
    %3646 = vmatpush1.bf16.msra.mxu0 %v2173
    %3647 = vmatprep.subr.bf16.mxu0 %v2164
    %3648 = vmatpush1.bf16.msra.mxu0 %v2163
    %3649 = vmatprep.subr.bf16.mxu0 %v2314
    %3650 = vmatpush2.bf16.msra.mxu0 %v2313
    %3651 = vmatprep.subr.bf16.mxu0 %v2304
    %3652 = vmatpush2.bf16.msra.mxu0 %v2303
    %3653 = vmatprep.subr.bf16.mxu0 %v2294
    %3654 = vmatpush2.bf16.msra.mxu0 %v2293
    %3655 = vmatprep.subr.bf16.mxu0 %v2284
    %3656 = vmatpush2.bf16.msra.mxu0 %v2283
    %3657 = vmatprep.subr.bf16.mxu0 %v2274
    %3658 = vmatpush2.bf16.msra.mxu0 %v2273
    %3659 = vmatprep.subr.bf16.mxu0 %v2264
    %3660 = vmatpush2.bf16.msra.mxu0 %v2263
    %3661 = vmatprep.subr.bf16.mxu0 %v2254
    %3662 = vmatpush2.bf16.msra.mxu0 %v2253
    %3663 = vmatprep.subr.bf16.mxu0 %v2244
    %3664 = vmatpush2.bf16.msra.mxu0 %v2243
    %3665 = vmatprep.mubr.bf16.mxu0 %v675
    %3666 = vmatmul.mubr.bf16.gmra.mxu0 %v674
    %v3667 = vpop.f32.mrf.mxu0
    %v3668 = vadd.f32 %v640, %v3667
    %v3669 = vpop.f32.mrf.mxu0
    %v3670 = vadd.f32 %v644, %v3669
    %v3671 = vpop.f32.mrf.mxu0
    %v3672 = vpop.f32.mrf.mxu0
    %3673 = vdwg.mxu0
    %3674 = vmatprep.subr.bf16.mxu0 %v2394
    %3675 = vmatpush1.bf16.msra.mxu0 %v2393
    %3676 = vmatprep.subr.bf16.mxu0 %v2384
    %3677 = vmatpush1.bf16.msra.mxu0 %v2383
    %3678 = vmatprep.subr.bf16.mxu0 %v2374
    %3679 = vmatpush1.bf16.msra.mxu0 %v2373
    %3680 = vmatprep.subr.bf16.mxu0 %v2364
    %3681 = vmatpush1.bf16.msra.mxu0 %v2363
    %3682 = vmatprep.subr.bf16.mxu0 %v2354
    %3683 = vmatpush1.bf16.msra.mxu0 %v2353
    %3684 = vmatprep.subr.bf16.mxu0 %v2344
    %3685 = vmatpush1.bf16.msra.mxu0 %v2343
    %3686 = vmatprep.subr.bf16.mxu0 %v2334
    %3687 = vmatpush1.bf16.msra.mxu0 %v2333
    %3688 = vmatprep.subr.bf16.mxu0 %v2324
    %3689 = vmatpush1.bf16.msra.mxu0 %v2323
    %3690 = vmatprep.subr.bf16.mxu0 %v2474
    %3691 = vmatpush2.bf16.msra.mxu0 %v2473
    %3692 = vmatprep.subr.bf16.mxu0 %v2464
    %3693 = vmatpush2.bf16.msra.mxu0 %v2463
    %3694 = vmatprep.subr.bf16.mxu0 %v2454
    %3695 = vmatpush2.bf16.msra.mxu0 %v2453
    %3696 = vmatprep.subr.bf16.mxu0 %v2444
    %3697 = vmatpush2.bf16.msra.mxu0 %v2443
    %3698 = vmatprep.subr.bf16.mxu0 %v2434
    %3699 = vmatpush2.bf16.msra.mxu0 %v2433
    %3700 = vmatprep.subr.bf16.mxu0 %v2424
    %3701 = vmatpush2.bf16.msra.mxu0 %v2423
    %3702 = vmatprep.subr.bf16.mxu0 %v2414
    %3703 = vmatpush2.bf16.msra.mxu0 %v2413
    %3704 = vmatprep.subr.bf16.mxu0 %v2404
    %3705 = vmatpush2.bf16.msra.mxu0 %v2403
    %3706 = vmatprep.mubr.bf16.mxu0 %v677
    %3707 = vmatmul.mubr.bf16.gmra.mxu0 %v676
    %v3708 = vpop.f32.mrf.mxu0
    %v3709 = vadd.f32 %v3668, %v3708
    %v3710 = vpop.f32.mrf.mxu0
    %v3711 = vadd.f32 %v3670, %v3710
    %v3712 = vpop.f32.mrf.mxu0
    %v3713 = vpop.f32.mrf.mxu0
    %3714 = vdwg.mxu0
    %3715 = vmatprep.subr.bf16.mxu0 %v2554
    %3716 = vmatpush1.bf16.msra.mxu0 %v2553
    %3717 = vmatprep.subr.bf16.mxu0 %v2544
    %3718 = vmatpush1.bf16.msra.mxu0 %v2543
    %3719 = vmatprep.subr.bf16.mxu0 %v2534
    %3720 = vmatpush1.bf16.msra.mxu0 %v2533
    %3721 = vmatprep.subr.bf16.mxu0 %v2524
    %3722 = vmatpush1.bf16.msra.mxu0 %v2523
    %3723 = vmatprep.subr.bf16.mxu0 %v2514
    %3724 = vmatpush1.bf16.msra.mxu0 %v2513
    %3725 = vmatprep.subr.bf16.mxu0 %v2504
    %3726 = vmatpush1.bf16.msra.mxu0 %v2503
    %3727 = vmatprep.subr.bf16.mxu0 %v2494
    %3728 = vmatpush1.bf16.msra.mxu0 %v2493
    %3729 = vmatprep.subr.bf16.mxu0 %v2484
    %3730 = vmatpush1.bf16.msra.mxu0 %v2483
    %3731 = vmatprep.subr.bf16.mxu0 %v2634
    %3732 = vmatpush2.bf16.msra.mxu0 %v2633
    %3733 = vmatprep.subr.bf16.mxu0 %v2624
    %3734 = vmatpush2.bf16.msra.mxu0 %v2623
    %3735 = vmatprep.subr.bf16.mxu0 %v2614
    %3736 = vmatpush2.bf16.msra.mxu0 %v2613
    %3737 = vmatprep.subr.bf16.mxu0 %v2604
    %3738 = vmatpush2.bf16.msra.mxu0 %v2603
    %3739 = vmatprep.subr.bf16.mxu0 %v2594
    %3740 = vmatpush2.bf16.msra.mxu0 %v2593
    %3741 = vmatprep.subr.bf16.mxu0 %v2584
    %3742 = vmatpush2.bf16.msra.mxu0 %v2583
    %3743 = vmatprep.subr.bf16.mxu0 %v2574
    %3744 = vmatpush2.bf16.msra.mxu0 %v2573
    %3745 = vmatprep.subr.bf16.mxu0 %v2564
    %3746 = vmatpush2.bf16.msra.mxu0 %v2563
    %3747 = vmatprep.mubr.bf16.mxu0 %v679
    %3748 = vmatmul.mubr.bf16.gmra.mxu0 %v678
    %v3749 = vpop.f32.mrf.mxu0
    %v3750 = vadd.f32 %v3709, %v3749
    %v3751 = vpop.f32.mrf.mxu0
    %v3752 = vadd.f32 %v3711, %v3751
    %v3753 = vpop.f32.mrf.mxu0
    %v3754 = vpop.f32.mrf.mxu0
    %3755 = vdwg.mxu0
    %3756 = vmatprep.subr.bf16.mxu0 0
    %3757 = vmatpush1.bf16.msra.mxu0 0
    %3758 = vmatprep.subr.bf16.mxu0 0
    %3759 = vmatpush1.bf16.msra.mxu0 0
    %3760 = vmatprep.subr.bf16.mxu0 0
    %3761 = vmatpush1.bf16.msra.mxu0 0
    %3762 = vmatprep.subr.bf16.mxu0 0
    %3763 = vmatpush1.bf16.msra.mxu0 0
    %3764 = vmatprep.subr.bf16.mxu0 0
    %3765 = vmatpush1.bf16.msra.mxu0 0
    %3766 = vmatprep.subr.bf16.mxu0 0
    %3767 = vmatpush1.bf16.msra.mxu0 0
    %3768 = vmatprep.subr.bf16.mxu0 0
    %3769 = vmatpush1.bf16.msra.mxu0 0
    %3770 = vmatprep.subr.bf16.mxu0 %v2644
    %3771 = vmatpush1.bf16.msra.mxu0 %v2643
    %3772 = vmatprep.subr.bf16.mxu0 0
    %3773 = vmatpush2.bf16.msra.mxu0 0
    %3774 = vmatprep.subr.bf16.mxu0 0
    %3775 = vmatpush2.bf16.msra.mxu0 0
    %3776 = vmatprep.subr.bf16.mxu0 0
    %3777 = vmatpush2.bf16.msra.mxu0 0
    %3778 = vmatprep.subr.bf16.mxu0 0
    %3779 = vmatpush2.bf16.msra.mxu0 0
    %3780 = vmatprep.subr.bf16.mxu0 0
    %3781 = vmatpush2.bf16.msra.mxu0 0
    %3782 = vmatprep.subr.bf16.mxu0 0
    %3783 = vmatpush2.bf16.msra.mxu0 0
    %3784 = vmatprep.subr.bf16.mxu0 0
    %3785 = vmatpush2.bf16.msra.mxu0 0
    %3786 = vmatprep.subr.bf16.mxu0 0
    %3787 = vmatpush2.bf16.msra.mxu0 0
    %3788 = vmatprep.mubr.bf16.mxu0 0
    %3789 = vmatmul.mubr.bf16.gmra.mxu0 %v3139
    %v3790 = vpop.f32.mrf.mxu0
    %v3791 = vadd.f32 %v3750, %v3790
    %v3792 = vpop.f32.mrf.mxu0
    %v3793 = vadd.f32 %v3752, %v3792
    %v3794 = vpop.f32.mrf.mxu0
    %v3795 = vpop.f32.mrf.mxu0
    %3796 = vdwg.mxu0
    %3797 = vmatprep.subr.bf16.mxu0 %v2236
    %3798 = vmatpush1.bf16.msra.mxu0 %v2235
    %3799 = vmatprep.subr.bf16.mxu0 %v2226
    %3800 = vmatpush1.bf16.msra.mxu0 %v2225
    %3801 = vmatprep.subr.bf16.mxu0 %v2216
    %3802 = vmatpush1.bf16.msra.mxu0 %v2215
    %3803 = vmatprep.subr.bf16.mxu0 %v2206
    %3804 = vmatpush1.bf16.msra.mxu0 %v2205
    %3805 = vmatprep.subr.bf16.mxu0 %v2196
    %3806 = vmatpush1.bf16.msra.mxu0 %v2195
    %3807 = vmatprep.subr.bf16.mxu0 %v2186
    %3808 = vmatpush1.bf16.msra.mxu0 %v2185
    %3809 = vmatprep.subr.bf16.mxu0 %v2176
    %3810 = vmatpush1.bf16.msra.mxu0 %v2175
    %3811 = vmatprep.subr.bf16.mxu0 %v2166
    %3812 = vmatpush1.bf16.msra.mxu0 %v2165
    %3813 = vmatprep.subr.bf16.mxu0 %v2316
    %3814 = vmatpush2.bf16.msra.mxu0 %v2315
    %3815 = vmatprep.subr.bf16.mxu0 %v2306
    %3816 = vmatpush2.bf16.msra.mxu0 %v2305
    %3817 = vmatprep.subr.bf16.mxu0 %v2296
    %3818 = vmatpush2.bf16.msra.mxu0 %v2295
    %3819 = vmatprep.subr.bf16.mxu0 %v2286
    %3820 = vmatpush2.bf16.msra.mxu0 %v2285
    %3821 = vmatprep.subr.bf16.mxu0 %v2276
    %3822 = vmatpush2.bf16.msra.mxu0 %v2275
    %3823 = vmatprep.subr.bf16.mxu0 %v2266
    %3824 = vmatpush2.bf16.msra.mxu0 %v2265
    %3825 = vmatprep.subr.bf16.mxu0 %v2256
    %3826 = vmatpush2.bf16.msra.mxu0 %v2255
    %3827 = vmatprep.subr.bf16.mxu0 %v2246
    %3828 = vmatpush2.bf16.msra.mxu0 %v2245
    %3829 = vmatprep.mubr.bf16.mxu0 %v675
    %3830 = vmatmul.mubr.bf16.gmra.mxu0 %v674
    %v3831 = vpop.f32.mrf.mxu0
    %v3832 = vadd.f32 %v648, %v3831
    %v3833 = vpop.f32.mrf.mxu0
    %v3834 = vadd.f32 %v652, %v3833
    %v3835 = vpop.f32.mrf.mxu0
    %v3836 = vpop.f32.mrf.mxu0
    %3837 = vdwg.mxu0
    %3838 = vmatprep.subr.bf16.mxu0 %v2396
    %3839 = vmatpush1.bf16.msra.mxu0 %v2395
    %3840 = vmatprep.subr.bf16.mxu0 %v2386
    %3841 = vmatpush1.bf16.msra.mxu0 %v2385
    %3842 = vmatprep.subr.bf16.mxu0 %v2376
    %3843 = vmatpush1.bf16.msra.mxu0 %v2375
    %3844 = vmatprep.subr.bf16.mxu0 %v2366
    %3845 = vmatpush1.bf16.msra.mxu0 %v2365
    %3846 = vmatprep.subr.bf16.mxu0 %v2356
    %3847 = vmatpush1.bf16.msra.mxu0 %v2355
    %3848 = vmatprep.subr.bf16.mxu0 %v2346
    %3849 = vmatpush1.bf16.msra.mxu0 %v2345
    %3850 = vmatprep.subr.bf16.mxu0 %v2336
    %3851 = vmatpush1.bf16.msra.mxu0 %v2335
    %3852 = vmatprep.subr.bf16.mxu0 %v2326
    %3853 = vmatpush1.bf16.msra.mxu0 %v2325
    %3854 = vmatprep.subr.bf16.mxu0 %v2476
    %3855 = vmatpush2.bf16.msra.mxu0 %v2475
    %3856 = vmatprep.subr.bf16.mxu0 %v2466
    %3857 = vmatpush2.bf16.msra.mxu0 %v2465
    %3858 = vmatprep.subr.bf16.mxu0 %v2456
    %3859 = vmatpush2.bf16.msra.mxu0 %v2455
    %3860 = vmatprep.subr.bf16.mxu0 %v2446
    %3861 = vmatpush2.bf16.msra.mxu0 %v2445
    %3862 = vmatprep.subr.bf16.mxu0 %v2436
    %3863 = vmatpush2.bf16.msra.mxu0 %v2435
    %3864 = vmatprep.subr.bf16.mxu0 %v2426
    %3865 = vmatpush2.bf16.msra.mxu0 %v2425
    %3866 = vmatprep.subr.bf16.mxu0 %v2416
    %3867 = vmatpush2.bf16.msra.mxu0 %v2415
    %3868 = vmatprep.subr.bf16.mxu0 %v2406
    %3869 = vmatpush2.bf16.msra.mxu0 %v2405
    %3870 = vmatprep.mubr.bf16.mxu0 %v677
    %3871 = vmatmul.mubr.bf16.gmra.mxu0 %v676
    %v3872 = vpop.f32.mrf.mxu0
    %v3873 = vadd.f32 %v3832, %v3872
    %v3874 = vpop.f32.mrf.mxu0
    %v3875 = vadd.f32 %v3834, %v3874
    %v3876 = vpop.f32.mrf.mxu0
    %v3877 = vpop.f32.mrf.mxu0
    %3878 = vdwg.mxu0
    %3879 = vmatprep.subr.bf16.mxu0 %v2556
    %3880 = vmatpush1.bf16.msra.mxu0 %v2555
    %3881 = vmatprep.subr.bf16.mxu0 %v2546
    %3882 = vmatpush1.bf16.msra.mxu0 %v2545
    %3883 = vmatprep.subr.bf16.mxu0 %v2536
    %3884 = vmatpush1.bf16.msra.mxu0 %v2535
    %3885 = vmatprep.subr.bf16.mxu0 %v2526
    %3886 = vmatpush1.bf16.msra.mxu0 %v2525
    %3887 = vmatprep.subr.bf16.mxu0 %v2516
    %3888 = vmatpush1.bf16.msra.mxu0 %v2515
    %3889 = vmatprep.subr.bf16.mxu0 %v2506
    %3890 = vmatpush1.bf16.msra.mxu0 %v2505
    %3891 = vmatprep.subr.bf16.mxu0 %v2496
    %3892 = vmatpush1.bf16.msra.mxu0 %v2495
    %3893 = vmatprep.subr.bf16.mxu0 %v2486
    %3894 = vmatpush1.bf16.msra.mxu0 %v2485
    %3895 = vmatprep.subr.bf16.mxu0 %v2636
    %3896 = vmatpush2.bf16.msra.mxu0 %v2635
    %3897 = vmatprep.subr.bf16.mxu0 %v2626
    %3898 = vmatpush2.bf16.msra.mxu0 %v2625
    %3899 = vmatprep.subr.bf16.mxu0 %v2616
    %3900 = vmatpush2.bf16.msra.mxu0 %v2615
    %3901 = vmatprep.subr.bf16.mxu0 %v2606
    %3902 = vmatpush2.bf16.msra.mxu0 %v2605
    %3903 = vmatprep.subr.bf16.mxu0 %v2596
    %3904 = vmatpush2.bf16.msra.mxu0 %v2595
    %3905 = vmatprep.subr.bf16.mxu0 %v2586
    %3906 = vmatpush2.bf16.msra.mxu0 %v2585
    %3907 = vmatprep.subr.bf16.mxu0 %v2576
    %3908 = vmatpush2.bf16.msra.mxu0 %v2575
    %3909 = vmatprep.subr.bf16.mxu0 %v2566
    %3910 = vmatpush2.bf16.msra.mxu0 %v2565
    %3911 = vmatprep.mubr.bf16.mxu0 %v679
    %3912 = vmatmul.mubr.bf16.gmra.mxu0 %v678
    %v3913 = vpop.f32.mrf.mxu0
    %v3914 = vadd.f32 %v3873, %v3913
    %v3915 = vpop.f32.mrf.mxu0
    %v3916 = vadd.f32 %v3875, %v3915
    %v3917 = vpop.f32.mrf.mxu0
    %v3918 = vpop.f32.mrf.mxu0
    %3919 = vdwg.mxu0
    %3920 = vmatprep.subr.bf16.mxu0 0
    %3921 = vmatpush1.bf16.msra.mxu0 0
    %3922 = vmatprep.subr.bf16.mxu0 0
    %3923 = vmatpush1.bf16.msra.mxu0 0
    %3924 = vmatprep.subr.bf16.mxu0 0
    %3925 = vmatpush1.bf16.msra.mxu0 0
    %3926 = vmatprep.subr.bf16.mxu0 0
    %3927 = vmatpush1.bf16.msra.mxu0 0
    %3928 = vmatprep.subr.bf16.mxu0 0
    %3929 = vmatpush1.bf16.msra.mxu0 0
    %3930 = vmatprep.subr.bf16.mxu0 0
    %3931 = vmatpush1.bf16.msra.mxu0 0
    %3932 = vmatprep.subr.bf16.mxu0 0
    %3933 = vmatpush1.bf16.msra.mxu0 0
    %3934 = vmatprep.subr.bf16.mxu0 %v2646
    %3935 = vmatpush1.bf16.msra.mxu0 %v2645
    %3936 = vmatprep.subr.bf16.mxu0 0
    %3937 = vmatpush2.bf16.msra.mxu0 0
    %3938 = vmatprep.subr.bf16.mxu0 0
    %3939 = vmatpush2.bf16.msra.mxu0 0
    %3940 = vmatprep.subr.bf16.mxu0 0
    %3941 = vmatpush2.bf16.msra.mxu0 0
    %3942 = vmatprep.subr.bf16.mxu0 0
    %3943 = vmatpush2.bf16.msra.mxu0 0
    %3944 = vmatprep.subr.bf16.mxu0 0
    %3945 = vmatpush2.bf16.msra.mxu0 0
    %3946 = vmatprep.subr.bf16.mxu0 0
    %3947 = vmatpush2.bf16.msra.mxu0 0
    %3948 = vmatprep.subr.bf16.mxu0 0
    %3949 = vmatpush2.bf16.msra.mxu0 0
    %3950 = vmatprep.subr.bf16.mxu0 0
    %3951 = vmatpush2.bf16.msra.mxu0 0
    %3952 = vmatprep.mubr.bf16.mxu0 0
    %3953 = vmatmul.mubr.bf16.gmra.mxu0 %v3139
    %v3954 = vpop.f32.mrf.mxu0
    %v3955 = vadd.f32 %v3914, %v3954
    %v3956 = vpop.f32.mrf.mxu0
    %v3957 = vadd.f32 %v3916, %v3956
    %v3958 = vpop.f32.mrf.mxu0
    %v3959 = vpop.f32.mrf.mxu0
    %3960 = vdwg.mxu0
    %v3961 = vmax.f32 %v3299, 0.0
    %v3962 = vmax.f32 %v3301, 0.0
    %v3963 = vmax.f32 %v3463, 0.0
    %v3964 = vmax.f32 %v3465, 0.0
    %v3965 = vmax.f32 %v3627, 0.0
    %v3966 = vmax.f32 %v3629, 0.0
    %v3967 = vmax.f32 %v3791, 0.0
    %v3968 = vmax.f32 %v3793, 0.0
    %v3969 = vmax.f32 %v3955, 0.0
    %v3970 = vmax.f32 %v3957, 0.0
    %v3971 = vpack.c.bf16 %v3961, %v3961
    %v3972 = vpack.c.bf16 %v3962, %v3962
    %v3973 = vpack.c.bf16 %v3963, %v3963
    %v3974 = vpack.c.bf16 %v3964, %v3964
    %v3975 = vpack.c.bf16 %v3965, %v3965
    %v3976 = vpack.c.bf16 %v3966, %v3966
    %v3977 = vpack.c.bf16 %v3967, %v3967
    %v3978 = vpack.c.bf16 %v3968, %v3968
    %v3979 = vpack.c.bf16 %v3969, %v3969
    %v3980 = vpack.c.bf16 %v3970, %v3970
    %v3981 = vld [vmem:[#allocation8] sm:$0xff]
    %v3982 = vld [vmem:[#allocation8 + $0x8] sm:$0xff]
    %v3983 = vld [vmem:[#allocation8 + $0x10] sm:$0xff]
    %v3984 = vld [vmem:[#allocation8 + $0x18] sm:$0xff]
    %v3985 = vld [vmem:[#allocation8 + $0x20] sm:$0xff]
    %v3986 = vld [vmem:[#allocation8 + $0x28] sm:$0xff]
    %v3987 = vld [vmem:[#allocation8 + $0x30] sm:$0xff]
    %v3988 = vld [vmem:[#allocation8 + $0x38] sm:$0xff]
    %v3989 = vld [vmem:[#allocation8 + $0x40] sm:$0xff]
    %v3990 = vld [vmem:[#allocation8 + $0x48] sm:$0xff]
    %v3991 = vld [vmem:[#allocation8 + $0x50] sm:$0xff]
    %v3992 = vld [vmem:[#allocation8 + $0x58] sm:$0xff]
    %v3993 = vld [vmem:[#allocation8 + $0x60] sm:$0xff]
    %v3994 = vld [vmem:[#allocation8 + $0x68] sm:$0xff]
    %v3995 = vld [vmem:[#allocation8 + $0x70] sm:$0xff]
    %v3996 = vld [vmem:[#allocation8 + $0x78] sm:$0xff]
    %v3997 = vld [vmem:[#allocation8 + $0x80] sm:$0xff]
    %v3998 = vld [vmem:[#allocation8 + $0x88] sm:$0xff]
    %v3999 = vld [vmem:[#allocation8 + $0x90] sm:$0xff]
    %v4000 = vld [vmem:[#allocation8 + $0x98] sm:$0xff]
    %v4001 = vld [vmem:[#allocation8 + $0xa0] sm:$0xff]
    %v4002 = vld [vmem:[#allocation8 + $0xa8] sm:$0xff]
    %v4003 = vld [vmem:[#allocation8 + $0xb0] sm:$0xff]
    %v4004 = vld [vmem:[#allocation8 + $0xb8] sm:$0xff]
    %v4005 = vld [vmem:[#allocation8 + $0xc0] sm:$0xff]
    %v4006 = vld [vmem:[#allocation8 + $0xc8] sm:$0xff]
    %v4007 = vld [vmem:[#allocation8 + $0xd0] sm:$0xff]
    %v4008 = vld [vmem:[#allocation8 + $0xd8] sm:$0xff]
    %v4009 = vld [vmem:[#allocation8 + $0xe0] sm:$0xff]
    %v4010 = vld [vmem:[#allocation8 + $0xe8] sm:$0xff]
    %v4011 = vld [vmem:[#allocation8 + $0xf0] sm:$0xff]
    %v4012 = vld [vmem:[#allocation8 + $0xf8] sm:$0xff]
    %v4013 = vld [vmem:[#allocation8 + $0x100] sm:$0xff]
    %v4014 = vld [vmem:[#allocation8 + $0x108] sm:$0xff]
    %v4015 = vld [vmem:[#allocation8 + $0x110] sm:$0xff]
    %v4016 = vld [vmem:[#allocation8 + $0x118] sm:$0xff]
    %v4017 = vld [vmem:[#allocation8 + $0x120] sm:$0xff]
    %v4018 = vld [vmem:[#allocation8 + $0x128] sm:$0xff]
    %v4019 = vld [vmem:[#allocation8 + $0x130] sm:$0xff]
    %v4020 = vld [vmem:[#allocation8 + $0x138] sm:$0xff]
    %v4021 = vld [vmem:[#allocation8 + $0x140] sm:$0xff]
    %v4022 = vld [vmem:[#allocation8 + $0x148] sm:$0xff]
    %v4023 = vld [vmem:[#allocation8 + $0x150] sm:$0xff]
    %v4024 = vld [vmem:[#allocation8 + $0x158] sm:$0xff]
    %v4025 = vld [vmem:[#allocation8 + $0x160] sm:$0xff]
    %v4026 = vld [vmem:[#allocation8 + $0x168] sm:$0xff]
    %v4027 = vld [vmem:[#allocation8 + $0x170] sm:$0xff]
    %v4028 = vld [vmem:[#allocation8 + $0x178] sm:$0xff]
    %v4029 = vld [vmem:[#allocation8 + $0x180] sm:$0xff]
    %v4030 = vld [vmem:[#allocation8 + $0x188] sm:$0xff]
    %v4031 = vld [vmem:[#allocation8 + $0x190] sm:$0xff]
    %v4032 = vld [vmem:[#allocation8 + $0x198] sm:$0xff]
    %v4033 = vld [vmem:[#allocation8 + $0x1a0] sm:$0xff]
    %v4034 = vld [vmem:[#allocation8 + $0x1a8] sm:$0xff]
    %v4035 = vld [vmem:[#allocation8 + $0x1b0] sm:$0xff]
    %v4036 = vld [vmem:[#allocation8 + $0x1b8] sm:$0xff]
    %v4037 = vld [vmem:[#allocation8 + $0x1c0] sm:$0xff]
    %v4038 = vld [vmem:[#allocation8 + $0x1c8] sm:$0xff]
    %v4039 = vld [vmem:[#allocation8 + $0x1d0] sm:$0xff]
    %v4040 = vld [vmem:[#allocation8 + $0x1d8] sm:$0xff]
    %v4041 = vld [vmem:[#allocation8 + $0x1e0] sm:$0xff]
    %v4042 = vld [vmem:[#allocation8 + $0x1e8] sm:$0xff]
    %v4043 = vld [vmem:[#allocation8 + $0x1f0] sm:$0xff]
    %v4044 = vld [vmem:[#allocation8 + $0x1f8] sm:$0xff]
    %v4045 = vld [vmem:[#allocation8 + $0x200] sm:$0xff]
    %v4046 = vld [vmem:[#allocation8 + $0x208] sm:$0xff]
    %v4047 = vld [vmem:[#allocation8 + $0x210] sm:$0xff]
    %v4048 = vld [vmem:[#allocation8 + $0x218] sm:$0xff]
    %v4049 = vld [vmem:[#allocation8 + $0x220] sm:$0xff]
    %v4050 = vld [vmem:[#allocation8 + $0x228] sm:$0xff]
    %v4051 = vld [vmem:[#allocation8 + $0x230] sm:$0xff]
    %v4052 = vld [vmem:[#allocation8 + $0x238] sm:$0xff]
    %v4053 = vld [vmem:[#allocation8 + $0x240] sm:$0xff]
    %v4054 = vld [vmem:[#allocation8 + $0x248] sm:$0xff]
    %v4055 = vld [vmem:[#allocation8 + $0x250] sm:$0xff]
    %v4056 = vld [vmem:[#allocation8 + $0x258] sm:$0xff]
    %v4057 = vld [vmem:[#allocation8 + $0x260] sm:$0xff]
    %v4058 = vld [vmem:[#allocation8 + $0x268] sm:$0xff]
    %v4059 = vld [vmem:[#allocation8 + $0x270] sm:$0xff]
    %v4060 = vld [vmem:[#allocation8 + $0x278] sm:$0xff]
    %v4061 = vld [vmem:[#allocation8 + $0x280] sm:$0xff]
    %v4062 = vld [vmem:[#allocation8 + $0x288] sm:$0xff]
    %v4063 = vld [vmem:[#allocation8 + $0x290] sm:$0xff]
    %v4064 = vld [vmem:[#allocation8 + $0x298] sm:$0xff]
    %v4065 = vld [vmem:[#allocation8 + $0x2a0] sm:$0xff]
    %v4066 = vld [vmem:[#allocation8 + $0x2a8] sm:$0xff]
    %v4067 = vld [vmem:[#allocation8 + $0x2b0] sm:$0xff]
    %v4068 = vld [vmem:[#allocation8 + $0x2b8] sm:$0xff]
    %v4069 = vld [vmem:[#allocation8 + $0x2c0] sm:$0xff]
    %v4070 = vld [vmem:[#allocation8 + $0x2c8] sm:$0xff]
    %v4071 = vld [vmem:[#allocation8 + $0x2d0] sm:$0xff]
    %v4072 = vld [vmem:[#allocation8 + $0x2d8] sm:$0xff]
    %v4073 = vld [vmem:[#allocation8 + $0x2e0] sm:$0xff]
    %v4074 = vld [vmem:[#allocation8 + $0x2e8] sm:$0xff]
    %v4075 = vld [vmem:[#allocation8 + $0x2f0] sm:$0xff]
    %v4076 = vld [vmem:[#allocation8 + $0x2f8] sm:$0xff]
    %v4077 = vld [vmem:[#allocation8 + $0x300] sm:$0xff]
    %v4078 = vld [vmem:[#allocation8 + $0x308] sm:$0xff]
    %v4079 = vld [vmem:[#allocation8 + $0x310] sm:$0xff]
    %v4080 = vld [vmem:[#allocation8 + $0x318] sm:$0xff]
    %v4081 = vld [vmem:[#allocation8 + $0x320] sm:$0xff]
    %v4082 = vld [vmem:[#allocation8 + $0x328] sm:$0xff]
    %v4083 = vld [vmem:[#allocation8 + $0x330] sm:$0xff]
    %v4084 = vld [vmem:[#allocation8 + $0x338] sm:$0xff]
    %v4085 = vld [vmem:[#allocation8 + $0x340] sm:$0xff]
    %v4086 = vld [vmem:[#allocation8 + $0x348] sm:$0xff]
    %v4087 = vld [vmem:[#allocation8 + $0x350] sm:$0xff]
    %v4088 = vld [vmem:[#allocation8 + $0x358] sm:$0xff]
    %v4089 = vld [vmem:[#allocation8 + $0x360] sm:$0xff]
    %v4090 = vld [vmem:[#allocation8 + $0x368] sm:$0xff]
    %v4091 = vld [vmem:[#allocation8 + $0x370] sm:$0xff]
    %v4092 = vld [vmem:[#allocation8 + $0x378] sm:$0xff]
    %v4093 = vld [vmem:[#allocation8 + $0x380] sm:$0xff]
    %v4094 = vld [vmem:[#allocation8 + $0x388] sm:$0xff]
    %v4095 = vld [vmem:[#allocation8 + $0x390] sm:$0xff]
    %v4096 = vld [vmem:[#allocation8 + $0x398] sm:$0xff]
    %v4097 = vld [vmem:[#allocation8 + $0x3a0] sm:$0xff]
    %v4098 = vld [vmem:[#allocation8 + $0x3a8] sm:$0xff]
    %v4099 = vld [vmem:[#allocation8 + $0x3b0] sm:$0xff]
    %v4100 = vld [vmem:[#allocation8 + $0x3b8] sm:$0xff]
    %v4101 = vld [vmem:[#allocation8 + $0x3c0] sm:$0xff]
    %v4102 = vld [vmem:[#allocation8 + $0x3c8] sm:$0xff]
    %v4103 = vld [vmem:[#allocation8 + $0x3d0] sm:$0xff]
    %v4104 = vld [vmem:[#allocation8 + $0x3d8] sm:$0xff]
    %v4105 = vld [vmem:[#allocation8 + $0x3e0] sm:$0xff]
    %v4106 = vld [vmem:[#allocation8 + $0x3e8] sm:$0xff]
    %v4107 = vld [vmem:[#allocation8 + $0x3f0] sm:$0xff]
    %v4108 = vld [vmem:[#allocation8 + $0x3f8] sm:$0xff]
    %v4109 = vld [vmem:[#allocation8 + $0x400] sm:$0xff]
    %v4110 = vld [vmem:[#allocation8 + $0x408] sm:$0xff]
    %v4111 = vld [vmem:[#allocation8 + $0x410] sm:$0xff]
    %v4112 = vld [vmem:[#allocation8 + $0x418] sm:$0xff]
    %v4113 = vld [vmem:[#allocation8 + $0x420] sm:$0xff]
    %v4114 = vld [vmem:[#allocation8 + $0x428] sm:$0xff]
    %v4115 = vld [vmem:[#allocation8 + $0x430] sm:$0xff]
    %v4116 = vld [vmem:[#allocation8 + $0x438] sm:$0xff]
    %v4117 = vld [vmem:[#allocation8 + $0x440] sm:$0xff]
    %v4118 = vld [vmem:[#allocation8 + $0x448] sm:$0xff]
    %v4119 = vld [vmem:[#allocation8 + $0x450] sm:$0xff]
    %v4120 = vld [vmem:[#allocation8 + $0x458] sm:$0xff]
    %v4121 = vld [vmem:[#allocation8 + $0x460] sm:$0xff]
    %v4122 = vld [vmem:[#allocation8 + $0x468] sm:$0xff]
    %v4123 = vld [vmem:[#allocation8 + $0x470] sm:$0xff]
    %v4124 = vld [vmem:[#allocation8 + $0x478] sm:$0xff]
    %v4125 = vld [vmem:[#allocation8 + $0x480] sm:$0xff]
    %v4126 = vld [vmem:[#allocation8 + $0x488] sm:$0xff]
    %v4127 = vld [vmem:[#allocation8 + $0x490] sm:$0xff]
    %v4128 = vld [vmem:[#allocation8 + $0x498] sm:$0xff]
    %v4129 = vld [vmem:[#allocation8 + $0x4a0] sm:$0xff]
    %v4130 = vld [vmem:[#allocation8 + $0x4a8] sm:$0xff]
    %v4131 = vld [vmem:[#allocation8 + $0x4b0] sm:$0xff]
    %v4132 = vld [vmem:[#allocation8 + $0x4b8] sm:$0xff]
    %v4133 = vld [vmem:[#allocation8 + $0x4c0] sm:$0xff]
    %v4134 = vld [vmem:[#allocation8 + $0x4c8] sm:$0xff]
    %v4135 = vld [vmem:[#allocation8 + $0x4d0] sm:$0xff]
    %v4136 = vld [vmem:[#allocation8 + $0x4d8] sm:$0xff]
    %v4137 = vld [vmem:[#allocation8 + $0x4e0] sm:$0xff]
    %v4138 = vld [vmem:[#allocation8 + $0x4e8] sm:$0xff]
    %v4139 = vld [vmem:[#allocation8 + $0x4f0] sm:$0xff]
    %v4140 = vld [vmem:[#allocation8 + $0x4f8] sm:$0xff]
    %v4141 = vld [vmem:[#allocation8 + $0x500] sm:$0xff]
    %v4142 = vld [vmem:[#allocation8 + $0x508] sm:$0xff]
    %v4143 = vld [vmem:[#allocation8 + $0x510] sm:$0xff]
    %v4144 = vld [vmem:[#allocation8 + $0x518] sm:$0xff]
    %v4145 = vld [vmem:[#allocation8 + $0x520] sm:$0xff]
    %v4146 = vld [vmem:[#allocation8 + $0x528] sm:$0xff]
    %v4147 = vld [vmem:[#allocation8 + $0x530] sm:$0xff]
    %v4148 = vld [vmem:[#allocation8 + $0x538] sm:$0xff]
    %v4149 = vld [vmem:[#allocation8 + $0x540] sm:$0xff]
    %v4150 = vld [vmem:[#allocation8 + $0x548] sm:$0xff]
    %v4151 = vld [vmem:[#allocation8 + $0x550] sm:$0xff]
    %v4152 = vld [vmem:[#allocation8 + $0x558] sm:$0xff]
    %v4153 = vld [vmem:[#allocation8 + $0x560] sm:$0xff]
    %v4154 = vld [vmem:[#allocation8 + $0x568] sm:$0xff]
    %v4155 = vld [vmem:[#allocation8 + $0x570] sm:$0xff]
    %v4156 = vld [vmem:[#allocation8 + $0x578] sm:$0xff]
    %v4157 = vld [vmem:[#allocation8 + $0x580] sm:$0xff]
    %v4158 = vld [vmem:[#allocation8 + $0x588] sm:$0xff]
    %v4159 = vld [vmem:[#allocation8 + $0x590] sm:$0xff]
    %v4160 = vld [vmem:[#allocation8 + $0x598] sm:$0xff]
    %v4161 = vld [vmem:[#allocation8 + $0x5a0] sm:$0xff]
    %v4162 = vld [vmem:[#allocation8 + $0x5a8] sm:$0xff]
    %v4163 = vld [vmem:[#allocation8 + $0x5b0] sm:$0xff]
    %v4164 = vld [vmem:[#allocation8 + $0x5b8] sm:$0xff]
    %v4165 = vld [vmem:[#allocation8 + $0x5c0] sm:$0xff]
    %v4166 = vld [vmem:[#allocation8 + $0x5c8] sm:$0xff]
    %v4167 = vld [vmem:[#allocation8 + $0x5d0] sm:$0xff]
    %v4168 = vld [vmem:[#allocation8 + $0x5d8] sm:$0xff]
    %v4169 = vld [vmem:[#allocation8 + $0x5e0] sm:$0xff]
    %v4170 = vld [vmem:[#allocation8 + $0x5e8] sm:$0xff]
    %v4171 = vld [vmem:[#allocation8 + $0x5f0] sm:$0xff]
    %v4172 = vld [vmem:[#allocation8 + $0x5f8] sm:$0xff]
    %v4173 = vld [vmem:[#allocation8 + $0x600] sm:$0xff]
    %v4174 = vld [vmem:[#allocation8 + $0x608] sm:$0xff]
    %v4175 = vld [vmem:[#allocation8 + $0x610] sm:$0xff]
    %v4176 = vld [vmem:[#allocation8 + $0x618] sm:$0xff]
    %v4177 = vld [vmem:[#allocation8 + $0x620] sm:$0xff]
    %v4178 = vld [vmem:[#allocation8 + $0x628] sm:$0xff]
    %v4179 = vld [vmem:[#allocation8 + $0x630] sm:$0xff]
    %v4180 = vld [vmem:[#allocation8 + $0x638] sm:$0xff]
    %v4181 = vld [vmem:[#allocation8 + $0x640] sm:$0xff]
    %v4182 = vld [vmem:[#allocation8 + $0x648] sm:$0xff]
    %v4183 = vld [vmem:[#allocation8 + $0x650] sm:$0xff]
    %v4184 = vld [vmem:[#allocation8 + $0x658] sm:$0xff]
    %v4185 = vld [vmem:[#allocation8 + $0x660] sm:$0xff]
    %v4186 = vld [vmem:[#allocation8 + $0x668] sm:$0xff]
    %v4187 = vld [vmem:[#allocation8 + $0x670] sm:$0xff]
    %v4188 = vld [vmem:[#allocation8 + $0x678] sm:$0xff]
    %v4189 = vld [vmem:[#allocation8 + $0x680] sm:$0xff]
    %v4190 = vld [vmem:[#allocation8 + $0x688] sm:$0xff]
    %v4191 = vld [vmem:[#allocation8 + $0x690] sm:$0xff]
    %v4192 = vld [vmem:[#allocation8 + $0x698] sm:$0xff]
    %v4193 = vld [vmem:[#allocation8 + $0x6a0] sm:$0xff]
    %v4194 = vld [vmem:[#allocation8 + $0x6a8] sm:$0xff]
    %v4195 = vld [vmem:[#allocation8 + $0x6b0] sm:$0xff]
    %v4196 = vld [vmem:[#allocation8 + $0x6b8] sm:$0xff]
    %v4197 = vld [vmem:[#allocation8 + $0x6c0] sm:$0xff]
    %v4198 = vld [vmem:[#allocation8 + $0x6c8] sm:$0xff]
    %v4199 = vld [vmem:[#allocation8 + $0x6d0] sm:$0xff]
    %v4200 = vld [vmem:[#allocation8 + $0x6d8] sm:$0xff]
    %v4201 = vld [vmem:[#allocation8 + $0x6e0] sm:$0xff]
    %v4202 = vld [vmem:[#allocation8 + $0x6e8] sm:$0xff]
    %v4203 = vld [vmem:[#allocation8 + $0x6f0] sm:$0xff]
    %v4204 = vld [vmem:[#allocation8 + $0x6f8] sm:$0xff]
    %v4205 = vld [vmem:[#allocation8 + $0x700] sm:$0xff]
    %v4206 = vld [vmem:[#allocation8 + $0x708] sm:$0xff]
    %v4207 = vld [vmem:[#allocation8 + $0x710] sm:$0xff]
    %v4208 = vld [vmem:[#allocation8 + $0x718] sm:$0xff]
    %v4209 = vld [vmem:[#allocation8 + $0x720] sm:$0xff]
    %v4210 = vld [vmem:[#allocation8 + $0x728] sm:$0xff]
    %v4211 = vld [vmem:[#allocation8 + $0x730] sm:$0xff]
    %v4212 = vld [vmem:[#allocation8 + $0x738] sm:$0xff]
    %v4213 = vld [vmem:[#allocation8 + $0x740] sm:$0xff]
    %v4214 = vld [vmem:[#allocation8 + $0x748] sm:$0xff]
    %v4215 = vld [vmem:[#allocation8 + $0x750] sm:$0xff]
    %v4216 = vld [vmem:[#allocation8 + $0x758] sm:$0xff]
    %v4217 = vld [vmem:[#allocation8 + $0x760] sm:$0xff]
    %v4218 = vld [vmem:[#allocation8 + $0x768] sm:$0xff]
    %v4219 = vld [vmem:[#allocation8 + $0x770] sm:$0xff]
    %v4220 = vld [vmem:[#allocation8 + $0x778] sm:$0xff]
    %v4221 = vld [vmem:[#allocation8 + $0x780] sm:$0xff]
    %v4222 = vld [vmem:[#allocation8 + $0x788] sm:$0xff]
    %v4223 = vld [vmem:[#allocation8 + $0x790] sm:$0xff]
    %v4224 = vld [vmem:[#allocation8 + $0x798] sm:$0xff]
    %v4225 = vld [vmem:[#allocation8 + $0x7a0] sm:$0xff]
    %v4226 = vld [vmem:[#allocation8 + $0x7a8] sm:$0xff]
    %v4227 = vld [vmem:[#allocation8 + $0x7b0] sm:$0xff]
    %v4228 = vld [vmem:[#allocation8 + $0x7b8] sm:$0xff]
    %v4229 = vld [vmem:[#allocation8 + $0x7c0] sm:$0xff]
    %v4230 = vld [vmem:[#allocation8 + $0x7c8] sm:$0xff]
    %v4231 = vld [vmem:[#allocation8 + $0x7d0] sm:$0xff]
    %v4232 = vld [vmem:[#allocation8 + $0x7d8] sm:$0xff]
    %v4233 = vld [vmem:[#allocation8 + $0x7e0] sm:$0xff]
    %v4234 = vld [vmem:[#allocation8 + $0x7e8] sm:$0xff]
    %v4235 = vld [vmem:[#allocation8 + $0x7f0] sm:$0xff]
    %v4236 = vld [vmem:[#allocation8 + $0x7f8] sm:$0xff]
    %v4237 = vld [vmem:[#allocation8 + $0x800] sm:$0xff]
    %v4238 = vld [vmem:[#allocation8 + $0x808] sm:$0xff]
    %v4239 = vld [vmem:[#allocation8 + $0x810] sm:$0xff]
    %v4240 = vld [vmem:[#allocation8 + $0x818] sm:$0xff]
    %v4241 = vld [vmem:[#allocation8 + $0x820] sm:$0xff]
    %v4242 = vld [vmem:[#allocation8 + $0x828] sm:$0xff]
    %v4243 = vld [vmem:[#allocation8 + $0x830] sm:$0xff]
    %v4244 = vld [vmem:[#allocation8 + $0x838] sm:$0xff]
    %v4245 = vld [vmem:[#allocation8 + $0x840] sm:$0xff]
    %v4246 = vld [vmem:[#allocation8 + $0x848] sm:$0xff]
    %v4247 = vld [vmem:[#allocation8 + $0x850] sm:$0xff]
    %v4248 = vld [vmem:[#allocation8 + $0x858] sm:$0xff]
    %v4249 = vld [vmem:[#allocation8 + $0x860] sm:$0xff]
    %v4250 = vld [vmem:[#allocation8 + $0x868] sm:$0xff]
    %v4251 = vld [vmem:[#allocation8 + $0x870] sm:$0xff]
    %v4252 = vld [vmem:[#allocation8 + $0x878] sm:$0xff]
    %v4253 = vld [vmem:[#allocation8 + $0x880] sm:$0xff]
    %v4254 = vld [vmem:[#allocation8 + $0x888] sm:$0xff]
    %v4255 = vld [vmem:[#allocation8 + $0x890] sm:$0xff]
    %v4256 = vld [vmem:[#allocation8 + $0x898] sm:$0xff]
    %v4257 = vld [vmem:[#allocation8 + $0x8a0] sm:$0xff]
    %v4258 = vld [vmem:[#allocation8 + $0x8a8] sm:$0xff]
    %v4259 = vld [vmem:[#allocation8 + $0x8b0] sm:$0xff]
    %v4260 = vld [vmem:[#allocation8 + $0x8b8] sm:$0xff]
    %v4261 = vld [vmem:[#allocation8 + $0x8c0] sm:$0xff]
    %v4262 = vld [vmem:[#allocation8 + $0x8c8] sm:$0xff]
    %v4263 = vld [vmem:[#allocation8 + $0x8d0] sm:$0xff]
    %v4264 = vld [vmem:[#allocation8 + $0x8d8] sm:$0xff]
    %v4265 = vld [vmem:[#allocation8 + $0x8e0] sm:$0xff]
    %v4266 = vld [vmem:[#allocation8 + $0x8e8] sm:$0xff]
    %v4267 = vld [vmem:[#allocation8 + $0x8f0] sm:$0xff]
    %v4268 = vld [vmem:[#allocation8 + $0x8f8] sm:$0xff]
    %v4269 = vld [vmem:[#allocation8 + $0x900] sm:$0xff]
    %v4270 = vld [vmem:[#allocation8 + $0x908] sm:$0xff]
    %v4271 = vld [vmem:[#allocation8 + $0x910] sm:$0xff]
    %v4272 = vld [vmem:[#allocation8 + $0x918] sm:$0xff]
    %v4273 = vld [vmem:[#allocation8 + $0x920] sm:$0xff]
    %v4274 = vld [vmem:[#allocation8 + $0x928] sm:$0xff]
    %v4275 = vld [vmem:[#allocation8 + $0x930] sm:$0xff]
    %v4276 = vld [vmem:[#allocation8 + $0x938] sm:$0xff]
    %v4277 = vld [vmem:[#allocation8 + $0x940] sm:$0xff]
    %v4278 = vld [vmem:[#allocation8 + $0x948] sm:$0xff]
    %v4279 = vld [vmem:[#allocation8 + $0x950] sm:$0xff]
    %v4280 = vld [vmem:[#allocation8 + $0x958] sm:$0xff]
    %v4281 = vld [vmem:[#allocation8 + $0x960] sm:$0xff]
    %v4282 = vld [vmem:[#allocation8 + $0x968] sm:$0xff]
    %v4283 = vld [vmem:[#allocation8 + $0x970] sm:$0xff]
    %v4284 = vld [vmem:[#allocation8 + $0x978] sm:$0xff]
    %v4285 = vld [vmem:[#allocation8 + $0x980] sm:$0xff]
    %v4286 = vld [vmem:[#allocation8 + $0x988] sm:$0xff]
    %v4287 = vld [vmem:[#allocation8 + $0x990] sm:$0xff]
    %v4288 = vld [vmem:[#allocation8 + $0x998] sm:$0xff]
    %v4289 = vld [vmem:[#allocation8 + $0x9a0] sm:$0xff]
    %v4290 = vld [vmem:[#allocation8 + $0x9a8] sm:$0xff]
    %v4291 = vld [vmem:[#allocation8 + $0x9b0] sm:$0xff]
    %v4292 = vld [vmem:[#allocation8 + $0x9b8] sm:$0xff]
    %v4293 = vld [vmem:[#allocation8 + $0x9c0] sm:$0xff]
    %v4294 = vld [vmem:[#allocation8 + $0x9c8] sm:$0xff]
    %v4295 = vld [vmem:[#allocation8 + $0x9d0] sm:$0xff]
    %v4296 = vld [vmem:[#allocation8 + $0x9d8] sm:$0xff]
    %v4297 = vld [vmem:[#allocation8 + $0x9e0] sm:$0xff]
    %v4298 = vld [vmem:[#allocation8 + $0x9e8] sm:$0xff]
    %v4299 = vld [vmem:[#allocation8 + $0x9f0] sm:$0xff]
    %v4300 = vld [vmem:[#allocation8 + $0x9f8] sm:$0xff]
    %v4301 = vld [vmem:[#allocation8 + $0xa00] sm:$0xff]
    %v4302 = vld [vmem:[#allocation8 + $0xa08] sm:$0xff]
    %v4303 = vld [vmem:[#allocation8 + $0xa10] sm:$0xff]
    %v4304 = vld [vmem:[#allocation8 + $0xa18] sm:$0xff]
    %v4305 = vld [vmem:[#allocation8 + $0xa20] sm:$0xff]
    %v4306 = vld [vmem:[#allocation8 + $0xa28] sm:$0xff]
    %v4307 = vld [vmem:[#allocation8 + $0xa30] sm:$0xff]
    %v4308 = vld [vmem:[#allocation8 + $0xa38] sm:$0xff]
    %v4309 = vld [vmem:[#allocation8 + $0xa40] sm:$0xff]
    %v4310 = vld [vmem:[#allocation8 + $0xa48] sm:$0xff]
    %v4311 = vld [vmem:[#allocation8 + $0xa50] sm:$0xff]
    %v4312 = vld [vmem:[#allocation8 + $0xa58] sm:$0xff]
    %v4313 = vld [vmem:[#allocation8 + $0xa60] sm:$0xff]
    %v4314 = vld [vmem:[#allocation8 + $0xa68] sm:$0xff]
    %v4315 = vld [vmem:[#allocation8 + $0xa70] sm:$0xff]
    %v4316 = vld [vmem:[#allocation8 + $0xa78] sm:$0xff]
    %v4317 = vld [vmem:[#allocation8 + $0xa80] sm:$0xff]
    %v4318 = vld [vmem:[#allocation8 + $0xa88] sm:$0xff]
    %v4319 = vld [vmem:[#allocation8 + $0xa90] sm:$0xff]
    %v4320 = vld [vmem:[#allocation8 + $0xa98] sm:$0xff]
    %v4321 = vld [vmem:[#allocation8 + $0xaa0] sm:$0xff]
    %v4322 = vld [vmem:[#allocation8 + $0xaa8] sm:$0xff]
    %v4323 = vld [vmem:[#allocation8 + $0xab0] sm:$0xff]
    %v4324 = vld [vmem:[#allocation8 + $0xab8] sm:$0xff]
    %v4325 = vld [vmem:[#allocation8 + $0xac0] sm:$0xff]
    %v4326 = vld [vmem:[#allocation8 + $0xac8] sm:$0xff]
    %v4327 = vld [vmem:[#allocation8 + $0xad0] sm:$0xff]
    %v4328 = vld [vmem:[#allocation8 + $0xad8] sm:$0xff]
    %v4329 = vld [vmem:[#allocation8 + $0xae0] sm:$0xff]
    %v4330 = vld [vmem:[#allocation8 + $0xae8] sm:$0xff]
    %v4331 = vld [vmem:[#allocation8 + $0xaf0] sm:$0xff]
    %v4332 = vld [vmem:[#allocation8 + $0xaf8] sm:$0xff]
    %v4333 = vld [vmem:[#allocation8 + $0xb00] sm:$0xff]
    %v4334 = vld [vmem:[#allocation8 + $0xb08] sm:$0xff]
    %v4335 = vld [vmem:[#allocation8 + $0xb10] sm:$0xff]
    %v4336 = vld [vmem:[#allocation8 + $0xb18] sm:$0xff]
    %v4337 = vld [vmem:[#allocation8 + $0xb20] sm:$0xff]
    %v4338 = vld [vmem:[#allocation8 + $0xb28] sm:$0xff]
    %v4339 = vld [vmem:[#allocation8 + $0xb30] sm:$0xff]
    %v4340 = vld [vmem:[#allocation8 + $0xb38] sm:$0xff]
    %v4341 = vld [vmem:[#allocation8 + $0xb40] sm:$0xff]
    %v4342 = vld [vmem:[#allocation8 + $0xb48] sm:$0xff]
    %v4343 = vld [vmem:[#allocation8 + $0xb50] sm:$0xff]
    %v4344 = vld [vmem:[#allocation8 + $0xb58] sm:$0xff]
    %v4345 = vld [vmem:[#allocation8 + $0xb60] sm:$0xff]
    %v4346 = vld [vmem:[#allocation8 + $0xb68] sm:$0xff]
    %v4347 = vld [vmem:[#allocation8 + $0xb70] sm:$0xff]
    %v4348 = vld [vmem:[#allocation8 + $0xb78] sm:$0xff]
    %v4349 = vld [vmem:[#allocation8 + $0xb80] sm:$0xff]
    %v4350 = vld [vmem:[#allocation8 + $0xb88] sm:$0xff]
    %v4351 = vld [vmem:[#allocation8 + $0xb90] sm:$0xff]
    %v4352 = vld [vmem:[#allocation8 + $0xb98] sm:$0xff]
    %v4353 = vld [vmem:[#allocation8 + $0xba0] sm:$0xff]
    %v4354 = vld [vmem:[#allocation8 + $0xba8] sm:$0xff]
    %v4355 = vld [vmem:[#allocation8 + $0xbb0] sm:$0xff]
    %v4356 = vld [vmem:[#allocation8 + $0xbb8] sm:$0xff]
    %v4357 = vld [vmem:[#allocation8 + $0xbc0] sm:$0xff]
    %v4358 = vld [vmem:[#allocation8 + $0xbc8] sm:$0xff]
    %v4359 = vld [vmem:[#allocation8 + $0xbd0] sm:$0xff]
    %v4360 = vld [vmem:[#allocation8 + $0xbd8] sm:$0xff]
    %v4361 = vld [vmem:[#allocation8 + $0xbe0] sm:$0xff]
    %v4362 = vld [vmem:[#allocation8 + $0xbe8] sm:$0xff]
    %v4363 = vld [vmem:[#allocation8 + $0xbf0] sm:$0xff]
    %v4364 = vld [vmem:[#allocation8 + $0xbf8] sm:$0xff]
    %v4365 = vld [vmem:[#allocation8 + $0xc00] sm:$0xff]
    %v4366 = vld [vmem:[#allocation8 + $0xc08] sm:$0xff]
    %v4367 = vld [vmem:[#allocation8 + $0xc10] sm:$0xff]
    %v4368 = vld [vmem:[#allocation8 + $0xc18] sm:$0xff]
    %v4369 = vld [vmem:[#allocation8 + $0xc20] sm:$0xff]
    %v4370 = vld [vmem:[#allocation8 + $0xc28] sm:$0xff]
    %v4371 = vld [vmem:[#allocation8 + $0xc30] sm:$0xff]
    %v4372 = vld [vmem:[#allocation8 + $0xc38] sm:$0xff]
    %v4373 = vld [vmem:[#allocation8 + $0xc40] sm:$0xff]
    %v4374 = vld [vmem:[#allocation8 + $0xc48] sm:$0xff]
    %v4375 = vld [vmem:[#allocation8 + $0xc50] sm:$0xff]
    %v4376 = vld [vmem:[#allocation8 + $0xc58] sm:$0xff]
    %v4377 = vld [vmem:[#allocation8 + $0xc60] sm:$0xff]
    %v4378 = vld [vmem:[#allocation8 + $0xc68] sm:$0xff]
    %v4379 = vld [vmem:[#allocation8 + $0xc70] sm:$0xff]
    %v4380 = vld [vmem:[#allocation8 + $0xc78] sm:$0xff]
    %v4381 = vld [vmem:[#allocation8 + $0xc80] sm:$0xff]
    %v4382 = vld [vmem:[#allocation8 + $0xc88] sm:$0xff]
    %v4383 = vld [vmem:[#allocation8 + $0xc90] sm:$0xff]
    %v4384 = vld [vmem:[#allocation8 + $0xc98] sm:$0xff]
    %v4385 = vld [vmem:[#allocation8 + $0xca0] sm:$0xff]
    %v4386 = vld [vmem:[#allocation8 + $0xca8] sm:$0xff]
    %v4387 = vld [vmem:[#allocation8 + $0xcb0] sm:$0xff]
    %v4388 = vld [vmem:[#allocation8 + $0xcb8] sm:$0xff]
    %v4389 = vld [vmem:[#allocation8 + $0xcc0] sm:$0xff]
    %v4390 = vld [vmem:[#allocation8 + $0xcc8] sm:$0xff]
    %v4391 = vld [vmem:[#allocation8 + $0xcd0] sm:$0xff]
    %v4392 = vld [vmem:[#allocation8 + $0xcd8] sm:$0xff]
    %v4393 = vld [vmem:[#allocation8 + $0xce0] sm:$0xff]
    %v4394 = vld [vmem:[#allocation8 + $0xce8] sm:$0xff]
    %v4395 = vld [vmem:[#allocation8 + $0xcf0] sm:$0xff]
    %v4396 = vld [vmem:[#allocation8 + $0xcf8] sm:$0xff]
    %v4397 = vld [vmem:[#allocation8 + $0xd00] sm:$0xff]
    %v4398 = vld [vmem:[#allocation8 + $0xd08] sm:$0xff]
    %v4399 = vld [vmem:[#allocation8 + $0xd10] sm:$0xff]
    %v4400 = vld [vmem:[#allocation8 + $0xd18] sm:$0xff]
    %v4401 = vld [vmem:[#allocation8 + $0xd20] sm:$0xff]
    %v4402 = vld [vmem:[#allocation8 + $0xd28] sm:$0xff]
    %v4403 = vld [vmem:[#allocation8 + $0xd30] sm:$0xff]
    %v4404 = vld [vmem:[#allocation8 + $0xd38] sm:$0xff]
    %v4405 = vld [vmem:[#allocation8 + $0xd40] sm:$0xff]
    %v4406 = vld [vmem:[#allocation8 + $0xd48] sm:$0xff]
    %v4407 = vld [vmem:[#allocation8 + $0xd50] sm:$0xff]
    %v4408 = vld [vmem:[#allocation8 + $0xd58] sm:$0xff]
    %v4409 = vld [vmem:[#allocation8 + $0xd60] sm:$0xff]
    %v4410 = vld [vmem:[#allocation8 + $0xd68] sm:$0xff]
    %v4411 = vld [vmem:[#allocation8 + $0xd70] sm:$0xff]
    %v4412 = vld [vmem:[#allocation8 + $0xd78] sm:$0xff]
    %v4413 = vld [vmem:[#allocation8 + $0xd80] sm:$0xff]
    %v4414 = vld [vmem:[#allocation8 + $0xd88] sm:$0xff]
    %v4415 = vld [vmem:[#allocation8 + $0xd90] sm:$0xff]
    %v4416 = vld [vmem:[#allocation8 + $0xd98] sm:$0xff]
    %v4417 = vld [vmem:[#allocation8 + $0xda0] sm:$0xff]
    %v4418 = vld [vmem:[#allocation8 + $0xda8] sm:$0xff]
    %v4419 = vld [vmem:[#allocation8 + $0xdb0] sm:$0xff]
    %v4420 = vld [vmem:[#allocation8 + $0xdb8] sm:$0xff]
    %v4421 = vld [vmem:[#allocation8 + $0xdc0] sm:$0xff]
    %v4422 = vld [vmem:[#allocation8 + $0xdc8] sm:$0xff]
    %v4423 = vld [vmem:[#allocation8 + $0xdd0] sm:$0xff]
    %v4424 = vld [vmem:[#allocation8 + $0xdd8] sm:$0xff]
    %v4425 = vld [vmem:[#allocation8 + $0xde0] sm:$0xff]
    %v4426 = vld [vmem:[#allocation8 + $0xde8] sm:$0xff]
    %v4427 = vld [vmem:[#allocation8 + $0xdf0] sm:$0xff]
    %v4428 = vld [vmem:[#allocation8 + $0xdf8] sm:$0xff]
    %v4429 = vld [vmem:[#allocation8 + $0xe00] sm:$0xff]
    %v4430 = vld [vmem:[#allocation8 + $0xe08] sm:$0xff]
    %v4431 = vld [vmem:[#allocation8 + $0xe10] sm:$0xff]
    %v4432 = vld [vmem:[#allocation8 + $0xe18] sm:$0xff]
    %v4433 = vld [vmem:[#allocation8 + $0xe20] sm:$0xff]
    %v4434 = vld [vmem:[#allocation8 + $0xe28] sm:$0xff]
    %v4435 = vld [vmem:[#allocation8 + $0xe30] sm:$0xff]
    %v4436 = vld [vmem:[#allocation8 + $0xe38] sm:$0xff]
    %v4437 = vld [vmem:[#allocation8 + $0xe40] sm:$0xff]
    %v4438 = vld [vmem:[#allocation8 + $0xe48] sm:$0xff]
    %v4439 = vld [vmem:[#allocation8 + $0xe50] sm:$0xff]
    %v4440 = vld [vmem:[#allocation8 + $0xe58] sm:$0xff]
    %v4441 = vld [vmem:[#allocation8 + $0xe60] sm:$0xff]
    %v4442 = vld [vmem:[#allocation8 + $0xe68] sm:$0xff]
    %v4443 = vld [vmem:[#allocation8 + $0xe70] sm:$0xff]
    %v4444 = vld [vmem:[#allocation8 + $0xe78] sm:$0xff]
    %v4445 = vld [vmem:[#allocation8 + $0xe80] sm:$0xff]
    %v4446 = vld [vmem:[#allocation8 + $0xe88] sm:$0xff]
    %v4447 = vld [vmem:[#allocation8 + $0xe90] sm:$0xff]
    %v4448 = vld [vmem:[#allocation8 + $0xe98] sm:$0xff]
    %v4449 = vld [vmem:[#allocation8 + $0xea0] sm:$0xff]
    %v4450 = vld [vmem:[#allocation8 + $0xea8] sm:$0xff]
    %v4451 = vld [vmem:[#allocation8 + $0xeb0] sm:$0xff]
    %v4452 = vld [vmem:[#allocation8 + $0xeb8] sm:$0xff]
    %v4453 = vld [vmem:[#allocation8 + $0xec0] sm:$0xff]
    %v4454 = vld [vmem:[#allocation8 + $0xec8] sm:$0xff]
    %v4455 = vld [vmem:[#allocation8 + $0xed0] sm:$0xff]
    %v4456 = vld [vmem:[#allocation8 + $0xed8] sm:$0xff]
    %v4457 = vld [vmem:[#allocation8 + $0xee0] sm:$0xff]
    %v4458 = vld [vmem:[#allocation8 + $0xee8] sm:$0xff]
    %v4459 = vld [vmem:[#allocation8 + $0xef0] sm:$0xff]
    %v4460 = vld [vmem:[#allocation8 + $0xef8] sm:$0xff]
    %v4461 = vld [vmem:[#allocation8 + $0xf00] sm:$0xff]
    %v4462 = vld [vmem:[#allocation8 + $0xf08] sm:$0xff]
    %v4463 = vld [vmem:[#allocation8 + $0xf10] sm:$0xff]
    %v4464 = vld [vmem:[#allocation8 + $0xf18] sm:$0xff]
    %v4465 = vld [vmem:[#allocation8 + $0xf20] sm:$0xff]
    %v4466 = vld [vmem:[#allocation8 + $0xf28] sm:$0xff]
    %v4467 = vld [vmem:[#allocation8 + $0xf30] sm:$0xff]
    %v4468 = vld [vmem:[#allocation8 + $0xf38] sm:$0xff]
    %v4469 = vld [vmem:[#allocation8 + $0xf40] sm:$0xff]
    %v4470 = vld [vmem:[#allocation8 + $0xf48] sm:$0xff]
    %v4471 = vld [vmem:[#allocation8 + $0xf50] sm:$0xff]
    %v4472 = vld [vmem:[#allocation8 + $0xf58] sm:$0xff]
    %v4473 = vld [vmem:[#allocation8 + $0xf60] sm:$0xff]
    %v4474 = vld [vmem:[#allocation8 + $0xf68] sm:$0xff]
    %v4475 = vld [vmem:[#allocation8 + $0xf70] sm:$0xff]
    %v4476 = vld [vmem:[#allocation8 + $0xf78] sm:$0xff]
    %v4477 = vld [vmem:[#allocation8 + $0xf80] sm:$0xff]
    %v4478 = vld [vmem:[#allocation8 + $0xf88] sm:$0xff]
    %v4479 = vld [vmem:[#allocation8 + $0xf90] sm:$0xff]
    %v4480 = vld [vmem:[#allocation8 + $0xf98] sm:$0xff]
    %v4481 = vld [vmem:[#allocation8 + $0xfa0] sm:$0xff]
    %v4482 = vld [vmem:[#allocation8 + $0xfa8] sm:$0xff]
    %v4483 = vld [vmem:[#allocation8 + $0xfb0] sm:$0xff]
    %v4484 = vld [vmem:[#allocation8 + $0xfb8] sm:$0xff]
    %v4485 = vld [vmem:[#allocation8 + $0xfc0] sm:$0xff]
    %v4486 = vld [vmem:[#allocation8 + $0xfc8] sm:$0xff]
    %v4487 = vld [vmem:[#allocation8 + $0xfd0] sm:$0xff]
    %v4488 = vld [vmem:[#allocation8 + $0xfd8] sm:$0xff]
    %v4489 = vld [vmem:[#allocation8 + $0xfe0] sm:$0xff]
    %v4490 = vld [vmem:[#allocation8 + $0xfe8] sm:$0xff]
    %v4491 = vld [vmem:[#allocation8 + $0xff0] sm:$0xff]
    %v4492 = vld [vmem:[#allocation8 + $0xff8] sm:$0xff]
    %v4493 = vld [vmem:[#allocation8 + $0x1000] sm:$0xff]
    %v4494 = vld [vmem:[#allocation8 + $0x1008] sm:$0xff]
    %v4495 = vld [vmem:[#allocation8 + $0x1010] sm:$0xff]
    %v4496 = vld [vmem:[#allocation8 + $0x1018] sm:$0xff]
    %v4497 = vld [vmem:[#allocation8 + $0x1020] sm:$0xff]
    %v4498 = vld [vmem:[#allocation8 + $0x1028] sm:$0xff]
    %v4499 = vld [vmem:[#allocation8 + $0x1030] sm:$0xff]
    %v4500 = vld [vmem:[#allocation8 + $0x1038] sm:$0xff]
    %v4501 = vld [vmem:[#allocation8 + $0x1040] sm:$0xff]
    %v4502 = vld [vmem:[#allocation8 + $0x1048] sm:$0xff]
    %v4503 = vld [vmem:[#allocation8 + $0x1050] sm:$0xff]
    %v4504 = vld [vmem:[#allocation8 + $0x1058] sm:$0xff]
    %v4505 = vld [vmem:[#allocation8 + $0x1060] sm:$0xff]
    %v4506 = vld [vmem:[#allocation8 + $0x1068] sm:$0xff]
    %v4507 = vld [vmem:[#allocation8 + $0x1070] sm:$0xff]
    %v4508 = vld [vmem:[#allocation8 + $0x1078] sm:$0xff]
    %v4509 = vld [vmem:[#allocation8 + $0x1080] sm:$0xff]
    %v4510 = vld [vmem:[#allocation8 + $0x1088] sm:$0xff]
    %v4511 = vld [vmem:[#allocation8 + $0x1090] sm:$0xff]
    %v4512 = vld [vmem:[#allocation8 + $0x1098] sm:$0xff]
    %v4513 = vld [vmem:[#allocation8 + $0x10a0] sm:$0xff]
    %v4514 = vld [vmem:[#allocation8 + $0x10a8] sm:$0xff]
    %v4515 = vld [vmem:[#allocation8 + $0x10b0] sm:$0xff]
    %v4516 = vld [vmem:[#allocation8 + $0x10b8] sm:$0xff]
    %v4517 = vld [vmem:[#allocation8 + $0x10c0] sm:$0xff]
    %v4518 = vld [vmem:[#allocation8 + $0x10c8] sm:$0xff]
    %v4519 = vld [vmem:[#allocation8 + $0x10d0] sm:$0xff]
    %v4520 = vld [vmem:[#allocation8 + $0x10d8] sm:$0xff]
    %v4521 = vld [vmem:[#allocation8 + $0x10e0] sm:$0xff]
    %v4522 = vld [vmem:[#allocation8 + $0x10e8] sm:$0xff]
    %v4523 = vld [vmem:[#allocation8 + $0x10f0] sm:$0xff]
    %v4524 = vld [vmem:[#allocation8 + $0x10f8] sm:$0xff]
    %v4525 = vld [vmem:[#allocation8 + $0x1100] sm:$0xff]
    %v4526 = vld [vmem:[#allocation8 + $0x1108] sm:$0xff]
    %v4527 = vld [vmem:[#allocation8 + $0x1110] sm:$0xff]
    %v4528 = vld [vmem:[#allocation8 + $0x1118] sm:$0xff]
    %v4529 = vld [vmem:[#allocation8 + $0x1120] sm:$0xff]
    %v4530 = vld [vmem:[#allocation8 + $0x1128] sm:$0xff]
    %v4531 = vld [vmem:[#allocation8 + $0x1130] sm:$0xff]
    %v4532 = vld [vmem:[#allocation8 + $0x1138] sm:$0xff]
    %v4533 = vld [vmem:[#allocation8 + $0x1140] sm:$0xff]
    %v4534 = vld [vmem:[#allocation8 + $0x1148] sm:$0xff]
    %v4535 = vld [vmem:[#allocation8 + $0x1150] sm:$0xff]
    %v4536 = vld [vmem:[#allocation8 + $0x1158] sm:$0xff]
    %v4537 = vld [vmem:[#allocation8 + $0x1160] sm:$0xff]
    %v4538 = vld [vmem:[#allocation8 + $0x1168] sm:$0xff]
    %v4539 = vld [vmem:[#allocation8 + $0x1170] sm:$0xff]
    %v4540 = vld [vmem:[#allocation8 + $0x1178] sm:$0xff]
    %v4541 = vld [vmem:[#allocation8 + $0x1180] sm:$0xff]
    %v4542 = vld [vmem:[#allocation8 + $0x1188] sm:$0xff]
    %v4543 = vld [vmem:[#allocation8 + $0x1190] sm:$0xff]
    %v4544 = vld [vmem:[#allocation8 + $0x1198] sm:$0xff]
    %v4545 = vld [vmem:[#allocation8 + $0x11a0] sm:$0xff]
    %v4546 = vld [vmem:[#allocation8 + $0x11a8] sm:$0xff]
    %v4547 = vld [vmem:[#allocation8 + $0x11b0] sm:$0xff]
    %v4548 = vld [vmem:[#allocation8 + $0x11b8] sm:$0xff]
    %v4549 = vld [vmem:[#allocation8 + $0x11c0] sm:$0xff]
    %v4550 = vld [vmem:[#allocation8 + $0x11c8] sm:$0xff]
    %v4551 = vld [vmem:[#allocation8 + $0x11d0] sm:$0xff]
    %v4552 = vld [vmem:[#allocation8 + $0x11d8] sm:$0xff]
    %v4553 = vld [vmem:[#allocation8 + $0x11e0] sm:$0xff]
    %v4554 = vld [vmem:[#allocation8 + $0x11e8] sm:$0xff]
    %v4555 = vld [vmem:[#allocation8 + $0x11f0] sm:$0xff]
    %v4556 = vld [vmem:[#allocation8 + $0x11f8] sm:$0xff]
    %v4557 = vld [vmem:[#allocation8 + $0x1200] sm:$0xff]
    %v4558 = vld [vmem:[#allocation8 + $0x1208] sm:$0xff]
    %v4559 = vld [vmem:[#allocation8 + $0x1210] sm:$0xff]
    %v4560 = vld [vmem:[#allocation8 + $0x1218] sm:$0xff]
    %v4561 = vld [vmem:[#allocation8 + $0x1220] sm:$0xff]
    %v4562 = vld [vmem:[#allocation8 + $0x1228] sm:$0xff]
    %v4563 = vld [vmem:[#allocation8 + $0x1230] sm:$0xff]
    %v4564 = vld [vmem:[#allocation8 + $0x1238] sm:$0xff]
    %v4565 = vld [vmem:[#allocation8 + $0x1240] sm:$0xff]
    %v4566 = vld [vmem:[#allocation8 + $0x1248] sm:$0xff]
    %v4567 = vld [vmem:[#allocation8 + $0x1250] sm:$0xff]
    %v4568 = vld [vmem:[#allocation8 + $0x1258] sm:$0xff]
    %v4569 = vld [vmem:[#allocation8 + $0x1260] sm:$0xff]
    %v4570 = vld [vmem:[#allocation8 + $0x1268] sm:$0xff]
    %v4571 = vld [vmem:[#allocation8 + $0x1270] sm:$0xff]
    %v4572 = vld [vmem:[#allocation8 + $0x1278] sm:$0xff]
    %v4573 = vld [vmem:[#allocation8 + $0x1280] sm:$0xff]
    %v4574 = vld [vmem:[#allocation8 + $0x1288] sm:$0xff]
    %v4575 = vld [vmem:[#allocation8 + $0x1290] sm:$0xff]
    %v4576 = vld [vmem:[#allocation8 + $0x1298] sm:$0xff]
    %v4577 = vld [vmem:[#allocation8 + $0x12a0] sm:$0xff]
    %v4578 = vld [vmem:[#allocation8 + $0x12a8] sm:$0xff]
    %v4579 = vld [vmem:[#allocation8 + $0x12b0] sm:$0xff]
    %v4580 = vld [vmem:[#allocation8 + $0x12b8] sm:$0xff]
    %v4581 = vld [vmem:[#allocation8 + $0x12c0] sm:$0xff]
    %v4582 = vld [vmem:[#allocation8 + $0x12c8] sm:$0xff]
    %v4583 = vld [vmem:[#allocation8 + $0x12d0] sm:$0xff]
    %v4584 = vld [vmem:[#allocation8 + $0x12d8] sm:$0xff]
    %v4585 = vld [vmem:[#allocation8 + $0x12e0] sm:$0xff]
    %v4586 = vld [vmem:[#allocation8 + $0x12e8] sm:$0xff]
    %v4587 = vld [vmem:[#allocation8 + $0x12f0] sm:$0xff]
    %v4588 = vld [vmem:[#allocation8 + $0x12f8] sm:$0xff]
    %v4589 = vld [vmem:[#allocation8 + $0x1300] sm:$0xff]
    %v4590 = vld [vmem:[#allocation8 + $0x1308] sm:$0xff]
    %v4591 = vld [vmem:[#allocation8 + $0x1310] sm:$0xff]
    %v4592 = vld [vmem:[#allocation8 + $0x1318] sm:$0xff]
    %v4593 = vld [vmem:[#allocation8 + $0x1320] sm:$0xff]
    %v4594 = vld [vmem:[#allocation8 + $0x1328] sm:$0xff]
    %v4595 = vld [vmem:[#allocation8 + $0x1330] sm:$0xff]
    %v4596 = vld [vmem:[#allocation8 + $0x1338] sm:$0xff]
    %v4597 = vld [vmem:[#allocation8 + $0x1340] sm:$0xff]
    %v4598 = vld [vmem:[#allocation8 + $0x1348] sm:$0xff]
    %v4599 = vld [vmem:[#allocation8 + $0x1350] sm:$0xff]
    %v4600 = vld [vmem:[#allocation8 + $0x1358] sm:$0xff]
    %v4601 = vld [vmem:[#allocation8 + $0x1360] sm:$0xff]
    %v4602 = vld [vmem:[#allocation8 + $0x1368] sm:$0xff]
    %v4603 = vld [vmem:[#allocation8 + $0x1370] sm:$0xff]
    %v4604 = vld [vmem:[#allocation8 + $0x1378] sm:$0xff]
    %v4605 = vld [vmem:[#allocation8 + $0x1380] sm:$0xff]
    %v4606 = vld [vmem:[#allocation8 + $0x1388] sm:$0xff]
    %v4607 = vld [vmem:[#allocation8 + $0x1390] sm:$0xff]
    %v4608 = vld [vmem:[#allocation8 + $0x1398] sm:$0xff]
    %v4609 = vld [vmem:[#allocation8 + $0x13a0] sm:$0xff]
    %v4610 = vld [vmem:[#allocation8 + $0x13a8] sm:$0xff]
    %v4611 = vld [vmem:[#allocation8 + $0x13b0] sm:$0xff]
    %v4612 = vld [vmem:[#allocation8 + $0x13b8] sm:$0xff]
    %v4613 = vld [vmem:[#allocation8 + $0x13c0] sm:$0xff]
    %v4614 = vld [vmem:[#allocation8 + $0x13c8] sm:$0xff]
    %v4615 = vld [vmem:[#allocation8 + $0x13d0] sm:$0xff]
    %v4616 = vld [vmem:[#allocation8 + $0x13d8] sm:$0xff]
    %v4617 = vld [vmem:[#allocation8 + $0x13e0] sm:$0xff]
    %v4618 = vld [vmem:[#allocation8 + $0x13e8] sm:$0xff]
    %v4619 = vld [vmem:[#allocation8 + $0x13f0] sm:$0xff]
    %v4620 = vld [vmem:[#allocation8 + $0x13f8] sm:$0xff]
    %v4621 = vld [vmem:[#allocation8 + $0x1400] sm:$0xff]
    %v4622 = vld [vmem:[#allocation8 + $0x1408] sm:$0xff]
    %v4623 = vld [vmem:[#allocation8 + $0x1410] sm:$0xff]
    %v4624 = vld [vmem:[#allocation8 + $0x1418] sm:$0xff]
    %v4625 = vld [vmem:[#allocation8 + $0x1420] sm:$0xff]
    %v4626 = vld [vmem:[#allocation8 + $0x1428] sm:$0xff]
    %v4627 = vld [vmem:[#allocation8 + $0x1430] sm:$0xff]
    %v4628 = vld [vmem:[#allocation8 + $0x1438] sm:$0xff]
    %v4629 = vld [vmem:[#allocation8 + $0x1440] sm:$0xff]
    %v4630 = vld [vmem:[#allocation8 + $0x1448] sm:$0xff]
    %v4631 = vld [vmem:[#allocation8 + $0x1450] sm:$0xff]
    %v4632 = vld [vmem:[#allocation8 + $0x1458] sm:$0xff]
    %v4633 = vld [vmem:[#allocation8 + $0x1460] sm:$0xff]
    %v4634 = vld [vmem:[#allocation8 + $0x1468] sm:$0xff]
    %v4635 = vld [vmem:[#allocation8 + $0x1470] sm:$0xff]
    %v4636 = vld [vmem:[#allocation8 + $0x1478] sm:$0xff]
    %v4637 = vld [vmem:[#allocation8 + $0x1480] sm:$0xff]
    %v4638 = vld [vmem:[#allocation8 + $0x1488] sm:$0xff]
    %v4639 = vld [vmem:[#allocation8 + $0x1490] sm:$0xff]
    %v4640 = vld [vmem:[#allocation8 + $0x1498] sm:$0xff]
    %v4641 = vld [vmem:[#allocation8 + $0x14a0] sm:$0xff]
    %v4642 = vld [vmem:[#allocation8 + $0x14a8] sm:$0xff]
    %v4643 = vld [vmem:[#allocation8 + $0x14b0] sm:$0xff]
    %v4644 = vld [vmem:[#allocation8 + $0x14b8] sm:$0xff]
    %v4645 = vld [vmem:[#allocation8 + $0x14c0] sm:$0xff]
    %v4646 = vld [vmem:[#allocation8 + $0x14c8] sm:$0xff]
    %v4647 = vld [vmem:[#allocation8 + $0x14d0] sm:$0xff]
    %v4648 = vld [vmem:[#allocation8 + $0x14d8] sm:$0xff]
    %v4649 = vld [vmem:[#allocation8 + $0x14e0] sm:$0xff]
    %v4650 = vld [vmem:[#allocation8 + $0x14e8] sm:$0xff]
    %v4651 = vld [vmem:[#allocation8 + $0x14f0] sm:$0xff]
    %v4652 = vld [vmem:[#allocation8 + $0x14f8] sm:$0xff]
    %v4653 = vld [vmem:[#allocation8 + $0x1500] sm:$0xff]
    %v4654 = vld [vmem:[#allocation8 + $0x1508] sm:$0xff]
    %v4655 = vld [vmem:[#allocation8 + $0x1510] sm:$0xff]
    %v4656 = vld [vmem:[#allocation8 + $0x1518] sm:$0xff]
    %v4657 = vld [vmem:[#allocation8 + $0x1520] sm:$0xff]
    %v4658 = vld [vmem:[#allocation8 + $0x1528] sm:$0xff]
    %v4659 = vld [vmem:[#allocation8 + $0x1530] sm:$0xff]
    %v4660 = vld [vmem:[#allocation8 + $0x1538] sm:$0xff]
    %v4661 = vld [vmem:[#allocation8 + $0x1540] sm:$0xff]
    %v4662 = vld [vmem:[#allocation8 + $0x1548] sm:$0xff]
    %v4663 = vld [vmem:[#allocation8 + $0x1550] sm:$0xff]
    %v4664 = vld [vmem:[#allocation8 + $0x1558] sm:$0xff]
    %v4665 = vld [vmem:[#allocation8 + $0x1560] sm:$0xff]
    %v4666 = vld [vmem:[#allocation8 + $0x1568] sm:$0xff]
    %v4667 = vld [vmem:[#allocation8 + $0x1570] sm:$0xff]
    %v4668 = vld [vmem:[#allocation8 + $0x1578] sm:$0xff]
    %v4669 = vld [vmem:[#allocation8 + $0x1580] sm:$0xff]
    %v4670 = vld [vmem:[#allocation8 + $0x1588] sm:$0xff]
    %v4671 = vld [vmem:[#allocation8 + $0x1590] sm:$0xff]
    %v4672 = vld [vmem:[#allocation8 + $0x1598] sm:$0xff]
    %v4673 = vld [vmem:[#allocation8 + $0x15a0] sm:$0xff]
    %v4674 = vld [vmem:[#allocation8 + $0x15a8] sm:$0xff]
    %v4675 = vld [vmem:[#allocation8 + $0x15b0] sm:$0xff]
    %v4676 = vld [vmem:[#allocation8 + $0x15b8] sm:$0xff]
    %v4677 = vld [vmem:[#allocation8 + $0x15c0] sm:$0xff]
    %v4678 = vld [vmem:[#allocation8 + $0x15c8] sm:$0xff]
    %v4679 = vld [vmem:[#allocation8 + $0x15d0] sm:$0xff]
    %v4680 = vld [vmem:[#allocation8 + $0x15d8] sm:$0xff]
    %v4681 = vld [vmem:[#allocation8 + $0x15e0] sm:$0xff]
    %v4682 = vld [vmem:[#allocation8 + $0x15e8] sm:$0xff]
    %v4683 = vld [vmem:[#allocation8 + $0x15f0] sm:$0xff]
    %v4684 = vld [vmem:[#allocation8 + $0x15f8] sm:$0xff]
    %v4685 = vld [vmem:[#allocation8 + $0x1600] sm:$0xff]
    %v4686 = vld [vmem:[#allocation8 + $0x1608] sm:$0xff]
    %v4687 = vld [vmem:[#allocation8 + $0x1610] sm:$0xff]
    %v4688 = vld [vmem:[#allocation8 + $0x1618] sm:$0xff]
    %v4689 = vld [vmem:[#allocation8 + $0x1620] sm:$0xff]
    %v4690 = vld [vmem:[#allocation8 + $0x1628] sm:$0xff]
    %v4691 = vld [vmem:[#allocation8 + $0x1630] sm:$0xff]
    %v4692 = vld [vmem:[#allocation8 + $0x1638] sm:$0xff]
    %v4693 = vld [vmem:[#allocation8 + $0x1640] sm:$0xff]
    %v4694 = vld [vmem:[#allocation8 + $0x1648] sm:$0xff]
    %v4695 = vld [vmem:[#allocation8 + $0x1650] sm:$0xff]
    %v4696 = vld [vmem:[#allocation8 + $0x1658] sm:$0xff]
    %v4697 = vld [vmem:[#allocation8 + $0x1660] sm:$0xff]
    %v4698 = vld [vmem:[#allocation8 + $0x1668] sm:$0xff]
    %v4699 = vld [vmem:[#allocation8 + $0x1670] sm:$0xff]
    %v4700 = vld [vmem:[#allocation8 + $0x1678] sm:$0xff]
    %v4701 = vld [vmem:[#allocation8 + $0x1680] sm:$0xff]
    %v4702 = vld [vmem:[#allocation8 + $0x1688] sm:$0xff]
    %v4703 = vld [vmem:[#allocation8 + $0x1690] sm:$0xff]
    %v4704 = vld [vmem:[#allocation8 + $0x1698] sm:$0xff]
    %v4705 = vld [vmem:[#allocation8 + $0x16a0] sm:$0xff]
    %v4706 = vld [vmem:[#allocation8 + $0x16a8] sm:$0xff]
    %v4707 = vld [vmem:[#allocation8 + $0x16b0] sm:$0xff]
    %v4708 = vld [vmem:[#allocation8 + $0x16b8] sm:$0xff]
    %v4709 = vld [vmem:[#allocation8 + $0x16c0] sm:$0xff]
    %v4710 = vld [vmem:[#allocation8 + $0x16c8] sm:$0xff]
    %v4711 = vld [vmem:[#allocation8 + $0x16d0] sm:$0xff]
    %v4712 = vld [vmem:[#allocation8 + $0x16d8] sm:$0xff]
    %v4713 = vld [vmem:[#allocation8 + $0x16e0] sm:$0xff]
    %v4714 = vld [vmem:[#allocation8 + $0x16e8] sm:$0xff]
    %v4715 = vld [vmem:[#allocation8 + $0x16f0] sm:$0xff]
    %v4716 = vld [vmem:[#allocation8 + $0x16f8] sm:$0xff]
    %v4717 = vld [vmem:[#allocation8 + $0x1700] sm:$0xff]
    %v4718 = vld [vmem:[#allocation8 + $0x1708] sm:$0xff]
    %v4719 = vld [vmem:[#allocation8 + $0x1710] sm:$0xff]
    %v4720 = vld [vmem:[#allocation8 + $0x1718] sm:$0xff]
    %v4721 = vld [vmem:[#allocation8 + $0x1720] sm:$0xff]
    %v4722 = vld [vmem:[#allocation8 + $0x1728] sm:$0xff]
    %v4723 = vld [vmem:[#allocation8 + $0x1730] sm:$0xff]
    %v4724 = vld [vmem:[#allocation8 + $0x1738] sm:$0xff]
    %v4725 = vld [vmem:[#allocation8 + $0x1740] sm:$0xff]
    %v4726 = vld [vmem:[#allocation8 + $0x1748] sm:$0xff]
    %v4727 = vld [vmem:[#allocation8 + $0x1750] sm:$0xff]
    %v4728 = vld [vmem:[#allocation8 + $0x1758] sm:$0xff]
    %v4729 = vld [vmem:[#allocation8 + $0x1760] sm:$0xff]
    %v4730 = vld [vmem:[#allocation8 + $0x1768] sm:$0xff]
    %v4731 = vld [vmem:[#allocation8 + $0x1770] sm:$0xff]
    %v4732 = vld [vmem:[#allocation8 + $0x1778] sm:$0xff]
    %v4733 = vld [vmem:[#allocation8 + $0x1780] sm:$0xff]
    %v4734 = vld [vmem:[#allocation8 + $0x1788] sm:$0xff]
    %v4735 = vld [vmem:[#allocation8 + $0x1790] sm:$0xff]
    %v4736 = vld [vmem:[#allocation8 + $0x1798] sm:$0xff]
    %v4737 = vld [vmem:[#allocation8 + $0x17a0] sm:$0xff]
    %v4738 = vld [vmem:[#allocation8 + $0x17a8] sm:$0xff]
    %v4739 = vld [vmem:[#allocation8 + $0x17b0] sm:$0xff]
    %v4740 = vld [vmem:[#allocation8 + $0x17b8] sm:$0xff]
    %v4741 = vld [vmem:[#allocation8 + $0x17c0] sm:$0xff]
    %v4742 = vld [vmem:[#allocation8 + $0x17c8] sm:$0xff]
    %v4743 = vld [vmem:[#allocation8 + $0x17d0] sm:$0xff]
    %v4744 = vld [vmem:[#allocation8 + $0x17d8] sm:$0xff]
    %v4745 = vld [vmem:[#allocation8 + $0x17e0] sm:$0xff]
    %v4746 = vld [vmem:[#allocation8 + $0x17e8] sm:$0xff]
    %v4747 = vld [vmem:[#allocation8 + $0x17f0] sm:$0xff]
    %v4748 = vld [vmem:[#allocation8 + $0x17f8] sm:$0xff]
    %v4749 = vld [vmem:[#allocation8 + $0x1800] sm:$0xff]
    %v4750 = vld [vmem:[#allocation8 + $0x1808] sm:$0xff]
    %v4751 = vld [vmem:[#allocation8 + $0x1810] sm:$0xff]
    %v4752 = vld [vmem:[#allocation8 + $0x1818] sm:$0xff]
    %v4753 = vld [vmem:[#allocation8 + $0x1820] sm:$0xff]
    %v4754 = vld [vmem:[#allocation8 + $0x1828] sm:$0xff]
    %v4755 = vld [vmem:[#allocation8 + $0x1830] sm:$0xff]
    %v4756 = vld [vmem:[#allocation8 + $0x1838] sm:$0xff]
    %v4757 = vld [vmem:[#allocation8 + $0x1840] sm:$0xff]
    %v4758 = vld [vmem:[#allocation8 + $0x1848] sm:$0xff]
    %v4759 = vld [vmem:[#allocation8 + $0x1850] sm:$0xff]
    %v4760 = vld [vmem:[#allocation8 + $0x1858] sm:$0xff]
    %v4761 = vld [vmem:[#allocation8 + $0x1860] sm:$0xff]
    %v4762 = vld [vmem:[#allocation8 + $0x1868] sm:$0xff]
    %v4763 = vld [vmem:[#allocation8 + $0x1870] sm:$0xff]
    %v4764 = vld [vmem:[#allocation8 + $0x1878] sm:$0xff]
    %v4765 = vld [vmem:[#allocation8 + $0x1880] sm:$0xff]
    %v4766 = vld [vmem:[#allocation8 + $0x1888] sm:$0xff]
    %v4767 = vld [vmem:[#allocation8 + $0x1890] sm:$0xff]
    %v4768 = vld [vmem:[#allocation8 + $0x1898] sm:$0xff]
    %v4769 = vld [vmem:[#allocation8 + $0x18a0] sm:$0xff]
    %v4770 = vld [vmem:[#allocation8 + $0x18a8] sm:$0xff]
    %v4771 = vld [vmem:[#allocation8 + $0x18b0] sm:$0xff]
    %v4772 = vld [vmem:[#allocation8 + $0x18b8] sm:$0xff]
    %v4773 = vld [vmem:[#allocation8 + $0x18c0] sm:$0xff]
    %v4774 = vld [vmem:[#allocation8 + $0x18c8] sm:$0xff]
    %v4775 = vld [vmem:[#allocation8 + $0x18d0] sm:$0xff]
    %v4776 = vld [vmem:[#allocation8 + $0x18d8] sm:$0xff]
    %v4777 = vld [vmem:[#allocation8 + $0x18e0] sm:$0xff]
    %v4778 = vld [vmem:[#allocation8 + $0x18e8] sm:$0xff]
    %v4779 = vld [vmem:[#allocation8 + $0x18f0] sm:$0xff]
    %v4780 = vld [vmem:[#allocation8 + $0x18f8] sm:$0xff]
    %v4781 = vld [vmem:[#allocation10] sm:$0xff]
    %v4782 = vld [vmem:[#allocation10 + $0x8] sm:$0x3]
    %v4785 = vlaneseq
    %v4786 = vshrl.u32 %v4785, 7
    %v4787 = vsub.s32 0, %v4786
    %v4788 = vrot.slane %v4781, %v4787
    %v4789 = vlaneseq
    %v4790 = vshrl.u32 %v4789, 7
    %v4791 = vsub.s32 1, %v4790
    %v4792 = vrot.slane %v4781, %v4791
    %v4793 = vlaneseq
    %v4794 = vshrl.u32 %v4793, 7
    %v4795 = vsub.s32 2, %v4794
    %v4796 = vrot.slane %v4781, %v4795
    %v4797 = vlaneseq
    %v4798 = vshrl.u32 %v4797, 7
    %v4799 = vsub.s32 3, %v4798
    %v4800 = vrot.slane %v4781, %v4799
    %v4801 = vlaneseq
    %v4802 = vshrl.u32 %v4801, 7
    %v4803 = vsub.s32 4, %v4802
    %v4804 = vrot.slane %v4781, %v4803
    %v4805 = vlaneseq
    %v4806 = vshrl.u32 %v4805, 7
    %v4807 = vsub.s32 5, %v4806
    %v4808 = vrot.slane %v4781, %v4807
    %v4809 = vlaneseq
    %v4810 = vshrl.u32 %v4809, 7
    %v4811 = vsub.s32 6, %v4810
    %v4812 = vrot.slane %v4781, %v4811
    %v4813 = vlaneseq
    %v4814 = vshrl.u32 %v4813, 7
    %v4815 = vsub.s32 7, %v4814
    %v4816 = vrot.slane %v4781, %v4815
    %v4817 = vlaneseq
    %v4818 = vshrl.u32 %v4817, 7
    %v4819 = vsub.s32 0, %v4818
    %v4820 = vrot.slane %v4782, %v4819
    %v4821 = vlaneseq
    %v4822 = vshrl.u32 %v4821, 7
    %v4823 = vsub.s32 1, %v4822
    %v4824 = vrot.slane %v4782, %v4823
    %v5635 = vunpack.c.l.b16 %v3981
    %v5636 = vunpack.c.h.b16 %v3981
    %v5637 = vunpack.c.l.b16 %v3982
    %v5638 = vunpack.c.h.b16 %v3982
    %v5639 = vunpack.c.l.b16 %v3983
    %v5640 = vunpack.c.h.b16 %v3983
    %v5641 = vunpack.c.l.b16 %v3984
    %v5642 = vunpack.c.h.b16 %v3984
    %v5643 = vunpack.c.l.b16 %v3985
    %v5644 = vunpack.c.h.b16 %v3985
    %v5645 = vunpack.c.l.b16 %v3986
    %v5646 = vunpack.c.h.b16 %v3986
    %v5647 = vunpack.c.l.b16 %v3987
    %v5648 = vunpack.c.h.b16 %v3987
    %v5649 = vunpack.c.l.b16 %v3988
    %v5650 = vunpack.c.h.b16 %v3988
    %v5651 = vunpack.c.l.b16 %v3989
    %v5652 = vunpack.c.h.b16 %v3989
    %v5653 = vunpack.c.l.b16 %v3990
    %v5654 = vunpack.c.h.b16 %v3990
    %v5655 = vunpack.c.l.b16 %v3991
    %v5656 = vunpack.c.h.b16 %v3991
    %v5657 = vunpack.c.l.b16 %v3992
    %v5658 = vunpack.c.h.b16 %v3992
    %v5659 = vunpack.c.l.b16 %v3993
    %v5660 = vunpack.c.h.b16 %v3993
    %v5661 = vunpack.c.l.b16 %v3994
    %v5662 = vunpack.c.h.b16 %v3994
    %v5663 = vunpack.c.l.b16 %v3995
    %v5664 = vunpack.c.h.b16 %v3995
    %v5665 = vunpack.c.l.b16 %v3996
    %v5666 = vunpack.c.h.b16 %v3996
    %v5667 = vunpack.c.l.b16 %v3997
    %v5668 = vunpack.c.h.b16 %v3997
    %v5669 = vunpack.c.l.b16 %v3998
    %v5670 = vunpack.c.h.b16 %v3998
    %v5671 = vunpack.c.l.b16 %v3999
    %v5672 = vunpack.c.h.b16 %v3999
    %v5673 = vunpack.c.l.b16 %v4000
    %v5674 = vunpack.c.h.b16 %v4000
    %v5675 = vunpack.c.l.b16 %v4001
    %v5676 = vunpack.c.h.b16 %v4001
    %v5677 = vunpack.c.l.b16 %v4002
    %v5678 = vunpack.c.h.b16 %v4002
    %v5679 = vunpack.c.l.b16 %v4003
    %v5680 = vunpack.c.h.b16 %v4003
    %v5681 = vunpack.c.l.b16 %v4004
    %v5682 = vunpack.c.h.b16 %v4004
    %v5683 = vunpack.c.l.b16 %v4005
    %v5684 = vunpack.c.h.b16 %v4005
    %v5685 = vunpack.c.l.b16 %v4006
    %v5686 = vunpack.c.h.b16 %v4006
    %v5687 = vunpack.c.l.b16 %v4007
    %v5688 = vunpack.c.h.b16 %v4007
    %v5689 = vunpack.c.l.b16 %v4008
    %v5690 = vunpack.c.h.b16 %v4008
    %v5691 = vunpack.c.l.b16 %v4009
    %v5692 = vunpack.c.h.b16 %v4009
    %v5693 = vunpack.c.l.b16 %v4010
    %v5694 = vunpack.c.h.b16 %v4010
    %v5695 = vunpack.c.l.b16 %v4011
    %v5696 = vunpack.c.h.b16 %v4011
    %v5697 = vunpack.c.l.b16 %v4012
    %v5698 = vunpack.c.h.b16 %v4012
    %v5699 = vunpack.c.l.b16 %v4013
    %v5700 = vunpack.c.h.b16 %v4013
    %v5701 = vunpack.c.l.b16 %v4014
    %v5702 = vunpack.c.h.b16 %v4014
    %v5703 = vunpack.c.l.b16 %v4015
    %v5704 = vunpack.c.h.b16 %v4015
    %v5705 = vunpack.c.l.b16 %v4016
    %v5706 = vunpack.c.h.b16 %v4016
    %v5707 = vunpack.c.l.b16 %v4017
    %v5708 = vunpack.c.h.b16 %v4017
    %v5709 = vunpack.c.l.b16 %v4018
    %v5710 = vunpack.c.h.b16 %v4018
    %v5711 = vunpack.c.l.b16 %v4019
    %v5712 = vunpack.c.h.b16 %v4019
    %v5713 = vunpack.c.l.b16 %v4020
    %v5714 = vunpack.c.h.b16 %v4020
    %v5715 = vunpack.c.l.b16 %v4021
    %v5716 = vunpack.c.h.b16 %v4021
    %v5717 = vunpack.c.l.b16 %v4022
    %v5718 = vunpack.c.h.b16 %v4022
    %v5719 = vunpack.c.l.b16 %v4023
    %v5720 = vunpack.c.h.b16 %v4023
    %v5721 = vunpack.c.l.b16 %v4024
    %v5722 = vunpack.c.h.b16 %v4024
    %v5723 = vunpack.c.l.b16 %v4025
    %v5724 = vunpack.c.h.b16 %v4025
    %v5725 = vunpack.c.l.b16 %v4026
    %v5726 = vunpack.c.h.b16 %v4026
    %v5727 = vunpack.c.l.b16 %v4027
    %v5728 = vunpack.c.h.b16 %v4027
    %v5729 = vunpack.c.l.b16 %v4028
    %v5730 = vunpack.c.h.b16 %v4028
    %v5731 = vunpack.c.l.b16 %v4029
    %v5732 = vunpack.c.h.b16 %v4029
    %v5733 = vunpack.c.l.b16 %v4030
    %v5734 = vunpack.c.h.b16 %v4030
    %v5735 = vunpack.c.l.b16 %v4031
    %v5736 = vunpack.c.h.b16 %v4031
    %v5737 = vunpack.c.l.b16 %v4032
    %v5738 = vunpack.c.h.b16 %v4032
    %v5739 = vunpack.c.l.b16 %v4033
    %v5740 = vunpack.c.h.b16 %v4033
    %v5741 = vunpack.c.l.b16 %v4034
    %v5742 = vunpack.c.h.b16 %v4034
    %v5743 = vunpack.c.l.b16 %v4035
    %v5744 = vunpack.c.h.b16 %v4035
    %v5745 = vunpack.c.l.b16 %v4036
    %v5746 = vunpack.c.h.b16 %v4036
    %v5747 = vunpack.c.l.b16 %v4037
    %v5748 = vunpack.c.h.b16 %v4037
    %v5749 = vunpack.c.l.b16 %v4038
    %v5750 = vunpack.c.h.b16 %v4038
    %v5751 = vunpack.c.l.b16 %v4039
    %v5752 = vunpack.c.h.b16 %v4039
    %v5753 = vunpack.c.l.b16 %v4040
    %v5754 = vunpack.c.h.b16 %v4040
    %v5755 = vunpack.c.l.b16 %v4041
    %v5756 = vunpack.c.h.b16 %v4041
    %v5757 = vunpack.c.l.b16 %v4042
    %v5758 = vunpack.c.h.b16 %v4042
    %v5759 = vunpack.c.l.b16 %v4043
    %v5760 = vunpack.c.h.b16 %v4043
    %v5761 = vunpack.c.l.b16 %v4044
    %v5762 = vunpack.c.h.b16 %v4044
    %v5763 = vunpack.c.l.b16 %v4045
    %v5764 = vunpack.c.h.b16 %v4045
    %v5765 = vunpack.c.l.b16 %v4046
    %v5766 = vunpack.c.h.b16 %v4046
    %v5767 = vunpack.c.l.b16 %v4047
    %v5768 = vunpack.c.h.b16 %v4047
    %v5769 = vunpack.c.l.b16 %v4048
    %v5770 = vunpack.c.h.b16 %v4048
    %v5771 = vunpack.c.l.b16 %v4049
    %v5772 = vunpack.c.h.b16 %v4049
    %v5773 = vunpack.c.l.b16 %v4050
    %v5774 = vunpack.c.h.b16 %v4050
    %v5775 = vunpack.c.l.b16 %v4051
    %v5776 = vunpack.c.h.b16 %v4051
    %v5777 = vunpack.c.l.b16 %v4052
    %v5778 = vunpack.c.h.b16 %v4052
    %v5779 = vunpack.c.l.b16 %v4053
    %v5780 = vunpack.c.h.b16 %v4053
    %v5781 = vunpack.c.l.b16 %v4054
    %v5782 = vunpack.c.h.b16 %v4054
    %v5783 = vunpack.c.l.b16 %v4055
    %v5784 = vunpack.c.h.b16 %v4055
    %v5785 = vunpack.c.l.b16 %v4056
    %v5786 = vunpack.c.h.b16 %v4056
    %v5787 = vunpack.c.l.b16 %v4057
    %v5788 = vunpack.c.h.b16 %v4057
    %v5789 = vunpack.c.l.b16 %v4058
    %v5790 = vunpack.c.h.b16 %v4058
    %v5791 = vunpack.c.l.b16 %v4059
    %v5792 = vunpack.c.h.b16 %v4059
    %v5793 = vunpack.c.l.b16 %v4060
    %v5794 = vunpack.c.h.b16 %v4060
    %v5795 = vunpack.c.l.b16 %v4061
    %v5796 = vunpack.c.h.b16 %v4061
    %v5797 = vunpack.c.l.b16 %v4062
    %v5798 = vunpack.c.h.b16 %v4062
    %v5799 = vunpack.c.l.b16 %v4063
    %v5800 = vunpack.c.h.b16 %v4063
    %v5801 = vunpack.c.l.b16 %v4064
    %v5802 = vunpack.c.h.b16 %v4064
    %v5803 = vunpack.c.l.b16 %v4065
    %v5804 = vunpack.c.h.b16 %v4065
    %v5805 = vunpack.c.l.b16 %v4066
    %v5806 = vunpack.c.h.b16 %v4066
    %v5807 = vunpack.c.l.b16 %v4067
    %v5808 = vunpack.c.h.b16 %v4067
    %v5809 = vunpack.c.l.b16 %v4068
    %v5810 = vunpack.c.h.b16 %v4068
    %v5811 = vunpack.c.l.b16 %v4069
    %v5812 = vunpack.c.h.b16 %v4069
    %v5813 = vunpack.c.l.b16 %v4070
    %v5814 = vunpack.c.h.b16 %v4070
    %v5815 = vunpack.c.l.b16 %v4071
    %v5816 = vunpack.c.h.b16 %v4071
    %v5817 = vunpack.c.l.b16 %v4072
    %v5818 = vunpack.c.h.b16 %v4072
    %v5819 = vunpack.c.l.b16 %v4073
    %v5820 = vunpack.c.h.b16 %v4073
    %v5821 = vunpack.c.l.b16 %v4074
    %v5822 = vunpack.c.h.b16 %v4074
    %v5823 = vunpack.c.l.b16 %v4075
    %v5824 = vunpack.c.h.b16 %v4075
    %v5825 = vunpack.c.l.b16 %v4076
    %v5826 = vunpack.c.h.b16 %v4076
    %v5827 = vunpack.c.l.b16 %v4077
    %v5828 = vunpack.c.h.b16 %v4077
    %v5829 = vunpack.c.l.b16 %v4078
    %v5830 = vunpack.c.h.b16 %v4078
    %v5831 = vunpack.c.l.b16 %v4079
    %v5832 = vunpack.c.h.b16 %v4079
    %v5833 = vunpack.c.l.b16 %v4080
    %v5834 = vunpack.c.h.b16 %v4080
    %v5835 = vunpack.c.l.b16 %v4081
    %v5836 = vunpack.c.h.b16 %v4081
    %v5837 = vunpack.c.l.b16 %v4082
    %v5838 = vunpack.c.h.b16 %v4082
    %v5839 = vunpack.c.l.b16 %v4083
    %v5840 = vunpack.c.h.b16 %v4083
    %v5841 = vunpack.c.l.b16 %v4084
    %v5842 = vunpack.c.h.b16 %v4084
    %v5843 = vunpack.c.l.b16 %v4085
    %v5844 = vunpack.c.h.b16 %v4085
    %v5845 = vunpack.c.l.b16 %v4086
    %v5846 = vunpack.c.h.b16 %v4086
    %v5847 = vunpack.c.l.b16 %v4087
    %v5848 = vunpack.c.h.b16 %v4087
    %v5849 = vunpack.c.l.b16 %v4088
    %v5850 = vunpack.c.h.b16 %v4088
    %v5851 = vunpack.c.l.b16 %v4089
    %v5852 = vunpack.c.h.b16 %v4089
    %v5853 = vunpack.c.l.b16 %v4090
    %v5854 = vunpack.c.h.b16 %v4090
    %v5855 = vunpack.c.l.b16 %v4091
    %v5856 = vunpack.c.h.b16 %v4091
    %v5857 = vunpack.c.l.b16 %v4092
    %v5858 = vunpack.c.h.b16 %v4092
    %v5859 = vunpack.c.l.b16 %v4093
    %v5860 = vunpack.c.h.b16 %v4093
    %v5861 = vunpack.c.l.b16 %v4094
    %v5862 = vunpack.c.h.b16 %v4094
    %v5863 = vunpack.c.l.b16 %v4095
    %v5864 = vunpack.c.h.b16 %v4095
    %v5865 = vunpack.c.l.b16 %v4096
    %v5866 = vunpack.c.h.b16 %v4096
    %v5867 = vunpack.c.l.b16 %v4097
    %v5868 = vunpack.c.h.b16 %v4097
    %v5869 = vunpack.c.l.b16 %v4098
    %v5870 = vunpack.c.h.b16 %v4098
    %v5871 = vunpack.c.l.b16 %v4099
    %v5872 = vunpack.c.h.b16 %v4099
    %v5873 = vunpack.c.l.b16 %v4100
    %v5874 = vunpack.c.h.b16 %v4100
    %v5875 = vunpack.c.l.b16 %v4101
    %v5876 = vunpack.c.h.b16 %v4101
    %v5877 = vunpack.c.l.b16 %v4102
    %v5878 = vunpack.c.h.b16 %v4102
    %v5879 = vunpack.c.l.b16 %v4103
    %v5880 = vunpack.c.h.b16 %v4103
    %v5881 = vunpack.c.l.b16 %v4104
    %v5882 = vunpack.c.h.b16 %v4104
    %v5883 = vunpack.c.l.b16 %v4105
    %v5884 = vunpack.c.h.b16 %v4105
    %v5885 = vunpack.c.l.b16 %v4106
    %v5886 = vunpack.c.h.b16 %v4106
    %v5887 = vunpack.c.l.b16 %v4107
    %v5888 = vunpack.c.h.b16 %v4107
    %v5889 = vunpack.c.l.b16 %v4108
    %v5890 = vunpack.c.h.b16 %v4108
    %v5891 = vunpack.c.l.b16 %v4109
    %v5892 = vunpack.c.h.b16 %v4109
    %v5893 = vunpack.c.l.b16 %v4110
    %v5894 = vunpack.c.h.b16 %v4110
    %v5895 = vunpack.c.l.b16 %v4111
    %v5896 = vunpack.c.h.b16 %v4111
    %v5897 = vunpack.c.l.b16 %v4112
    %v5898 = vunpack.c.h.b16 %v4112
    %v5899 = vunpack.c.l.b16 %v4113
    %v5900 = vunpack.c.h.b16 %v4113
    %v5901 = vunpack.c.l.b16 %v4114
    %v5902 = vunpack.c.h.b16 %v4114
    %v5903 = vunpack.c.l.b16 %v4115
    %v5904 = vunpack.c.h.b16 %v4115
    %v5905 = vunpack.c.l.b16 %v4116
    %v5906 = vunpack.c.h.b16 %v4116
    %v5907 = vunpack.c.l.b16 %v4117
    %v5908 = vunpack.c.h.b16 %v4117
    %v5909 = vunpack.c.l.b16 %v4118
    %v5910 = vunpack.c.h.b16 %v4118
    %v5911 = vunpack.c.l.b16 %v4119
    %v5912 = vunpack.c.h.b16 %v4119
    %v5913 = vunpack.c.l.b16 %v4120
    %v5914 = vunpack.c.h.b16 %v4120
    %v5915 = vunpack.c.l.b16 %v4121
    %v5916 = vunpack.c.h.b16 %v4121
    %v5917 = vunpack.c.l.b16 %v4122
    %v5918 = vunpack.c.h.b16 %v4122
    %v5919 = vunpack.c.l.b16 %v4123
    %v5920 = vunpack.c.h.b16 %v4123
    %v5921 = vunpack.c.l.b16 %v4124
    %v5922 = vunpack.c.h.b16 %v4124
    %v5923 = vunpack.c.l.b16 %v4125
    %v5924 = vunpack.c.h.b16 %v4125
    %v5925 = vunpack.c.l.b16 %v4126
    %v5926 = vunpack.c.h.b16 %v4126
    %v5927 = vunpack.c.l.b16 %v4127
    %v5928 = vunpack.c.h.b16 %v4127
    %v5929 = vunpack.c.l.b16 %v4128
    %v5930 = vunpack.c.h.b16 %v4128
    %v5931 = vunpack.c.l.b16 %v4129
    %v5932 = vunpack.c.h.b16 %v4129
    %v5933 = vunpack.c.l.b16 %v4130
    %v5934 = vunpack.c.h.b16 %v4130
    %v5935 = vunpack.c.l.b16 %v4131
    %v5936 = vunpack.c.h.b16 %v4131
    %v5937 = vunpack.c.l.b16 %v4132
    %v5938 = vunpack.c.h.b16 %v4132
    %v5939 = vunpack.c.l.b16 %v4133
    %v5940 = vunpack.c.h.b16 %v4133
    %v5941 = vunpack.c.l.b16 %v4134
    %v5942 = vunpack.c.h.b16 %v4134
    %v5943 = vunpack.c.l.b16 %v4135
    %v5944 = vunpack.c.h.b16 %v4135
    %v5945 = vunpack.c.l.b16 %v4136
    %v5946 = vunpack.c.h.b16 %v4136
    %v5947 = vunpack.c.l.b16 %v4137
    %v5948 = vunpack.c.h.b16 %v4137
    %v5949 = vunpack.c.l.b16 %v4138
    %v5950 = vunpack.c.h.b16 %v4138
    %v5951 = vunpack.c.l.b16 %v4139
    %v5952 = vunpack.c.h.b16 %v4139
    %v5953 = vunpack.c.l.b16 %v4140
    %v5954 = vunpack.c.h.b16 %v4140
    %v5955 = vunpack.c.l.b16 %v4141
    %v5956 = vunpack.c.h.b16 %v4141
    %v5957 = vunpack.c.l.b16 %v4142
    %v5958 = vunpack.c.h.b16 %v4142
    %v5959 = vunpack.c.l.b16 %v4143
    %v5960 = vunpack.c.h.b16 %v4143
    %v5961 = vunpack.c.l.b16 %v4144
    %v5962 = vunpack.c.h.b16 %v4144
    %v5963 = vunpack.c.l.b16 %v4145
    %v5964 = vunpack.c.h.b16 %v4145
    %v5965 = vunpack.c.l.b16 %v4146
    %v5966 = vunpack.c.h.b16 %v4146
    %v5967 = vunpack.c.l.b16 %v4147
    %v5968 = vunpack.c.h.b16 %v4147
    %v5969 = vunpack.c.l.b16 %v4148
    %v5970 = vunpack.c.h.b16 %v4148
    %v5971 = vunpack.c.l.b16 %v4149
    %v5972 = vunpack.c.h.b16 %v4149
    %v5973 = vunpack.c.l.b16 %v4150
    %v5974 = vunpack.c.h.b16 %v4150
    %v5975 = vunpack.c.l.b16 %v4151
    %v5976 = vunpack.c.h.b16 %v4151
    %v5977 = vunpack.c.l.b16 %v4152
    %v5978 = vunpack.c.h.b16 %v4152
    %v5979 = vunpack.c.l.b16 %v4153
    %v5980 = vunpack.c.h.b16 %v4153
    %v5981 = vunpack.c.l.b16 %v4154
    %v5982 = vunpack.c.h.b16 %v4154
    %v5983 = vunpack.c.l.b16 %v4155
    %v5984 = vunpack.c.h.b16 %v4155
    %v5985 = vunpack.c.l.b16 %v4156
    %v5986 = vunpack.c.h.b16 %v4156
    %v5987 = vunpack.c.l.b16 %v4157
    %v5988 = vunpack.c.h.b16 %v4157
    %v5989 = vunpack.c.l.b16 %v4158
    %v5990 = vunpack.c.h.b16 %v4158
    %v5991 = vunpack.c.l.b16 %v4159
    %v5992 = vunpack.c.h.b16 %v4159
    %v5993 = vunpack.c.l.b16 %v4160
    %v5994 = vunpack.c.h.b16 %v4160
    %v5995 = vunpack.c.l.b16 %v4161
    %v5996 = vunpack.c.h.b16 %v4161
    %v5997 = vunpack.c.l.b16 %v4162
    %v5998 = vunpack.c.h.b16 %v4162
    %v5999 = vunpack.c.l.b16 %v4163
    %v6000 = vunpack.c.h.b16 %v4163
    %v6001 = vunpack.c.l.b16 %v4164
    %v6002 = vunpack.c.h.b16 %v4164
    %v6003 = vunpack.c.l.b16 %v4165
    %v6004 = vunpack.c.h.b16 %v4165
    %v6005 = vunpack.c.l.b16 %v4166
    %v6006 = vunpack.c.h.b16 %v4166
    %v6007 = vunpack.c.l.b16 %v4167
    %v6008 = vunpack.c.h.b16 %v4167
    %v6009 = vunpack.c.l.b16 %v4168
    %v6010 = vunpack.c.h.b16 %v4168
    %v6011 = vunpack.c.l.b16 %v4169
    %v6012 = vunpack.c.h.b16 %v4169
    %v6013 = vunpack.c.l.b16 %v4170
    %v6014 = vunpack.c.h.b16 %v4170
    %v6015 = vunpack.c.l.b16 %v4171
    %v6016 = vunpack.c.h.b16 %v4171
    %v6017 = vunpack.c.l.b16 %v4172
    %v6018 = vunpack.c.h.b16 %v4172
    %v6019 = vunpack.c.l.b16 %v4173
    %v6020 = vunpack.c.h.b16 %v4173
    %v6021 = vunpack.c.l.b16 %v4174
    %v6022 = vunpack.c.h.b16 %v4174
    %v6023 = vunpack.c.l.b16 %v4175
    %v6024 = vunpack.c.h.b16 %v4175
    %v6025 = vunpack.c.l.b16 %v4176
    %v6026 = vunpack.c.h.b16 %v4176
    %v6027 = vunpack.c.l.b16 %v4177
    %v6028 = vunpack.c.h.b16 %v4177
    %v6029 = vunpack.c.l.b16 %v4178
    %v6030 = vunpack.c.h.b16 %v4178
    %v6031 = vunpack.c.l.b16 %v4179
    %v6032 = vunpack.c.h.b16 %v4179
    %v6033 = vunpack.c.l.b16 %v4180
    %v6034 = vunpack.c.h.b16 %v4180
    %v6035 = vunpack.c.l.b16 %v4181
    %v6036 = vunpack.c.h.b16 %v4181
    %v6037 = vunpack.c.l.b16 %v4182
    %v6038 = vunpack.c.h.b16 %v4182
    %v6039 = vunpack.c.l.b16 %v4183
    %v6040 = vunpack.c.h.b16 %v4183
    %v6041 = vunpack.c.l.b16 %v4184
    %v6042 = vunpack.c.h.b16 %v4184
    %v6043 = vunpack.c.l.b16 %v4185
    %v6044 = vunpack.c.h.b16 %v4185
    %v6045 = vunpack.c.l.b16 %v4186
    %v6046 = vunpack.c.h.b16 %v4186
    %v6047 = vunpack.c.l.b16 %v4187
    %v6048 = vunpack.c.h.b16 %v4187
    %v6049 = vunpack.c.l.b16 %v4188
    %v6050 = vunpack.c.h.b16 %v4188
    %v6051 = vunpack.c.l.b16 %v4189
    %v6052 = vunpack.c.h.b16 %v4189
    %v6053 = vunpack.c.l.b16 %v4190
    %v6054 = vunpack.c.h.b16 %v4190
    %v6055 = vunpack.c.l.b16 %v4191
    %v6056 = vunpack.c.h.b16 %v4191
    %v6057 = vunpack.c.l.b16 %v4192
    %v6058 = vunpack.c.h.b16 %v4192
    %v6059 = vunpack.c.l.b16 %v4193
    %v6060 = vunpack.c.h.b16 %v4193
    %v6061 = vunpack.c.l.b16 %v4194
    %v6062 = vunpack.c.h.b16 %v4194
    %v6063 = vunpack.c.l.b16 %v4195
    %v6064 = vunpack.c.h.b16 %v4195
    %v6065 = vunpack.c.l.b16 %v4196
    %v6066 = vunpack.c.h.b16 %v4196
    %v6067 = vunpack.c.l.b16 %v4197
    %v6068 = vunpack.c.h.b16 %v4197
    %v6069 = vunpack.c.l.b16 %v4198
    %v6070 = vunpack.c.h.b16 %v4198
    %v6071 = vunpack.c.l.b16 %v4199
    %v6072 = vunpack.c.h.b16 %v4199
    %v6073 = vunpack.c.l.b16 %v4200
    %v6074 = vunpack.c.h.b16 %v4200
    %v6075 = vunpack.c.l.b16 %v4201
    %v6076 = vunpack.c.h.b16 %v4201
    %v6077 = vunpack.c.l.b16 %v4202
    %v6078 = vunpack.c.h.b16 %v4202
    %v6079 = vunpack.c.l.b16 %v4203
    %v6080 = vunpack.c.h.b16 %v4203
    %v6081 = vunpack.c.l.b16 %v4204
    %v6082 = vunpack.c.h.b16 %v4204
    %v6083 = vunpack.c.l.b16 %v4205
    %v6084 = vunpack.c.h.b16 %v4205
    %v6085 = vunpack.c.l.b16 %v4206
    %v6086 = vunpack.c.h.b16 %v4206
    %v6087 = vunpack.c.l.b16 %v4207
    %v6088 = vunpack.c.h.b16 %v4207
    %v6089 = vunpack.c.l.b16 %v4208
    %v6090 = vunpack.c.h.b16 %v4208
    %v6091 = vunpack.c.l.b16 %v4209
    %v6092 = vunpack.c.h.b16 %v4209
    %v6093 = vunpack.c.l.b16 %v4210
    %v6094 = vunpack.c.h.b16 %v4210
    %v6095 = vunpack.c.l.b16 %v4211
    %v6096 = vunpack.c.h.b16 %v4211
    %v6097 = vunpack.c.l.b16 %v4212
    %v6098 = vunpack.c.h.b16 %v4212
    %v6099 = vunpack.c.l.b16 %v4213
    %v6100 = vunpack.c.h.b16 %v4213
    %v6101 = vunpack.c.l.b16 %v4214
    %v6102 = vunpack.c.h.b16 %v4214
    %v6103 = vunpack.c.l.b16 %v4215
    %v6104 = vunpack.c.h.b16 %v4215
    %v6105 = vunpack.c.l.b16 %v4216
    %v6106 = vunpack.c.h.b16 %v4216
    %v6107 = vunpack.c.l.b16 %v4217
    %v6108 = vunpack.c.h.b16 %v4217
    %v6109 = vunpack.c.l.b16 %v4218
    %v6110 = vunpack.c.h.b16 %v4218
    %v6111 = vunpack.c.l.b16 %v4219
    %v6112 = vunpack.c.h.b16 %v4219
    %v6113 = vunpack.c.l.b16 %v4220
    %v6114 = vunpack.c.h.b16 %v4220
    %v6115 = vunpack.c.l.b16 %v4221
    %v6116 = vunpack.c.h.b16 %v4221
    %v6117 = vunpack.c.l.b16 %v4222
    %v6118 = vunpack.c.h.b16 %v4222
    %v6119 = vunpack.c.l.b16 %v4223
    %v6120 = vunpack.c.h.b16 %v4223
    %v6121 = vunpack.c.l.b16 %v4224
    %v6122 = vunpack.c.h.b16 %v4224
    %v6123 = vunpack.c.l.b16 %v4225
    %v6124 = vunpack.c.h.b16 %v4225
    %v6125 = vunpack.c.l.b16 %v4226
    %v6126 = vunpack.c.h.b16 %v4226
    %v6127 = vunpack.c.l.b16 %v4227
    %v6128 = vunpack.c.h.b16 %v4227
    %v6129 = vunpack.c.l.b16 %v4228
    %v6130 = vunpack.c.h.b16 %v4228
    %v6131 = vunpack.c.l.b16 %v4229
    %v6132 = vunpack.c.h.b16 %v4229
    %v6133 = vunpack.c.l.b16 %v4230
    %v6134 = vunpack.c.h.b16 %v4230
    %v6135 = vunpack.c.l.b16 %v4231
    %v6136 = vunpack.c.h.b16 %v4231
    %v6137 = vunpack.c.l.b16 %v4232
    %v6138 = vunpack.c.h.b16 %v4232
    %v6139 = vunpack.c.l.b16 %v4233
    %v6140 = vunpack.c.h.b16 %v4233
    %v6141 = vunpack.c.l.b16 %v4234
    %v6142 = vunpack.c.h.b16 %v4234
    %v6143 = vunpack.c.l.b16 %v4235
    %v6144 = vunpack.c.h.b16 %v4235
    %v6145 = vunpack.c.l.b16 %v4236
    %v6146 = vunpack.c.h.b16 %v4236
    %v6147 = vunpack.c.l.b16 %v4237
    %v6148 = vunpack.c.h.b16 %v4237
    %v6149 = vunpack.c.l.b16 %v4238
    %v6150 = vunpack.c.h.b16 %v4238
    %v6151 = vunpack.c.l.b16 %v4239
    %v6152 = vunpack.c.h.b16 %v4239
    %v6153 = vunpack.c.l.b16 %v4240
    %v6154 = vunpack.c.h.b16 %v4240
    %v6155 = vunpack.c.l.b16 %v4241
    %v6156 = vunpack.c.h.b16 %v4241
    %v6157 = vunpack.c.l.b16 %v4242
    %v6158 = vunpack.c.h.b16 %v4242
    %v6159 = vunpack.c.l.b16 %v4243
    %v6160 = vunpack.c.h.b16 %v4243
    %v6161 = vunpack.c.l.b16 %v4244
    %v6162 = vunpack.c.h.b16 %v4244
    %v6163 = vunpack.c.l.b16 %v4245
    %v6164 = vunpack.c.h.b16 %v4245
    %v6165 = vunpack.c.l.b16 %v4246
    %v6166 = vunpack.c.h.b16 %v4246
    %v6167 = vunpack.c.l.b16 %v4247
    %v6168 = vunpack.c.h.b16 %v4247
    %v6169 = vunpack.c.l.b16 %v4248
    %v6170 = vunpack.c.h.b16 %v4248
    %v6171 = vunpack.c.l.b16 %v4249
    %v6172 = vunpack.c.h.b16 %v4249
    %v6173 = vunpack.c.l.b16 %v4250
    %v6174 = vunpack.c.h.b16 %v4250
    %v6175 = vunpack.c.l.b16 %v4251
    %v6176 = vunpack.c.h.b16 %v4251
    %v6177 = vunpack.c.l.b16 %v4252
    %v6178 = vunpack.c.h.b16 %v4252
    %v6179 = vunpack.c.l.b16 %v4253
    %v6180 = vunpack.c.h.b16 %v4253
    %v6181 = vunpack.c.l.b16 %v4254
    %v6182 = vunpack.c.h.b16 %v4254
    %v6183 = vunpack.c.l.b16 %v4255
    %v6184 = vunpack.c.h.b16 %v4255
    %v6185 = vunpack.c.l.b16 %v4256
    %v6186 = vunpack.c.h.b16 %v4256
    %v6187 = vunpack.c.l.b16 %v4257
    %v6188 = vunpack.c.h.b16 %v4257
    %v6189 = vunpack.c.l.b16 %v4258
    %v6190 = vunpack.c.h.b16 %v4258
    %v6191 = vunpack.c.l.b16 %v4259
    %v6192 = vunpack.c.h.b16 %v4259
    %v6193 = vunpack.c.l.b16 %v4260
    %v6194 = vunpack.c.h.b16 %v4260
    %v6195 = vunpack.c.l.b16 %v4261
    %v6196 = vunpack.c.h.b16 %v4261
    %v6197 = vunpack.c.l.b16 %v4262
    %v6198 = vunpack.c.h.b16 %v4262
    %v6199 = vunpack.c.l.b16 %v4263
    %v6200 = vunpack.c.h.b16 %v4263
    %v6201 = vunpack.c.l.b16 %v4264
    %v6202 = vunpack.c.h.b16 %v4264
    %v6203 = vunpack.c.l.b16 %v4265
    %v6204 = vunpack.c.h.b16 %v4265
    %v6205 = vunpack.c.l.b16 %v4266
    %v6206 = vunpack.c.h.b16 %v4266
    %v6207 = vunpack.c.l.b16 %v4267
    %v6208 = vunpack.c.h.b16 %v4267
    %v6209 = vunpack.c.l.b16 %v4268
    %v6210 = vunpack.c.h.b16 %v4268
    %v6211 = vunpack.c.l.b16 %v4269
    %v6212 = vunpack.c.h.b16 %v4269
    %v6213 = vunpack.c.l.b16 %v4270
    %v6214 = vunpack.c.h.b16 %v4270
    %v6215 = vunpack.c.l.b16 %v4271
    %v6216 = vunpack.c.h.b16 %v4271
    %v6217 = vunpack.c.l.b16 %v4272
    %v6218 = vunpack.c.h.b16 %v4272
    %v6219 = vunpack.c.l.b16 %v4273
    %v6220 = vunpack.c.h.b16 %v4273
    %v6221 = vunpack.c.l.b16 %v4274
    %v6222 = vunpack.c.h.b16 %v4274
    %v6223 = vunpack.c.l.b16 %v4275
    %v6224 = vunpack.c.h.b16 %v4275
    %v6225 = vunpack.c.l.b16 %v4276
    %v6226 = vunpack.c.h.b16 %v4276
    %v6227 = vunpack.c.l.b16 %v4277
    %v6228 = vunpack.c.h.b16 %v4277
    %v6229 = vunpack.c.l.b16 %v4278
    %v6230 = vunpack.c.h.b16 %v4278
    %v6231 = vunpack.c.l.b16 %v4279
    %v6232 = vunpack.c.h.b16 %v4279
    %v6233 = vunpack.c.l.b16 %v4280
    %v6234 = vunpack.c.h.b16 %v4280
    %v6235 = vunpack.c.l.b16 %v4281
    %v6236 = vunpack.c.h.b16 %v4281
    %v6237 = vunpack.c.l.b16 %v4282
    %v6238 = vunpack.c.h.b16 %v4282
    %v6239 = vunpack.c.l.b16 %v4283
    %v6240 = vunpack.c.h.b16 %v4283
    %v6241 = vunpack.c.l.b16 %v4284
    %v6242 = vunpack.c.h.b16 %v4284
    %v6243 = vunpack.c.l.b16 %v4285
    %v6244 = vunpack.c.h.b16 %v4285
    %v6245 = vunpack.c.l.b16 %v4286
    %v6246 = vunpack.c.h.b16 %v4286
    %v6247 = vunpack.c.l.b16 %v4287
    %v6248 = vunpack.c.h.b16 %v4287
    %v6249 = vunpack.c.l.b16 %v4288
    %v6250 = vunpack.c.h.b16 %v4288
    %v6251 = vunpack.c.l.b16 %v4289
    %v6252 = vunpack.c.h.b16 %v4289
    %v6253 = vunpack.c.l.b16 %v4290
    %v6254 = vunpack.c.h.b16 %v4290
    %v6255 = vunpack.c.l.b16 %v4291
    %v6256 = vunpack.c.h.b16 %v4291
    %v6257 = vunpack.c.l.b16 %v4292
    %v6258 = vunpack.c.h.b16 %v4292
    %v6259 = vunpack.c.l.b16 %v4293
    %v6260 = vunpack.c.h.b16 %v4293
    %v6261 = vunpack.c.l.b16 %v4294
    %v6262 = vunpack.c.h.b16 %v4294
    %v6263 = vunpack.c.l.b16 %v4295
    %v6264 = vunpack.c.h.b16 %v4295
    %v6265 = vunpack.c.l.b16 %v4296
    %v6266 = vunpack.c.h.b16 %v4296
    %v6267 = vunpack.c.l.b16 %v4297
    %v6268 = vunpack.c.h.b16 %v4297
    %v6269 = vunpack.c.l.b16 %v4298
    %v6270 = vunpack.c.h.b16 %v4298
    %v6271 = vunpack.c.l.b16 %v4299
    %v6272 = vunpack.c.h.b16 %v4299
    %v6273 = vunpack.c.l.b16 %v4300
    %v6274 = vunpack.c.h.b16 %v4300
    %v6275 = vunpack.c.l.b16 %v4301
    %v6276 = vunpack.c.h.b16 %v4301
    %v6277 = vunpack.c.l.b16 %v4302
    %v6278 = vunpack.c.h.b16 %v4302
    %v6279 = vunpack.c.l.b16 %v4303
    %v6280 = vunpack.c.h.b16 %v4303
    %v6281 = vunpack.c.l.b16 %v4304
    %v6282 = vunpack.c.h.b16 %v4304
    %v6283 = vunpack.c.l.b16 %v4305
    %v6284 = vunpack.c.h.b16 %v4305
    %v6285 = vunpack.c.l.b16 %v4306
    %v6286 = vunpack.c.h.b16 %v4306
    %v6287 = vunpack.c.l.b16 %v4307
    %v6288 = vunpack.c.h.b16 %v4307
    %v6289 = vunpack.c.l.b16 %v4308
    %v6290 = vunpack.c.h.b16 %v4308
    %v6291 = vunpack.c.l.b16 %v4309
    %v6292 = vunpack.c.h.b16 %v4309
    %v6293 = vunpack.c.l.b16 %v4310
    %v6294 = vunpack.c.h.b16 %v4310
    %v6295 = vunpack.c.l.b16 %v4311
    %v6296 = vunpack.c.h.b16 %v4311
    %v6297 = vunpack.c.l.b16 %v4312
    %v6298 = vunpack.c.h.b16 %v4312
    %v6299 = vunpack.c.l.b16 %v4313
    %v6300 = vunpack.c.h.b16 %v4313
    %v6301 = vunpack.c.l.b16 %v4314
    %v6302 = vunpack.c.h.b16 %v4314
    %v6303 = vunpack.c.l.b16 %v4315
    %v6304 = vunpack.c.h.b16 %v4315
    %v6305 = vunpack.c.l.b16 %v4316
    %v6306 = vunpack.c.h.b16 %v4316
    %v6307 = vunpack.c.l.b16 %v4317
    %v6308 = vunpack.c.h.b16 %v4317
    %v6309 = vunpack.c.l.b16 %v4318
    %v6310 = vunpack.c.h.b16 %v4318
    %v6311 = vunpack.c.l.b16 %v4319
    %v6312 = vunpack.c.h.b16 %v4319
    %v6313 = vunpack.c.l.b16 %v4320
    %v6314 = vunpack.c.h.b16 %v4320
    %v6315 = vunpack.c.l.b16 %v4321
    %v6316 = vunpack.c.h.b16 %v4321
    %v6317 = vunpack.c.l.b16 %v4322
    %v6318 = vunpack.c.h.b16 %v4322
    %v6319 = vunpack.c.l.b16 %v4323
    %v6320 = vunpack.c.h.b16 %v4323
    %v6321 = vunpack.c.l.b16 %v4324
    %v6322 = vunpack.c.h.b16 %v4324
    %v6323 = vunpack.c.l.b16 %v4325
    %v6324 = vunpack.c.h.b16 %v4325
    %v6325 = vunpack.c.l.b16 %v4326
    %v6326 = vunpack.c.h.b16 %v4326
    %v6327 = vunpack.c.l.b16 %v4327
    %v6328 = vunpack.c.h.b16 %v4327
    %v6329 = vunpack.c.l.b16 %v4328
    %v6330 = vunpack.c.h.b16 %v4328
    %v6331 = vunpack.c.l.b16 %v4329
    %v6332 = vunpack.c.h.b16 %v4329
    %v6333 = vunpack.c.l.b16 %v4330
    %v6334 = vunpack.c.h.b16 %v4330
    %v6335 = vunpack.c.l.b16 %v4331
    %v6336 = vunpack.c.h.b16 %v4331
    %v6337 = vunpack.c.l.b16 %v4332
    %v6338 = vunpack.c.h.b16 %v4332
    %v6339 = vunpack.c.l.b16 %v4333
    %v6340 = vunpack.c.h.b16 %v4333
    %v6341 = vunpack.c.l.b16 %v4334
    %v6342 = vunpack.c.h.b16 %v4334
    %v6343 = vunpack.c.l.b16 %v4335
    %v6344 = vunpack.c.h.b16 %v4335
    %v6345 = vunpack.c.l.b16 %v4336
    %v6346 = vunpack.c.h.b16 %v4336
    %v6347 = vunpack.c.l.b16 %v4337
    %v6348 = vunpack.c.h.b16 %v4337
    %v6349 = vunpack.c.l.b16 %v4338
    %v6350 = vunpack.c.h.b16 %v4338
    %v6351 = vunpack.c.l.b16 %v4339
    %v6352 = vunpack.c.h.b16 %v4339
    %v6353 = vunpack.c.l.b16 %v4340
    %v6354 = vunpack.c.h.b16 %v4340
    %v6355 = vunpack.c.l.b16 %v4341
    %v6356 = vunpack.c.h.b16 %v4341
    %v6357 = vunpack.c.l.b16 %v4342
    %v6358 = vunpack.c.h.b16 %v4342
    %v6359 = vunpack.c.l.b16 %v4343
    %v6360 = vunpack.c.h.b16 %v4343
    %v6361 = vunpack.c.l.b16 %v4344
    %v6362 = vunpack.c.h.b16 %v4344
    %v6363 = vunpack.c.l.b16 %v4345
    %v6364 = vunpack.c.h.b16 %v4345
    %v6365 = vunpack.c.l.b16 %v4346
    %v6366 = vunpack.c.h.b16 %v4346
    %v6367 = vunpack.c.l.b16 %v4347
    %v6368 = vunpack.c.h.b16 %v4347
    %v6369 = vunpack.c.l.b16 %v4348
    %v6370 = vunpack.c.h.b16 %v4348
    %v6371 = vunpack.c.l.b16 %v4349
    %v6372 = vunpack.c.h.b16 %v4349
    %v6373 = vunpack.c.l.b16 %v4350
    %v6374 = vunpack.c.h.b16 %v4350
    %v6375 = vunpack.c.l.b16 %v4351
    %v6376 = vunpack.c.h.b16 %v4351
    %v6377 = vunpack.c.l.b16 %v4352
    %v6378 = vunpack.c.h.b16 %v4352
    %v6379 = vunpack.c.l.b16 %v4353
    %v6380 = vunpack.c.h.b16 %v4353
    %v6381 = vunpack.c.l.b16 %v4354
    %v6382 = vunpack.c.h.b16 %v4354
    %v6383 = vunpack.c.l.b16 %v4355
    %v6384 = vunpack.c.h.b16 %v4355
    %v6385 = vunpack.c.l.b16 %v4356
    %v6386 = vunpack.c.h.b16 %v4356
    %v6387 = vunpack.c.l.b16 %v4357
    %v6388 = vunpack.c.h.b16 %v4357
    %v6389 = vunpack.c.l.b16 %v4358
    %v6390 = vunpack.c.h.b16 %v4358
    %v6391 = vunpack.c.l.b16 %v4359
    %v6392 = vunpack.c.h.b16 %v4359
    %v6393 = vunpack.c.l.b16 %v4360
    %v6394 = vunpack.c.h.b16 %v4360
    %v6395 = vunpack.c.l.b16 %v4361
    %v6396 = vunpack.c.h.b16 %v4361
    %v6397 = vunpack.c.l.b16 %v4362
    %v6398 = vunpack.c.h.b16 %v4362
    %v6399 = vunpack.c.l.b16 %v4363
    %v6400 = vunpack.c.h.b16 %v4363
    %v6401 = vunpack.c.l.b16 %v4364
    %v6402 = vunpack.c.h.b16 %v4364
    %v6403 = vunpack.c.l.b16 %v4365
    %v6404 = vunpack.c.h.b16 %v4365
    %v6405 = vunpack.c.l.b16 %v4366
    %v6406 = vunpack.c.h.b16 %v4366
    %v6407 = vunpack.c.l.b16 %v4367
    %v6408 = vunpack.c.h.b16 %v4367
    %v6409 = vunpack.c.l.b16 %v4368
    %v6410 = vunpack.c.h.b16 %v4368
    %v6411 = vunpack.c.l.b16 %v4369
    %v6412 = vunpack.c.h.b16 %v4369
    %v6413 = vunpack.c.l.b16 %v4370
    %v6414 = vunpack.c.h.b16 %v4370
    %v6415 = vunpack.c.l.b16 %v4371
    %v6416 = vunpack.c.h.b16 %v4371
    %v6417 = vunpack.c.l.b16 %v4372
    %v6418 = vunpack.c.h.b16 %v4372
    %v6419 = vunpack.c.l.b16 %v4373
    %v6420 = vunpack.c.h.b16 %v4373
    %v6421 = vunpack.c.l.b16 %v4374
    %v6422 = vunpack.c.h.b16 %v4374
    %v6423 = vunpack.c.l.b16 %v4375
    %v6424 = vunpack.c.h.b16 %v4375
    %v6425 = vunpack.c.l.b16 %v4376
    %v6426 = vunpack.c.h.b16 %v4376
    %v6427 = vunpack.c.l.b16 %v4377
    %v6428 = vunpack.c.h.b16 %v4377
    %v6429 = vunpack.c.l.b16 %v4378
    %v6430 = vunpack.c.h.b16 %v4378
    %v6431 = vunpack.c.l.b16 %v4379
    %v6432 = vunpack.c.h.b16 %v4379
    %v6433 = vunpack.c.l.b16 %v4380
    %v6434 = vunpack.c.h.b16 %v4380
    %v6435 = vunpack.c.l.b16 %v4381
    %v6436 = vunpack.c.h.b16 %v4381
    %v6437 = vunpack.c.l.b16 %v4382
    %v6438 = vunpack.c.h.b16 %v4382
    %v6439 = vunpack.c.l.b16 %v4383
    %v6440 = vunpack.c.h.b16 %v4383
    %v6441 = vunpack.c.l.b16 %v4384
    %v6442 = vunpack.c.h.b16 %v4384
    %v6443 = vunpack.c.l.b16 %v4385
    %v6444 = vunpack.c.h.b16 %v4385
    %v6445 = vunpack.c.l.b16 %v4386
    %v6446 = vunpack.c.h.b16 %v4386
    %v6447 = vunpack.c.l.b16 %v4387
    %v6448 = vunpack.c.h.b16 %v4387
    %v6449 = vunpack.c.l.b16 %v4388
    %v6450 = vunpack.c.h.b16 %v4388
    %v6451 = vunpack.c.l.b16 %v4389
    %v6452 = vunpack.c.h.b16 %v4389
    %v6453 = vunpack.c.l.b16 %v4390
    %v6454 = vunpack.c.h.b16 %v4390
    %v6455 = vunpack.c.l.b16 %v4391
    %v6456 = vunpack.c.h.b16 %v4391
    %v6457 = vunpack.c.l.b16 %v4392
    %v6458 = vunpack.c.h.b16 %v4392
    %v6459 = vunpack.c.l.b16 %v4393
    %v6460 = vunpack.c.h.b16 %v4393
    %v6461 = vunpack.c.l.b16 %v4394
    %v6462 = vunpack.c.h.b16 %v4394
    %v6463 = vunpack.c.l.b16 %v4395
    %v6464 = vunpack.c.h.b16 %v4395
    %v6465 = vunpack.c.l.b16 %v4396
    %v6466 = vunpack.c.h.b16 %v4396
    %v6467 = vunpack.c.l.b16 %v4397
    %v6468 = vunpack.c.h.b16 %v4397
    %v6469 = vunpack.c.l.b16 %v4398
    %v6470 = vunpack.c.h.b16 %v4398
    %v6471 = vunpack.c.l.b16 %v4399
    %v6472 = vunpack.c.h.b16 %v4399
    %v6473 = vunpack.c.l.b16 %v4400
    %v6474 = vunpack.c.h.b16 %v4400
    %v6475 = vunpack.c.l.b16 %v4401
    %v6476 = vunpack.c.h.b16 %v4401
    %v6477 = vunpack.c.l.b16 %v4402
    %v6478 = vunpack.c.h.b16 %v4402
    %v6479 = vunpack.c.l.b16 %v4403
    %v6480 = vunpack.c.h.b16 %v4403
    %v6481 = vunpack.c.l.b16 %v4404
    %v6482 = vunpack.c.h.b16 %v4404
    %v6483 = vunpack.c.l.b16 %v4405
    %v6484 = vunpack.c.h.b16 %v4405
    %v6485 = vunpack.c.l.b16 %v4406
    %v6486 = vunpack.c.h.b16 %v4406
    %v6487 = vunpack.c.l.b16 %v4407
    %v6488 = vunpack.c.h.b16 %v4407
    %v6489 = vunpack.c.l.b16 %v4408
    %v6490 = vunpack.c.h.b16 %v4408
    %v6491 = vunpack.c.l.b16 %v4409
    %v6492 = vunpack.c.h.b16 %v4409
    %v6493 = vunpack.c.l.b16 %v4410
    %v6494 = vunpack.c.h.b16 %v4410
    %v6495 = vunpack.c.l.b16 %v4411
    %v6496 = vunpack.c.h.b16 %v4411
    %v6497 = vunpack.c.l.b16 %v4412
    %v6498 = vunpack.c.h.b16 %v4412
    %v6499 = vunpack.c.l.b16 %v4413
    %v6500 = vunpack.c.h.b16 %v4413
    %v6501 = vunpack.c.l.b16 %v4414
    %v6502 = vunpack.c.h.b16 %v4414
    %v6503 = vunpack.c.l.b16 %v4415
    %v6504 = vunpack.c.h.b16 %v4415
    %v6505 = vunpack.c.l.b16 %v4416
    %v6506 = vunpack.c.h.b16 %v4416
    %v6507 = vunpack.c.l.b16 %v4417
    %v6508 = vunpack.c.h.b16 %v4417
    %v6509 = vunpack.c.l.b16 %v4418
    %v6510 = vunpack.c.h.b16 %v4418
    %v6511 = vunpack.c.l.b16 %v4419
    %v6512 = vunpack.c.h.b16 %v4419
    %v6513 = vunpack.c.l.b16 %v4420
    %v6514 = vunpack.c.h.b16 %v4420
    %v6515 = vunpack.c.l.b16 %v4421
    %v6516 = vunpack.c.h.b16 %v4421
    %v6517 = vunpack.c.l.b16 %v4422
    %v6518 = vunpack.c.h.b16 %v4422
    %v6519 = vunpack.c.l.b16 %v4423
    %v6520 = vunpack.c.h.b16 %v4423
    %v6521 = vunpack.c.l.b16 %v4424
    %v6522 = vunpack.c.h.b16 %v4424
    %v6523 = vunpack.c.l.b16 %v4425
    %v6524 = vunpack.c.h.b16 %v4425
    %v6525 = vunpack.c.l.b16 %v4426
    %v6526 = vunpack.c.h.b16 %v4426
    %v6527 = vunpack.c.l.b16 %v4427
    %v6528 = vunpack.c.h.b16 %v4427
    %v6529 = vunpack.c.l.b16 %v4428
    %v6530 = vunpack.c.h.b16 %v4428
    %v6531 = vunpack.c.l.b16 %v4429
    %v6532 = vunpack.c.h.b16 %v4429
    %v6533 = vunpack.c.l.b16 %v4430
    %v6534 = vunpack.c.h.b16 %v4430
    %v6535 = vunpack.c.l.b16 %v4431
    %v6536 = vunpack.c.h.b16 %v4431
    %v6537 = vunpack.c.l.b16 %v4432
    %v6538 = vunpack.c.h.b16 %v4432
    %v6539 = vunpack.c.l.b16 %v4433
    %v6540 = vunpack.c.h.b16 %v4433
    %v6541 = vunpack.c.l.b16 %v4434
    %v6542 = vunpack.c.h.b16 %v4434
    %v6543 = vunpack.c.l.b16 %v4435
    %v6544 = vunpack.c.h.b16 %v4435
    %v6545 = vunpack.c.l.b16 %v4436
    %v6546 = vunpack.c.h.b16 %v4436
    %v6547 = vunpack.c.l.b16 %v4437
    %v6548 = vunpack.c.h.b16 %v4437
    %v6549 = vunpack.c.l.b16 %v4438
    %v6550 = vunpack.c.h.b16 %v4438
    %v6551 = vunpack.c.l.b16 %v4439
    %v6552 = vunpack.c.h.b16 %v4439
    %v6553 = vunpack.c.l.b16 %v4440
    %v6554 = vunpack.c.h.b16 %v4440
    %v6555 = vunpack.c.l.b16 %v4441
    %v6556 = vunpack.c.h.b16 %v4441
    %v6557 = vunpack.c.l.b16 %v4442
    %v6558 = vunpack.c.h.b16 %v4442
    %v6559 = vunpack.c.l.b16 %v4443
    %v6560 = vunpack.c.h.b16 %v4443
    %v6561 = vunpack.c.l.b16 %v4444
    %v6562 = vunpack.c.h.b16 %v4444
    %v6563 = vunpack.c.l.b16 %v4445
    %v6564 = vunpack.c.h.b16 %v4445
    %v6565 = vunpack.c.l.b16 %v4446
    %v6566 = vunpack.c.h.b16 %v4446
    %v6567 = vunpack.c.l.b16 %v4447
    %v6568 = vunpack.c.h.b16 %v4447
    %v6569 = vunpack.c.l.b16 %v4448
    %v6570 = vunpack.c.h.b16 %v4448
    %v6571 = vunpack.c.l.b16 %v4449
    %v6572 = vunpack.c.h.b16 %v4449
    %v6573 = vunpack.c.l.b16 %v4450
    %v6574 = vunpack.c.h.b16 %v4450
    %v6575 = vunpack.c.l.b16 %v4451
    %v6576 = vunpack.c.h.b16 %v4451
    %v6577 = vunpack.c.l.b16 %v4452
    %v6578 = vunpack.c.h.b16 %v4452
    %v6579 = vunpack.c.l.b16 %v4453
    %v6580 = vunpack.c.h.b16 %v4453
    %v6581 = vunpack.c.l.b16 %v4454
    %v6582 = vunpack.c.h.b16 %v4454
    %v6583 = vunpack.c.l.b16 %v4455
    %v6584 = vunpack.c.h.b16 %v4455
    %v6585 = vunpack.c.l.b16 %v4456
    %v6586 = vunpack.c.h.b16 %v4456
    %v6587 = vunpack.c.l.b16 %v4457
    %v6588 = vunpack.c.h.b16 %v4457
    %v6589 = vunpack.c.l.b16 %v4458
    %v6590 = vunpack.c.h.b16 %v4458
    %v6591 = vunpack.c.l.b16 %v4459
    %v6592 = vunpack.c.h.b16 %v4459
    %v6593 = vunpack.c.l.b16 %v4460
    %v6594 = vunpack.c.h.b16 %v4460
    %v6595 = vunpack.c.l.b16 %v4461
    %v6596 = vunpack.c.h.b16 %v4461
    %v6597 = vunpack.c.l.b16 %v4462
    %v6598 = vunpack.c.h.b16 %v4462
    %v6599 = vunpack.c.l.b16 %v4463
    %v6600 = vunpack.c.h.b16 %v4463
    %v6601 = vunpack.c.l.b16 %v4464
    %v6602 = vunpack.c.h.b16 %v4464
    %v6603 = vunpack.c.l.b16 %v4465
    %v6604 = vunpack.c.h.b16 %v4465
    %v6605 = vunpack.c.l.b16 %v4466
    %v6606 = vunpack.c.h.b16 %v4466
    %v6607 = vunpack.c.l.b16 %v4467
    %v6608 = vunpack.c.h.b16 %v4467
    %v6609 = vunpack.c.l.b16 %v4468
    %v6610 = vunpack.c.h.b16 %v4468
    %v6611 = vunpack.c.l.b16 %v4469
    %v6612 = vunpack.c.h.b16 %v4469
    %v6613 = vunpack.c.l.b16 %v4470
    %v6614 = vunpack.c.h.b16 %v4470
    %v6615 = vunpack.c.l.b16 %v4471
    %v6616 = vunpack.c.h.b16 %v4471
    %v6617 = vunpack.c.l.b16 %v4472
    %v6618 = vunpack.c.h.b16 %v4472
    %v6619 = vunpack.c.l.b16 %v4473
    %v6620 = vunpack.c.h.b16 %v4473
    %v6621 = vunpack.c.l.b16 %v4474
    %v6622 = vunpack.c.h.b16 %v4474
    %v6623 = vunpack.c.l.b16 %v4475
    %v6624 = vunpack.c.h.b16 %v4475
    %v6625 = vunpack.c.l.b16 %v4476
    %v6626 = vunpack.c.h.b16 %v4476
    %v6627 = vunpack.c.l.b16 %v4477
    %v6628 = vunpack.c.h.b16 %v4477
    %v6629 = vunpack.c.l.b16 %v4478
    %v6630 = vunpack.c.h.b16 %v4478
    %v6631 = vunpack.c.l.b16 %v4479
    %v6632 = vunpack.c.h.b16 %v4479
    %v6633 = vunpack.c.l.b16 %v4480
    %v6634 = vunpack.c.h.b16 %v4480
    %v6635 = vunpack.c.l.b16 %v4481
    %v6636 = vunpack.c.h.b16 %v4481
    %v6637 = vunpack.c.l.b16 %v4482
    %v6638 = vunpack.c.h.b16 %v4482
    %v6639 = vunpack.c.l.b16 %v4483
    %v6640 = vunpack.c.h.b16 %v4483
    %v6641 = vunpack.c.l.b16 %v4484
    %v6642 = vunpack.c.h.b16 %v4484
    %v6643 = vunpack.c.l.b16 %v4485
    %v6644 = vunpack.c.h.b16 %v4485
    %v6645 = vunpack.c.l.b16 %v4486
    %v6646 = vunpack.c.h.b16 %v4486
    %v6647 = vunpack.c.l.b16 %v4487
    %v6648 = vunpack.c.h.b16 %v4487
    %v6649 = vunpack.c.l.b16 %v4488
    %v6650 = vunpack.c.h.b16 %v4488
    %v6651 = vunpack.c.l.b16 %v4489
    %v6652 = vunpack.c.h.b16 %v4489
    %v6653 = vunpack.c.l.b16 %v4490
    %v6654 = vunpack.c.h.b16 %v4490
    %v6655 = vunpack.c.l.b16 %v4491
    %v6656 = vunpack.c.h.b16 %v4491
    %v6657 = vunpack.c.l.b16 %v4492
    %v6658 = vunpack.c.h.b16 %v4492
    %v6659 = vunpack.c.l.b16 %v4493
    %v6660 = vunpack.c.h.b16 %v4493
    %v6661 = vunpack.c.l.b16 %v4494
    %v6662 = vunpack.c.h.b16 %v4494
    %v6663 = vunpack.c.l.b16 %v4495
    %v6664 = vunpack.c.h.b16 %v4495
    %v6665 = vunpack.c.l.b16 %v4496
    %v6666 = vunpack.c.h.b16 %v4496
    %v6667 = vunpack.c.l.b16 %v4497
    %v6668 = vunpack.c.h.b16 %v4497
    %v6669 = vunpack.c.l.b16 %v4498
    %v6670 = vunpack.c.h.b16 %v4498
    %v6671 = vunpack.c.l.b16 %v4499
    %v6672 = vunpack.c.h.b16 %v4499
    %v6673 = vunpack.c.l.b16 %v4500
    %v6674 = vunpack.c.h.b16 %v4500
    %v6675 = vunpack.c.l.b16 %v4501
    %v6676 = vunpack.c.h.b16 %v4501
    %v6677 = vunpack.c.l.b16 %v4502
    %v6678 = vunpack.c.h.b16 %v4502
    %v6679 = vunpack.c.l.b16 %v4503
    %v6680 = vunpack.c.h.b16 %v4503
    %v6681 = vunpack.c.l.b16 %v4504
    %v6682 = vunpack.c.h.b16 %v4504
    %v6683 = vunpack.c.l.b16 %v4505
    %v6684 = vunpack.c.h.b16 %v4505
    %v6685 = vunpack.c.l.b16 %v4506
    %v6686 = vunpack.c.h.b16 %v4506
    %v6687 = vunpack.c.l.b16 %v4507
    %v6688 = vunpack.c.h.b16 %v4507
    %v6689 = vunpack.c.l.b16 %v4508
    %v6690 = vunpack.c.h.b16 %v4508
    %v6691 = vunpack.c.l.b16 %v4509
    %v6692 = vunpack.c.h.b16 %v4509
    %v6693 = vunpack.c.l.b16 %v4510
    %v6694 = vunpack.c.h.b16 %v4510
    %v6695 = vunpack.c.l.b16 %v4511
    %v6696 = vunpack.c.h.b16 %v4511
    %v6697 = vunpack.c.l.b16 %v4512
    %v6698 = vunpack.c.h.b16 %v4512
    %v6699 = vunpack.c.l.b16 %v4513
    %v6700 = vunpack.c.h.b16 %v4513
    %v6701 = vunpack.c.l.b16 %v4514
    %v6702 = vunpack.c.h.b16 %v4514
    %v6703 = vunpack.c.l.b16 %v4515
    %v6704 = vunpack.c.h.b16 %v4515
    %v6705 = vunpack.c.l.b16 %v4516
    %v6706 = vunpack.c.h.b16 %v4516
    %v6707 = vunpack.c.l.b16 %v4517
    %v6708 = vunpack.c.h.b16 %v4517
    %v6709 = vunpack.c.l.b16 %v4518
    %v6710 = vunpack.c.h.b16 %v4518
    %v6711 = vunpack.c.l.b16 %v4519
    %v6712 = vunpack.c.h.b16 %v4519
    %v6713 = vunpack.c.l.b16 %v4520
    %v6714 = vunpack.c.h.b16 %v4520
    %v6715 = vunpack.c.l.b16 %v4521
    %v6716 = vunpack.c.h.b16 %v4521
    %v6717 = vunpack.c.l.b16 %v4522
    %v6718 = vunpack.c.h.b16 %v4522
    %v6719 = vunpack.c.l.b16 %v4523
    %v6720 = vunpack.c.h.b16 %v4523
    %v6721 = vunpack.c.l.b16 %v4524
    %v6722 = vunpack.c.h.b16 %v4524
    %v6723 = vunpack.c.l.b16 %v4525
    %v6724 = vunpack.c.h.b16 %v4525
    %v6725 = vunpack.c.l.b16 %v4526
    %v6726 = vunpack.c.h.b16 %v4526
    %v6727 = vunpack.c.l.b16 %v4527
    %v6728 = vunpack.c.h.b16 %v4527
    %v6729 = vunpack.c.l.b16 %v4528
    %v6730 = vunpack.c.h.b16 %v4528
    %v6731 = vunpack.c.l.b16 %v4529
    %v6732 = vunpack.c.h.b16 %v4529
    %v6733 = vunpack.c.l.b16 %v4530
    %v6734 = vunpack.c.h.b16 %v4530
    %v6735 = vunpack.c.l.b16 %v4531
    %v6736 = vunpack.c.h.b16 %v4531
    %v6737 = vunpack.c.l.b16 %v4532
    %v6738 = vunpack.c.h.b16 %v4532
    %v6739 = vunpack.c.l.b16 %v4533
    %v6740 = vunpack.c.h.b16 %v4533
    %v6741 = vunpack.c.l.b16 %v4534
    %v6742 = vunpack.c.h.b16 %v4534
    %v6743 = vunpack.c.l.b16 %v4535
    %v6744 = vunpack.c.h.b16 %v4535
    %v6745 = vunpack.c.l.b16 %v4536
    %v6746 = vunpack.c.h.b16 %v4536
    %v6747 = vunpack.c.l.b16 %v4537
    %v6748 = vunpack.c.h.b16 %v4537
    %v6749 = vunpack.c.l.b16 %v4538
    %v6750 = vunpack.c.h.b16 %v4538
    %v6751 = vunpack.c.l.b16 %v4539
    %v6752 = vunpack.c.h.b16 %v4539
    %v6753 = vunpack.c.l.b16 %v4540
    %v6754 = vunpack.c.h.b16 %v4540
    %v6755 = vunpack.c.l.b16 %v4541
    %v6756 = vunpack.c.h.b16 %v4541
    %v6757 = vunpack.c.l.b16 %v4542
    %v6758 = vunpack.c.h.b16 %v4542
    %v6759 = vunpack.c.l.b16 %v4543
    %v6760 = vunpack.c.h.b16 %v4543
    %v6761 = vunpack.c.l.b16 %v4544
    %v6762 = vunpack.c.h.b16 %v4544
    %v6763 = vunpack.c.l.b16 %v4545
    %v6764 = vunpack.c.h.b16 %v4545
    %v6765 = vunpack.c.l.b16 %v4546
    %v6766 = vunpack.c.h.b16 %v4546
    %v6767 = vunpack.c.l.b16 %v4547
    %v6768 = vunpack.c.h.b16 %v4547
    %v6769 = vunpack.c.l.b16 %v4548
    %v6770 = vunpack.c.h.b16 %v4548
    %v6771 = vunpack.c.l.b16 %v4549
    %v6772 = vunpack.c.h.b16 %v4549
    %v6773 = vunpack.c.l.b16 %v4550
    %v6774 = vunpack.c.h.b16 %v4550
    %v6775 = vunpack.c.l.b16 %v4551
    %v6776 = vunpack.c.h.b16 %v4551
    %v6777 = vunpack.c.l.b16 %v4552
    %v6778 = vunpack.c.h.b16 %v4552
    %v6779 = vunpack.c.l.b16 %v4553
    %v6780 = vunpack.c.h.b16 %v4553
    %v6781 = vunpack.c.l.b16 %v4554
    %v6782 = vunpack.c.h.b16 %v4554
    %v6783 = vunpack.c.l.b16 %v4555
    %v6784 = vunpack.c.h.b16 %v4555
    %v6785 = vunpack.c.l.b16 %v4556
    %v6786 = vunpack.c.h.b16 %v4556
    %v6787 = vunpack.c.l.b16 %v4557
    %v6788 = vunpack.c.h.b16 %v4557
    %v6789 = vunpack.c.l.b16 %v4558
    %v6790 = vunpack.c.h.b16 %v4558
    %v6791 = vunpack.c.l.b16 %v4559
    %v6792 = vunpack.c.h.b16 %v4559
    %v6793 = vunpack.c.l.b16 %v4560
    %v6794 = vunpack.c.h.b16 %v4560
    %v6795 = vunpack.c.l.b16 %v4561
    %v6796 = vunpack.c.h.b16 %v4561
    %v6797 = vunpack.c.l.b16 %v4562
    %v6798 = vunpack.c.h.b16 %v4562
    %v6799 = vunpack.c.l.b16 %v4563
    %v6800 = vunpack.c.h.b16 %v4563
    %v6801 = vunpack.c.l.b16 %v4564
    %v6802 = vunpack.c.h.b16 %v4564
    %v6803 = vunpack.c.l.b16 %v4565
    %v6804 = vunpack.c.h.b16 %v4565
    %v6805 = vunpack.c.l.b16 %v4566
    %v6806 = vunpack.c.h.b16 %v4566
    %v6807 = vunpack.c.l.b16 %v4567
    %v6808 = vunpack.c.h.b16 %v4567
    %v6809 = vunpack.c.l.b16 %v4568
    %v6810 = vunpack.c.h.b16 %v4568
    %v6811 = vunpack.c.l.b16 %v4569
    %v6812 = vunpack.c.h.b16 %v4569
    %v6813 = vunpack.c.l.b16 %v4570
    %v6814 = vunpack.c.h.b16 %v4570
    %v6815 = vunpack.c.l.b16 %v4571
    %v6816 = vunpack.c.h.b16 %v4571
    %v6817 = vunpack.c.l.b16 %v4572
    %v6818 = vunpack.c.h.b16 %v4572
    %v6819 = vunpack.c.l.b16 %v4573
    %v6820 = vunpack.c.h.b16 %v4573
    %v6821 = vunpack.c.l.b16 %v4574
    %v6822 = vunpack.c.h.b16 %v4574
    %v6823 = vunpack.c.l.b16 %v4575
    %v6824 = vunpack.c.h.b16 %v4575
    %v6825 = vunpack.c.l.b16 %v4576
    %v6826 = vunpack.c.h.b16 %v4576
    %v6827 = vunpack.c.l.b16 %v4577
    %v6828 = vunpack.c.h.b16 %v4577
    %v6829 = vunpack.c.l.b16 %v4578
    %v6830 = vunpack.c.h.b16 %v4578
    %v6831 = vunpack.c.l.b16 %v4579
    %v6832 = vunpack.c.h.b16 %v4579
    %v6833 = vunpack.c.l.b16 %v4580
    %v6834 = vunpack.c.h.b16 %v4580
    %v6835 = vunpack.c.l.b16 %v4581
    %v6836 = vunpack.c.h.b16 %v4581
    %v6837 = vunpack.c.l.b16 %v4582
    %v6838 = vunpack.c.h.b16 %v4582
    %v6839 = vunpack.c.l.b16 %v4583
    %v6840 = vunpack.c.h.b16 %v4583
    %v6841 = vunpack.c.l.b16 %v4584
    %v6842 = vunpack.c.h.b16 %v4584
    %v6843 = vunpack.c.l.b16 %v4585
    %v6844 = vunpack.c.h.b16 %v4585
    %v6845 = vunpack.c.l.b16 %v4586
    %v6846 = vunpack.c.h.b16 %v4586
    %v6847 = vunpack.c.l.b16 %v4587
    %v6848 = vunpack.c.h.b16 %v4587
    %v6849 = vunpack.c.l.b16 %v4588
    %v6850 = vunpack.c.h.b16 %v4588
    %v6851 = vunpack.c.l.b16 %v4589
    %v6852 = vunpack.c.h.b16 %v4589
    %v6853 = vunpack.c.l.b16 %v4590
    %v6854 = vunpack.c.h.b16 %v4590
    %v6855 = vunpack.c.l.b16 %v4591
    %v6856 = vunpack.c.h.b16 %v4591
    %v6857 = vunpack.c.l.b16 %v4592
    %v6858 = vunpack.c.h.b16 %v4592
    %v6859 = vunpack.c.l.b16 %v4593
    %v6860 = vunpack.c.h.b16 %v4593
    %v6861 = vunpack.c.l.b16 %v4594
    %v6862 = vunpack.c.h.b16 %v4594
    %v6863 = vunpack.c.l.b16 %v4595
    %v6864 = vunpack.c.h.b16 %v4595
    %v6865 = vunpack.c.l.b16 %v4596
    %v6866 = vunpack.c.h.b16 %v4596
    %v6867 = vunpack.c.l.b16 %v4597
    %v6868 = vunpack.c.h.b16 %v4597
    %v6869 = vunpack.c.l.b16 %v4598
    %v6870 = vunpack.c.h.b16 %v4598
    %v6871 = vunpack.c.l.b16 %v4599
    %v6872 = vunpack.c.h.b16 %v4599
    %v6873 = vunpack.c.l.b16 %v4600
    %v6874 = vunpack.c.h.b16 %v4600
    %v6875 = vunpack.c.l.b16 %v4601
    %v6876 = vunpack.c.h.b16 %v4601
    %v6877 = vunpack.c.l.b16 %v4602
    %v6878 = vunpack.c.h.b16 %v4602
    %v6879 = vunpack.c.l.b16 %v4603
    %v6880 = vunpack.c.h.b16 %v4603
    %v6881 = vunpack.c.l.b16 %v4604
    %v6882 = vunpack.c.h.b16 %v4604
    %v6883 = vunpack.c.l.b16 %v4605
    %v6884 = vunpack.c.h.b16 %v4605
    %v6885 = vunpack.c.l.b16 %v4606
    %v6886 = vunpack.c.h.b16 %v4606
    %v6887 = vunpack.c.l.b16 %v4607
    %v6888 = vunpack.c.h.b16 %v4607
    %v6889 = vunpack.c.l.b16 %v4608
    %v6890 = vunpack.c.h.b16 %v4608
    %v6891 = vunpack.c.l.b16 %v4609
    %v6892 = vunpack.c.h.b16 %v4609
    %v6893 = vunpack.c.l.b16 %v4610
    %v6894 = vunpack.c.h.b16 %v4610
    %v6895 = vunpack.c.l.b16 %v4611
    %v6896 = vunpack.c.h.b16 %v4611
    %v6897 = vunpack.c.l.b16 %v4612
    %v6898 = vunpack.c.h.b16 %v4612
    %v6899 = vunpack.c.l.b16 %v4613
    %v6900 = vunpack.c.h.b16 %v4613
    %v6901 = vunpack.c.l.b16 %v4614
    %v6902 = vunpack.c.h.b16 %v4614
    %v6903 = vunpack.c.l.b16 %v4615
    %v6904 = vunpack.c.h.b16 %v4615
    %v6905 = vunpack.c.l.b16 %v4616
    %v6906 = vunpack.c.h.b16 %v4616
    %v6907 = vunpack.c.l.b16 %v4617
    %v6908 = vunpack.c.h.b16 %v4617
    %v6909 = vunpack.c.l.b16 %v4618
    %v6910 = vunpack.c.h.b16 %v4618
    %v6911 = vunpack.c.l.b16 %v4619
    %v6912 = vunpack.c.h.b16 %v4619
    %v6913 = vunpack.c.l.b16 %v4620
    %v6914 = vunpack.c.h.b16 %v4620
    %v6915 = vunpack.c.l.b16 %v4621
    %v6916 = vunpack.c.h.b16 %v4621
    %v6917 = vunpack.c.l.b16 %v4622
    %v6918 = vunpack.c.h.b16 %v4622
    %v6919 = vunpack.c.l.b16 %v4623
    %v6920 = vunpack.c.h.b16 %v4623
    %v6921 = vunpack.c.l.b16 %v4624
    %v6922 = vunpack.c.h.b16 %v4624
    %v6923 = vunpack.c.l.b16 %v4625
    %v6924 = vunpack.c.h.b16 %v4625
    %v6925 = vunpack.c.l.b16 %v4626
    %v6926 = vunpack.c.h.b16 %v4626
    %v6927 = vunpack.c.l.b16 %v4627
    %v6928 = vunpack.c.h.b16 %v4627
    %v6929 = vunpack.c.l.b16 %v4628
    %v6930 = vunpack.c.h.b16 %v4628
    %v6931 = vunpack.c.l.b16 %v4629
    %v6932 = vunpack.c.h.b16 %v4629
    %v6933 = vunpack.c.l.b16 %v4630
    %v6934 = vunpack.c.h.b16 %v4630
    %v6935 = vunpack.c.l.b16 %v4631
    %v6936 = vunpack.c.h.b16 %v4631
    %v6937 = vunpack.c.l.b16 %v4632
    %v6938 = vunpack.c.h.b16 %v4632
    %v6939 = vunpack.c.l.b16 %v4633
    %v6940 = vunpack.c.h.b16 %v4633
    %v6941 = vunpack.c.l.b16 %v4634
    %v6942 = vunpack.c.h.b16 %v4634
    %v6943 = vunpack.c.l.b16 %v4635
    %v6944 = vunpack.c.h.b16 %v4635
    %v6945 = vunpack.c.l.b16 %v4636
    %v6946 = vunpack.c.h.b16 %v4636
    %v6947 = vunpack.c.l.b16 %v4637
    %v6948 = vunpack.c.h.b16 %v4637
    %v6949 = vunpack.c.l.b16 %v4638
    %v6950 = vunpack.c.h.b16 %v4638
    %v6951 = vunpack.c.l.b16 %v4639
    %v6952 = vunpack.c.h.b16 %v4639
    %v6953 = vunpack.c.l.b16 %v4640
    %v6954 = vunpack.c.h.b16 %v4640
    %v6955 = vunpack.c.l.b16 %v4641
    %v6956 = vunpack.c.h.b16 %v4641
    %v6957 = vunpack.c.l.b16 %v4642
    %v6958 = vunpack.c.h.b16 %v4642
    %v6959 = vunpack.c.l.b16 %v4643
    %v6960 = vunpack.c.h.b16 %v4643
    %v6961 = vunpack.c.l.b16 %v4644
    %v6962 = vunpack.c.h.b16 %v4644
    %v6963 = vunpack.c.l.b16 %v4645
    %v6964 = vunpack.c.h.b16 %v4645
    %v6965 = vunpack.c.l.b16 %v4646
    %v6966 = vunpack.c.h.b16 %v4646
    %v6967 = vunpack.c.l.b16 %v4647
    %v6968 = vunpack.c.h.b16 %v4647
    %v6969 = vunpack.c.l.b16 %v4648
    %v6970 = vunpack.c.h.b16 %v4648
    %v6971 = vunpack.c.l.b16 %v4649
    %v6972 = vunpack.c.h.b16 %v4649
    %v6973 = vunpack.c.l.b16 %v4650
    %v6974 = vunpack.c.h.b16 %v4650
    %v6975 = vunpack.c.l.b16 %v4651
    %v6976 = vunpack.c.h.b16 %v4651
    %v6977 = vunpack.c.l.b16 %v4652
    %v6978 = vunpack.c.h.b16 %v4652
    %v6979 = vunpack.c.l.b16 %v4653
    %v6980 = vunpack.c.h.b16 %v4653
    %v6981 = vunpack.c.l.b16 %v4654
    %v6982 = vunpack.c.h.b16 %v4654
    %v6983 = vunpack.c.l.b16 %v4655
    %v6984 = vunpack.c.h.b16 %v4655
    %v6985 = vunpack.c.l.b16 %v4656
    %v6986 = vunpack.c.h.b16 %v4656
    %v6987 = vunpack.c.l.b16 %v4657
    %v6988 = vunpack.c.h.b16 %v4657
    %v6989 = vunpack.c.l.b16 %v4658
    %v6990 = vunpack.c.h.b16 %v4658
    %v6991 = vunpack.c.l.b16 %v4659
    %v6992 = vunpack.c.h.b16 %v4659
    %v6993 = vunpack.c.l.b16 %v4660
    %v6994 = vunpack.c.h.b16 %v4660
    %v6995 = vunpack.c.l.b16 %v4661
    %v6996 = vunpack.c.h.b16 %v4661
    %v6997 = vunpack.c.l.b16 %v4662
    %v6998 = vunpack.c.h.b16 %v4662
    %v6999 = vunpack.c.l.b16 %v4663
    %v7000 = vunpack.c.h.b16 %v4663
    %v7001 = vunpack.c.l.b16 %v4664
    %v7002 = vunpack.c.h.b16 %v4664
    %v7003 = vunpack.c.l.b16 %v4665
    %v7004 = vunpack.c.h.b16 %v4665
    %v7005 = vunpack.c.l.b16 %v4666
    %v7006 = vunpack.c.h.b16 %v4666
    %v7007 = vunpack.c.l.b16 %v4667
    %v7008 = vunpack.c.h.b16 %v4667
    %v7009 = vunpack.c.l.b16 %v4668
    %v7010 = vunpack.c.h.b16 %v4668
    %v7011 = vunpack.c.l.b16 %v4669
    %v7012 = vunpack.c.h.b16 %v4669
    %v7013 = vunpack.c.l.b16 %v4670
    %v7014 = vunpack.c.h.b16 %v4670
    %v7015 = vunpack.c.l.b16 %v4671
    %v7016 = vunpack.c.h.b16 %v4671
    %v7017 = vunpack.c.l.b16 %v4672
    %v7018 = vunpack.c.h.b16 %v4672
    %v7019 = vunpack.c.l.b16 %v4673
    %v7020 = vunpack.c.h.b16 %v4673
    %v7021 = vunpack.c.l.b16 %v4674
    %v7022 = vunpack.c.h.b16 %v4674
    %v7023 = vunpack.c.l.b16 %v4675
    %v7024 = vunpack.c.h.b16 %v4675
    %v7025 = vunpack.c.l.b16 %v4676
    %v7026 = vunpack.c.h.b16 %v4676
    %v7027 = vunpack.c.l.b16 %v4677
    %v7028 = vunpack.c.h.b16 %v4677
    %v7029 = vunpack.c.l.b16 %v4678
    %v7030 = vunpack.c.h.b16 %v4678
    %v7031 = vunpack.c.l.b16 %v4679
    %v7032 = vunpack.c.h.b16 %v4679
    %v7033 = vunpack.c.l.b16 %v4680
    %v7034 = vunpack.c.h.b16 %v4680
    %v7035 = vunpack.c.l.b16 %v4681
    %v7036 = vunpack.c.h.b16 %v4681
    %v7037 = vunpack.c.l.b16 %v4682
    %v7038 = vunpack.c.h.b16 %v4682
    %v7039 = vunpack.c.l.b16 %v4683
    %v7040 = vunpack.c.h.b16 %v4683
    %v7041 = vunpack.c.l.b16 %v4684
    %v7042 = vunpack.c.h.b16 %v4684
    %v7043 = vunpack.c.l.b16 %v4685
    %v7044 = vunpack.c.h.b16 %v4685
    %v7045 = vunpack.c.l.b16 %v4686
    %v7046 = vunpack.c.h.b16 %v4686
    %v7047 = vunpack.c.l.b16 %v4687
    %v7048 = vunpack.c.h.b16 %v4687
    %v7049 = vunpack.c.l.b16 %v4688
    %v7050 = vunpack.c.h.b16 %v4688
    %v7051 = vunpack.c.l.b16 %v4689
    %v7052 = vunpack.c.h.b16 %v4689
    %v7053 = vunpack.c.l.b16 %v4690
    %v7054 = vunpack.c.h.b16 %v4690
    %v7055 = vunpack.c.l.b16 %v4691
    %v7056 = vunpack.c.h.b16 %v4691
    %v7057 = vunpack.c.l.b16 %v4692
    %v7058 = vunpack.c.h.b16 %v4692
    %v7059 = vunpack.c.l.b16 %v4693
    %v7060 = vunpack.c.h.b16 %v4693
    %v7061 = vunpack.c.l.b16 %v4694
    %v7062 = vunpack.c.h.b16 %v4694
    %v7063 = vunpack.c.l.b16 %v4695
    %v7064 = vunpack.c.h.b16 %v4695
    %v7065 = vunpack.c.l.b16 %v4696
    %v7066 = vunpack.c.h.b16 %v4696
    %v7067 = vunpack.c.l.b16 %v4697
    %v7068 = vunpack.c.h.b16 %v4697
    %v7069 = vunpack.c.l.b16 %v4698
    %v7070 = vunpack.c.h.b16 %v4698
    %v7071 = vunpack.c.l.b16 %v4699
    %v7072 = vunpack.c.h.b16 %v4699
    %v7073 = vunpack.c.l.b16 %v4700
    %v7074 = vunpack.c.h.b16 %v4700
    %v7075 = vunpack.c.l.b16 %v4701
    %v7076 = vunpack.c.h.b16 %v4701
    %v7077 = vunpack.c.l.b16 %v4702
    %v7078 = vunpack.c.h.b16 %v4702
    %v7079 = vunpack.c.l.b16 %v4703
    %v7080 = vunpack.c.h.b16 %v4703
    %v7081 = vunpack.c.l.b16 %v4704
    %v7082 = vunpack.c.h.b16 %v4704
    %v7083 = vunpack.c.l.b16 %v4705
    %v7084 = vunpack.c.h.b16 %v4705
    %v7085 = vunpack.c.l.b16 %v4706
    %v7086 = vunpack.c.h.b16 %v4706
    %v7087 = vunpack.c.l.b16 %v4707
    %v7088 = vunpack.c.h.b16 %v4707
    %v7089 = vunpack.c.l.b16 %v4708
    %v7090 = vunpack.c.h.b16 %v4708
    %v7091 = vunpack.c.l.b16 %v4709
    %v7092 = vunpack.c.h.b16 %v4709
    %v7093 = vunpack.c.l.b16 %v4710
    %v7094 = vunpack.c.h.b16 %v4710
    %v7095 = vunpack.c.l.b16 %v4711
    %v7096 = vunpack.c.h.b16 %v4711
    %v7097 = vunpack.c.l.b16 %v4712
    %v7098 = vunpack.c.h.b16 %v4712
    %v7099 = vunpack.c.l.b16 %v4713
    %v7100 = vunpack.c.h.b16 %v4713
    %v7101 = vunpack.c.l.b16 %v4714
    %v7102 = vunpack.c.h.b16 %v4714
    %v7103 = vunpack.c.l.b16 %v4715
    %v7104 = vunpack.c.h.b16 %v4715
    %v7105 = vunpack.c.l.b16 %v4716
    %v7106 = vunpack.c.h.b16 %v4716
    %v7107 = vunpack.c.l.b16 %v4717
    %v7108 = vunpack.c.h.b16 %v4717
    %v7109 = vunpack.c.l.b16 %v4718
    %v7110 = vunpack.c.h.b16 %v4718
    %v7111 = vunpack.c.l.b16 %v4719
    %v7112 = vunpack.c.h.b16 %v4719
    %v7113 = vunpack.c.l.b16 %v4720
    %v7114 = vunpack.c.h.b16 %v4720
    %v7115 = vunpack.c.l.b16 %v4721
    %v7116 = vunpack.c.h.b16 %v4721
    %v7117 = vunpack.c.l.b16 %v4722
    %v7118 = vunpack.c.h.b16 %v4722
    %v7119 = vunpack.c.l.b16 %v4723
    %v7120 = vunpack.c.h.b16 %v4723
    %v7121 = vunpack.c.l.b16 %v4724
    %v7122 = vunpack.c.h.b16 %v4724
    %v7123 = vunpack.c.l.b16 %v4725
    %v7124 = vunpack.c.h.b16 %v4725
    %v7125 = vunpack.c.l.b16 %v4726
    %v7126 = vunpack.c.h.b16 %v4726
    %v7127 = vunpack.c.l.b16 %v4727
    %v7128 = vunpack.c.h.b16 %v4727
    %v7129 = vunpack.c.l.b16 %v4728
    %v7130 = vunpack.c.h.b16 %v4728
    %v7131 = vunpack.c.l.b16 %v4729
    %v7132 = vunpack.c.h.b16 %v4729
    %v7133 = vunpack.c.l.b16 %v4730
    %v7134 = vunpack.c.h.b16 %v4730
    %v7135 = vunpack.c.l.b16 %v4731
    %v7136 = vunpack.c.h.b16 %v4731
    %v7137 = vunpack.c.l.b16 %v4732
    %v7138 = vunpack.c.h.b16 %v4732
    %v7139 = vunpack.c.l.b16 %v4733
    %v7140 = vunpack.c.h.b16 %v4733
    %v7141 = vunpack.c.l.b16 %v4734
    %v7142 = vunpack.c.h.b16 %v4734
    %v7143 = vunpack.c.l.b16 %v4735
    %v7144 = vunpack.c.h.b16 %v4735
    %v7145 = vunpack.c.l.b16 %v4736
    %v7146 = vunpack.c.h.b16 %v4736
    %v7147 = vunpack.c.l.b16 %v4737
    %v7148 = vunpack.c.h.b16 %v4737
    %v7149 = vunpack.c.l.b16 %v4738
    %v7150 = vunpack.c.h.b16 %v4738
    %v7151 = vunpack.c.l.b16 %v4739
    %v7152 = vunpack.c.h.b16 %v4739
    %v7153 = vunpack.c.l.b16 %v4740
    %v7154 = vunpack.c.h.b16 %v4740
    %v7155 = vunpack.c.l.b16 %v4741
    %v7156 = vunpack.c.h.b16 %v4741
    %v7157 = vunpack.c.l.b16 %v4742
    %v7158 = vunpack.c.h.b16 %v4742
    %v7159 = vunpack.c.l.b16 %v4743
    %v7160 = vunpack.c.h.b16 %v4743
    %v7161 = vunpack.c.l.b16 %v4744
    %v7162 = vunpack.c.h.b16 %v4744
    %v7163 = vunpack.c.l.b16 %v4745
    %v7164 = vunpack.c.h.b16 %v4745
    %v7165 = vunpack.c.l.b16 %v4746
    %v7166 = vunpack.c.h.b16 %v4746
    %v7167 = vunpack.c.l.b16 %v4747
    %v7168 = vunpack.c.h.b16 %v4747
    %v7169 = vunpack.c.l.b16 %v4748
    %v7170 = vunpack.c.h.b16 %v4748
    %v7171 = vunpack.c.l.b16 %v4749
    %v7172 = vunpack.c.h.b16 %v4749
    %v7173 = vunpack.c.l.b16 %v4750
    %v7174 = vunpack.c.h.b16 %v4750
    %v7175 = vunpack.c.l.b16 %v4751
    %v7176 = vunpack.c.h.b16 %v4751
    %v7177 = vunpack.c.l.b16 %v4752
    %v7178 = vunpack.c.h.b16 %v4752
    %v7179 = vunpack.c.l.b16 %v4753
    %v7180 = vunpack.c.h.b16 %v4753
    %v7181 = vunpack.c.l.b16 %v4754
    %v7182 = vunpack.c.h.b16 %v4754
    %v7183 = vunpack.c.l.b16 %v4755
    %v7184 = vunpack.c.h.b16 %v4755
    %v7185 = vunpack.c.l.b16 %v4756
    %v7186 = vunpack.c.h.b16 %v4756
    %v7187 = vunpack.c.l.b16 %v4757
    %v7188 = vunpack.c.h.b16 %v4757
    %v7189 = vunpack.c.l.b16 %v4758
    %v7190 = vunpack.c.h.b16 %v4758
    %v7191 = vunpack.c.l.b16 %v4759
    %v7192 = vunpack.c.h.b16 %v4759
    %v7193 = vunpack.c.l.b16 %v4760
    %v7194 = vunpack.c.h.b16 %v4760
    %v7195 = vunpack.c.l.b16 %v4761
    %v7196 = vunpack.c.h.b16 %v4761
    %v7197 = vunpack.c.l.b16 %v4762
    %v7198 = vunpack.c.h.b16 %v4762
    %v7199 = vunpack.c.l.b16 %v4763
    %v7200 = vunpack.c.h.b16 %v4763
    %v7201 = vunpack.c.l.b16 %v4764
    %v7202 = vunpack.c.h.b16 %v4764
    %v7203 = vunpack.c.l.b16 %v4765
    %v7204 = vunpack.c.h.b16 %v4765
    %v7205 = vunpack.c.l.b16 %v4766
    %v7206 = vunpack.c.h.b16 %v4766
    %v7207 = vunpack.c.l.b16 %v4767
    %v7208 = vunpack.c.h.b16 %v4767
    %v7209 = vunpack.c.l.b16 %v4768
    %v7210 = vunpack.c.h.b16 %v4768
    %v7211 = vunpack.c.l.b16 %v4769
    %v7212 = vunpack.c.h.b16 %v4769
    %v7213 = vunpack.c.l.b16 %v4770
    %v7214 = vunpack.c.h.b16 %v4770
    %v7215 = vunpack.c.l.b16 %v4771
    %v7216 = vunpack.c.h.b16 %v4771
    %v7217 = vunpack.c.l.b16 %v4772
    %v7218 = vunpack.c.h.b16 %v4772
    %v7219 = vunpack.c.l.b16 %v4773
    %v7220 = vunpack.c.h.b16 %v4773
    %v7221 = vunpack.c.l.b16 %v4774
    %v7222 = vunpack.c.h.b16 %v4774
    %v7223 = vunpack.c.l.b16 %v4775
    %v7224 = vunpack.c.h.b16 %v4775
    %v7225 = vunpack.c.l.b16 %v4776
    %v7226 = vunpack.c.h.b16 %v4776
    %v7227 = vunpack.c.l.b16 %v4777
    %v7228 = vunpack.c.h.b16 %v4777
    %v7229 = vunpack.c.l.b16 %v4778
    %v7230 = vunpack.c.h.b16 %v4778
    %v7231 = vunpack.c.l.b16 %v4779
    %v7232 = vunpack.c.h.b16 %v4779
    %v7233 = vunpack.c.l.b16 %v4780
    %v7234 = vunpack.c.h.b16 %v4780
    %v7235 = vpack.c.b16 %v5645, %v5635
    %v7236 = vpack.c.b16 %v5646, %v5636
    %v7237 = vpack.c.b16 %v5647, %v5637
    %v7238 = vpack.c.b16 %v5648, %v5638
    %v7239 = vpack.c.b16 %v5649, %v5639
    %v7240 = vpack.c.b16 %v5650, %v5640
    %v7241 = vpack.c.b16 %v5651, %v5641
    %v7242 = vpack.c.b16 %v5652, %v5642
    %v7243 = vpack.c.b16 %v5653, %v5643
    %v7244 = vpack.c.b16 %v5654, %v5644
    %v7245 = vpack.c.b16 %v5665, %v5655
    %v7246 = vpack.c.b16 %v5666, %v5656
    %v7247 = vpack.c.b16 %v5667, %v5657
    %v7248 = vpack.c.b16 %v5668, %v5658
    %v7249 = vpack.c.b16 %v5669, %v5659
    %v7250 = vpack.c.b16 %v5670, %v5660
    %v7251 = vpack.c.b16 %v5671, %v5661
    %v7252 = vpack.c.b16 %v5672, %v5662
    %v7253 = vpack.c.b16 %v5673, %v5663
    %v7254 = vpack.c.b16 %v5674, %v5664
    %v7255 = vpack.c.b16 %v5685, %v5675
    %v7256 = vpack.c.b16 %v5686, %v5676
    %v7257 = vpack.c.b16 %v5687, %v5677
    %v7258 = vpack.c.b16 %v5688, %v5678
    %v7259 = vpack.c.b16 %v5689, %v5679
    %v7260 = vpack.c.b16 %v5690, %v5680
    %v7261 = vpack.c.b16 %v5691, %v5681
    %v7262 = vpack.c.b16 %v5692, %v5682
    %v7263 = vpack.c.b16 %v5693, %v5683
    %v7264 = vpack.c.b16 %v5694, %v5684
    %v7265 = vpack.c.b16 %v5705, %v5695
    %v7266 = vpack.c.b16 %v5706, %v5696
    %v7267 = vpack.c.b16 %v5707, %v5697
    %v7268 = vpack.c.b16 %v5708, %v5698
    %v7269 = vpack.c.b16 %v5709, %v5699
    %v7270 = vpack.c.b16 %v5710, %v5700
    %v7271 = vpack.c.b16 %v5711, %v5701
    %v7272 = vpack.c.b16 %v5712, %v5702
    %v7273 = vpack.c.b16 %v5713, %v5703
    %v7274 = vpack.c.b16 %v5714, %v5704
    %v7275 = vpack.c.b16 %v5725, %v5715
    %v7276 = vpack.c.b16 %v5726, %v5716
    %v7277 = vpack.c.b16 %v5727, %v5717
    %v7278 = vpack.c.b16 %v5728, %v5718
    %v7279 = vpack.c.b16 %v5729, %v5719
    %v7280 = vpack.c.b16 %v5730, %v5720
    %v7281 = vpack.c.b16 %v5731, %v5721
    %v7282 = vpack.c.b16 %v5732, %v5722
    %v7283 = vpack.c.b16 %v5733, %v5723
    %v7284 = vpack.c.b16 %v5734, %v5724
    %v7285 = vpack.c.b16 %v5745, %v5735
    %v7286 = vpack.c.b16 %v5746, %v5736
    %v7287 = vpack.c.b16 %v5747, %v5737
    %v7288 = vpack.c.b16 %v5748, %v5738
    %v7289 = vpack.c.b16 %v5749, %v5739
    %v7290 = vpack.c.b16 %v5750, %v5740
    %v7291 = vpack.c.b16 %v5751, %v5741
    %v7292 = vpack.c.b16 %v5752, %v5742
    %v7293 = vpack.c.b16 %v5753, %v5743
    %v7294 = vpack.c.b16 %v5754, %v5744
    %v7295 = vpack.c.b16 %v5765, %v5755
    %v7296 = vpack.c.b16 %v5766, %v5756
    %v7297 = vpack.c.b16 %v5767, %v5757
    %v7298 = vpack.c.b16 %v5768, %v5758
    %v7299 = vpack.c.b16 %v5769, %v5759
    %v7300 = vpack.c.b16 %v5770, %v5760
    %v7301 = vpack.c.b16 %v5771, %v5761
    %v7302 = vpack.c.b16 %v5772, %v5762
    %v7303 = vpack.c.b16 %v5773, %v5763
    %v7304 = vpack.c.b16 %v5774, %v5764
    %v7305 = vpack.c.b16 %v5785, %v5775
    %v7306 = vpack.c.b16 %v5786, %v5776
    %v7307 = vpack.c.b16 %v5787, %v5777
    %v7308 = vpack.c.b16 %v5788, %v5778
    %v7309 = vpack.c.b16 %v5789, %v5779
    %v7310 = vpack.c.b16 %v5790, %v5780
    %v7311 = vpack.c.b16 %v5791, %v5781
    %v7312 = vpack.c.b16 %v5792, %v5782
    %v7313 = vpack.c.b16 %v5793, %v5783
    %v7314 = vpack.c.b16 %v5794, %v5784
    %v7315 = vpack.c.b16 %v5805, %v5795
    %v7316 = vpack.c.b16 %v5806, %v5796
    %v7317 = vpack.c.b16 %v5807, %v5797
    %v7318 = vpack.c.b16 %v5808, %v5798
    %v7319 = vpack.c.b16 %v5809, %v5799
    %v7320 = vpack.c.b16 %v5810, %v5800
    %v7321 = vpack.c.b16 %v5811, %v5801
    %v7322 = vpack.c.b16 %v5812, %v5802
    %v7323 = vpack.c.b16 %v5813, %v5803
    %v7324 = vpack.c.b16 %v5814, %v5804
    %v7325 = vpack.c.b16 %v5825, %v5815
    %v7326 = vpack.c.b16 %v5826, %v5816
    %v7327 = vpack.c.b16 %v5827, %v5817
    %v7328 = vpack.c.b16 %v5828, %v5818
    %v7329 = vpack.c.b16 %v5829, %v5819
    %v7330 = vpack.c.b16 %v5830, %v5820
    %v7331 = vpack.c.b16 %v5831, %v5821
    %v7332 = vpack.c.b16 %v5832, %v5822
    %v7333 = vpack.c.b16 %v5833, %v5823
    %v7334 = vpack.c.b16 %v5834, %v5824
    %v7335 = vpack.c.b16 %v5845, %v5835
    %v7336 = vpack.c.b16 %v5846, %v5836
    %v7337 = vpack.c.b16 %v5847, %v5837
    %v7338 = vpack.c.b16 %v5848, %v5838
    %v7339 = vpack.c.b16 %v5849, %v5839
    %v7340 = vpack.c.b16 %v5850, %v5840
    %v7341 = vpack.c.b16 %v5851, %v5841
    %v7342 = vpack.c.b16 %v5852, %v5842
    %v7343 = vpack.c.b16 %v5853, %v5843
    %v7344 = vpack.c.b16 %v5854, %v5844
    %v7345 = vpack.c.b16 %v5865, %v5855
    %v7346 = vpack.c.b16 %v5866, %v5856
    %v7347 = vpack.c.b16 %v5867, %v5857
    %v7348 = vpack.c.b16 %v5868, %v5858
    %v7349 = vpack.c.b16 %v5869, %v5859
    %v7350 = vpack.c.b16 %v5870, %v5860
    %v7351 = vpack.c.b16 %v5871, %v5861
    %v7352 = vpack.c.b16 %v5872, %v5862
    %v7353 = vpack.c.b16 %v5873, %v5863
    %v7354 = vpack.c.b16 %v5874, %v5864
    %v7355 = vpack.c.b16 %v5885, %v5875
    %v7356 = vpack.c.b16 %v5886, %v5876
    %v7357 = vpack.c.b16 %v5887, %v5877
    %v7358 = vpack.c.b16 %v5888, %v5878
    %v7359 = vpack.c.b16 %v5889, %v5879
    %v7360 = vpack.c.b16 %v5890, %v5880
    %v7361 = vpack.c.b16 %v5891, %v5881
    %v7362 = vpack.c.b16 %v5892, %v5882
    %v7363 = vpack.c.b16 %v5893, %v5883
    %v7364 = vpack.c.b16 %v5894, %v5884
    %v7365 = vpack.c.b16 %v5905, %v5895
    %v7366 = vpack.c.b16 %v5906, %v5896
    %v7367 = vpack.c.b16 %v5907, %v5897
    %v7368 = vpack.c.b16 %v5908, %v5898
    %v7369 = vpack.c.b16 %v5909, %v5899
    %v7370 = vpack.c.b16 %v5910, %v5900
    %v7371 = vpack.c.b16 %v5911, %v5901
    %v7372 = vpack.c.b16 %v5912, %v5902
    %v7373 = vpack.c.b16 %v5913, %v5903
    %v7374 = vpack.c.b16 %v5914, %v5904
    %v7375 = vpack.c.b16 %v5925, %v5915
    %v7376 = vpack.c.b16 %v5926, %v5916
    %v7377 = vpack.c.b16 %v5927, %v5917
    %v7378 = vpack.c.b16 %v5928, %v5918
    %v7379 = vpack.c.b16 %v5929, %v5919
    %v7380 = vpack.c.b16 %v5930, %v5920
    %v7381 = vpack.c.b16 %v5931, %v5921
    %v7382 = vpack.c.b16 %v5932, %v5922
    %v7383 = vpack.c.b16 %v5933, %v5923
    %v7384 = vpack.c.b16 %v5934, %v5924
    %v7385 = vpack.c.b16 %v5945, %v5935
    %v7386 = vpack.c.b16 %v5946, %v5936
    %v7387 = vpack.c.b16 %v5947, %v5937
    %v7388 = vpack.c.b16 %v5948, %v5938
    %v7389 = vpack.c.b16 %v5949, %v5939
    %v7390 = vpack.c.b16 %v5950, %v5940
    %v7391 = vpack.c.b16 %v5951, %v5941
    %v7392 = vpack.c.b16 %v5952, %v5942
    %v7393 = vpack.c.b16 %v5953, %v5943
    %v7394 = vpack.c.b16 %v5954, %v5944
    %v7395 = vpack.c.b16 %v5965, %v5955
    %v7396 = vpack.c.b16 %v5966, %v5956
    %v7397 = vpack.c.b16 %v5967, %v5957
    %v7398 = vpack.c.b16 %v5968, %v5958
    %v7399 = vpack.c.b16 %v5969, %v5959
    %v7400 = vpack.c.b16 %v5970, %v5960
    %v7401 = vpack.c.b16 %v5971, %v5961
    %v7402 = vpack.c.b16 %v5972, %v5962
    %v7403 = vpack.c.b16 %v5973, %v5963
    %v7404 = vpack.c.b16 %v5974, %v5964
    %v7405 = vpack.c.b16 %v5985, %v5975
    %v7406 = vpack.c.b16 %v5986, %v5976
    %v7407 = vpack.c.b16 %v5987, %v5977
    %v7408 = vpack.c.b16 %v5988, %v5978
    %v7409 = vpack.c.b16 %v5989, %v5979
    %v7410 = vpack.c.b16 %v5990, %v5980
    %v7411 = vpack.c.b16 %v5991, %v5981
    %v7412 = vpack.c.b16 %v5992, %v5982
    %v7413 = vpack.c.b16 %v5993, %v5983
    %v7414 = vpack.c.b16 %v5994, %v5984
    %v7415 = vpack.c.b16 %v6005, %v5995
    %v7416 = vpack.c.b16 %v6006, %v5996
    %v7417 = vpack.c.b16 %v6007, %v5997
    %v7418 = vpack.c.b16 %v6008, %v5998
    %v7419 = vpack.c.b16 %v6009, %v5999
    %v7420 = vpack.c.b16 %v6010, %v6000
    %v7421 = vpack.c.b16 %v6011, %v6001
    %v7422 = vpack.c.b16 %v6012, %v6002
    %v7423 = vpack.c.b16 %v6013, %v6003
    %v7424 = vpack.c.b16 %v6014, %v6004
    %v7425 = vpack.c.b16 %v6025, %v6015
    %v7426 = vpack.c.b16 %v6026, %v6016
    %v7427 = vpack.c.b16 %v6027, %v6017
    %v7428 = vpack.c.b16 %v6028, %v6018
    %v7429 = vpack.c.b16 %v6029, %v6019
    %v7430 = vpack.c.b16 %v6030, %v6020
    %v7431 = vpack.c.b16 %v6031, %v6021
    %v7432 = vpack.c.b16 %v6032, %v6022
    %v7433 = vpack.c.b16 %v6033, %v6023
    %v7434 = vpack.c.b16 %v6034, %v6024
    %v7435 = vpack.c.b16 %v6045, %v6035
    %v7436 = vpack.c.b16 %v6046, %v6036
    %v7437 = vpack.c.b16 %v6047, %v6037
    %v7438 = vpack.c.b16 %v6048, %v6038
    %v7439 = vpack.c.b16 %v6049, %v6039
    %v7440 = vpack.c.b16 %v6050, %v6040
    %v7441 = vpack.c.b16 %v6051, %v6041
    %v7442 = vpack.c.b16 %v6052, %v6042
    %v7443 = vpack.c.b16 %v6053, %v6043
    %v7444 = vpack.c.b16 %v6054, %v6044
    %v7445 = vpack.c.b16 %v6065, %v6055
    %v7446 = vpack.c.b16 %v6066, %v6056
    %v7447 = vpack.c.b16 %v6067, %v6057
    %v7448 = vpack.c.b16 %v6068, %v6058
    %v7449 = vpack.c.b16 %v6069, %v6059
    %v7450 = vpack.c.b16 %v6070, %v6060
    %v7451 = vpack.c.b16 %v6071, %v6061
    %v7452 = vpack.c.b16 %v6072, %v6062
    %v7453 = vpack.c.b16 %v6073, %v6063
    %v7454 = vpack.c.b16 %v6074, %v6064
    %v7455 = vpack.c.b16 %v6085, %v6075
    %v7456 = vpack.c.b16 %v6086, %v6076
    %v7457 = vpack.c.b16 %v6087, %v6077
    %v7458 = vpack.c.b16 %v6088, %v6078
    %v7459 = vpack.c.b16 %v6089, %v6079
    %v7460 = vpack.c.b16 %v6090, %v6080
    %v7461 = vpack.c.b16 %v6091, %v6081
    %v7462 = vpack.c.b16 %v6092, %v6082
    %v7463 = vpack.c.b16 %v6093, %v6083
    %v7464 = vpack.c.b16 %v6094, %v6084
    %v7465 = vpack.c.b16 %v6105, %v6095
    %v7466 = vpack.c.b16 %v6106, %v6096
    %v7467 = vpack.c.b16 %v6107, %v6097
    %v7468 = vpack.c.b16 %v6108, %v6098
    %v7469 = vpack.c.b16 %v6109, %v6099
    %v7470 = vpack.c.b16 %v6110, %v6100
    %v7471 = vpack.c.b16 %v6111, %v6101
    %v7472 = vpack.c.b16 %v6112, %v6102
    %v7473 = vpack.c.b16 %v6113, %v6103
    %v7474 = vpack.c.b16 %v6114, %v6104
    %v7475 = vpack.c.b16 %v6125, %v6115
    %v7476 = vpack.c.b16 %v6126, %v6116
    %v7477 = vpack.c.b16 %v6127, %v6117
    %v7478 = vpack.c.b16 %v6128, %v6118
    %v7479 = vpack.c.b16 %v6129, %v6119
    %v7480 = vpack.c.b16 %v6130, %v6120
    %v7481 = vpack.c.b16 %v6131, %v6121
    %v7482 = vpack.c.b16 %v6132, %v6122
    %v7483 = vpack.c.b16 %v6133, %v6123
    %v7484 = vpack.c.b16 %v6134, %v6124
    %v7485 = vpack.c.b16 %v6145, %v6135
    %v7486 = vpack.c.b16 %v6146, %v6136
    %v7487 = vpack.c.b16 %v6147, %v6137
    %v7488 = vpack.c.b16 %v6148, %v6138
    %v7489 = vpack.c.b16 %v6149, %v6139
    %v7490 = vpack.c.b16 %v6150, %v6140
    %v7491 = vpack.c.b16 %v6151, %v6141
    %v7492 = vpack.c.b16 %v6152, %v6142
    %v7493 = vpack.c.b16 %v6153, %v6143
    %v7494 = vpack.c.b16 %v6154, %v6144
    %v7495 = vpack.c.b16 %v6165, %v6155
    %v7496 = vpack.c.b16 %v6166, %v6156
    %v7497 = vpack.c.b16 %v6167, %v6157
    %v7498 = vpack.c.b16 %v6168, %v6158
    %v7499 = vpack.c.b16 %v6169, %v6159
    %v7500 = vpack.c.b16 %v6170, %v6160
    %v7501 = vpack.c.b16 %v6171, %v6161
    %v7502 = vpack.c.b16 %v6172, %v6162
    %v7503 = vpack.c.b16 %v6173, %v6163
    %v7504 = vpack.c.b16 %v6174, %v6164
    %v7505 = vpack.c.b16 %v6185, %v6175
    %v7506 = vpack.c.b16 %v6186, %v6176
    %v7507 = vpack.c.b16 %v6187, %v6177
    %v7508 = vpack.c.b16 %v6188, %v6178
    %v7509 = vpack.c.b16 %v6189, %v6179
    %v7510 = vpack.c.b16 %v6190, %v6180
    %v7511 = vpack.c.b16 %v6191, %v6181
    %v7512 = vpack.c.b16 %v6192, %v6182
    %v7513 = vpack.c.b16 %v6193, %v6183
    %v7514 = vpack.c.b16 %v6194, %v6184
    %v7515 = vpack.c.b16 %v6205, %v6195
    %v7516 = vpack.c.b16 %v6206, %v6196
    %v7517 = vpack.c.b16 %v6207, %v6197
    %v7518 = vpack.c.b16 %v6208, %v6198
    %v7519 = vpack.c.b16 %v6209, %v6199
    %v7520 = vpack.c.b16 %v6210, %v6200
    %v7521 = vpack.c.b16 %v6211, %v6201
    %v7522 = vpack.c.b16 %v6212, %v6202
    %v7523 = vpack.c.b16 %v6213, %v6203
    %v7524 = vpack.c.b16 %v6214, %v6204
    %v7525 = vpack.c.b16 %v6225, %v6215
    %v7526 = vpack.c.b16 %v6226, %v6216
    %v7527 = vpack.c.b16 %v6227, %v6217
    %v7528 = vpack.c.b16 %v6228, %v6218
    %v7529 = vpack.c.b16 %v6229, %v6219
    %v7530 = vpack.c.b16 %v6230, %v6220
    %v7531 = vpack.c.b16 %v6231, %v6221
    %v7532 = vpack.c.b16 %v6232, %v6222
    %v7533 = vpack.c.b16 %v6233, %v6223
    %v7534 = vpack.c.b16 %v6234, %v6224
    %v7535 = vpack.c.b16 %v6245, %v6235
    %v7536 = vpack.c.b16 %v6246, %v6236
    %v7537 = vpack.c.b16 %v6247, %v6237
    %v7538 = vpack.c.b16 %v6248, %v6238
    %v7539 = vpack.c.b16 %v6249, %v6239
    %v7540 = vpack.c.b16 %v6250, %v6240
    %v7541 = vpack.c.b16 %v6251, %v6241
    %v7542 = vpack.c.b16 %v6252, %v6242
    %v7543 = vpack.c.b16 %v6253, %v6243
    %v7544 = vpack.c.b16 %v6254, %v6244
    %v7545 = vpack.c.b16 %v6265, %v6255
    %v7546 = vpack.c.b16 %v6266, %v6256
    %v7547 = vpack.c.b16 %v6267, %v6257
    %v7548 = vpack.c.b16 %v6268, %v6258
    %v7549 = vpack.c.b16 %v6269, %v6259
    %v7550 = vpack.c.b16 %v6270, %v6260
    %v7551 = vpack.c.b16 %v6271, %v6261
    %v7552 = vpack.c.b16 %v6272, %v6262
    %v7553 = vpack.c.b16 %v6273, %v6263
    %v7554 = vpack.c.b16 %v6274, %v6264
    %v7555 = vpack.c.b16 %v6285, %v6275
    %v7556 = vpack.c.b16 %v6286, %v6276
    %v7557 = vpack.c.b16 %v6287, %v6277
    %v7558 = vpack.c.b16 %v6288, %v6278
    %v7559 = vpack.c.b16 %v6289, %v6279
    %v7560 = vpack.c.b16 %v6290, %v6280
    %v7561 = vpack.c.b16 %v6291, %v6281
    %v7562 = vpack.c.b16 %v6292, %v6282
    %v7563 = vpack.c.b16 %v6293, %v6283
    %v7564 = vpack.c.b16 %v6294, %v6284
    %v7565 = vpack.c.b16 %v6305, %v6295
    %v7566 = vpack.c.b16 %v6306, %v6296
    %v7567 = vpack.c.b16 %v6307, %v6297
    %v7568 = vpack.c.b16 %v6308, %v6298
    %v7569 = vpack.c.b16 %v6309, %v6299
    %v7570 = vpack.c.b16 %v6310, %v6300
    %v7571 = vpack.c.b16 %v6311, %v6301
    %v7572 = vpack.c.b16 %v6312, %v6302
    %v7573 = vpack.c.b16 %v6313, %v6303
    %v7574 = vpack.c.b16 %v6314, %v6304
    %v7575 = vpack.c.b16 %v6325, %v6315
    %v7576 = vpack.c.b16 %v6326, %v6316
    %v7577 = vpack.c.b16 %v6327, %v6317
    %v7578 = vpack.c.b16 %v6328, %v6318
    %v7579 = vpack.c.b16 %v6329, %v6319
    %v7580 = vpack.c.b16 %v6330, %v6320
    %v7581 = vpack.c.b16 %v6331, %v6321
    %v7582 = vpack.c.b16 %v6332, %v6322
    %v7583 = vpack.c.b16 %v6333, %v6323
    %v7584 = vpack.c.b16 %v6334, %v6324
    %v7585 = vpack.c.b16 %v6345, %v6335
    %v7586 = vpack.c.b16 %v6346, %v6336
    %v7587 = vpack.c.b16 %v6347, %v6337
    %v7588 = vpack.c.b16 %v6348, %v6338
    %v7589 = vpack.c.b16 %v6349, %v6339
    %v7590 = vpack.c.b16 %v6350, %v6340
    %v7591 = vpack.c.b16 %v6351, %v6341
    %v7592 = vpack.c.b16 %v6352, %v6342
    %v7593 = vpack.c.b16 %v6353, %v6343
    %v7594 = vpack.c.b16 %v6354, %v6344
    %v7595 = vpack.c.b16 %v6365, %v6355
    %v7596 = vpack.c.b16 %v6366, %v6356
    %v7597 = vpack.c.b16 %v6367, %v6357
    %v7598 = vpack.c.b16 %v6368, %v6358
    %v7599 = vpack.c.b16 %v6369, %v6359
    %v7600 = vpack.c.b16 %v6370, %v6360
    %v7601 = vpack.c.b16 %v6371, %v6361
    %v7602 = vpack.c.b16 %v6372, %v6362
    %v7603 = vpack.c.b16 %v6373, %v6363
    %v7604 = vpack.c.b16 %v6374, %v6364
    %v7605 = vpack.c.b16 %v6385, %v6375
    %v7606 = vpack.c.b16 %v6386, %v6376
    %v7607 = vpack.c.b16 %v6387, %v6377
    %v7608 = vpack.c.b16 %v6388, %v6378
    %v7609 = vpack.c.b16 %v6389, %v6379
    %v7610 = vpack.c.b16 %v6390, %v6380
    %v7611 = vpack.c.b16 %v6391, %v6381
    %v7612 = vpack.c.b16 %v6392, %v6382
    %v7613 = vpack.c.b16 %v6393, %v6383
    %v7614 = vpack.c.b16 %v6394, %v6384
    %v7615 = vpack.c.b16 %v6405, %v6395
    %v7616 = vpack.c.b16 %v6406, %v6396
    %v7617 = vpack.c.b16 %v6407, %v6397
    %v7618 = vpack.c.b16 %v6408, %v6398
    %v7619 = vpack.c.b16 %v6409, %v6399
    %v7620 = vpack.c.b16 %v6410, %v6400
    %v7621 = vpack.c.b16 %v6411, %v6401
    %v7622 = vpack.c.b16 %v6412, %v6402
    %v7623 = vpack.c.b16 %v6413, %v6403
    %v7624 = vpack.c.b16 %v6414, %v6404
    %v7625 = vpack.c.b16 %v6425, %v6415
    %v7626 = vpack.c.b16 %v6426, %v6416
    %v7627 = vpack.c.b16 %v6427, %v6417
    %v7628 = vpack.c.b16 %v6428, %v6418
    %v7629 = vpack.c.b16 %v6429, %v6419
    %v7630 = vpack.c.b16 %v6430, %v6420
    %v7631 = vpack.c.b16 %v6431, %v6421
    %v7632 = vpack.c.b16 %v6432, %v6422
    %v7633 = vpack.c.b16 %v6433, %v6423
    %v7634 = vpack.c.b16 %v6434, %v6424
    %v7635 = vpack.c.b16 %v6445, %v6435
    %v7636 = vpack.c.b16 %v6446, %v6436
    %v7637 = vpack.c.b16 %v6447, %v6437
    %v7638 = vpack.c.b16 %v6448, %v6438
    %v7639 = vpack.c.b16 %v6449, %v6439
    %v7640 = vpack.c.b16 %v6450, %v6440
    %v7641 = vpack.c.b16 %v6451, %v6441
    %v7642 = vpack.c.b16 %v6452, %v6442
    %v7643 = vpack.c.b16 %v6453, %v6443
    %v7644 = vpack.c.b16 %v6454, %v6444
    %v7645 = vpack.c.b16 %v6465, %v6455
    %v7646 = vpack.c.b16 %v6466, %v6456
    %v7647 = vpack.c.b16 %v6467, %v6457
    %v7648 = vpack.c.b16 %v6468, %v6458
    %v7649 = vpack.c.b16 %v6469, %v6459
    %v7650 = vpack.c.b16 %v6470, %v6460
    %v7651 = vpack.c.b16 %v6471, %v6461
    %v7652 = vpack.c.b16 %v6472, %v6462
    %v7653 = vpack.c.b16 %v6473, %v6463
    %v7654 = vpack.c.b16 %v6474, %v6464
    %v7655 = vpack.c.b16 %v6485, %v6475
    %v7656 = vpack.c.b16 %v6486, %v6476
    %v7657 = vpack.c.b16 %v6487, %v6477
    %v7658 = vpack.c.b16 %v6488, %v6478
    %v7659 = vpack.c.b16 %v6489, %v6479
    %v7660 = vpack.c.b16 %v6490, %v6480
    %v7661 = vpack.c.b16 %v6491, %v6481
    %v7662 = vpack.c.b16 %v6492, %v6482
    %v7663 = vpack.c.b16 %v6493, %v6483
    %v7664 = vpack.c.b16 %v6494, %v6484
    %v7665 = vpack.c.b16 %v6505, %v6495
    %v7666 = vpack.c.b16 %v6506, %v6496
    %v7667 = vpack.c.b16 %v6507, %v6497
    %v7668 = vpack.c.b16 %v6508, %v6498
    %v7669 = vpack.c.b16 %v6509, %v6499
    %v7670 = vpack.c.b16 %v6510, %v6500
    %v7671 = vpack.c.b16 %v6511, %v6501
    %v7672 = vpack.c.b16 %v6512, %v6502
    %v7673 = vpack.c.b16 %v6513, %v6503
    %v7674 = vpack.c.b16 %v6514, %v6504
    %v7675 = vpack.c.b16 %v6525, %v6515
    %v7676 = vpack.c.b16 %v6526, %v6516
    %v7677 = vpack.c.b16 %v6527, %v6517
    %v7678 = vpack.c.b16 %v6528, %v6518
    %v7679 = vpack.c.b16 %v6529, %v6519
    %v7680 = vpack.c.b16 %v6530, %v6520
    %v7681 = vpack.c.b16 %v6531, %v6521
    %v7682 = vpack.c.b16 %v6532, %v6522
    %v7683 = vpack.c.b16 %v6533, %v6523
    %v7684 = vpack.c.b16 %v6534, %v6524
    %v7685 = vpack.c.b16 %v6545, %v6535
    %v7686 = vpack.c.b16 %v6546, %v6536
    %v7687 = vpack.c.b16 %v6547, %v6537
    %v7688 = vpack.c.b16 %v6548, %v6538
    %v7689 = vpack.c.b16 %v6549, %v6539
    %v7690 = vpack.c.b16 %v6550, %v6540
    %v7691 = vpack.c.b16 %v6551, %v6541
    %v7692 = vpack.c.b16 %v6552, %v6542
    %v7693 = vpack.c.b16 %v6553, %v6543
    %v7694 = vpack.c.b16 %v6554, %v6544
    %v7695 = vpack.c.b16 %v6565, %v6555
    %v7696 = vpack.c.b16 %v6566, %v6556
    %v7697 = vpack.c.b16 %v6567, %v6557
    %v7698 = vpack.c.b16 %v6568, %v6558
    %v7699 = vpack.c.b16 %v6569, %v6559
    %v7700 = vpack.c.b16 %v6570, %v6560
    %v7701 = vpack.c.b16 %v6571, %v6561
    %v7702 = vpack.c.b16 %v6572, %v6562
    %v7703 = vpack.c.b16 %v6573, %v6563
    %v7704 = vpack.c.b16 %v6574, %v6564
    %v7705 = vpack.c.b16 %v6585, %v6575
    %v7706 = vpack.c.b16 %v6586, %v6576
    %v7707 = vpack.c.b16 %v6587, %v6577
    %v7708 = vpack.c.b16 %v6588, %v6578
    %v7709 = vpack.c.b16 %v6589, %v6579
    %v7710 = vpack.c.b16 %v6590, %v6580
    %v7711 = vpack.c.b16 %v6591, %v6581
    %v7712 = vpack.c.b16 %v6592, %v6582
    %v7713 = vpack.c.b16 %v6593, %v6583
    %v7714 = vpack.c.b16 %v6594, %v6584
    %v7715 = vpack.c.b16 %v6605, %v6595
    %v7716 = vpack.c.b16 %v6606, %v6596
    %v7717 = vpack.c.b16 %v6607, %v6597
    %v7718 = vpack.c.b16 %v6608, %v6598
    %v7719 = vpack.c.b16 %v6609, %v6599
    %v7720 = vpack.c.b16 %v6610, %v6600
    %v7721 = vpack.c.b16 %v6611, %v6601
    %v7722 = vpack.c.b16 %v6612, %v6602
    %v7723 = vpack.c.b16 %v6613, %v6603
    %v7724 = vpack.c.b16 %v6614, %v6604
    %v7725 = vpack.c.b16 %v6625, %v6615
    %v7726 = vpack.c.b16 %v6626, %v6616
    %v7727 = vpack.c.b16 %v6627, %v6617
    %v7728 = vpack.c.b16 %v6628, %v6618
    %v7729 = vpack.c.b16 %v6629, %v6619
    %v7730 = vpack.c.b16 %v6630, %v6620
    %v7731 = vpack.c.b16 %v6631, %v6621
    %v7732 = vpack.c.b16 %v6632, %v6622
    %v7733 = vpack.c.b16 %v6633, %v6623
    %v7734 = vpack.c.b16 %v6634, %v6624
    %v7735 = vpack.c.b16 %v6645, %v6635
    %v7736 = vpack.c.b16 %v6646, %v6636
    %v7737 = vpack.c.b16 %v6647, %v6637
    %v7738 = vpack.c.b16 %v6648, %v6638
    %v7739 = vpack.c.b16 %v6649, %v6639
    %v7740 = vpack.c.b16 %v6650, %v6640
    %v7741 = vpack.c.b16 %v6651, %v6641
    %v7742 = vpack.c.b16 %v6652, %v6642
    %v7743 = vpack.c.b16 %v6653, %v6643
    %v7744 = vpack.c.b16 %v6654, %v6644
    %v7745 = vpack.c.b16 %v6665, %v6655
    %v7746 = vpack.c.b16 %v6666, %v6656
    %v7747 = vpack.c.b16 %v6667, %v6657
    %v7748 = vpack.c.b16 %v6668, %v6658
    %v7749 = vpack.c.b16 %v6669, %v6659
    %v7750 = vpack.c.b16 %v6670, %v6660
    %v7751 = vpack.c.b16 %v6671, %v6661
    %v7752 = vpack.c.b16 %v6672, %v6662
    %v7753 = vpack.c.b16 %v6673, %v6663
    %v7754 = vpack.c.b16 %v6674, %v6664
    %v7755 = vpack.c.b16 %v6685, %v6675
    %v7756 = vpack.c.b16 %v6686, %v6676
    %v7757 = vpack.c.b16 %v6687, %v6677
    %v7758 = vpack.c.b16 %v6688, %v6678
    %v7759 = vpack.c.b16 %v6689, %v6679
    %v7760 = vpack.c.b16 %v6690, %v6680
    %v7761 = vpack.c.b16 %v6691, %v6681
    %v7762 = vpack.c.b16 %v6692, %v6682
    %v7763 = vpack.c.b16 %v6693, %v6683
    %v7764 = vpack.c.b16 %v6694, %v6684
    %v7765 = vpack.c.b16 %v6705, %v6695
    %v7766 = vpack.c.b16 %v6706, %v6696
    %v7767 = vpack.c.b16 %v6707, %v6697
    %v7768 = vpack.c.b16 %v6708, %v6698
    %v7769 = vpack.c.b16 %v6709, %v6699
    %v7770 = vpack.c.b16 %v6710, %v6700
    %v7771 = vpack.c.b16 %v6711, %v6701
    %v7772 = vpack.c.b16 %v6712, %v6702
    %v7773 = vpack.c.b16 %v6713, %v6703
    %v7774 = vpack.c.b16 %v6714, %v6704
    %v7775 = vpack.c.b16 %v6725, %v6715
    %v7776 = vpack.c.b16 %v6726, %v6716
    %v7777 = vpack.c.b16 %v6727, %v6717
    %v7778 = vpack.c.b16 %v6728, %v6718
    %v7779 = vpack.c.b16 %v6729, %v6719
    %v7780 = vpack.c.b16 %v6730, %v6720
    %v7781 = vpack.c.b16 %v6731, %v6721
    %v7782 = vpack.c.b16 %v6732, %v6722
    %v7783 = vpack.c.b16 %v6733, %v6723
    %v7784 = vpack.c.b16 %v6734, %v6724
    %v7785 = vpack.c.b16 %v6745, %v6735
    %v7786 = vpack.c.b16 %v6746, %v6736
    %v7787 = vpack.c.b16 %v6747, %v6737
    %v7788 = vpack.c.b16 %v6748, %v6738
    %v7789 = vpack.c.b16 %v6749, %v6739
    %v7790 = vpack.c.b16 %v6750, %v6740
    %v7791 = vpack.c.b16 %v6751, %v6741
    %v7792 = vpack.c.b16 %v6752, %v6742
    %v7793 = vpack.c.b16 %v6753, %v6743
    %v7794 = vpack.c.b16 %v6754, %v6744
    %v7795 = vpack.c.b16 %v6765, %v6755
    %v7796 = vpack.c.b16 %v6766, %v6756
    %v7797 = vpack.c.b16 %v6767, %v6757
    %v7798 = vpack.c.b16 %v6768, %v6758
    %v7799 = vpack.c.b16 %v6769, %v6759
    %v7800 = vpack.c.b16 %v6770, %v6760
    %v7801 = vpack.c.b16 %v6771, %v6761
    %v7802 = vpack.c.b16 %v6772, %v6762
    %v7803 = vpack.c.b16 %v6773, %v6763
    %v7804 = vpack.c.b16 %v6774, %v6764
    %v7805 = vpack.c.b16 %v6785, %v6775
    %v7806 = vpack.c.b16 %v6786, %v6776
    %v7807 = vpack.c.b16 %v6787, %v6777
    %v7808 = vpack.c.b16 %v6788, %v6778
    %v7809 = vpack.c.b16 %v6789, %v6779
    %v7810 = vpack.c.b16 %v6790, %v6780
    %v7811 = vpack.c.b16 %v6791, %v6781
    %v7812 = vpack.c.b16 %v6792, %v6782
    %v7813 = vpack.c.b16 %v6793, %v6783
    %v7814 = vpack.c.b16 %v6794, %v6784
    %v7815 = vpack.c.b16 %v6805, %v6795
    %v7816 = vpack.c.b16 %v6806, %v6796
    %v7817 = vpack.c.b16 %v6807, %v6797
    %v7818 = vpack.c.b16 %v6808, %v6798
    %v7819 = vpack.c.b16 %v6809, %v6799
    %v7820 = vpack.c.b16 %v6810, %v6800
    %v7821 = vpack.c.b16 %v6811, %v6801
    %v7822 = vpack.c.b16 %v6812, %v6802
    %v7823 = vpack.c.b16 %v6813, %v6803
    %v7824 = vpack.c.b16 %v6814, %v6804
    %v7825 = vpack.c.b16 %v6825, %v6815
    %v7826 = vpack.c.b16 %v6826, %v6816
    %v7827 = vpack.c.b16 %v6827, %v6817
    %v7828 = vpack.c.b16 %v6828, %v6818
    %v7829 = vpack.c.b16 %v6829, %v6819
    %v7830 = vpack.c.b16 %v6830, %v6820
    %v7831 = vpack.c.b16 %v6831, %v6821
    %v7832 = vpack.c.b16 %v6832, %v6822
    %v7833 = vpack.c.b16 %v6833, %v6823
    %v7834 = vpack.c.b16 %v6834, %v6824
    %v7835 = vpack.c.b16 %v6845, %v6835
    %v7836 = vpack.c.b16 %v6846, %v6836
    %v7837 = vpack.c.b16 %v6847, %v6837
    %v7838 = vpack.c.b16 %v6848, %v6838
    %v7839 = vpack.c.b16 %v6849, %v6839
    %v7840 = vpack.c.b16 %v6850, %v6840
    %v7841 = vpack.c.b16 %v6851, %v6841
    %v7842 = vpack.c.b16 %v6852, %v6842
    %v7843 = vpack.c.b16 %v6853, %v6843
    %v7844 = vpack.c.b16 %v6854, %v6844
    %v7845 = vpack.c.b16 %v6865, %v6855
    %v7846 = vpack.c.b16 %v6866, %v6856
    %v7847 = vpack.c.b16 %v6867, %v6857
    %v7848 = vpack.c.b16 %v6868, %v6858
    %v7849 = vpack.c.b16 %v6869, %v6859
    %v7850 = vpack.c.b16 %v6870, %v6860
    %v7851 = vpack.c.b16 %v6871, %v6861
    %v7852 = vpack.c.b16 %v6872, %v6862
    %v7853 = vpack.c.b16 %v6873, %v6863
    %v7854 = vpack.c.b16 %v6874, %v6864
    %v7855 = vpack.c.b16 %v6885, %v6875
    %v7856 = vpack.c.b16 %v6886, %v6876
    %v7857 = vpack.c.b16 %v6887, %v6877
    %v7858 = vpack.c.b16 %v6888, %v6878
    %v7859 = vpack.c.b16 %v6889, %v6879
    %v7860 = vpack.c.b16 %v6890, %v6880
    %v7861 = vpack.c.b16 %v6891, %v6881
    %v7862 = vpack.c.b16 %v6892, %v6882
    %v7863 = vpack.c.b16 %v6893, %v6883
    %v7864 = vpack.c.b16 %v6894, %v6884
    %v7865 = vpack.c.b16 %v6905, %v6895
    %v7866 = vpack.c.b16 %v6906, %v6896
    %v7867 = vpack.c.b16 %v6907, %v6897
    %v7868 = vpack.c.b16 %v6908, %v6898
    %v7869 = vpack.c.b16 %v6909, %v6899
    %v7870 = vpack.c.b16 %v6910, %v6900
    %v7871 = vpack.c.b16 %v6911, %v6901
    %v7872 = vpack.c.b16 %v6912, %v6902
    %v7873 = vpack.c.b16 %v6913, %v6903
    %v7874 = vpack.c.b16 %v6914, %v6904
    %v7875 = vpack.c.b16 %v6925, %v6915
    %v7876 = vpack.c.b16 %v6926, %v6916
    %v7877 = vpack.c.b16 %v6927, %v6917
    %v7878 = vpack.c.b16 %v6928, %v6918
    %v7879 = vpack.c.b16 %v6929, %v6919
    %v7880 = vpack.c.b16 %v6930, %v6920
    %v7881 = vpack.c.b16 %v6931, %v6921
    %v7882 = vpack.c.b16 %v6932, %v6922
    %v7883 = vpack.c.b16 %v6933, %v6923
    %v7884 = vpack.c.b16 %v6934, %v6924
    %v7885 = vpack.c.b16 %v6945, %v6935
    %v7886 = vpack.c.b16 %v6946, %v6936
    %v7887 = vpack.c.b16 %v6947, %v6937
    %v7888 = vpack.c.b16 %v6948, %v6938
    %v7889 = vpack.c.b16 %v6949, %v6939
    %v7890 = vpack.c.b16 %v6950, %v6940
    %v7891 = vpack.c.b16 %v6951, %v6941
    %v7892 = vpack.c.b16 %v6952, %v6942
    %v7893 = vpack.c.b16 %v6953, %v6943
    %v7894 = vpack.c.b16 %v6954, %v6944
    %v7895 = vpack.c.b16 %v6965, %v6955
    %v7896 = vpack.c.b16 %v6966, %v6956
    %v7897 = vpack.c.b16 %v6967, %v6957
    %v7898 = vpack.c.b16 %v6968, %v6958
    %v7899 = vpack.c.b16 %v6969, %v6959
    %v7900 = vpack.c.b16 %v6970, %v6960
    %v7901 = vpack.c.b16 %v6971, %v6961
    %v7902 = vpack.c.b16 %v6972, %v6962
    %v7903 = vpack.c.b16 %v6973, %v6963
    %v7904 = vpack.c.b16 %v6974, %v6964
    %v7905 = vpack.c.b16 %v6985, %v6975
    %v7906 = vpack.c.b16 %v6986, %v6976
    %v7907 = vpack.c.b16 %v6987, %v6977
    %v7908 = vpack.c.b16 %v6988, %v6978
    %v7909 = vpack.c.b16 %v6989, %v6979
    %v7910 = vpack.c.b16 %v6990, %v6980
    %v7911 = vpack.c.b16 %v6991, %v6981
    %v7912 = vpack.c.b16 %v6992, %v6982
    %v7913 = vpack.c.b16 %v6993, %v6983
    %v7914 = vpack.c.b16 %v6994, %v6984
    %v7915 = vpack.c.b16 %v7005, %v6995
    %v7916 = vpack.c.b16 %v7006, %v6996
    %v7917 = vpack.c.b16 %v7007, %v6997
    %v7918 = vpack.c.b16 %v7008, %v6998
    %v7919 = vpack.c.b16 %v7009, %v6999
    %v7920 = vpack.c.b16 %v7010, %v7000
    %v7921 = vpack.c.b16 %v7011, %v7001
    %v7922 = vpack.c.b16 %v7012, %v7002
    %v7923 = vpack.c.b16 %v7013, %v7003
    %v7924 = vpack.c.b16 %v7014, %v7004
    %v7925 = vpack.c.b16 %v7025, %v7015
    %v7926 = vpack.c.b16 %v7026, %v7016
    %v7927 = vpack.c.b16 %v7027, %v7017
    %v7928 = vpack.c.b16 %v7028, %v7018
    %v7929 = vpack.c.b16 %v7029, %v7019
    %v7930 = vpack.c.b16 %v7030, %v7020
    %v7931 = vpack.c.b16 %v7031, %v7021
    %v7932 = vpack.c.b16 %v7032, %v7022
    %v7933 = vpack.c.b16 %v7033, %v7023
    %v7934 = vpack.c.b16 %v7034, %v7024
    %v7935 = vpack.c.b16 %v7045, %v7035
    %v7936 = vpack.c.b16 %v7046, %v7036
    %v7937 = vpack.c.b16 %v7047, %v7037
    %v7938 = vpack.c.b16 %v7048, %v7038
    %v7939 = vpack.c.b16 %v7049, %v7039
    %v7940 = vpack.c.b16 %v7050, %v7040
    %v7941 = vpack.c.b16 %v7051, %v7041
    %v7942 = vpack.c.b16 %v7052, %v7042
    %v7943 = vpack.c.b16 %v7053, %v7043
    %v7944 = vpack.c.b16 %v7054, %v7044
    %v7945 = vpack.c.b16 %v7065, %v7055
    %v7946 = vpack.c.b16 %v7066, %v7056
    %v7947 = vpack.c.b16 %v7067, %v7057
    %v7948 = vpack.c.b16 %v7068, %v7058
    %v7949 = vpack.c.b16 %v7069, %v7059
    %v7950 = vpack.c.b16 %v7070, %v7060
    %v7951 = vpack.c.b16 %v7071, %v7061
    %v7952 = vpack.c.b16 %v7072, %v7062
    %v7953 = vpack.c.b16 %v7073, %v7063
    %v7954 = vpack.c.b16 %v7074, %v7064
    %v7955 = vpack.c.b16 %v7085, %v7075
    %v7956 = vpack.c.b16 %v7086, %v7076
    %v7957 = vpack.c.b16 %v7087, %v7077
    %v7958 = vpack.c.b16 %v7088, %v7078
    %v7959 = vpack.c.b16 %v7089, %v7079
    %v7960 = vpack.c.b16 %v7090, %v7080
    %v7961 = vpack.c.b16 %v7091, %v7081
    %v7962 = vpack.c.b16 %v7092, %v7082
    %v7963 = vpack.c.b16 %v7093, %v7083
    %v7964 = vpack.c.b16 %v7094, %v7084
    %v7965 = vpack.c.b16 %v7105, %v7095
    %v7966 = vpack.c.b16 %v7106, %v7096
    %v7967 = vpack.c.b16 %v7107, %v7097
    %v7968 = vpack.c.b16 %v7108, %v7098
    %v7969 = vpack.c.b16 %v7109, %v7099
    %v7970 = vpack.c.b16 %v7110, %v7100
    %v7971 = vpack.c.b16 %v7111, %v7101
    %v7972 = vpack.c.b16 %v7112, %v7102
    %v7973 = vpack.c.b16 %v7113, %v7103
    %v7974 = vpack.c.b16 %v7114, %v7104
    %v7975 = vpack.c.b16 %v7125, %v7115
    %v7976 = vpack.c.b16 %v7126, %v7116
    %v7977 = vpack.c.b16 %v7127, %v7117
    %v7978 = vpack.c.b16 %v7128, %v7118
    %v7979 = vpack.c.b16 %v7129, %v7119
    %v7980 = vpack.c.b16 %v7130, %v7120
    %v7981 = vpack.c.b16 %v7131, %v7121
    %v7982 = vpack.c.b16 %v7132, %v7122
    %v7983 = vpack.c.b16 %v7133, %v7123
    %v7984 = vpack.c.b16 %v7134, %v7124
    %v7985 = vpack.c.b16 %v7145, %v7135
    %v7986 = vpack.c.b16 %v7146, %v7136
    %v7987 = vpack.c.b16 %v7147, %v7137
    %v7988 = vpack.c.b16 %v7148, %v7138
    %v7989 = vpack.c.b16 %v7149, %v7139
    %v7990 = vpack.c.b16 %v7150, %v7140
    %v7991 = vpack.c.b16 %v7151, %v7141
    %v7992 = vpack.c.b16 %v7152, %v7142
    %v7993 = vpack.c.b16 %v7153, %v7143
    %v7994 = vpack.c.b16 %v7154, %v7144
    %v7995 = vpack.c.b16 %v7165, %v7155
    %v7996 = vpack.c.b16 %v7166, %v7156
    %v7997 = vpack.c.b16 %v7167, %v7157
    %v7998 = vpack.c.b16 %v7168, %v7158
    %v7999 = vpack.c.b16 %v7169, %v7159
    %v8000 = vpack.c.b16 %v7170, %v7160
    %v8001 = vpack.c.b16 %v7171, %v7161
    %v8002 = vpack.c.b16 %v7172, %v7162
    %v8003 = vpack.c.b16 %v7173, %v7163
    %v8004 = vpack.c.b16 %v7174, %v7164
    %v8005 = vpack.c.b16 %v7185, %v7175
    %v8006 = vpack.c.b16 %v7186, %v7176
    %v8007 = vpack.c.b16 %v7187, %v7177
    %v8008 = vpack.c.b16 %v7188, %v7178
    %v8009 = vpack.c.b16 %v7189, %v7179
    %v8010 = vpack.c.b16 %v7190, %v7180
    %v8011 = vpack.c.b16 %v7191, %v7181
    %v8012 = vpack.c.b16 %v7192, %v7182
    %v8013 = vpack.c.b16 %v7193, %v7183
    %v8014 = vpack.c.b16 %v7194, %v7184
    %v8015 = vpack.c.b16 %v7205, %v7195
    %v8016 = vpack.c.b16 %v7206, %v7196
    %v8017 = vpack.c.b16 %v7207, %v7197
    %v8018 = vpack.c.b16 %v7208, %v7198
    %v8019 = vpack.c.b16 %v7209, %v7199
    %v8020 = vpack.c.b16 %v7210, %v7200
    %v8021 = vpack.c.b16 %v7211, %v7201
    %v8022 = vpack.c.b16 %v7212, %v7202
    %v8023 = vpack.c.b16 %v7213, %v7203
    %v8024 = vpack.c.b16 %v7214, %v7204
    %v8025 = vpack.c.b16 %v7225, %v7215
    %v8026 = vpack.c.b16 %v7226, %v7216
    %v8027 = vpack.c.b16 %v7227, %v7217
    %v8028 = vpack.c.b16 %v7228, %v7218
    %v8029 = vpack.c.b16 %v7229, %v7219
    %v8030 = vpack.c.b16 %v7230, %v7220
    %v8031 = vpack.c.b16 %v7231, %v7221
    %v8032 = vpack.c.b16 %v7232, %v7222
    %v8033 = vpack.c.b16 %v7233, %v7223
    %v8034 = vpack.c.b16 %v7234, %v7224
    %8835 = vmatprep.subr.bf16.mxu0 %v7306
    %8836 = vmatpush1.bf16.msra.mxu0 %v7305
    %8837 = vmatprep.subr.bf16.mxu0 %v7296
    %8838 = vmatpush1.bf16.msra.mxu0 %v7295
    %8839 = vmatprep.subr.bf16.mxu0 %v7286
    %8840 = vmatpush1.bf16.msra.mxu0 %v7285
    %8841 = vmatprep.subr.bf16.mxu0 %v7276
    %8842 = vmatpush1.bf16.msra.mxu0 %v7275
    %8843 = vmatprep.subr.bf16.mxu0 %v7266
    %8844 = vmatpush1.bf16.msra.mxu0 %v7265
    %8845 = vmatprep.subr.bf16.mxu0 %v7256
    %8846 = vmatpush1.bf16.msra.mxu0 %v7255
    %8847 = vmatprep.subr.bf16.mxu0 %v7246
    %8848 = vmatpush1.bf16.msra.mxu0 %v7245
    %8849 = vmatprep.subr.bf16.mxu0 %v7236
    %8850 = vmatpush1.bf16.msra.mxu0 %v7235
    %8851 = vmatprep.subr.bf16.mxu0 %v7386
    %8852 = vmatpush2.bf16.msra.mxu0 %v7385
    %8853 = vmatprep.subr.bf16.mxu0 %v7376
    %8854 = vmatpush2.bf16.msra.mxu0 %v7375
    %8855 = vmatprep.subr.bf16.mxu0 %v7366
    %8856 = vmatpush2.bf16.msra.mxu0 %v7365
    %8857 = vmatprep.subr.bf16.mxu0 %v7356
    %8858 = vmatpush2.bf16.msra.mxu0 %v7355
    %8859 = vmatprep.subr.bf16.mxu0 %v7346
    %8860 = vmatpush2.bf16.msra.mxu0 %v7345
    %8861 = vmatprep.subr.bf16.mxu0 %v7336
    %8862 = vmatpush2.bf16.msra.mxu0 %v7335
    %8863 = vmatprep.subr.bf16.mxu0 %v7326
    %8864 = vmatpush2.bf16.msra.mxu0 %v7325
    %8865 = vmatprep.subr.bf16.mxu0 %v7316
    %8866 = vmatpush2.bf16.msra.mxu0 %v7315
    %8867 = vmatprep.mubr.bf16.mxu0 %v3972
    %8868 = vmatmul.mubr.bf16.gmra.mxu0 %v3971
    %v8869 = vpop.f32.mrf.mxu0
    %v8870 = vadd.f32 %v4788, %v8869
    %v8871 = vpop.f32.mrf.mxu0
    %v8872 = vadd.f32 %v4792, %v8871
    %v8873 = vpop.f32.mrf.mxu0
    %v8874 = vpop.f32.mrf.mxu0
    %8875 = vdwg.mxu0
    %8876 = vmatprep.subr.bf16.mxu0 %v7466
    %8877 = vmatpush1.bf16.msra.mxu0 %v7465
    %8878 = vmatprep.subr.bf16.mxu0 %v7456
    %8879 = vmatpush1.bf16.msra.mxu0 %v7455
    %8880 = vmatprep.subr.bf16.mxu0 %v7446
    %8881 = vmatpush1.bf16.msra.mxu0 %v7445
    %8882 = vmatprep.subr.bf16.mxu0 %v7436
    %8883 = vmatpush1.bf16.msra.mxu0 %v7435
    %8884 = vmatprep.subr.bf16.mxu0 %v7426
    %8885 = vmatpush1.bf16.msra.mxu0 %v7425
    %8886 = vmatprep.subr.bf16.mxu0 %v7416
    %8887 = vmatpush1.bf16.msra.mxu0 %v7415
    %8888 = vmatprep.subr.bf16.mxu0 %v7406
    %8889 = vmatpush1.bf16.msra.mxu0 %v7405
    %8890 = vmatprep.subr.bf16.mxu0 %v7396
    %8891 = vmatpush1.bf16.msra.mxu0 %v7395
    %8892 = vmatprep.subr.bf16.mxu0 %v7546
    %8893 = vmatpush2.bf16.msra.mxu0 %v7545
    %8894 = vmatprep.subr.bf16.mxu0 %v7536
    %8895 = vmatpush2.bf16.msra.mxu0 %v7535
    %8896 = vmatprep.subr.bf16.mxu0 %v7526
    %8897 = vmatpush2.bf16.msra.mxu0 %v7525
    %8898 = vmatprep.subr.bf16.mxu0 %v7516
    %8899 = vmatpush2.bf16.msra.mxu0 %v7515
    %8900 = vmatprep.subr.bf16.mxu0 %v7506
    %8901 = vmatpush2.bf16.msra.mxu0 %v7505
    %8902 = vmatprep.subr.bf16.mxu0 %v7496
    %8903 = vmatpush2.bf16.msra.mxu0 %v7495
    %8904 = vmatprep.subr.bf16.mxu0 %v7486
    %8905 = vmatpush2.bf16.msra.mxu0 %v7485
    %8906 = vmatprep.subr.bf16.mxu0 %v7476
    %8907 = vmatpush2.bf16.msra.mxu0 %v7475
    %8908 = vmatprep.mubr.bf16.mxu0 %v3974
    %8909 = vmatmul.mubr.bf16.gmra.mxu0 %v3973
    %v8910 = vpop.f32.mrf.mxu0
    %v8911 = vadd.f32 %v8870, %v8910
    %v8912 = vpop.f32.mrf.mxu0
    %v8913 = vadd.f32 %v8872, %v8912
    %v8914 = vpop.f32.mrf.mxu0
    %v8915 = vpop.f32.mrf.mxu0
    %8916 = vdwg.mxu0
    %8917 = vmatprep.subr.bf16.mxu0 %v7626
    %8918 = vmatpush1.bf16.msra.mxu0 %v7625
    %8919 = vmatprep.subr.bf16.mxu0 %v7616
    %8920 = vmatpush1.bf16.msra.mxu0 %v7615
    %8921 = vmatprep.subr.bf16.mxu0 %v7606
    %8922 = vmatpush1.bf16.msra.mxu0 %v7605
    %8923 = vmatprep.subr.bf16.mxu0 %v7596
    %8924 = vmatpush1.bf16.msra.mxu0 %v7595
    %8925 = vmatprep.subr.bf16.mxu0 %v7586
    %8926 = vmatpush1.bf16.msra.mxu0 %v7585
    %8927 = vmatprep.subr.bf16.mxu0 %v7576
    %8928 = vmatpush1.bf16.msra.mxu0 %v7575
    %8929 = vmatprep.subr.bf16.mxu0 %v7566
    %8930 = vmatpush1.bf16.msra.mxu0 %v7565
    %8931 = vmatprep.subr.bf16.mxu0 %v7556
    %8932 = vmatpush1.bf16.msra.mxu0 %v7555
    %8933 = vmatprep.subr.bf16.mxu0 %v7706
    %8934 = vmatpush2.bf16.msra.mxu0 %v7705
    %8935 = vmatprep.subr.bf16.mxu0 %v7696
    %8936 = vmatpush2.bf16.msra.mxu0 %v7695
    %8937 = vmatprep.subr.bf16.mxu0 %v7686
    %8938 = vmatpush2.bf16.msra.mxu0 %v7685
    %8939 = vmatprep.subr.bf16.mxu0 %v7676
    %8940 = vmatpush2.bf16.msra.mxu0 %v7675
    %8941 = vmatprep.subr.bf16.mxu0 %v7666
    %8942 = vmatpush2.bf16.msra.mxu0 %v7665
    %8943 = vmatprep.subr.bf16.mxu0 %v7656
    %8944 = vmatpush2.bf16.msra.mxu0 %v7655
    %8945 = vmatprep.subr.bf16.mxu0 %v7646
    %8946 = vmatpush2.bf16.msra.mxu0 %v7645
    %8947 = vmatprep.subr.bf16.mxu0 %v7636
    %8948 = vmatpush2.bf16.msra.mxu0 %v7635
    %8949 = vmatprep.mubr.bf16.mxu0 %v3976
    %8950 = vmatmul.mubr.bf16.gmra.mxu0 %v3975
    %v8951 = vpop.f32.mrf.mxu0
    %v8952 = vadd.f32 %v8911, %v8951
    %v8953 = vpop.f32.mrf.mxu0
    %v8954 = vadd.f32 %v8913, %v8953
    %v8955 = vpop.f32.mrf.mxu0
    %v8956 = vpop.f32.mrf.mxu0
    %8957 = vdwg.mxu0
    %8958 = vmatprep.subr.bf16.mxu0 %v7786
    %8959 = vmatpush1.bf16.msra.mxu0 %v7785
    %8960 = vmatprep.subr.bf16.mxu0 %v7776
    %8961 = vmatpush1.bf16.msra.mxu0 %v7775
    %8962 = vmatprep.subr.bf16.mxu0 %v7766
    %8963 = vmatpush1.bf16.msra.mxu0 %v7765
    %8964 = vmatprep.subr.bf16.mxu0 %v7756
    %8965 = vmatpush1.bf16.msra.mxu0 %v7755
    %8966 = vmatprep.subr.bf16.mxu0 %v7746
    %8967 = vmatpush1.bf16.msra.mxu0 %v7745
    %8968 = vmatprep.subr.bf16.mxu0 %v7736
    %8969 = vmatpush1.bf16.msra.mxu0 %v7735
    %8970 = vmatprep.subr.bf16.mxu0 %v7726
    %8971 = vmatpush1.bf16.msra.mxu0 %v7725
    %8972 = vmatprep.subr.bf16.mxu0 %v7716
    %8973 = vmatpush1.bf16.msra.mxu0 %v7715
    %8974 = vmatprep.subr.bf16.mxu0 %v7866
    %8975 = vmatpush2.bf16.msra.mxu0 %v7865
    %8976 = vmatprep.subr.bf16.mxu0 %v7856
    %8977 = vmatpush2.bf16.msra.mxu0 %v7855
    %8978 = vmatprep.subr.bf16.mxu0 %v7846
    %8979 = vmatpush2.bf16.msra.mxu0 %v7845
    %8980 = vmatprep.subr.bf16.mxu0 %v7836
    %8981 = vmatpush2.bf16.msra.mxu0 %v7835
    %8982 = vmatprep.subr.bf16.mxu0 %v7826
    %8983 = vmatpush2.bf16.msra.mxu0 %v7825
    %8984 = vmatprep.subr.bf16.mxu0 %v7816
    %8985 = vmatpush2.bf16.msra.mxu0 %v7815
    %8986 = vmatprep.subr.bf16.mxu0 %v7806
    %8987 = vmatpush2.bf16.msra.mxu0 %v7805
    %8988 = vmatprep.subr.bf16.mxu0 %v7796
    %8989 = vmatpush2.bf16.msra.mxu0 %v7795
    %8990 = vmatprep.mubr.bf16.mxu0 %v3978
    %8991 = vmatmul.mubr.bf16.gmra.mxu0 %v3977
    %v8992 = vpop.f32.mrf.mxu0
    %v8993 = vadd.f32 %v8952, %v8992
    %v8994 = vpop.f32.mrf.mxu0
    %v8995 = vadd.f32 %v8954, %v8994
    %v8996 = vpop.f32.mrf.mxu0
    %v8997 = vpop.f32.mrf.mxu0
    %8998 = vdwg.mxu0
    %8999 = vmatprep.subr.bf16.mxu0 %v7946
    %9000 = vmatpush1.bf16.msra.mxu0 %v7945
    %9001 = vmatprep.subr.bf16.mxu0 %v7936
    %9002 = vmatpush1.bf16.msra.mxu0 %v7935
    %9003 = vmatprep.subr.bf16.mxu0 %v7926
    %9004 = vmatpush1.bf16.msra.mxu0 %v7925
    %9005 = vmatprep.subr.bf16.mxu0 %v7916
    %9006 = vmatpush1.bf16.msra.mxu0 %v7915
    %9007 = vmatprep.subr.bf16.mxu0 %v7906
    %9008 = vmatpush1.bf16.msra.mxu0 %v7905
    %9009 = vmatprep.subr.bf16.mxu0 %v7896
    %9010 = vmatpush1.bf16.msra.mxu0 %v7895
    %9011 = vmatprep.subr.bf16.mxu0 %v7886
    %9012 = vmatpush1.bf16.msra.mxu0 %v7885
    %9013 = vmatprep.subr.bf16.mxu0 %v7876
    %9014 = vmatpush1.bf16.msra.mxu0 %v7875
    %9015 = vmatprep.subr.bf16.mxu0 %v8026
    %9016 = vmatpush2.bf16.msra.mxu0 %v8025
    %9017 = vmatprep.subr.bf16.mxu0 %v8016
    %9018 = vmatpush2.bf16.msra.mxu0 %v8015
    %9019 = vmatprep.subr.bf16.mxu0 %v8006
    %9020 = vmatpush2.bf16.msra.mxu0 %v8005
    %9021 = vmatprep.subr.bf16.mxu0 %v7996
    %9022 = vmatpush2.bf16.msra.mxu0 %v7995
    %9023 = vmatprep.subr.bf16.mxu0 %v7986
    %9024 = vmatpush2.bf16.msra.mxu0 %v7985
    %9025 = vmatprep.subr.bf16.mxu0 %v7976
    %9026 = vmatpush2.bf16.msra.mxu0 %v7975
    %9027 = vmatprep.subr.bf16.mxu0 %v7966
    %9028 = vmatpush2.bf16.msra.mxu0 %v7965
    %9029 = vmatprep.subr.bf16.mxu0 %v7956
    %9030 = vmatpush2.bf16.msra.mxu0 %v7955
    %9031 = vmatprep.mubr.bf16.mxu0 %v3980
    %9032 = vmatmul.mubr.bf16.gmra.mxu0 %v3979
    %v9033 = vpop.f32.mrf.mxu0
    %v9034 = vadd.f32 %v8993, %v9033
    %v9035 = vpop.f32.mrf.mxu0
    %v9036 = vadd.f32 %v8995, %v9035
    %v9037 = vpop.f32.mrf.mxu0
    %v9038 = vpop.f32.mrf.mxu0
    %9039 = vdwg.mxu0
    %9040 = vmatprep.subr.bf16.mxu0 %v7308
    %9041 = vmatpush1.bf16.msra.mxu0 %v7307
    %9042 = vmatprep.subr.bf16.mxu0 %v7298
    %9043 = vmatpush1.bf16.msra.mxu0 %v7297
    %9044 = vmatprep.subr.bf16.mxu0 %v7288
    %9045 = vmatpush1.bf16.msra.mxu0 %v7287
    %9046 = vmatprep.subr.bf16.mxu0 %v7278
    %9047 = vmatpush1.bf16.msra.mxu0 %v7277
    %9048 = vmatprep.subr.bf16.mxu0 %v7268
    %9049 = vmatpush1.bf16.msra.mxu0 %v7267
    %9050 = vmatprep.subr.bf16.mxu0 %v7258
    %9051 = vmatpush1.bf16.msra.mxu0 %v7257
    %9052 = vmatprep.subr.bf16.mxu0 %v7248
    %9053 = vmatpush1.bf16.msra.mxu0 %v7247
    %9054 = vmatprep.subr.bf16.mxu0 %v7238
    %9055 = vmatpush1.bf16.msra.mxu0 %v7237
    %9056 = vmatprep.subr.bf16.mxu0 %v7388
    %9057 = vmatpush2.bf16.msra.mxu0 %v7387
    %9058 = vmatprep.subr.bf16.mxu0 %v7378
    %9059 = vmatpush2.bf16.msra.mxu0 %v7377
    %9060 = vmatprep.subr.bf16.mxu0 %v7368
    %9061 = vmatpush2.bf16.msra.mxu0 %v7367
    %9062 = vmatprep.subr.bf16.mxu0 %v7358
    %9063 = vmatpush2.bf16.msra.mxu0 %v7357
    %9064 = vmatprep.subr.bf16.mxu0 %v7348
    %9065 = vmatpush2.bf16.msra.mxu0 %v7347
    %9066 = vmatprep.subr.bf16.mxu0 %v7338
    %9067 = vmatpush2.bf16.msra.mxu0 %v7337
    %9068 = vmatprep.subr.bf16.mxu0 %v7328
    %9069 = vmatpush2.bf16.msra.mxu0 %v7327
    %9070 = vmatprep.subr.bf16.mxu0 %v7318
    %9071 = vmatpush2.bf16.msra.mxu0 %v7317
    %9072 = vmatprep.mubr.bf16.mxu0 %v3972
    %9073 = vmatmul.mubr.bf16.gmra.mxu0 %v3971
    %v9074 = vpop.f32.mrf.mxu0
    %v9075 = vadd.f32 %v4796, %v9074
    %v9076 = vpop.f32.mrf.mxu0
    %v9077 = vadd.f32 %v4800, %v9076
    %v9078 = vpop.f32.mrf.mxu0
    %v9079 = vpop.f32.mrf.mxu0
    %9080 = vdwg.mxu0
    %9081 = vmatprep.subr.bf16.mxu0 %v7468
    %9082 = vmatpush1.bf16.msra.mxu0 %v7467
    %9083 = vmatprep.subr.bf16.mxu0 %v7458
    %9084 = vmatpush1.bf16.msra.mxu0 %v7457
    %9085 = vmatprep.subr.bf16.mxu0 %v7448
    %9086 = vmatpush1.bf16.msra.mxu0 %v7447
    %9087 = vmatprep.subr.bf16.mxu0 %v7438
    %9088 = vmatpush1.bf16.msra.mxu0 %v7437
    %9089 = vmatprep.subr.bf16.mxu0 %v7428
    %9090 = vmatpush1.bf16.msra.mxu0 %v7427
    %9091 = vmatprep.subr.bf16.mxu0 %v7418
    %9092 = vmatpush1.bf16.msra.mxu0 %v7417
    %9093 = vmatprep.subr.bf16.mxu0 %v7408
    %9094 = vmatpush1.bf16.msra.mxu0 %v7407
    %9095 = vmatprep.subr.bf16.mxu0 %v7398
    %9096 = vmatpush1.bf16.msra.mxu0 %v7397
    %9097 = vmatprep.subr.bf16.mxu0 %v7548
    %9098 = vmatpush2.bf16.msra.mxu0 %v7547
    %9099 = vmatprep.subr.bf16.mxu0 %v7538
    %9100 = vmatpush2.bf16.msra.mxu0 %v7537
    %9101 = vmatprep.subr.bf16.mxu0 %v7528
    %9102 = vmatpush2.bf16.msra.mxu0 %v7527
    %9103 = vmatprep.subr.bf16.mxu0 %v7518
    %9104 = vmatpush2.bf16.msra.mxu0 %v7517
    %9105 = vmatprep.subr.bf16.mxu0 %v7508
    %9106 = vmatpush2.bf16.msra.mxu0 %v7507
    %9107 = vmatprep.subr.bf16.mxu0 %v7498
    %9108 = vmatpush2.bf16.msra.mxu0 %v7497
    %9109 = vmatprep.subr.bf16.mxu0 %v7488
    %9110 = vmatpush2.bf16.msra.mxu0 %v7487
    %9111 = vmatprep.subr.bf16.mxu0 %v7478
    %9112 = vmatpush2.bf16.msra.mxu0 %v7477
    %9113 = vmatprep.mubr.bf16.mxu0 %v3974
    %9114 = vmatmul.mubr.bf16.gmra.mxu0 %v3973
    %v9115 = vpop.f32.mrf.mxu0
    %v9116 = vadd.f32 %v9075, %v9115
    %v9117 = vpop.f32.mrf.mxu0
    %v9118 = vadd.f32 %v9077, %v9117
    %v9119 = vpop.f32.mrf.mxu0
    %v9120 = vpop.f32.mrf.mxu0
    %9121 = vdwg.mxu0
    %9122 = vmatprep.subr.bf16.mxu0 %v7628
    %9123 = vmatpush1.bf16.msra.mxu0 %v7627
    %9124 = vmatprep.subr.bf16.mxu0 %v7618
    %9125 = vmatpush1.bf16.msra.mxu0 %v7617
    %9126 = vmatprep.subr.bf16.mxu0 %v7608
    %9127 = vmatpush1.bf16.msra.mxu0 %v7607
    %9128 = vmatprep.subr.bf16.mxu0 %v7598
    %9129 = vmatpush1.bf16.msra.mxu0 %v7597
    %9130 = vmatprep.subr.bf16.mxu0 %v7588
    %9131 = vmatpush1.bf16.msra.mxu0 %v7587
    %9132 = vmatprep.subr.bf16.mxu0 %v7578
    %9133 = vmatpush1.bf16.msra.mxu0 %v7577
    %9134 = vmatprep.subr.bf16.mxu0 %v7568
    %9135 = vmatpush1.bf16.msra.mxu0 %v7567
    %9136 = vmatprep.subr.bf16.mxu0 %v7558
    %9137 = vmatpush1.bf16.msra.mxu0 %v7557
    %9138 = vmatprep.subr.bf16.mxu0 %v7708
    %9139 = vmatpush2.bf16.msra.mxu0 %v7707
    %9140 = vmatprep.subr.bf16.mxu0 %v7698
    %9141 = vmatpush2.bf16.msra.mxu0 %v7697
    %9142 = vmatprep.subr.bf16.mxu0 %v7688
    %9143 = vmatpush2.bf16.msra.mxu0 %v7687
    %9144 = vmatprep.subr.bf16.mxu0 %v7678
    %9145 = vmatpush2.bf16.msra.mxu0 %v7677
    %9146 = vmatprep.subr.bf16.mxu0 %v7668
    %9147 = vmatpush2.bf16.msra.mxu0 %v7667
    %9148 = vmatprep.subr.bf16.mxu0 %v7658
    %9149 = vmatpush2.bf16.msra.mxu0 %v7657
    %9150 = vmatprep.subr.bf16.mxu0 %v7648
    %9151 = vmatpush2.bf16.msra.mxu0 %v7647
    %9152 = vmatprep.subr.bf16.mxu0 %v7638
    %9153 = vmatpush2.bf16.msra.mxu0 %v7637
    %9154 = vmatprep.mubr.bf16.mxu0 %v3976
    %9155 = vmatmul.mubr.bf16.gmra.mxu0 %v3975
    %v9156 = vpop.f32.mrf.mxu0
    %v9157 = vadd.f32 %v9116, %v9156
    %v9158 = vpop.f32.mrf.mxu0
    %v9159 = vadd.f32 %v9118, %v9158
    %v9160 = vpop.f32.mrf.mxu0
    %v9161 = vpop.f32.mrf.mxu0
    %9162 = vdwg.mxu0
    %9163 = vmatprep.subr.bf16.mxu0 %v7788
    %9164 = vmatpush1.bf16.msra.mxu0 %v7787
    %9165 = vmatprep.subr.bf16.mxu0 %v7778
    %9166 = vmatpush1.bf16.msra.mxu0 %v7777
    %9167 = vmatprep.subr.bf16.mxu0 %v7768
    %9168 = vmatpush1.bf16.msra.mxu0 %v7767
    %9169 = vmatprep.subr.bf16.mxu0 %v7758
    %9170 = vmatpush1.bf16.msra.mxu0 %v7757
    %9171 = vmatprep.subr.bf16.mxu0 %v7748
    %9172 = vmatpush1.bf16.msra.mxu0 %v7747
    %9173 = vmatprep.subr.bf16.mxu0 %v7738
    %9174 = vmatpush1.bf16.msra.mxu0 %v7737
    %9175 = vmatprep.subr.bf16.mxu0 %v7728
    %9176 = vmatpush1.bf16.msra.mxu0 %v7727
    %9177 = vmatprep.subr.bf16.mxu0 %v7718
    %9178 = vmatpush1.bf16.msra.mxu0 %v7717
    %9179 = vmatprep.subr.bf16.mxu0 %v7868
    %9180 = vmatpush2.bf16.msra.mxu0 %v7867
    %9181 = vmatprep.subr.bf16.mxu0 %v7858
    %9182 = vmatpush2.bf16.msra.mxu0 %v7857
    %9183 = vmatprep.subr.bf16.mxu0 %v7848
    %9184 = vmatpush2.bf16.msra.mxu0 %v7847
    %9185 = vmatprep.subr.bf16.mxu0 %v7838
    %9186 = vmatpush2.bf16.msra.mxu0 %v7837
    %9187 = vmatprep.subr.bf16.mxu0 %v7828
    %9188 = vmatpush2.bf16.msra.mxu0 %v7827
    %9189 = vmatprep.subr.bf16.mxu0 %v7818
    %9190 = vmatpush2.bf16.msra.mxu0 %v7817
    %9191 = vmatprep.subr.bf16.mxu0 %v7808
    %9192 = vmatpush2.bf16.msra.mxu0 %v7807
    %9193 = vmatprep.subr.bf16.mxu0 %v7798
    %9194 = vmatpush2.bf16.msra.mxu0 %v7797
    %9195 = vmatprep.mubr.bf16.mxu0 %v3978
    %9196 = vmatmul.mubr.bf16.gmra.mxu0 %v3977
    %v9197 = vpop.f32.mrf.mxu0
    %v9198 = vadd.f32 %v9157, %v9197
    %v9199 = vpop.f32.mrf.mxu0
    %v9200 = vadd.f32 %v9159, %v9199
    %v9201 = vpop.f32.mrf.mxu0
    %v9202 = vpop.f32.mrf.mxu0
    %9203 = vdwg.mxu0
    %9204 = vmatprep.subr.bf16.mxu0 %v7948
    %9205 = vmatpush1.bf16.msra.mxu0 %v7947
    %9206 = vmatprep.subr.bf16.mxu0 %v7938
    %9207 = vmatpush1.bf16.msra.mxu0 %v7937
    %9208 = vmatprep.subr.bf16.mxu0 %v7928
    %9209 = vmatpush1.bf16.msra.mxu0 %v7927
    %9210 = vmatprep.subr.bf16.mxu0 %v7918
    %9211 = vmatpush1.bf16.msra.mxu0 %v7917
    %9212 = vmatprep.subr.bf16.mxu0 %v7908
    %9213 = vmatpush1.bf16.msra.mxu0 %v7907
    %9214 = vmatprep.subr.bf16.mxu0 %v7898
    %9215 = vmatpush1.bf16.msra.mxu0 %v7897
    %9216 = vmatprep.subr.bf16.mxu0 %v7888
    %9217 = vmatpush1.bf16.msra.mxu0 %v7887
    %9218 = vmatprep.subr.bf16.mxu0 %v7878
    %9219 = vmatpush1.bf16.msra.mxu0 %v7877
    %9220 = vmatprep.subr.bf16.mxu0 %v8028
    %9221 = vmatpush2.bf16.msra.mxu0 %v8027
    %9222 = vmatprep.subr.bf16.mxu0 %v8018
    %9223 = vmatpush2.bf16.msra.mxu0 %v8017
    %9224 = vmatprep.subr.bf16.mxu0 %v8008
    %9225 = vmatpush2.bf16.msra.mxu0 %v8007
    %9226 = vmatprep.subr.bf16.mxu0 %v7998
    %9227 = vmatpush2.bf16.msra.mxu0 %v7997
    %9228 = vmatprep.subr.bf16.mxu0 %v7988
    %9229 = vmatpush2.bf16.msra.mxu0 %v7987
    %9230 = vmatprep.subr.bf16.mxu0 %v7978
    %9231 = vmatpush2.bf16.msra.mxu0 %v7977
    %9232 = vmatprep.subr.bf16.mxu0 %v7968
    %9233 = vmatpush2.bf16.msra.mxu0 %v7967
    %9234 = vmatprep.subr.bf16.mxu0 %v7958
    %9235 = vmatpush2.bf16.msra.mxu0 %v7957
    %9236 = vmatprep.mubr.bf16.mxu0 %v3980
    %9237 = vmatmul.mubr.bf16.gmra.mxu0 %v3979
    %v9238 = vpop.f32.mrf.mxu0
    %v9239 = vadd.f32 %v9198, %v9238
    %v9240 = vpop.f32.mrf.mxu0
    %v9241 = vadd.f32 %v9200, %v9240
    %v9242 = vpop.f32.mrf.mxu0
    %v9243 = vpop.f32.mrf.mxu0
    %9244 = vdwg.mxu0
    %9245 = vmatprep.subr.bf16.mxu0 %v7310
    %9246 = vmatpush1.bf16.msra.mxu0 %v7309
    %9247 = vmatprep.subr.bf16.mxu0 %v7300
    %9248 = vmatpush1.bf16.msra.mxu0 %v7299
    %9249 = vmatprep.subr.bf16.mxu0 %v7290
    %9250 = vmatpush1.bf16.msra.mxu0 %v7289
    %9251 = vmatprep.subr.bf16.mxu0 %v7280
    %9252 = vmatpush1.bf16.msra.mxu0 %v7279
    %9253 = vmatprep.subr.bf16.mxu0 %v7270
    %9254 = vmatpush1.bf16.msra.mxu0 %v7269
    %9255 = vmatprep.subr.bf16.mxu0 %v7260
    %9256 = vmatpush1.bf16.msra.mxu0 %v7259
    %9257 = vmatprep.subr.bf16.mxu0 %v7250
    %9258 = vmatpush1.bf16.msra.mxu0 %v7249
    %9259 = vmatprep.subr.bf16.mxu0 %v7240
    %9260 = vmatpush1.bf16.msra.mxu0 %v7239
    %9261 = vmatprep.subr.bf16.mxu0 %v7390
    %9262 = vmatpush2.bf16.msra.mxu0 %v7389
    %9263 = vmatprep.subr.bf16.mxu0 %v7380
    %9264 = vmatpush2.bf16.msra.mxu0 %v7379
    %9265 = vmatprep.subr.bf16.mxu0 %v7370
    %9266 = vmatpush2.bf16.msra.mxu0 %v7369
    %9267 = vmatprep.subr.bf16.mxu0 %v7360
    %9268 = vmatpush2.bf16.msra.mxu0 %v7359
    %9269 = vmatprep.subr.bf16.mxu0 %v7350
    %9270 = vmatpush2.bf16.msra.mxu0 %v7349
    %9271 = vmatprep.subr.bf16.mxu0 %v7340
    %9272 = vmatpush2.bf16.msra.mxu0 %v7339
    %9273 = vmatprep.subr.bf16.mxu0 %v7330
    %9274 = vmatpush2.bf16.msra.mxu0 %v7329
    %9275 = vmatprep.subr.bf16.mxu0 %v7320
    %9276 = vmatpush2.bf16.msra.mxu0 %v7319
    %9277 = vmatprep.mubr.bf16.mxu0 %v3972
    %9278 = vmatmul.mubr.bf16.gmra.mxu0 %v3971
    %v9279 = vpop.f32.mrf.mxu0
    %v9280 = vadd.f32 %v4804, %v9279
    %v9281 = vpop.f32.mrf.mxu0
    %v9282 = vadd.f32 %v4808, %v9281
    %v9283 = vpop.f32.mrf.mxu0
    %v9284 = vpop.f32.mrf.mxu0
    %9285 = vdwg.mxu0
    %9286 = vmatprep.subr.bf16.mxu0 %v7470
    %9287 = vmatpush1.bf16.msra.mxu0 %v7469
    %9288 = vmatprep.subr.bf16.mxu0 %v7460
    %9289 = vmatpush1.bf16.msra.mxu0 %v7459
    %9290 = vmatprep.subr.bf16.mxu0 %v7450
    %9291 = vmatpush1.bf16.msra.mxu0 %v7449
    %9292 = vmatprep.subr.bf16.mxu0 %v7440
    %9293 = vmatpush1.bf16.msra.mxu0 %v7439
    %9294 = vmatprep.subr.bf16.mxu0 %v7430
    %9295 = vmatpush1.bf16.msra.mxu0 %v7429
    %9296 = vmatprep.subr.bf16.mxu0 %v7420
    %9297 = vmatpush1.bf16.msra.mxu0 %v7419
    %9298 = vmatprep.subr.bf16.mxu0 %v7410
    %9299 = vmatpush1.bf16.msra.mxu0 %v7409
    %9300 = vmatprep.subr.bf16.mxu0 %v7400
    %9301 = vmatpush1.bf16.msra.mxu0 %v7399
    %9302 = vmatprep.subr.bf16.mxu0 %v7550
    %9303 = vmatpush2.bf16.msra.mxu0 %v7549
    %9304 = vmatprep.subr.bf16.mxu0 %v7540
    %9305 = vmatpush2.bf16.msra.mxu0 %v7539
    %9306 = vmatprep.subr.bf16.mxu0 %v7530
    %9307 = vmatpush2.bf16.msra.mxu0 %v7529
    %9308 = vmatprep.subr.bf16.mxu0 %v7520
    %9309 = vmatpush2.bf16.msra.mxu0 %v7519
    %9310 = vmatprep.subr.bf16.mxu0 %v7510
    %9311 = vmatpush2.bf16.msra.mxu0 %v7509
    %9312 = vmatprep.subr.bf16.mxu0 %v7500
    %9313 = vmatpush2.bf16.msra.mxu0 %v7499
    %9314 = vmatprep.subr.bf16.mxu0 %v7490
    %9315 = vmatpush2.bf16.msra.mxu0 %v7489
    %9316 = vmatprep.subr.bf16.mxu0 %v7480
    %9317 = vmatpush2.bf16.msra.mxu0 %v7479
    %9318 = vmatprep.mubr.bf16.mxu0 %v3974
    %9319 = vmatmul.mubr.bf16.gmra.mxu0 %v3973
    %v9320 = vpop.f32.mrf.mxu0
    %v9321 = vadd.f32 %v9280, %v9320
    %v9322 = vpop.f32.mrf.mxu0
    %v9323 = vadd.f32 %v9282, %v9322
    %v9324 = vpop.f32.mrf.mxu0
    %v9325 = vpop.f32.mrf.mxu0
    %9326 = vdwg.mxu0
    %9327 = vmatprep.subr.bf16.mxu0 %v7630
    %9328 = vmatpush1.bf16.msra.mxu0 %v7629
    %9329 = vmatprep.subr.bf16.mxu0 %v7620
    %9330 = vmatpush1.bf16.msra.mxu0 %v7619
    %9331 = vmatprep.subr.bf16.mxu0 %v7610
    %9332 = vmatpush1.bf16.msra.mxu0 %v7609
    %9333 = vmatprep.subr.bf16.mxu0 %v7600
    %9334 = vmatpush1.bf16.msra.mxu0 %v7599
    %9335 = vmatprep.subr.bf16.mxu0 %v7590
    %9336 = vmatpush1.bf16.msra.mxu0 %v7589
    %9337 = vmatprep.subr.bf16.mxu0 %v7580
    %9338 = vmatpush1.bf16.msra.mxu0 %v7579
    %9339 = vmatprep.subr.bf16.mxu0 %v7570
    %9340 = vmatpush1.bf16.msra.mxu0 %v7569
    %9341 = vmatprep.subr.bf16.mxu0 %v7560
    %9342 = vmatpush1.bf16.msra.mxu0 %v7559
    %9343 = vmatprep.subr.bf16.mxu0 %v7710
    %9344 = vmatpush2.bf16.msra.mxu0 %v7709
    %9345 = vmatprep.subr.bf16.mxu0 %v7700
    %9346 = vmatpush2.bf16.msra.mxu0 %v7699
    %9347 = vmatprep.subr.bf16.mxu0 %v7690
    %9348 = vmatpush2.bf16.msra.mxu0 %v7689
    %9349 = vmatprep.subr.bf16.mxu0 %v7680
    %9350 = vmatpush2.bf16.msra.mxu0 %v7679
    %9351 = vmatprep.subr.bf16.mxu0 %v7670
    %9352 = vmatpush2.bf16.msra.mxu0 %v7669
    %9353 = vmatprep.subr.bf16.mxu0 %v7660
    %9354 = vmatpush2.bf16.msra.mxu0 %v7659
    %9355 = vmatprep.subr.bf16.mxu0 %v7650
    %9356 = vmatpush2.bf16.msra.mxu0 %v7649
    %9357 = vmatprep.subr.bf16.mxu0 %v7640
    %9358 = vmatpush2.bf16.msra.mxu0 %v7639
    %9359 = vmatprep.mubr.bf16.mxu0 %v3976
    %9360 = vmatmul.mubr.bf16.gmra.mxu0 %v3975
    %v9361 = vpop.f32.mrf.mxu0
    %v9362 = vadd.f32 %v9321, %v9361
    %v9363 = vpop.f32.mrf.mxu0
    %v9364 = vadd.f32 %v9323, %v9363
    %v9365 = vpop.f32.mrf.mxu0
    %v9366 = vpop.f32.mrf.mxu0
    %9367 = vdwg.mxu0
    %9368 = vmatprep.subr.bf16.mxu0 %v7790
    %9369 = vmatpush1.bf16.msra.mxu0 %v7789
    %9370 = vmatprep.subr.bf16.mxu0 %v7780
    %9371 = vmatpush1.bf16.msra.mxu0 %v7779
    %9372 = vmatprep.subr.bf16.mxu0 %v7770
    %9373 = vmatpush1.bf16.msra.mxu0 %v7769
    %9374 = vmatprep.subr.bf16.mxu0 %v7760
    %9375 = vmatpush1.bf16.msra.mxu0 %v7759
    %9376 = vmatprep.subr.bf16.mxu0 %v7750
    %9377 = vmatpush1.bf16.msra.mxu0 %v7749
    %9378 = vmatprep.subr.bf16.mxu0 %v7740
    %9379 = vmatpush1.bf16.msra.mxu0 %v7739
    %9380 = vmatprep.subr.bf16.mxu0 %v7730
    %9381 = vmatpush1.bf16.msra.mxu0 %v7729
    %9382 = vmatprep.subr.bf16.mxu0 %v7720
    %9383 = vmatpush1.bf16.msra.mxu0 %v7719
    %9384 = vmatprep.subr.bf16.mxu0 %v7870
    %9385 = vmatpush2.bf16.msra.mxu0 %v7869
    %9386 = vmatprep.subr.bf16.mxu0 %v7860
    %9387 = vmatpush2.bf16.msra.mxu0 %v7859
    %9388 = vmatprep.subr.bf16.mxu0 %v7850
    %9389 = vmatpush2.bf16.msra.mxu0 %v7849
    %9390 = vmatprep.subr.bf16.mxu0 %v7840
    %9391 = vmatpush2.bf16.msra.mxu0 %v7839
    %9392 = vmatprep.subr.bf16.mxu0 %v7830
    %9393 = vmatpush2.bf16.msra.mxu0 %v7829
    %9394 = vmatprep.subr.bf16.mxu0 %v7820
    %9395 = vmatpush2.bf16.msra.mxu0 %v7819
    %9396 = vmatprep.subr.bf16.mxu0 %v7810
    %9397 = vmatpush2.bf16.msra.mxu0 %v7809
    %9398 = vmatprep.subr.bf16.mxu0 %v7800
    %9399 = vmatpush2.bf16.msra.mxu0 %v7799
    %9400 = vmatprep.mubr.bf16.mxu0 %v3978
    %9401 = vmatmul.mubr.bf16.gmra.mxu0 %v3977
    %v9402 = vpop.f32.mrf.mxu0
    %v9403 = vadd.f32 %v9362, %v9402
    %v9404 = vpop.f32.mrf.mxu0
    %v9405 = vadd.f32 %v9364, %v9404
    %v9406 = vpop.f32.mrf.mxu0
    %v9407 = vpop.f32.mrf.mxu0
    %9408 = vdwg.mxu0
    %9409 = vmatprep.subr.bf16.mxu0 %v7950
    %9410 = vmatpush1.bf16.msra.mxu0 %v7949
    %9411 = vmatprep.subr.bf16.mxu0 %v7940
    %9412 = vmatpush1.bf16.msra.mxu0 %v7939
    %9413 = vmatprep.subr.bf16.mxu0 %v7930
    %9414 = vmatpush1.bf16.msra.mxu0 %v7929
    %9415 = vmatprep.subr.bf16.mxu0 %v7920
    %9416 = vmatpush1.bf16.msra.mxu0 %v7919
    %9417 = vmatprep.subr.bf16.mxu0 %v7910
    %9418 = vmatpush1.bf16.msra.mxu0 %v7909
    %9419 = vmatprep.subr.bf16.mxu0 %v7900
    %9420 = vmatpush1.bf16.msra.mxu0 %v7899
    %9421 = vmatprep.subr.bf16.mxu0 %v7890
    %9422 = vmatpush1.bf16.msra.mxu0 %v7889
    %9423 = vmatprep.subr.bf16.mxu0 %v7880
    %9424 = vmatpush1.bf16.msra.mxu0 %v7879
    %9425 = vmatprep.subr.bf16.mxu0 %v8030
    %9426 = vmatpush2.bf16.msra.mxu0 %v8029
    %9427 = vmatprep.subr.bf16.mxu0 %v8020
    %9428 = vmatpush2.bf16.msra.mxu0 %v8019
    %9429 = vmatprep.subr.bf16.mxu0 %v8010
    %9430 = vmatpush2.bf16.msra.mxu0 %v8009
    %9431 = vmatprep.subr.bf16.mxu0 %v8000
    %9432 = vmatpush2.bf16.msra.mxu0 %v7999
    %9433 = vmatprep.subr.bf16.mxu0 %v7990
    %9434 = vmatpush2.bf16.msra.mxu0 %v7989
    %9435 = vmatprep.subr.bf16.mxu0 %v7980
    %9436 = vmatpush2.bf16.msra.mxu0 %v7979
    %9437 = vmatprep.subr.bf16.mxu0 %v7970
    %9438 = vmatpush2.bf16.msra.mxu0 %v7969
    %9439 = vmatprep.subr.bf16.mxu0 %v7960
    %9440 = vmatpush2.bf16.msra.mxu0 %v7959
    %9441 = vmatprep.mubr.bf16.mxu0 %v3980
    %9442 = vmatmul.mubr.bf16.gmra.mxu0 %v3979
    %v9443 = vpop.f32.mrf.mxu0
    %v9444 = vadd.f32 %v9403, %v9443
    %v9445 = vpop.f32.mrf.mxu0
    %v9446 = vadd.f32 %v9405, %v9445
    %v9447 = vpop.f32.mrf.mxu0
    %v9448 = vpop.f32.mrf.mxu0
    %9449 = vdwg.mxu0
    %9450 = vmatprep.subr.bf16.mxu0 %v7312
    %9451 = vmatpush1.bf16.msra.mxu0 %v7311
    %9452 = vmatprep.subr.bf16.mxu0 %v7302
    %9453 = vmatpush1.bf16.msra.mxu0 %v7301
    %9454 = vmatprep.subr.bf16.mxu0 %v7292
    %9455 = vmatpush1.bf16.msra.mxu0 %v7291
    %9456 = vmatprep.subr.bf16.mxu0 %v7282
    %9457 = vmatpush1.bf16.msra.mxu0 %v7281
    %9458 = vmatprep.subr.bf16.mxu0 %v7272
    %9459 = vmatpush1.bf16.msra.mxu0 %v7271
    %9460 = vmatprep.subr.bf16.mxu0 %v7262
    %9461 = vmatpush1.bf16.msra.mxu0 %v7261
    %9462 = vmatprep.subr.bf16.mxu0 %v7252
    %9463 = vmatpush1.bf16.msra.mxu0 %v7251
    %9464 = vmatprep.subr.bf16.mxu0 %v7242
    %9465 = vmatpush1.bf16.msra.mxu0 %v7241
    %9466 = vmatprep.subr.bf16.mxu0 %v7392
    %9467 = vmatpush2.bf16.msra.mxu0 %v7391
    %9468 = vmatprep.subr.bf16.mxu0 %v7382
    %9469 = vmatpush2.bf16.msra.mxu0 %v7381
    %9470 = vmatprep.subr.bf16.mxu0 %v7372
    %9471 = vmatpush2.bf16.msra.mxu0 %v7371
    %9472 = vmatprep.subr.bf16.mxu0 %v7362
    %9473 = vmatpush2.bf16.msra.mxu0 %v7361
    %9474 = vmatprep.subr.bf16.mxu0 %v7352
    %9475 = vmatpush2.bf16.msra.mxu0 %v7351
    %9476 = vmatprep.subr.bf16.mxu0 %v7342
    %9477 = vmatpush2.bf16.msra.mxu0 %v7341
    %9478 = vmatprep.subr.bf16.mxu0 %v7332
    %9479 = vmatpush2.bf16.msra.mxu0 %v7331
    %9480 = vmatprep.subr.bf16.mxu0 %v7322
    %9481 = vmatpush2.bf16.msra.mxu0 %v7321
    %9482 = vmatprep.mubr.bf16.mxu0 %v3972
    %9483 = vmatmul.mubr.bf16.gmra.mxu0 %v3971
    %v9484 = vpop.f32.mrf.mxu0
    %v9485 = vadd.f32 %v4812, %v9484
    %v9486 = vpop.f32.mrf.mxu0
    %v9487 = vadd.f32 %v4816, %v9486
    %v9488 = vpop.f32.mrf.mxu0
    %v9489 = vpop.f32.mrf.mxu0
    %9490 = vdwg.mxu0
    %9491 = vmatprep.subr.bf16.mxu0 %v7472
    %9492 = vmatpush1.bf16.msra.mxu0 %v7471
    %9493 = vmatprep.subr.bf16.mxu0 %v7462
    %9494 = vmatpush1.bf16.msra.mxu0 %v7461
    %9495 = vmatprep.subr.bf16.mxu0 %v7452
    %9496 = vmatpush1.bf16.msra.mxu0 %v7451
    %9497 = vmatprep.subr.bf16.mxu0 %v7442
    %9498 = vmatpush1.bf16.msra.mxu0 %v7441
    %9499 = vmatprep.subr.bf16.mxu0 %v7432
    %9500 = vmatpush1.bf16.msra.mxu0 %v7431
    %9501 = vmatprep.subr.bf16.mxu0 %v7422
    %9502 = vmatpush1.bf16.msra.mxu0 %v7421
    %9503 = vmatprep.subr.bf16.mxu0 %v7412
    %9504 = vmatpush1.bf16.msra.mxu0 %v7411
    %9505 = vmatprep.subr.bf16.mxu0 %v7402
    %9506 = vmatpush1.bf16.msra.mxu0 %v7401
    %9507 = vmatprep.subr.bf16.mxu0 %v7552
    %9508 = vmatpush2.bf16.msra.mxu0 %v7551
    %9509 = vmatprep.subr.bf16.mxu0 %v7542
    %9510 = vmatpush2.bf16.msra.mxu0 %v7541
    %9511 = vmatprep.subr.bf16.mxu0 %v7532
    %9512 = vmatpush2.bf16.msra.mxu0 %v7531
    %9513 = vmatprep.subr.bf16.mxu0 %v7522
    %9514 = vmatpush2.bf16.msra.mxu0 %v7521
    %9515 = vmatprep.subr.bf16.mxu0 %v7512
    %9516 = vmatpush2.bf16.msra.mxu0 %v7511
    %9517 = vmatprep.subr.bf16.mxu0 %v7502
    %9518 = vmatpush2.bf16.msra.mxu0 %v7501
    %9519 = vmatprep.subr.bf16.mxu0 %v7492
    %9520 = vmatpush2.bf16.msra.mxu0 %v7491
    %9521 = vmatprep.subr.bf16.mxu0 %v7482
    %9522 = vmatpush2.bf16.msra.mxu0 %v7481
    %9523 = vmatprep.mubr.bf16.mxu0 %v3974
    %9524 = vmatmul.mubr.bf16.gmra.mxu0 %v3973
    %v9525 = vpop.f32.mrf.mxu0
    %v9526 = vadd.f32 %v9485, %v9525
    %v9527 = vpop.f32.mrf.mxu0
    %v9528 = vadd.f32 %v9487, %v9527
    %v9529 = vpop.f32.mrf.mxu0
    %v9530 = vpop.f32.mrf.mxu0
    %9531 = vdwg.mxu0
    %9532 = vmatprep.subr.bf16.mxu0 %v7632
    %9533 = vmatpush1.bf16.msra.mxu0 %v7631
    %9534 = vmatprep.subr.bf16.mxu0 %v7622
    %9535 = vmatpush1.bf16.msra.mxu0 %v7621
    %9536 = vmatprep.subr.bf16.mxu0 %v7612
    %9537 = vmatpush1.bf16.msra.mxu0 %v7611
    %9538 = vmatprep.subr.bf16.mxu0 %v7602
    %9539 = vmatpush1.bf16.msra.mxu0 %v7601
    %9540 = vmatprep.subr.bf16.mxu0 %v7592
    %9541 = vmatpush1.bf16.msra.mxu0 %v7591
    %9542 = vmatprep.subr.bf16.mxu0 %v7582
    %9543 = vmatpush1.bf16.msra.mxu0 %v7581
    %9544 = vmatprep.subr.bf16.mxu0 %v7572
    %9545 = vmatpush1.bf16.msra.mxu0 %v7571
    %9546 = vmatprep.subr.bf16.mxu0 %v7562
    %9547 = vmatpush1.bf16.msra.mxu0 %v7561
    %9548 = vmatprep.subr.bf16.mxu0 %v7712
    %9549 = vmatpush2.bf16.msra.mxu0 %v7711
    %9550 = vmatprep.subr.bf16.mxu0 %v7702
    %9551 = vmatpush2.bf16.msra.mxu0 %v7701
    %9552 = vmatprep.subr.bf16.mxu0 %v7692
    %9553 = vmatpush2.bf16.msra.mxu0 %v7691
    %9554 = vmatprep.subr.bf16.mxu0 %v7682
    %9555 = vmatpush2.bf16.msra.mxu0 %v7681
    %9556 = vmatprep.subr.bf16.mxu0 %v7672
    %9557 = vmatpush2.bf16.msra.mxu0 %v7671
    %9558 = vmatprep.subr.bf16.mxu0 %v7662
    %9559 = vmatpush2.bf16.msra.mxu0 %v7661
    %9560 = vmatprep.subr.bf16.mxu0 %v7652
    %9561 = vmatpush2.bf16.msra.mxu0 %v7651
    %9562 = vmatprep.subr.bf16.mxu0 %v7642
    %9563 = vmatpush2.bf16.msra.mxu0 %v7641
    %9564 = vmatprep.mubr.bf16.mxu0 %v3976
    %9565 = vmatmul.mubr.bf16.gmra.mxu0 %v3975
    %v9566 = vpop.f32.mrf.mxu0
    %v9567 = vadd.f32 %v9526, %v9566
    %v9568 = vpop.f32.mrf.mxu0
    %v9569 = vadd.f32 %v9528, %v9568
    %v9570 = vpop.f32.mrf.mxu0
    %v9571 = vpop.f32.mrf.mxu0
    %9572 = vdwg.mxu0
    %9573 = vmatprep.subr.bf16.mxu0 %v7792
    %9574 = vmatpush1.bf16.msra.mxu0 %v7791
    %9575 = vmatprep.subr.bf16.mxu0 %v7782
    %9576 = vmatpush1.bf16.msra.mxu0 %v7781
    %9577 = vmatprep.subr.bf16.mxu0 %v7772
    %9578 = vmatpush1.bf16.msra.mxu0 %v7771
    %9579 = vmatprep.subr.bf16.mxu0 %v7762
    %9580 = vmatpush1.bf16.msra.mxu0 %v7761
    %9581 = vmatprep.subr.bf16.mxu0 %v7752
    %9582 = vmatpush1.bf16.msra.mxu0 %v7751
    %9583 = vmatprep.subr.bf16.mxu0 %v7742
    %9584 = vmatpush1.bf16.msra.mxu0 %v7741
    %9585 = vmatprep.subr.bf16.mxu0 %v7732
    %9586 = vmatpush1.bf16.msra.mxu0 %v7731
    %9587 = vmatprep.subr.bf16.mxu0 %v7722
    %9588 = vmatpush1.bf16.msra.mxu0 %v7721
    %9589 = vmatprep.subr.bf16.mxu0 %v7872
    %9590 = vmatpush2.bf16.msra.mxu0 %v7871
    %9591 = vmatprep.subr.bf16.mxu0 %v7862
    %9592 = vmatpush2.bf16.msra.mxu0 %v7861
    %9593 = vmatprep.subr.bf16.mxu0 %v7852
    %9594 = vmatpush2.bf16.msra.mxu0 %v7851
    %9595 = vmatprep.subr.bf16.mxu0 %v7842
    %9596 = vmatpush2.bf16.msra.mxu0 %v7841
    %9597 = vmatprep.subr.bf16.mxu0 %v7832
    %9598 = vmatpush2.bf16.msra.mxu0 %v7831
    %9599 = vmatprep.subr.bf16.mxu0 %v7822
    %9600 = vmatpush2.bf16.msra.mxu0 %v7821
    %9601 = vmatprep.subr.bf16.mxu0 %v7812
    %9602 = vmatpush2.bf16.msra.mxu0 %v7811
    %9603 = vmatprep.subr.bf16.mxu0 %v7802
    %9604 = vmatpush2.bf16.msra.mxu0 %v7801
    %9605 = vmatprep.mubr.bf16.mxu0 %v3978
    %9606 = vmatmul.mubr.bf16.gmra.mxu0 %v3977
    %v9607 = vpop.f32.mrf.mxu0
    %v9608 = vadd.f32 %v9567, %v9607
    %v9609 = vpop.f32.mrf.mxu0
    %v9610 = vadd.f32 %v9569, %v9609
    %v9611 = vpop.f32.mrf.mxu0
    %v9612 = vpop.f32.mrf.mxu0
    %9613 = vdwg.mxu0
    %9614 = vmatprep.subr.bf16.mxu0 %v7952
    %9615 = vmatpush1.bf16.msra.mxu0 %v7951
    %9616 = vmatprep.subr.bf16.mxu0 %v7942
    %9617 = vmatpush1.bf16.msra.mxu0 %v7941
    %9618 = vmatprep.subr.bf16.mxu0 %v7932
    %9619 = vmatpush1.bf16.msra.mxu0 %v7931
    %9620 = vmatprep.subr.bf16.mxu0 %v7922
    %9621 = vmatpush1.bf16.msra.mxu0 %v7921
    %9622 = vmatprep.subr.bf16.mxu0 %v7912
    %9623 = vmatpush1.bf16.msra.mxu0 %v7911
    %9624 = vmatprep.subr.bf16.mxu0 %v7902
    %9625 = vmatpush1.bf16.msra.mxu0 %v7901
    %9626 = vmatprep.subr.bf16.mxu0 %v7892
    %9627 = vmatpush1.bf16.msra.mxu0 %v7891
    %9628 = vmatprep.subr.bf16.mxu0 %v7882
    %9629 = vmatpush1.bf16.msra.mxu0 %v7881
    %9630 = vmatprep.subr.bf16.mxu0 %v8032
    %9631 = vmatpush2.bf16.msra.mxu0 %v8031
    %9632 = vmatprep.subr.bf16.mxu0 %v8022
    %9633 = vmatpush2.bf16.msra.mxu0 %v8021
    %9634 = vmatprep.subr.bf16.mxu0 %v8012
    %9635 = vmatpush2.bf16.msra.mxu0 %v8011
    %9636 = vmatprep.subr.bf16.mxu0 %v8002
    %9637 = vmatpush2.bf16.msra.mxu0 %v8001
    %9638 = vmatprep.subr.bf16.mxu0 %v7992
    %9639 = vmatpush2.bf16.msra.mxu0 %v7991
    %9640 = vmatprep.subr.bf16.mxu0 %v7982
    %9641 = vmatpush2.bf16.msra.mxu0 %v7981
    %9642 = vmatprep.subr.bf16.mxu0 %v7972
    %9643 = vmatpush2.bf16.msra.mxu0 %v7971
    %9644 = vmatprep.subr.bf16.mxu0 %v7962
    %9645 = vmatpush2.bf16.msra.mxu0 %v7961
    %9646 = vmatprep.mubr.bf16.mxu0 %v3980
    %9647 = vmatmul.mubr.bf16.gmra.mxu0 %v3979
    %v9648 = vpop.f32.mrf.mxu0
    %v9649 = vadd.f32 %v9608, %v9648
    %v9650 = vpop.f32.mrf.mxu0
    %v9651 = vadd.f32 %v9610, %v9650
    %v9652 = vpop.f32.mrf.mxu0
    %v9653 = vpop.f32.mrf.mxu0
    %9654 = vdwg.mxu0
    %9655 = vmatprep.subr.bf16.mxu0 %v7314
    %9656 = vmatpush1.bf16.msra.mxu0 %v7313
    %9657 = vmatprep.subr.bf16.mxu0 %v7304
    %9658 = vmatpush1.bf16.msra.mxu0 %v7303
    %9659 = vmatprep.subr.bf16.mxu0 %v7294
    %9660 = vmatpush1.bf16.msra.mxu0 %v7293
    %9661 = vmatprep.subr.bf16.mxu0 %v7284
    %9662 = vmatpush1.bf16.msra.mxu0 %v7283
    %9663 = vmatprep.subr.bf16.mxu0 %v7274
    %9664 = vmatpush1.bf16.msra.mxu0 %v7273
    %9665 = vmatprep.subr.bf16.mxu0 %v7264
    %9666 = vmatpush1.bf16.msra.mxu0 %v7263
    %9667 = vmatprep.subr.bf16.mxu0 %v7254
    %9668 = vmatpush1.bf16.msra.mxu0 %v7253
    %9669 = vmatprep.subr.bf16.mxu0 %v7244
    %9670 = vmatpush1.bf16.msra.mxu0 %v7243
    %9671 = vmatprep.subr.bf16.mxu0 %v7394
    %9672 = vmatpush2.bf16.msra.mxu0 %v7393
    %9673 = vmatprep.subr.bf16.mxu0 %v7384
    %9674 = vmatpush2.bf16.msra.mxu0 %v7383
    %9675 = vmatprep.subr.bf16.mxu0 %v7374
    %9676 = vmatpush2.bf16.msra.mxu0 %v7373
    %9677 = vmatprep.subr.bf16.mxu0 %v7364
    %9678 = vmatpush2.bf16.msra.mxu0 %v7363
    %9679 = vmatprep.subr.bf16.mxu0 %v7354
    %9680 = vmatpush2.bf16.msra.mxu0 %v7353
    %9681 = vmatprep.subr.bf16.mxu0 %v7344
    %9682 = vmatpush2.bf16.msra.mxu0 %v7343
    %9683 = vmatprep.subr.bf16.mxu0 %v7334
    %9684 = vmatpush2.bf16.msra.mxu0 %v7333
    %9685 = vmatprep.subr.bf16.mxu0 %v7324
    %9686 = vmatpush2.bf16.msra.mxu0 %v7323
    %9687 = vmatprep.mubr.bf16.mxu0 %v3972
    %9688 = vmatmul.mubr.bf16.gmra.mxu0 %v3971
    %v9689 = vpop.f32.mrf.mxu0
    %v9690 = vadd.f32 %v4820, %v9689
    %v9691 = vpop.f32.mrf.mxu0
    %v9692 = vadd.f32 %v4824, %v9691
    %v9693 = vpop.f32.mrf.mxu0
    %v9694 = vpop.f32.mrf.mxu0
    %9695 = vdwg.mxu0
    %9696 = vmatprep.subr.bf16.mxu0 %v7474
    %9697 = vmatpush1.bf16.msra.mxu0 %v7473
    %9698 = vmatprep.subr.bf16.mxu0 %v7464
    %9699 = vmatpush1.bf16.msra.mxu0 %v7463
    %9700 = vmatprep.subr.bf16.mxu0 %v7454
    %9701 = vmatpush1.bf16.msra.mxu0 %v7453
    %9702 = vmatprep.subr.bf16.mxu0 %v7444
    %9703 = vmatpush1.bf16.msra.mxu0 %v7443
    %9704 = vmatprep.subr.bf16.mxu0 %v7434
    %9705 = vmatpush1.bf16.msra.mxu0 %v7433
    %9706 = vmatprep.subr.bf16.mxu0 %v7424
    %9707 = vmatpush1.bf16.msra.mxu0 %v7423
    %9708 = vmatprep.subr.bf16.mxu0 %v7414
    %9709 = vmatpush1.bf16.msra.mxu0 %v7413
    %9710 = vmatprep.subr.bf16.mxu0 %v7404
    %9711 = vmatpush1.bf16.msra.mxu0 %v7403
    %9712 = vmatprep.subr.bf16.mxu0 %v7554
    %9713 = vmatpush2.bf16.msra.mxu0 %v7553
    %9714 = vmatprep.subr.bf16.mxu0 %v7544
    %9715 = vmatpush2.bf16.msra.mxu0 %v7543
    %9716 = vmatprep.subr.bf16.mxu0 %v7534
    %9717 = vmatpush2.bf16.msra.mxu0 %v7533
    %9718 = vmatprep.subr.bf16.mxu0 %v7524
    %9719 = vmatpush2.bf16.msra.mxu0 %v7523
    %9720 = vmatprep.subr.bf16.mxu0 %v7514
    %9721 = vmatpush2.bf16.msra.mxu0 %v7513
    %9722 = vmatprep.subr.bf16.mxu0 %v7504
    %9723 = vmatpush2.bf16.msra.mxu0 %v7503
    %9724 = vmatprep.subr.bf16.mxu0 %v7494
    %9725 = vmatpush2.bf16.msra.mxu0 %v7493
    %9726 = vmatprep.subr.bf16.mxu0 %v7484
    %9727 = vmatpush2.bf16.msra.mxu0 %v7483
    %9728 = vmatprep.mubr.bf16.mxu0 %v3974
    %9729 = vmatmul.mubr.bf16.gmra.mxu0 %v3973
    %v9730 = vpop.f32.mrf.mxu0
    %v9731 = vadd.f32 %v9690, %v9730
    %v9732 = vpop.f32.mrf.mxu0
    %v9733 = vadd.f32 %v9692, %v9732
    %v9734 = vpop.f32.mrf.mxu0
    %v9735 = vpop.f32.mrf.mxu0
    %9736 = vdwg.mxu0
    %9737 = vmatprep.subr.bf16.mxu0 %v7634
    %9738 = vmatpush1.bf16.msra.mxu0 %v7633
    %9739 = vmatprep.subr.bf16.mxu0 %v7624
    %9740 = vmatpush1.bf16.msra.mxu0 %v7623
    %9741 = vmatprep.subr.bf16.mxu0 %v7614
    %9742 = vmatpush1.bf16.msra.mxu0 %v7613
    %9743 = vmatprep.subr.bf16.mxu0 %v7604
    %9744 = vmatpush1.bf16.msra.mxu0 %v7603
    %9745 = vmatprep.subr.bf16.mxu0 %v7594
    %9746 = vmatpush1.bf16.msra.mxu0 %v7593
    %9747 = vmatprep.subr.bf16.mxu0 %v7584
    %9748 = vmatpush1.bf16.msra.mxu0 %v7583
    %9749 = vmatprep.subr.bf16.mxu0 %v7574
    %9750 = vmatpush1.bf16.msra.mxu0 %v7573
    %9751 = vmatprep.subr.bf16.mxu0 %v7564
    %9752 = vmatpush1.bf16.msra.mxu0 %v7563
    %9753 = vmatprep.subr.bf16.mxu0 %v7714
    %9754 = vmatpush2.bf16.msra.mxu0 %v7713
    %9755 = vmatprep.subr.bf16.mxu0 %v7704
    %9756 = vmatpush2.bf16.msra.mxu0 %v7703
    %9757 = vmatprep.subr.bf16.mxu0 %v7694
    %9758 = vmatpush2.bf16.msra.mxu0 %v7693
    %9759 = vmatprep.subr.bf16.mxu0 %v7684
    %9760 = vmatpush2.bf16.msra.mxu0 %v7683
    %9761 = vmatprep.subr.bf16.mxu0 %v7674
    %9762 = vmatpush2.bf16.msra.mxu0 %v7673
    %9763 = vmatprep.subr.bf16.mxu0 %v7664
    %9764 = vmatpush2.bf16.msra.mxu0 %v7663
    %9765 = vmatprep.subr.bf16.mxu0 %v7654
    %9766 = vmatpush2.bf16.msra.mxu0 %v7653
    %9767 = vmatprep.subr.bf16.mxu0 %v7644
    %9768 = vmatpush2.bf16.msra.mxu0 %v7643
    %9769 = vmatprep.mubr.bf16.mxu0 %v3976
    %9770 = vmatmul.mubr.bf16.gmra.mxu0 %v3975
    %v9771 = vpop.f32.mrf.mxu0
    %v9772 = vadd.f32 %v9731, %v9771
    %v9773 = vpop.f32.mrf.mxu0
    %v9774 = vadd.f32 %v9733, %v9773
    %v9775 = vpop.f32.mrf.mxu0
    %v9776 = vpop.f32.mrf.mxu0
    %9777 = vdwg.mxu0
    %9778 = vmatprep.subr.bf16.mxu0 %v7794
    %9779 = vmatpush1.bf16.msra.mxu0 %v7793
    %9780 = vmatprep.subr.bf16.mxu0 %v7784
    %9781 = vmatpush1.bf16.msra.mxu0 %v7783
    %9782 = vmatprep.subr.bf16.mxu0 %v7774
    %9783 = vmatpush1.bf16.msra.mxu0 %v7773
    %9784 = vmatprep.subr.bf16.mxu0 %v7764
    %9785 = vmatpush1.bf16.msra.mxu0 %v7763
    %9786 = vmatprep.subr.bf16.mxu0 %v7754
    %9787 = vmatpush1.bf16.msra.mxu0 %v7753
    %9788 = vmatprep.subr.bf16.mxu0 %v7744
    %9789 = vmatpush1.bf16.msra.mxu0 %v7743
    %9790 = vmatprep.subr.bf16.mxu0 %v7734
    %9791 = vmatpush1.bf16.msra.mxu0 %v7733
    %9792 = vmatprep.subr.bf16.mxu0 %v7724
    %9793 = vmatpush1.bf16.msra.mxu0 %v7723
    %9794 = vmatprep.subr.bf16.mxu0 %v7874
    %9795 = vmatpush2.bf16.msra.mxu0 %v7873
    %9796 = vmatprep.subr.bf16.mxu0 %v7864
    %9797 = vmatpush2.bf16.msra.mxu0 %v7863
    %9798 = vmatprep.subr.bf16.mxu0 %v7854
    %9799 = vmatpush2.bf16.msra.mxu0 %v7853
    %9800 = vmatprep.subr.bf16.mxu0 %v7844
    %9801 = vmatpush2.bf16.msra.mxu0 %v7843
    %9802 = vmatprep.subr.bf16.mxu0 %v7834
    %9803 = vmatpush2.bf16.msra.mxu0 %v7833
    %9804 = vmatprep.subr.bf16.mxu0 %v7824
    %9805 = vmatpush2.bf16.msra.mxu0 %v7823
    %9806 = vmatprep.subr.bf16.mxu0 %v7814
    %9807 = vmatpush2.bf16.msra.mxu0 %v7813
    %9808 = vmatprep.subr.bf16.mxu0 %v7804
    %9809 = vmatpush2.bf16.msra.mxu0 %v7803
    %9810 = vmatprep.mubr.bf16.mxu0 %v3978
    %9811 = vmatmul.mubr.bf16.gmra.mxu0 %v3977
    %v9812 = vpop.f32.mrf.mxu0
    %v9813 = vadd.f32 %v9772, %v9812
    %v9814 = vpop.f32.mrf.mxu0
    %v9815 = vadd.f32 %v9774, %v9814
    %v9816 = vpop.f32.mrf.mxu0
    %v9817 = vpop.f32.mrf.mxu0
    %9818 = vdwg.mxu0
    %9819 = vmatprep.subr.bf16.mxu0 %v7954
    %9820 = vmatpush1.bf16.msra.mxu0 %v7953
    %9821 = vmatprep.subr.bf16.mxu0 %v7944
    %9822 = vmatpush1.bf16.msra.mxu0 %v7943
    %9823 = vmatprep.subr.bf16.mxu0 %v7934
    %9824 = vmatpush1.bf16.msra.mxu0 %v7933
    %9825 = vmatprep.subr.bf16.mxu0 %v7924
    %9826 = vmatpush1.bf16.msra.mxu0 %v7923
    %9827 = vmatprep.subr.bf16.mxu0 %v7914
    %9828 = vmatpush1.bf16.msra.mxu0 %v7913
    %9829 = vmatprep.subr.bf16.mxu0 %v7904
    %9830 = vmatpush1.bf16.msra.mxu0 %v7903
    %9831 = vmatprep.subr.bf16.mxu0 %v7894
    %9832 = vmatpush1.bf16.msra.mxu0 %v7893
    %9833 = vmatprep.subr.bf16.mxu0 %v7884
    %9834 = vmatpush1.bf16.msra.mxu0 %v7883
    %9835 = vmatprep.subr.bf16.mxu0 %v8034
    %9836 = vmatpush2.bf16.msra.mxu0 %v8033
    %9837 = vmatprep.subr.bf16.mxu0 %v8024
    %9838 = vmatpush2.bf16.msra.mxu0 %v8023
    %9839 = vmatprep.subr.bf16.mxu0 %v8014
    %9840 = vmatpush2.bf16.msra.mxu0 %v8013
    %9841 = vmatprep.subr.bf16.mxu0 %v8004
    %9842 = vmatpush2.bf16.msra.mxu0 %v8003
    %9843 = vmatprep.subr.bf16.mxu0 %v7994
    %9844 = vmatpush2.bf16.msra.mxu0 %v7993
    %9845 = vmatprep.subr.bf16.mxu0 %v7984
    %9846 = vmatpush2.bf16.msra.mxu0 %v7983
    %9847 = vmatprep.subr.bf16.mxu0 %v7974
    %9848 = vmatpush2.bf16.msra.mxu0 %v7973
    %9849 = vmatprep.subr.bf16.mxu0 %v7964
    %9850 = vmatpush2.bf16.msra.mxu0 %v7963
    %9851 = vmatprep.mubr.bf16.mxu0 %v3980
    %9852 = vmatmul.mubr.bf16.gmra.mxu0 %v3979
    %v9853 = vpop.f32.mrf.mxu0
    %v9854 = vadd.f32 %v9813, %v9853
    %v9855 = vpop.f32.mrf.mxu0
    %v9856 = vadd.f32 %v9815, %v9855
    %v9857 = vpop.f32.mrf.mxu0
    %v9858 = vpop.f32.mrf.mxu0
    %9859 = vdwg.mxu0
    %v9860 = vmax.f32 %v9034, 0.0
    %v9861 = vmax.f32 %v9036, 0.0
    %v9862 = vmax.f32 %v9239, 0.0
    %v9863 = vmax.f32 %v9241, 0.0
    %v9864 = vmax.f32 %v9444, 0.0
    %v9865 = vmax.f32 %v9446, 0.0
    %v9866 = vmax.f32 %v9649, 0.0
    %v9867 = vmax.f32 %v9651, 0.0
    %v9868 = vmax.f32 %v9854, 0.0
    %v9869 = vmax.f32 %v9856, 0.0
    %v9870 = vpack.c.bf16 %v9860, %v9860
    %v9871 = vpack.c.bf16 %v9861, %v9861
    %v9872 = vpack.c.bf16 %v9862, %v9862
    %v9873 = vpack.c.bf16 %v9863, %v9863
    %v9874 = vpack.c.bf16 %v9864, %v9864
    %v9875 = vpack.c.bf16 %v9865, %v9865
    %v9876 = vpack.c.bf16 %v9866, %v9866
    %v9877 = vpack.c.bf16 %v9867, %v9867
    %v9878 = vpack.c.bf16 %v9868, %v9868
    %v9879 = vpack.c.bf16 %v9869, %v9869
    %v9880 = vld [vmem:[#allocation11] sm:$0xf]
    %v9881 = vld [vmem:[#allocation11 + $0x4] sm:$0xf]
    %v9882 = vld [vmem:[#allocation11 + $0x8] sm:$0xf]
    %v9883 = vld [vmem:[#allocation11 + $0xc] sm:$0xf]
    %v9884 = vld [vmem:[#allocation11 + $0x10] sm:$0xf]
    %v9885 = vld [vmem:[#allocation11 + $0x14] sm:$0xf]
    %v9886 = vld [vmem:[#allocation11 + $0x18] sm:$0xf]
    %v9887 = vld [vmem:[#allocation11 + $0x1c] sm:$0xf]
    %v9888 = vld [vmem:[#allocation11 + $0x20] sm:$0xf]
    %v9889 = vld [vmem:[#allocation11 + $0x24] sm:$0xf]
    %v9890 = vld [vmem:[#allocation11 + $0x28] sm:$0xf]
    %v9891 = vld [vmem:[#allocation11 + $0x2c] sm:$0xf]
    %v9892 = vld [vmem:[#allocation11 + $0x30] sm:$0xf]
    %v9893 = vld [vmem:[#allocation11 + $0x34] sm:$0xf]
    %v9894 = vld [vmem:[#allocation11 + $0x38] sm:$0xf]
    %v9895 = vld [vmem:[#allocation11 + $0x3c] sm:$0xf]
    %v9896 = vld [vmem:[#allocation11 + $0x40] sm:$0xf]
    %v9897 = vld [vmem:[#allocation11 + $0x44] sm:$0xf]
    %v9898 = vld [vmem:[#allocation11 + $0x48] sm:$0xf]
    %v9899 = vld [vmem:[#allocation11 + $0x4c] sm:$0xf]
    %v9900 = vld [vmem:[#allocation11 + $0x50] sm:$0xf]
    %v9901 = vld [vmem:[#allocation11 + $0x54] sm:$0xf]
    %v9902 = vld [vmem:[#allocation11 + $0x58] sm:$0xf]
    %v9903 = vld [vmem:[#allocation11 + $0x5c] sm:$0xf]
    %v9904 = vld [vmem:[#allocation11 + $0x60] sm:$0xf]
    %v9905 = vld [vmem:[#allocation11 + $0x64] sm:$0xf]
    %v9906 = vld [vmem:[#allocation11 + $0x68] sm:$0xf]
    %v9907 = vld [vmem:[#allocation11 + $0x6c] sm:$0xf]
    %v9908 = vld [vmem:[#allocation11 + $0x70] sm:$0xf]
    %v9909 = vld [vmem:[#allocation11 + $0x74] sm:$0xf]
    %v9910 = vld [vmem:[#allocation11 + $0x78] sm:$0xf]
    %v9911 = vld [vmem:[#allocation11 + $0x7c] sm:$0xf]
    %v9912 = vld [vmem:[#allocation11 + $0x80] sm:$0xf]
    %v9913 = vld [vmem:[#allocation11 + $0x84] sm:$0xf]
    %v9914 = vld [vmem:[#allocation11 + $0x88] sm:$0xf]
    %v9915 = vld [vmem:[#allocation11 + $0x8c] sm:$0xf]
    %v9916 = vld [vmem:[#allocation11 + $0x90] sm:$0xf]
    %v9917 = vld [vmem:[#allocation11 + $0x94] sm:$0xf]
    %v9918 = vld [vmem:[#allocation11 + $0x98] sm:$0xf]
    %v9919 = vld [vmem:[#allocation11 + $0x9c] sm:$0xf]
    %v9920 = vld [vmem:[#allocation11 + $0xa0] sm:$0xf]
    %v9921 = vld [vmem:[#allocation11 + $0xa4] sm:$0xf]
    %v9922 = vld [vmem:[#allocation11 + $0xa8] sm:$0xf]
    %v9923 = vld [vmem:[#allocation11 + $0xac] sm:$0xf]
    %v9924 = vld [vmem:[#allocation11 + $0xb0] sm:$0xf]
    %v9925 = vld [vmem:[#allocation11 + $0xb4] sm:$0xf]
    %v9926 = vld [vmem:[#allocation11 + $0xb8] sm:$0xf]
    %v9927 = vld [vmem:[#allocation11 + $0xbc] sm:$0xf]
    %v9928 = vld [vmem:[#allocation11 + $0xc0] sm:$0xf]
    %v9929 = vld [vmem:[#allocation11 + $0xc4] sm:$0xf]
    %v9930 = vld [vmem:[#allocation11 + $0xc8] sm:$0xf]
    %v9931 = vld [vmem:[#allocation11 + $0xcc] sm:$0xf]
    %v9932 = vld [vmem:[#allocation11 + $0xd0] sm:$0xf]
    %v9933 = vld [vmem:[#allocation11 + $0xd4] sm:$0xf]
    %v9934 = vld [vmem:[#allocation11 + $0xd8] sm:$0xf]
    %v9935 = vld [vmem:[#allocation11 + $0xdc] sm:$0xf]
    %v9936 = vld [vmem:[#allocation11 + $0xe0] sm:$0xf]
    %v9937 = vld [vmem:[#allocation11 + $0xe4] sm:$0xf]
    %v9938 = vld [vmem:[#allocation11 + $0xe8] sm:$0xf]
    %v9939 = vld [vmem:[#allocation11 + $0xec] sm:$0xf]
    %v9940 = vld [vmem:[#allocation11 + $0xf0] sm:$0xf]
    %v9941 = vld [vmem:[#allocation11 + $0xf4] sm:$0xf]
    %v9942 = vld [vmem:[#allocation11 + $0xf8] sm:$0xf]
    %v9943 = vld [vmem:[#allocation11 + $0xfc] sm:$0xf]
    %v9944 = vld [vmem:[#allocation11 + $0x100] sm:$0xf]
    %v9945 = vld [vmem:[#allocation11 + $0x104] sm:$0xf]
    %v9946 = vld [vmem:[#allocation11 + $0x108] sm:$0xf]
    %v9947 = vld [vmem:[#allocation11 + $0x10c] sm:$0xf]
    %v9948 = vld [vmem:[#allocation11 + $0x110] sm:$0xf]
    %v9949 = vld [vmem:[#allocation11 + $0x114] sm:$0xf]
    %v9950 = vld [vmem:[#allocation11 + $0x118] sm:$0xf]
    %v9951 = vld [vmem:[#allocation11 + $0x11c] sm:$0xf]
    %v9952 = vld [vmem:[#allocation11 + $0x120] sm:$0xf]
    %v9953 = vld [vmem:[#allocation11 + $0x124] sm:$0xf]
    %v9954 = vld [vmem:[#allocation11 + $0x128] sm:$0xf]
    %v9955 = vld [vmem:[#allocation11 + $0x12c] sm:$0xf]
    %v9956 = vld [vmem:[#allocation11 + $0x130] sm:$0xf]
    %v9957 = vld [vmem:[#allocation11 + $0x134] sm:$0xf]
    %v9958 = vld [vmem:[#allocation11 + $0x138] sm:$0xf]
    %v9959 = vld [vmem:[#allocation11 + $0x13c] sm:$0xf]
    %v9960 = vld [vmem:[#allocation11 + $0x140] sm:$0xf]
    %v9961 = vld [vmem:[#allocation11 + $0x144] sm:$0xf]
    %v9962 = vld [vmem:[#allocation11 + $0x148] sm:$0xf]
    %v9963 = vld [vmem:[#allocation11 + $0x14c] sm:$0xf]
    %v9964 = vld [vmem:[#allocation11 + $0x150] sm:$0xf]
    %v9965 = vld [vmem:[#allocation11 + $0x154] sm:$0xf]
    %v9966 = vld [vmem:[#allocation11 + $0x158] sm:$0xf]
    %v9967 = vld [vmem:[#allocation11 + $0x15c] sm:$0xf]
    %v9968 = vld [vmem:[#allocation11 + $0x160] sm:$0xf]
    %v9969 = vld [vmem:[#allocation11 + $0x164] sm:$0xf]
    %v9970 = vld [vmem:[#allocation11 + $0x168] sm:$0xf]
    %v9971 = vld [vmem:[#allocation11 + $0x16c] sm:$0xf]
    %v9972 = vld [vmem:[#allocation11 + $0x170] sm:$0xf]
    %v9973 = vld [vmem:[#allocation11 + $0x174] sm:$0xf]
    %v9974 = vld [vmem:[#allocation11 + $0x178] sm:$0xf]
    %v9975 = vld [vmem:[#allocation11 + $0x17c] sm:$0xf]
    %v9976 = vld [vmem:[#allocation11 + $0x180] sm:$0xf]
    %v9977 = vld [vmem:[#allocation11 + $0x184] sm:$0xf]
    %v9978 = vld [vmem:[#allocation11 + $0x188] sm:$0xf]
    %v9979 = vld [vmem:[#allocation11 + $0x18c] sm:$0xf]
    %v9980 = vld [vmem:[#allocation11 + $0x190] sm:$0xf]
    %v9981 = vld [vmem:[#allocation11 + $0x194] sm:$0xf]
    %v9982 = vld [vmem:[#allocation11 + $0x198] sm:$0xf]
    %v9983 = vld [vmem:[#allocation11 + $0x19c] sm:$0xf]
    %v9984 = vld [vmem:[#allocation11 + $0x1a0] sm:$0xf]
    %v9985 = vld [vmem:[#allocation11 + $0x1a4] sm:$0xf]
    %v9986 = vld [vmem:[#allocation11 + $0x1a8] sm:$0xf]
    %v9987 = vld [vmem:[#allocation11 + $0x1ac] sm:$0xf]
    %v9988 = vld [vmem:[#allocation11 + $0x1b0] sm:$0xf]
    %v9989 = vld [vmem:[#allocation11 + $0x1b4] sm:$0xf]
    %v9990 = vld [vmem:[#allocation11 + $0x1b8] sm:$0xf]
    %v9991 = vld [vmem:[#allocation11 + $0x1bc] sm:$0xf]
    %v9992 = vld [vmem:[#allocation11 + $0x1c0] sm:$0xf]
    %v9993 = vld [vmem:[#allocation11 + $0x1c4] sm:$0xf]
    %v9994 = vld [vmem:[#allocation11 + $0x1c8] sm:$0xf]
    %v9995 = vld [vmem:[#allocation11 + $0x1cc] sm:$0xf]
    %v9996 = vld [vmem:[#allocation11 + $0x1d0] sm:$0xf]
    %v9997 = vld [vmem:[#allocation11 + $0x1d4] sm:$0xf]
    %v9998 = vld [vmem:[#allocation11 + $0x1d8] sm:$0xf]
    %v9999 = vld [vmem:[#allocation11 + $0x1dc] sm:$0xf]
    %v10000 = vld [vmem:[#allocation11 + $0x1e0] sm:$0xf]
    %v10001 = vld [vmem:[#allocation11 + $0x1e4] sm:$0xf]
    %v10002 = vld [vmem:[#allocation11 + $0x1e8] sm:$0xf]
    %v10003 = vld [vmem:[#allocation11 + $0x1ec] sm:$0xf]
    %v10004 = vld [vmem:[#allocation11 + $0x1f0] sm:$0xf]
    %v10005 = vld [vmem:[#allocation11 + $0x1f4] sm:$0xf]
    %v10006 = vld [vmem:[#allocation11 + $0x1f8] sm:$0xf]
    %v10007 = vld [vmem:[#allocation11 + $0x1fc] sm:$0xf]
    %v10008 = vld [vmem:[#allocation11 + $0x200] sm:$0xf]
    %v10009 = vld [vmem:[#allocation11 + $0x204] sm:$0xf]
    %v10010 = vld [vmem:[#allocation11 + $0x208] sm:$0xf]
    %v10011 = vld [vmem:[#allocation11 + $0x20c] sm:$0xf]
    %v10012 = vld [vmem:[#allocation11 + $0x210] sm:$0xf]
    %v10013 = vld [vmem:[#allocation11 + $0x214] sm:$0xf]
    %v10014 = vld [vmem:[#allocation11 + $0x218] sm:$0xf]
    %v10015 = vld [vmem:[#allocation11 + $0x21c] sm:$0xf]
    %v10016 = vld [vmem:[#allocation11 + $0x220] sm:$0xf]
    %v10017 = vld [vmem:[#allocation11 + $0x224] sm:$0xf]
    %v10018 = vld [vmem:[#allocation11 + $0x228] sm:$0xf]
    %v10019 = vld [vmem:[#allocation11 + $0x22c] sm:$0xf]
    %v10020 = vld [vmem:[#allocation11 + $0x230] sm:$0xf]
    %v10021 = vld [vmem:[#allocation11 + $0x234] sm:$0xf]
    %v10022 = vld [vmem:[#allocation11 + $0x238] sm:$0xf]
    %v10023 = vld [vmem:[#allocation11 + $0x23c] sm:$0xf]
    %v10024 = vld [vmem:[#allocation11 + $0x240] sm:$0xf]
    %v10025 = vld [vmem:[#allocation11 + $0x244] sm:$0xf]
    %v10026 = vld [vmem:[#allocation11 + $0x248] sm:$0xf]
    %v10027 = vld [vmem:[#allocation11 + $0x24c] sm:$0xf]
    %v10028 = vld [vmem:[#allocation11 + $0x250] sm:$0xf]
    %v10029 = vld [vmem:[#allocation11 + $0x254] sm:$0xf]
    %v10030 = vld [vmem:[#allocation11 + $0x258] sm:$0xf]
    %v10031 = vld [vmem:[#allocation11 + $0x25c] sm:$0xf]
    %v10032 = vld [vmem:[#allocation11 + $0x260] sm:$0xf]
    %v10033 = vld [vmem:[#allocation11 + $0x264] sm:$0xf]
    %v10034 = vld [vmem:[#allocation11 + $0x268] sm:$0xf]
    %v10035 = vld [vmem:[#allocation11 + $0x26c] sm:$0xf]
    %v10036 = vld [vmem:[#allocation11 + $0x270] sm:$0xf]
    %v10037 = vld [vmem:[#allocation11 + $0x274] sm:$0xf]
    %v10038 = vld [vmem:[#allocation11 + $0x278] sm:$0xf]
    %v10039 = vld [vmem:[#allocation11 + $0x27c] sm:$0xf]
    %v10040 = vld [vmem:[#allocation13] sm:$0x1]
    %v10042 = vlaneseq
    %v10043 = vshrl.u32 %v10042, 7
    %v10044 = vsub.s32 0, %v10043
    %v10045 = vrot.slane %v10040, %v10044
    %v10207 = vunpack.c.l.b16 %v9880
    %v10208 = vunpack.c.l.b16 %v9881
    %v10209 = vunpack.c.l.b16 %v9882
    %v10210 = vunpack.c.l.b16 %v9883
    %v10211 = vunpack.c.l.b16 %v9884
    %v10212 = vunpack.c.l.b16 %v9885
    %v10213 = vunpack.c.l.b16 %v9886
    %v10214 = vunpack.c.l.b16 %v9887
    %v10215 = vunpack.c.l.b16 %v9888
    %v10216 = vunpack.c.l.b16 %v9889
    %v10217 = vunpack.c.l.b16 %v9890
    %v10218 = vunpack.c.l.b16 %v9891
    %v10219 = vunpack.c.l.b16 %v9892
    %v10220 = vunpack.c.l.b16 %v9893
    %v10221 = vunpack.c.l.b16 %v9894
    %v10222 = vunpack.c.l.b16 %v9895
    %v10223 = vunpack.c.l.b16 %v9896
    %v10224 = vunpack.c.l.b16 %v9897
    %v10225 = vunpack.c.l.b16 %v9898
    %v10226 = vunpack.c.l.b16 %v9899
    %v10227 = vunpack.c.l.b16 %v9900
    %v10228 = vunpack.c.l.b16 %v9901
    %v10229 = vunpack.c.l.b16 %v9902
    %v10230 = vunpack.c.l.b16 %v9903
    %v10231 = vunpack.c.l.b16 %v9904
    %v10232 = vunpack.c.l.b16 %v9905
    %v10233 = vunpack.c.l.b16 %v9906
    %v10234 = vunpack.c.l.b16 %v9907
    %v10235 = vunpack.c.l.b16 %v9908
    %v10236 = vunpack.c.l.b16 %v9909
    %v10237 = vunpack.c.l.b16 %v9910
    %v10238 = vunpack.c.l.b16 %v9911
    %v10239 = vunpack.c.l.b16 %v9912
    %v10240 = vunpack.c.l.b16 %v9913
    %v10241 = vunpack.c.l.b16 %v9914
    %v10242 = vunpack.c.l.b16 %v9915
    %v10243 = vunpack.c.l.b16 %v9916
    %v10244 = vunpack.c.l.b16 %v9917
    %v10245 = vunpack.c.l.b16 %v9918
    %v10246 = vunpack.c.l.b16 %v9919
    %v10247 = vunpack.c.l.b16 %v9920
    %v10248 = vunpack.c.l.b16 %v9921
    %v10249 = vunpack.c.l.b16 %v9922
    %v10250 = vunpack.c.l.b16 %v9923
    %v10251 = vunpack.c.l.b16 %v9924
    %v10252 = vunpack.c.l.b16 %v9925
    %v10253 = vunpack.c.l.b16 %v9926
    %v10254 = vunpack.c.l.b16 %v9927
    %v10255 = vunpack.c.l.b16 %v9928
    %v10256 = vunpack.c.l.b16 %v9929
    %v10257 = vunpack.c.l.b16 %v9930
    %v10258 = vunpack.c.l.b16 %v9931
    %v10259 = vunpack.c.l.b16 %v9932
    %v10260 = vunpack.c.l.b16 %v9933
    %v10261 = vunpack.c.l.b16 %v9934
    %v10262 = vunpack.c.l.b16 %v9935
    %v10263 = vunpack.c.l.b16 %v9936
    %v10264 = vunpack.c.l.b16 %v9937
    %v10265 = vunpack.c.l.b16 %v9938
    %v10266 = vunpack.c.l.b16 %v9939
    %v10267 = vunpack.c.l.b16 %v9940
    %v10268 = vunpack.c.l.b16 %v9941
    %v10269 = vunpack.c.l.b16 %v9942
    %v10270 = vunpack.c.l.b16 %v9943
    %v10271 = vunpack.c.l.b16 %v9944
    %v10272 = vunpack.c.l.b16 %v9945
    %v10273 = vunpack.c.l.b16 %v9946
    %v10274 = vunpack.c.l.b16 %v9947
    %v10275 = vunpack.c.l.b16 %v9948
    %v10276 = vunpack.c.l.b16 %v9949
    %v10277 = vunpack.c.l.b16 %v9950
    %v10278 = vunpack.c.l.b16 %v9951
    %v10279 = vunpack.c.l.b16 %v9952
    %v10280 = vunpack.c.l.b16 %v9953
    %v10281 = vunpack.c.l.b16 %v9954
    %v10282 = vunpack.c.l.b16 %v9955
    %v10283 = vunpack.c.l.b16 %v9956
    %v10284 = vunpack.c.l.b16 %v9957
    %v10285 = vunpack.c.l.b16 %v9958
    %v10286 = vunpack.c.l.b16 %v9959
    %v10287 = vunpack.c.l.b16 %v9960
    %v10288 = vunpack.c.l.b16 %v9961
    %v10289 = vunpack.c.l.b16 %v9962
    %v10290 = vunpack.c.l.b16 %v9963
    %v10291 = vunpack.c.l.b16 %v9964
    %v10292 = vunpack.c.l.b16 %v9965
    %v10293 = vunpack.c.l.b16 %v9966
    %v10294 = vunpack.c.l.b16 %v9967
    %v10295 = vunpack.c.l.b16 %v9968
    %v10296 = vunpack.c.l.b16 %v9969
    %v10297 = vunpack.c.l.b16 %v9970
    %v10298 = vunpack.c.l.b16 %v9971
    %v10299 = vunpack.c.l.b16 %v9972
    %v10300 = vunpack.c.l.b16 %v9973
    %v10301 = vunpack.c.l.b16 %v9974
    %v10302 = vunpack.c.l.b16 %v9975
    %v10303 = vunpack.c.l.b16 %v9976
    %v10304 = vunpack.c.l.b16 %v9977
    %v10305 = vunpack.c.l.b16 %v9978
    %v10306 = vunpack.c.l.b16 %v9979
    %v10307 = vunpack.c.l.b16 %v9980
    %v10308 = vunpack.c.l.b16 %v9981
    %v10309 = vunpack.c.l.b16 %v9982
    %v10310 = vunpack.c.l.b16 %v9983
    %v10311 = vunpack.c.l.b16 %v9984
    %v10312 = vunpack.c.l.b16 %v9985
    %v10313 = vunpack.c.l.b16 %v9986
    %v10314 = vunpack.c.l.b16 %v9987
    %v10315 = vunpack.c.l.b16 %v9988
    %v10316 = vunpack.c.l.b16 %v9989
    %v10317 = vunpack.c.l.b16 %v9990
    %v10318 = vunpack.c.l.b16 %v9991
    %v10319 = vunpack.c.l.b16 %v9992
    %v10320 = vunpack.c.l.b16 %v9993
    %v10321 = vunpack.c.l.b16 %v9994
    %v10322 = vunpack.c.l.b16 %v9995
    %v10323 = vunpack.c.l.b16 %v9996
    %v10324 = vunpack.c.l.b16 %v9997
    %v10325 = vunpack.c.l.b16 %v9998
    %v10326 = vunpack.c.l.b16 %v9999
    %v10327 = vunpack.c.l.b16 %v10000
    %v10328 = vunpack.c.l.b16 %v10001
    %v10329 = vunpack.c.l.b16 %v10002
    %v10330 = vunpack.c.l.b16 %v10003
    %v10331 = vunpack.c.l.b16 %v10004
    %v10332 = vunpack.c.l.b16 %v10005
    %v10333 = vunpack.c.l.b16 %v10006
    %v10334 = vunpack.c.l.b16 %v10007
    %v10335 = vunpack.c.l.b16 %v10008
    %v10336 = vunpack.c.l.b16 %v10009
    %v10337 = vunpack.c.l.b16 %v10010
    %v10338 = vunpack.c.l.b16 %v10011
    %v10339 = vunpack.c.l.b16 %v10012
    %v10340 = vunpack.c.l.b16 %v10013
    %v10341 = vunpack.c.l.b16 %v10014
    %v10342 = vunpack.c.l.b16 %v10015
    %v10343 = vunpack.c.l.b16 %v10016
    %v10344 = vunpack.c.l.b16 %v10017
    %v10345 = vunpack.c.l.b16 %v10018
    %v10346 = vunpack.c.l.b16 %v10019
    %v10347 = vunpack.c.l.b16 %v10020
    %v10348 = vunpack.c.l.b16 %v10021
    %v10349 = vunpack.c.l.b16 %v10022
    %v10350 = vunpack.c.l.b16 %v10023
    %v10351 = vunpack.c.l.b16 %v10024
    %v10352 = vunpack.c.l.b16 %v10025
    %v10353 = vunpack.c.l.b16 %v10026
    %v10354 = vunpack.c.l.b16 %v10027
    %v10355 = vunpack.c.l.b16 %v10028
    %v10356 = vunpack.c.l.b16 %v10029
    %v10357 = vunpack.c.l.b16 %v10030
    %v10358 = vunpack.c.l.b16 %v10031
    %v10359 = vunpack.c.l.b16 %v10032
    %v10360 = vunpack.c.l.b16 %v10033
    %v10361 = vunpack.c.l.b16 %v10034
    %v10362 = vunpack.c.l.b16 %v10035
    %v10363 = vunpack.c.l.b16 %v10036
    %v10364 = vunpack.c.l.b16 %v10037
    %v10365 = vunpack.c.l.b16 %v10038
    %v10366 = vunpack.c.l.b16 %v10039
    %v10367 = vpack.c.b16 %v10208, %v10207
    %v10368 = vpack.c.b16 %v10210, %v10209
    %v10369 = vpack.c.b16 %v10212, %v10211
    %v10370 = vpack.c.b16 %v10214, %v10213
    %v10371 = vpack.c.b16 %v10216, %v10215
    %v10372 = vpack.c.b16 %v10218, %v10217
    %v10373 = vpack.c.b16 %v10220, %v10219
    %v10374 = vpack.c.b16 %v10222, %v10221
    %v10375 = vpack.c.b16 %v10224, %v10223
    %v10376 = vpack.c.b16 %v10226, %v10225
    %v10377 = vpack.c.b16 %v10228, %v10227
    %v10378 = vpack.c.b16 %v10230, %v10229
    %v10379 = vpack.c.b16 %v10232, %v10231
    %v10380 = vpack.c.b16 %v10234, %v10233
    %v10381 = vpack.c.b16 %v10236, %v10235
    %v10382 = vpack.c.b16 %v10238, %v10237
    %v10383 = vpack.c.b16 %v10240, %v10239
    %v10384 = vpack.c.b16 %v10242, %v10241
    %v10385 = vpack.c.b16 %v10244, %v10243
    %v10386 = vpack.c.b16 %v10246, %v10245
    %v10387 = vpack.c.b16 %v10248, %v10247
    %v10388 = vpack.c.b16 %v10250, %v10249
    %v10389 = vpack.c.b16 %v10252, %v10251
    %v10390 = vpack.c.b16 %v10254, %v10253
    %v10391 = vpack.c.b16 %v10256, %v10255
    %v10392 = vpack.c.b16 %v10258, %v10257
    %v10393 = vpack.c.b16 %v10260, %v10259
    %v10394 = vpack.c.b16 %v10262, %v10261
    %v10395 = vpack.c.b16 %v10264, %v10263
    %v10396 = vpack.c.b16 %v10266, %v10265
    %v10397 = vpack.c.b16 %v10268, %v10267
    %v10398 = vpack.c.b16 %v10270, %v10269
    %v10399 = vpack.c.b16 %v10272, %v10271
    %v10400 = vpack.c.b16 %v10274, %v10273
    %v10401 = vpack.c.b16 %v10276, %v10275
    %v10402 = vpack.c.b16 %v10278, %v10277
    %v10403 = vpack.c.b16 %v10280, %v10279
    %v10404 = vpack.c.b16 %v10282, %v10281
    %v10405 = vpack.c.b16 %v10284, %v10283
    %v10406 = vpack.c.b16 %v10286, %v10285
    %v10407 = vpack.c.b16 %v10288, %v10287
    %v10408 = vpack.c.b16 %v10290, %v10289
    %v10409 = vpack.c.b16 %v10292, %v10291
    %v10410 = vpack.c.b16 %v10294, %v10293
    %v10411 = vpack.c.b16 %v10296, %v10295
    %v10412 = vpack.c.b16 %v10298, %v10297
    %v10413 = vpack.c.b16 %v10300, %v10299
    %v10414 = vpack.c.b16 %v10302, %v10301
    %v10415 = vpack.c.b16 %v10304, %v10303
    %v10416 = vpack.c.b16 %v10306, %v10305
    %v10417 = vpack.c.b16 %v10308, %v10307
    %v10418 = vpack.c.b16 %v10310, %v10309
    %v10419 = vpack.c.b16 %v10312, %v10311
    %v10420 = vpack.c.b16 %v10314, %v10313
    %v10421 = vpack.c.b16 %v10316, %v10315
    %v10422 = vpack.c.b16 %v10318, %v10317
    %v10423 = vpack.c.b16 %v10320, %v10319
    %v10424 = vpack.c.b16 %v10322, %v10321
    %v10425 = vpack.c.b16 %v10324, %v10323
    %v10426 = vpack.c.b16 %v10326, %v10325
    %v10427 = vpack.c.b16 %v10328, %v10327
    %v10428 = vpack.c.b16 %v10330, %v10329
    %v10429 = vpack.c.b16 %v10332, %v10331
    %v10430 = vpack.c.b16 %v10334, %v10333
    %v10431 = vpack.c.b16 %v10336, %v10335
    %v10432 = vpack.c.b16 %v10338, %v10337
    %v10433 = vpack.c.b16 %v10340, %v10339
    %v10434 = vpack.c.b16 %v10342, %v10341
    %v10435 = vpack.c.b16 %v10344, %v10343
    %v10436 = vpack.c.b16 %v10346, %v10345
    %v10437 = vpack.c.b16 %v10348, %v10347
    %v10438 = vpack.c.b16 %v10350, %v10349
    %v10439 = vpack.c.b16 %v10352, %v10351
    %v10440 = vpack.c.b16 %v10354, %v10353
    %v10441 = vpack.c.b16 %v10356, %v10355
    %v10442 = vpack.c.b16 %v10358, %v10357
    %v10443 = vpack.c.b16 %v10360, %v10359
    %v10444 = vpack.c.b16 %v10362, %v10361
    %v10445 = vpack.c.b16 %v10364, %v10363
    %v10446 = vpack.c.b16 %v10366, %v10365
    %10527 = vmatprep.subr.bf16.mxu0 0
    %10528 = vmatpush1.bf16.msra.mxu0 %v10374
    %10529 = vmatprep.subr.bf16.mxu0 0
    %10530 = vmatpush1.bf16.msra.mxu0 %v10373
    %10531 = vmatprep.subr.bf16.mxu0 0
    %10532 = vmatpush1.bf16.msra.mxu0 %v10372
    %10533 = vmatprep.subr.bf16.mxu0 0
    %10534 = vmatpush1.bf16.msra.mxu0 %v10371
    %10535 = vmatprep.subr.bf16.mxu0 0
    %10536 = vmatpush1.bf16.msra.mxu0 %v10370
    %10537 = vmatprep.subr.bf16.mxu0 0
    %10538 = vmatpush1.bf16.msra.mxu0 %v10369
    %10539 = vmatprep.subr.bf16.mxu0 0
    %10540 = vmatpush1.bf16.msra.mxu0 %v10368
    %10541 = vmatprep.subr.bf16.mxu0 0
    %10542 = vmatpush1.bf16.msra.mxu0 %v10367
    %10543 = vmatprep.subr.bf16.mxu0 0
    %10544 = vmatpush2.bf16.msra.mxu0 %v10382
    %10545 = vmatprep.subr.bf16.mxu0 0
    %10546 = vmatpush2.bf16.msra.mxu0 %v10381
    %10547 = vmatprep.subr.bf16.mxu0 0
    %10548 = vmatpush2.bf16.msra.mxu0 %v10380
    %10549 = vmatprep.subr.bf16.mxu0 0
    %10550 = vmatpush2.bf16.msra.mxu0 %v10379
    %10551 = vmatprep.subr.bf16.mxu0 0
    %10552 = vmatpush2.bf16.msra.mxu0 %v10378
    %10553 = vmatprep.subr.bf16.mxu0 0
    %10554 = vmatpush2.bf16.msra.mxu0 %v10377
    %10555 = vmatprep.subr.bf16.mxu0 0
    %10556 = vmatpush2.bf16.msra.mxu0 %v10376
    %10557 = vmatprep.subr.bf16.mxu0 0
    %10558 = vmatpush2.bf16.msra.mxu0 %v10375
    %10559 = vmatprep.mubr.bf16.mxu0 %v9871
    %10560 = vmatmul.mubr.bf16.gmra.mxu0 %v9870
    %v10561 = vpop.f32.mrf.mxu0
    %v10562 = vadd.f32 %v10045, %v10561
    %v10563 = vpop.f32.mrf.mxu0
    %v10564 = vpop.f32.mrf.mxu0
    %v10565 = vpop.f32.mrf.mxu0
    %10566 = vdwg.mxu0
    %10567 = vmatprep.subr.bf16.mxu0 0
    %10568 = vmatpush1.bf16.msra.mxu0 %v10390
    %10569 = vmatprep.subr.bf16.mxu0 0
    %10570 = vmatpush1.bf16.msra.mxu0 %v10389
    %10571 = vmatprep.subr.bf16.mxu0 0
    %10572 = vmatpush1.bf16.msra.mxu0 %v10388
    %10573 = vmatprep.subr.bf16.mxu0 0
    %10574 = vmatpush1.bf16.msra.mxu0 %v10387
    %10575 = vmatprep.subr.bf16.mxu0 0
    %10576 = vmatpush1.bf16.msra.mxu0 %v10386
    %10577 = vmatprep.subr.bf16.mxu0 0
    %10578 = vmatpush1.bf16.msra.mxu0 %v10385
    %10579 = vmatprep.subr.bf16.mxu0 0
    %10580 = vmatpush1.bf16.msra.mxu0 %v10384
    %10581 = vmatprep.subr.bf16.mxu0 0
    %10582 = vmatpush1.bf16.msra.mxu0 %v10383
    %10583 = vmatprep.subr.bf16.mxu0 0
    %10584 = vmatpush2.bf16.msra.mxu0 %v10398
    %10585 = vmatprep.subr.bf16.mxu0 0
    %10586 = vmatpush2.bf16.msra.mxu0 %v10397
    %10587 = vmatprep.subr.bf16.mxu0 0
    %10588 = vmatpush2.bf16.msra.mxu0 %v10396
    %10589 = vmatprep.subr.bf16.mxu0 0
    %10590 = vmatpush2.bf16.msra.mxu0 %v10395
    %10591 = vmatprep.subr.bf16.mxu0 0
    %10592 = vmatpush2.bf16.msra.mxu0 %v10394
    %10593 = vmatprep.subr.bf16.mxu0 0
    %10594 = vmatpush2.bf16.msra.mxu0 %v10393
    %10595 = vmatprep.subr.bf16.mxu0 0
    %10596 = vmatpush2.bf16.msra.mxu0 %v10392
    %10597 = vmatprep.subr.bf16.mxu0 0
    %10598 = vmatpush2.bf16.msra.mxu0 %v10391
    %10599 = vmatprep.mubr.bf16.mxu0 %v9873
    %10600 = vmatmul.mubr.bf16.gmra.mxu0 %v9872
    %v10601 = vpop.f32.mrf.mxu0
    %v10602 = vadd.f32 %v10562, %v10601
    %v10603 = vpop.f32.mrf.mxu0
    %v10604 = vpop.f32.mrf.mxu0
    %v10605 = vpop.f32.mrf.mxu0
    %10606 = vdwg.mxu0
    %10607 = vmatprep.subr.bf16.mxu0 0
    %10608 = vmatpush1.bf16.msra.mxu0 %v10406
    %10609 = vmatprep.subr.bf16.mxu0 0
    %10610 = vmatpush1.bf16.msra.mxu0 %v10405
    %10611 = vmatprep.subr.bf16.mxu0 0
    %10612 = vmatpush1.bf16.msra.mxu0 %v10404
    %10613 = vmatprep.subr.bf16.mxu0 0
    %10614 = vmatpush1.bf16.msra.mxu0 %v10403
    %10615 = vmatprep.subr.bf16.mxu0 0
    %10616 = vmatpush1.bf16.msra.mxu0 %v10402
    %10617 = vmatprep.subr.bf16.mxu0 0
    %10618 = vmatpush1.bf16.msra.mxu0 %v10401
    %10619 = vmatprep.subr.bf16.mxu0 0
    %10620 = vmatpush1.bf16.msra.mxu0 %v10400
    %10621 = vmatprep.subr.bf16.mxu0 0
    %10622 = vmatpush1.bf16.msra.mxu0 %v10399
    %10623 = vmatprep.subr.bf16.mxu0 0
    %10624 = vmatpush2.bf16.msra.mxu0 %v10414
    %10625 = vmatprep.subr.bf16.mxu0 0
    %10626 = vmatpush2.bf16.msra.mxu0 %v10413
    %10627 = vmatprep.subr.bf16.mxu0 0
    %10628 = vmatpush2.bf16.msra.mxu0 %v10412
    %10629 = vmatprep.subr.bf16.mxu0 0
    %10630 = vmatpush2.bf16.msra.mxu0 %v10411
    %10631 = vmatprep.subr.bf16.mxu0 0
    %10632 = vmatpush2.bf16.msra.mxu0 %v10410
    %10633 = vmatprep.subr.bf16.mxu0 0
    %10634 = vmatpush2.bf16.msra.mxu0 %v10409
    %10635 = vmatprep.subr.bf16.mxu0 0
    %10636 = vmatpush2.bf16.msra.mxu0 %v10408
    %10637 = vmatprep.subr.bf16.mxu0 0
    %10638 = vmatpush2.bf16.msra.mxu0 %v10407
    %10639 = vmatprep.mubr.bf16.mxu0 %v9875
    %10640 = vmatmul.mubr.bf16.gmra.mxu0 %v9874
    %v10641 = vpop.f32.mrf.mxu0
    %v10642 = vadd.f32 %v10602, %v10641
    %v10643 = vpop.f32.mrf.mxu0
    %v10644 = vpop.f32.mrf.mxu0
    %v10645 = vpop.f32.mrf.mxu0
    %10646 = vdwg.mxu0
    %10647 = vmatprep.subr.bf16.mxu0 0
    %10648 = vmatpush1.bf16.msra.mxu0 %v10422
    %10649 = vmatprep.subr.bf16.mxu0 0
    %10650 = vmatpush1.bf16.msra.mxu0 %v10421
    %10651 = vmatprep.subr.bf16.mxu0 0
    %10652 = vmatpush1.bf16.msra.mxu0 %v10420
    %10653 = vmatprep.subr.bf16.mxu0 0
    %10654 = vmatpush1.bf16.msra.mxu0 %v10419
    %10655 = vmatprep.subr.bf16.mxu0 0
    %10656 = vmatpush1.bf16.msra.mxu0 %v10418
    %10657 = vmatprep.subr.bf16.mxu0 0
    %10658 = vmatpush1.bf16.msra.mxu0 %v10417
    %10659 = vmatprep.subr.bf16.mxu0 0
    %10660 = vmatpush1.bf16.msra.mxu0 %v10416
    %10661 = vmatprep.subr.bf16.mxu0 0
    %10662 = vmatpush1.bf16.msra.mxu0 %v10415
    %10663 = vmatprep.subr.bf16.mxu0 0
    %10664 = vmatpush2.bf16.msra.mxu0 %v10430
    %10665 = vmatprep.subr.bf16.mxu0 0
    %10666 = vmatpush2.bf16.msra.mxu0 %v10429
    %10667 = vmatprep.subr.bf16.mxu0 0
    %10668 = vmatpush2.bf16.msra.mxu0 %v10428
    %10669 = vmatprep.subr.bf16.mxu0 0
    %10670 = vmatpush2.bf16.msra.mxu0 %v10427
    %10671 = vmatprep.subr.bf16.mxu0 0
    %10672 = vmatpush2.bf16.msra.mxu0 %v10426
    %10673 = vmatprep.subr.bf16.mxu0 0
    %10674 = vmatpush2.bf16.msra.mxu0 %v10425
    %10675 = vmatprep.subr.bf16.mxu0 0
    %10676 = vmatpush2.bf16.msra.mxu0 %v10424
    %10677 = vmatprep.subr.bf16.mxu0 0
    %10678 = vmatpush2.bf16.msra.mxu0 %v10423
    %10679 = vmatprep.mubr.bf16.mxu0 %v9877
    %10680 = vmatmul.mubr.bf16.gmra.mxu0 %v9876
    %v10681 = vpop.f32.mrf.mxu0
    %v10682 = vadd.f32 %v10642, %v10681
    %v10683 = vpop.f32.mrf.mxu0
    %v10684 = vpop.f32.mrf.mxu0
    %v10685 = vpop.f32.mrf.mxu0
    %10686 = vdwg.mxu0
    %10687 = vmatprep.subr.bf16.mxu0 0
    %10688 = vmatpush1.bf16.msra.mxu0 %v10438
    %10689 = vmatprep.subr.bf16.mxu0 0
    %10690 = vmatpush1.bf16.msra.mxu0 %v10437
    %10691 = vmatprep.subr.bf16.mxu0 0
    %10692 = vmatpush1.bf16.msra.mxu0 %v10436
    %10693 = vmatprep.subr.bf16.mxu0 0
    %10694 = vmatpush1.bf16.msra.mxu0 %v10435
    %10695 = vmatprep.subr.bf16.mxu0 0
    %10696 = vmatpush1.bf16.msra.mxu0 %v10434
    %10697 = vmatprep.subr.bf16.mxu0 0
    %10698 = vmatpush1.bf16.msra.mxu0 %v10433
    %10699 = vmatprep.subr.bf16.mxu0 0
    %10700 = vmatpush1.bf16.msra.mxu0 %v10432
    %10701 = vmatprep.subr.bf16.mxu0 0
    %10702 = vmatpush1.bf16.msra.mxu0 %v10431
    %10703 = vmatprep.subr.bf16.mxu0 0
    %10704 = vmatpush2.bf16.msra.mxu0 %v10446
    %10705 = vmatprep.subr.bf16.mxu0 0
    %10706 = vmatpush2.bf16.msra.mxu0 %v10445
    %10707 = vmatprep.subr.bf16.mxu0 0
    %10708 = vmatpush2.bf16.msra.mxu0 %v10444
    %10709 = vmatprep.subr.bf16.mxu0 0
    %10710 = vmatpush2.bf16.msra.mxu0 %v10443
    %10711 = vmatprep.subr.bf16.mxu0 0
    %10712 = vmatpush2.bf16.msra.mxu0 %v10442
    %10713 = vmatprep.subr.bf16.mxu0 0
    %10714 = vmatpush2.bf16.msra.mxu0 %v10441
    %10715 = vmatprep.subr.bf16.mxu0 0
    %10716 = vmatpush2.bf16.msra.mxu0 %v10440
    %10717 = vmatprep.subr.bf16.mxu0 0
    %10718 = vmatpush2.bf16.msra.mxu0 %v10439
    %10719 = vmatprep.mubr.bf16.mxu0 %v9879
    %10720 = vmatmul.mubr.bf16.gmra.mxu0 %v9878
    %v10721 = vpop.f32.mrf.mxu0
    %v10722 = vadd.f32 %v10682, %v10721
    %v10723 = vpop.f32.mrf.mxu0
    %v10724 = vpop.f32.mrf.mxu0
    %v10725 = vpop.f32.mrf.mxu0
    %10726 = vdwg.mxu0
    %10727 = vst [vmem:[#allocation14] sm:$0xff] %v10722
    // Predicated region
    $region58: #{tpu_custom_call.1} parent=1 // pred_check
      _
    $region59: #{tpu_custom_call.1} parent=1 // pred_check_branch
      %10729 = sbr.rel (0) target = $region61
    $region60: #{tpu_custom_call.1} parent=1 // pred_region
      %s10731 = ssub.s32 128, 128
      %10732 = vsyncadd [#allocation4], %s10731
      %s10734 = sshll.u32 [#allocation14], 4
      %s10735 = int_to_ptr.vmem [resolvable:$true] %s10734
      %10737 = dma.vmem_to_hbm [thread:$0]  %s10735, 128, %s7, [#allocation4]
    $region61: #{tpu_custom_call.1} parent=1 // pred_fallthru
      _
    // Predicated region
    $region62: #{tpu_custom_call.1} parent=1 // pred_check
      _
    $region63: #{tpu_custom_call.1} parent=1 // pred_check_branch
      %10739 = sbr.rel (0) target = $region65
    $region64: #{tpu_custom_call.1} parent=1 // pred_region
      %10740 = dma.done [#allocation4], 128
    $region65: #{tpu_custom_call.1} parent=1 // pred_fallthru
      _
    %10741 = vsyncpa [#allocation3], 1
    %10742 = vsyncpa [#allocation6], 1
    %10743 = vsyncpa [#allocation9], 1
    %10744 = vsyncpa [#allocation12], 1
    %10745 = vsyncpa [#allocation4], 1

</llo_original>
